<compile_context>
chip_gen: v5e
topology: v5e:2x2
jax: 0.10.0
libtpu: 0.0.40
codegen_flags: <defaults>
</compile_context>

<pallas_src>
import functools

import jax
import jax.numpy as jnp
from jax import lax
from jax.experimental import pallas as pl
from jax.experimental.pallas import tpu as pltpu

FULL_RESIDENT_ROWS = 4096  # run the whole layer in one grid step below this
TM = 1024                  # M-tile for the tiled (no-BN) path above that


def _round_up(x, m):
    return (x + m - 1) // m * m


# --------------------------------------------------------------------------
# Pallas kernels
# --------------------------------------------------------------------------
def _conv_bn_kernel(a_ref, w_ref, b_ref, g_ref, beta_ref, o_ref, *,
                    m_valid, pad_rows, eps):
    """Fused full-layer ConvBlock: y = A @ W + b, then training-mode BatchNorm.

    A holds the entire layer (grid=(1,)), so per-channel batch statistics are
    computed and applied in one pass without y ever leaving VMEM.  Zero-padded
    rows of A produce exactly `bias`, so their contribution to the statistics
    is removed analytically.  ConvBlock's activation is the identity
    (dangling-else bug in the PyTorch source), so no activation is applied.
    """
    y = jnp.dot(a_ref[...], w_ref[...], preferred_element_type=jnp.float32)
    bias = b_ref[...]
    y = y + bias

    s = jnp.sum(y, axis=0, keepdims=True) - pad_rows * bias
    ss = jnp.sum(y * y, axis=0, keepdims=True) - pad_rows * (bias * bias)
    inv_m = 1.0 / m_valid
    mean = s * inv_m
    var = jnp.maximum(ss * inv_m - mean * mean, 0.0)  # biased var (train-mode BN)

    scale = g_ref[...] * lax.rsqrt(var + eps)
    o_ref[...] = (y - mean) * scale + beta_ref[...]


def _conv_act_kernel(a_ref, w_ref, b_ref, o_ref, *, act):
    """One M-tile of: y = A @ W + b with fused activation (no BN, no stats)."""
    y = jnp.dot(a_ref[...], w_ref[...], preferred_element_type=jnp.float32)
    y = y + b_ref[...]
    if act == "lrelu":
        y = jnp.where(y > 0, y, 0.2 * y)
    elif act == "sigmoid":
        y = jax.nn.sigmoid(y)
    o_ref[...] = y


# --------------------------------------------------------------------------
# JAX glue
# --------------------------------------------------------------------------
def _im2col(x, kh, kw, stride, pad):
    n, h, w, c = x.shape
    xp = jnp.pad(x, ((0, 0), (pad, pad), (pad, pad), (0, 0)))
    ho = (h + 2 * pad - kh) // stride + 1
    wo = (w + 2 * pad - kw) // stride + 1
    cols = []
    for i in range(kh):
        for j in range(kw):
            cols.append(
                xp[:, i:i + (ho - 1) * stride + 1:stride,
                   j:j + (wo - 1) * stride + 1:stride, :]
            )
    patches = jnp.concatenate(cols, axis=-1)  # (N, Ho, Wo, kh*kw*C)
    return patches.reshape(n * ho * wo, kh * kw * c), (n, ho, wo)


def conv_layer_pallas(x_nhwc, layer, eps=1e-5):
    """Conv2d (+ optional fused training-mode BatchNorm) (+ optional act)."""
    w, b = layer["w"], layer["b"]
    kh, kw, cin, cout = w.shape
    patches, (n, ho, wo) = _im2col(x_nhwc, kh, kw, layer["stride"], layer["pad"])
    m, k = patches.shape
    kp = _round_up(k, 128)
    npad = _round_up(cout, 128)
    has_bn = layer["has_bn"]

    if has_bn or m <= FULL_RESIDENT_ROWS:
        # Full-layer residency: one grid step, whole GEMM output in VMEM.
        # (BN layers must take this path so the stats can be single-pass;
        #  fine here because every layer is far below VMEM capacity.)
        tm = _round_up(m, 16)
        mp = tm
    else:
        tm = TM
        mp = _round_up(m, TM)

    # bf16 matmul operands (f32 accumulation inside the kernel); single pads.
    a = jnp.pad(patches, ((0, mp - m), (0, kp - k))).astype(jnp.bfloat16)
    wmat = jnp.pad(w.reshape(kh * kw * cin, cout),
                   ((0, kp - k), (0, npad - cout))).astype(jnp.bfloat16)
    bias = jnp.pad(b, (0, npad - cout)).astype(jnp.float32).reshape(1, npad)

    a_spec = pl.BlockSpec((tm, kp), lambda i: (i, 0))
    w_spec = pl.BlockSpec((kp, npad), lambda i: (0, 0))
    v_spec = pl.BlockSpec((1, npad), lambda i: (0, 0))
    o_spec = pl.BlockSpec((tm, npad), lambda i: (i, 0))

    if has_bn:
        gamma = jnp.pad(layer["gamma"], (0, npad - cout)).astype(jnp.float32).reshape(1, npad)
        beta = jnp.pad(layer["beta"], (0, npad - cout)).astype(jnp.float32).reshape(1, npad)
        kern = functools.partial(_conv_bn_kernel, m_valid=float(m),
                                 pad_rows=float(mp - m), eps=eps)
        inputs = (a, wmat, bias, gamma, beta)
        in_specs = [a_spec, w_spec, v_spec, v_spec, v_spec]
        dim_sem = ("arbitrary",)
    else:
        kern = functools.partial(_conv_act_kernel, act=layer["act"])
        inputs = (a, wmat, bias)
        in_specs = [a_spec, w_spec, v_spec]
        dim_sem = ("parallel",)  # no carried state -> megacore-shardable

    out = pl.pallas_call(
        kern,
        out_shape=jax.ShapeDtypeStruct((mp, npad), jnp.float32),
        grid_spec=pltpu.PrefetchScalarGridSpec(
            num_scalar_prefetch=0,
            grid=(mp // tm,),
            in_specs=in_specs,
            out_specs=o_spec,
        ),
        compiler_params=pltpu.CompilerParams(dimension_semantics=dim_sem),
    )(*inputs)

    return out[:m, :cout].reshape(n, ho, wo, cout)


# --------------------------------------------------------------------------
# Discriminator: parameters + forward
# --------------------------------------------------------------------------
def init_params(key, in_num_ch, first_num_ch):
    f = first_num_ch
    cfg = [
        # (cin, cout, k, stride, pad, has_bn, act)
        (in_num_ch, f, 4, 2, 2, False, "lrelu"),   # conv_1 (+ LeakyReLU 0.2)
        (f, 2 * f, 4, 2, 1, True, "none"),         # conv_2 (ConvBlock -> identity act)
        (2 * f, 4 * f, 4, 2, 1, True, "none"),     # conv_3
        (4 * f, 8 * f, 4, 1, 1, True, "none"),     # conv_4 (stride 1)
        (8 * f, 1, 4, 1, 0, False, "sigmoid"),     # output conv + Sigmoid
    ]
    params = []
    for (cin, cout, k, s, p, has_bn, act) in cfg:
        key, kw_, kb_ = jax.random.split(key, 3)
        w = 0.05 * jax.random.normal(kw_, (k, k, cin, cout), jnp.float32)
        b = 0.01 * jax.random.normal(kb_, (cout,), jnp.float32)
        layer = {"w": w, "b": b, "stride": s, "pad": p, "has_bn": has_bn, "act": act}
        if has_bn:
            layer["gamma"] = jnp.ones((cout,), jnp.float32)   # PyTorch BN init
            layer["beta"] = jnp.zeros((cout,), jnp.float32)
        params.append(layer)
    return params


def discriminator_forward(params, x_nchw):
    h = jnp.transpose(x_nchw, (0, 2, 3, 1)).astype(jnp.float32)  # NCHW -> NHWC
    for layer in params:
        h = conv_layer_pallas(h, layer)
    return jnp.transpose(h, (0, 3, 1, 2))  # NHWC -> NCHW


# Pure-JAX reference (same semantics, same bf16-input / f32-accumulate matmul
# precision) for a correctness check.
def reference_forward(params, x_nchw):
    h = jnp.transpose(x_nchw, (0, 2, 3, 1)).astype(jnp.float32)
    for layer in params:
        p = layer["pad"]
        y = lax.conv_general_dilated(
            h.astype(jnp.bfloat16), layer["w"].astype(jnp.bfloat16),
            (layer["stride"], layer["stride"]), [(p, p), (p, p)],
            dimension_numbers=("NHWC", "HWIO", "NHWC"),
            preferred_element_type=jnp.float32,
        ) + layer["b"]
        if layer["has_bn"]:
            mean = y.mean(axis=(0, 1, 2))
            var = y.var(axis=(0, 1, 2))
            y = (y - mean) / jnp.sqrt(var + 1e-5) * layer["gamma"] + layer["beta"]
        if layer["act"] == "lrelu":
            y = jnp.where(y > 0, y, 0.2 * y)
        elif layer["act"] == "sigmoid":
            y = jax.nn.sigmoid(y)
        h = y
    return jnp.transpose(h, (0, 3, 1, 2))


if __name__ == "__main__":
    key = jax.random.PRNGKey(0)
    in_num_ch, first_num_ch = 4, 16
    params = init_params(key, in_num_ch, first_num_ch)

    kx = jax.random.PRNGKey(0)
    # Spatial 64 is the smallest convenient size keeping the final 4x4 valid
    # conv non-degenerate (output spatial = 4x4).
    x = jax.random.normal(kx, (2, in_num_ch, 64, 64), jnp.float32)  # NCHW

    fwd = jax.jit(functools.partial(discriminator_forward, params))
    ref_fwd = jax.jit(functools.partial(reference_forward, params))

    out = jax.block_until_ready(fwd(x))
    ref = jax.block_until_ready(ref_fwd(x))

    assert out.shape == ref.shape == (2, 1, 4, 4), out.shape
    max_err = float(jnp.max(jnp.abs(out - ref)))
    # Both paths round matmul inputs to bf16 with f32 accumulation; residual
    # differences are accumulation order + occasional one-ulp bf16 flips.
    assert max_err < 5e-3, f"max abs error {max_err}"

    print("KERNEL_OK")
</pallas_src>

<mosaic_0001>
module attributes {stable_mosaic.version = 11 : i64} {
  func.func @_conv_act_kernel(%arg0: i32, %arg1: memref<2192x128xbf16, #tpu.memory_space<vmem>>, %arg2: memref<128x128xbf16, #tpu.memory_space<vmem>>, %arg3: memref<1x128xf32, #tpu.memory_space<vmem>>, %arg4: memref<2192x128xf32, #tpu.memory_space<vmem>>) attributes {dimension_semantics = [#tpu.dimension_semantics<parallel>], iteration_bounds = array<i64: 1>, scalar_prefetch = 0 : i64, scratch_operands = 0 : i64, tpu.core_type = #tpu.core_type<tc>, window_params = [{transform_indices = @transform_0, window_bounds = array<i64: 2192, 128>}, {pipeline_mode = #tpu.pipeline_mode<synchronous>, transform_indices = @transform_1, window_bounds = array<i64: 128, 128>}, {pipeline_mode = #tpu.pipeline_mode<synchronous>, transform_indices = @transform_2, window_bounds = array<i64: 1, 128>}, {transform_indices = @transform_3, window_bounds = array<i64: 2192, 128>}]} {
    %c0 = arith.constant 0 : index
    %c0_0 = arith.constant 0 : index
    %0 = vector.load %arg1[%c0, %c0_0] : memref<2192x128xbf16, #tpu.memory_space<vmem>>, vector<2192x128xbf16>
    %c0_1 = arith.constant 0 : index
    %c0_2 = arith.constant 0 : index
    %1 = vector.load %arg2[%c0_1, %c0_2] : memref<128x128xbf16, #tpu.memory_space<vmem>>, vector<128x128xbf16>
    %cst = arith.constant dense<0.000000e+00> : vector<2192x128xf32>
    %2 = tpu.matmul %0, %1, %cst {dimension_numbers = #tpu.dot_dimension_numbers<[1], [0], [0], [1], [0, 0, 1, 1], [], []>} : vector<2192x128xbf16>, vector<128x128xbf16>, vector<2192x128xf32> -> vector<2192x128xf32>
    %c0_3 = arith.constant 0 : index
    %c0_4 = arith.constant 0 : index
    %3 = vector.load %arg3[%c0_3, %c0_4] : memref<1x128xf32, #tpu.memory_space<vmem>>, vector<1x128xf32>
    %4 = vector.broadcast %3 : vector<1x128xf32> to vector<2192x128xf32>
    %5 = arith.addf %2, %4 : vector<2192x128xf32>
    %cst_5 = arith.constant 0.000000e+00 : f32
    %6 = vector.broadcast %cst_5 : f32 to vector<2192x128xf32>
    %7 = arith.cmpf ogt, %5, %6 : vector<2192x128xf32>
    %cst_6 = arith.constant 2.000000e-01 : f32
    %8 = vector.broadcast %cst_6 : f32 to vector<2192x128xf32>
    %9 = arith.mulf %8, %5 : vector<2192x128xf32>
    %10 = arith.select %7, %5, %9 : vector<2192x128xi1>, vector<2192x128xf32>
    %c0_7 = arith.constant 0 : index
    %c0_8 = arith.constant 0 : index
    %11 = vector.load %arg4[%c0_7, %c0_8] : memref<2192x128xf32, #tpu.memory_space<vmem>>, vector<2192x128xf32>
    tpu.vector_store %arg4[%c0_7, %c0_8], %10 {strides = array<i32>} : memref<2192x128xf32, #tpu.memory_space<vmem>>, vector<2192x128xf32>,
    return
  }
  func.func @transform_0(%arg0: i32) -> (i32, i32) {
    %c0_i32 = arith.constant 0 : i32
    %c0_i32_0 = arith.constant 0 : i32
    return %arg0, %c0_i32 : i32, i32
  }
  func.func @transform_1(%arg0: i32) -> (i32, i32) {
    %c0_i32 = arith.constant 0 : i32
    %c0_i32_0 = arith.constant 0 : i32
    %c0_i32_1 = arith.constant 0 : i32
    return %c0_i32, %c0_i32_0 : i32, i32
  }
  func.func @transform_2(%arg0: i32) -> (i32, i32) {
    %c0_i32 = arith.constant 0 : i32
    %c0_i32_0 = arith.constant 0 : i32
    %c0_i32_1 = arith.constant 0 : i32
    return %c0_i32, %c0_i32_0 : i32, i32
  }
  func.func @transform_3(%arg0: i32) -> (i32, i32) {
    %c0_i32 = arith.constant 0 : i32
    %c0_i32_0 = arith.constant 0 : i32
    return %arg0, %c0_i32 : i32, i32
  }
}

module attributes {stable_mosaic.version = 11 : i64} {
  func.func @_conv_bn_kernel(%arg0: i32, %arg1: memref<512x256xbf16, #tpu.memory_space<vmem>>, %arg2: memref<256x128xbf16, #tpu.memory_space<vmem>>, %arg3: memref<1x128xf32, #tpu.memory_space<vmem>>, %arg4: memref<1x128xf32, #tpu.memory_space<vmem>>, %arg5: memref<1x128xf32, #tpu.memory_space<vmem>>, %arg6: memref<512x128xf32, #tpu.memory_space<vmem>>) attributes {dimension_semantics = [#tpu.dimension_semantics<arbitrary>], iteration_bounds = array<i64: 1>, scalar_prefetch = 0 : i64, scratch_operands = 0 : i64, tpu.core_type = #tpu.core_type<tc>, window_params = [{transform_indices = @transform_0, window_bounds = array<i64: 512, 256>}, {pipeline_mode = #tpu.pipeline_mode<synchronous>, transform_indices = @transform_1, window_bounds = array<i64: 256, 128>}, {pipeline_mode = #tpu.pipeline_mode<synchronous>, transform_indices = @transform_2, window_bounds = array<i64: 1, 128>}, {pipeline_mode = #tpu.pipeline_mode<synchronous>, transform_indices = @transform_3, window_bounds = array<i64: 1, 128>}, {pipeline_mode = #tpu.pipeline_mode<synchronous>, transform_indices = @transform_4, window_bounds = array<i64: 1, 128>}, {transform_indices = @transform_5, window_bounds = array<i64: 512, 128>}]} {
    %c0 = arith.constant 0 : index
    %c0_0 = arith.constant 0 : index
    %0 = vector.load %arg1[%c0, %c0_0] : memref<512x256xbf16, #tpu.memory_space<vmem>>, vector<512x256xbf16>
    %c0_1 = arith.constant 0 : index
    %c0_2 = arith.constant 0 : index
    %1 = vector.load %arg2[%c0_1, %c0_2] : memref<256x128xbf16, #tpu.memory_space<vmem>>, vector<256x128xbf16>
    %cst = arith.constant dense<0.000000e+00> : vector<512x128xf32>
    %2 = tpu.matmul %0, %1, %cst {dimension_numbers = #tpu.dot_dimension_numbers<[1], [0], [0], [1], [0, 0, 1, 1], [], []>} : vector<512x256xbf16>, vector<256x128xbf16>, vector<512x128xf32> -> vector<512x128xf32>
    %c0_3 = arith.constant 0 : index
    %c0_4 = arith.constant 0 : index
    %3 = vector.load %arg3[%c0_3, %c0_4] : memref<1x128xf32, #tpu.memory_space<vmem>>, vector<1x128xf32>
    %4 = vector.broadcast %3 : vector<1x128xf32> to vector<512x128xf32>
    %5 = arith.addf %2, %4 : vector<512x128xf32>
    %cst_5 = arith.constant dense<0.000000e+00> : vector<128xf32>
    %6 = vector.multi_reduction <add>, %5, %cst_5 [0] : vector<512x128xf32> to vector<128xf32>
    %7 = vector.shape_cast %6 : vector<128xf32> to vector<1x128xf32>
    %cst_6 = arith.constant 0.000000e+00 : f32
    %8 = vector.broadcast %cst_6 : f32 to vector<1x128xf32>
    %9 = arith.mulf %8, %3 : vector<1x128xf32>
    %10 = arith.subf %7, %9 : vector<1x128xf32>
    %11 = arith.mulf %5, %5 : vector<512x128xf32>
    %cst_7 = arith.constant dense<0.000000e+00> : vector<128xf32>
    %12 = vector.multi_reduction <add>, %11, %cst_7 [0] : vector<512x128xf32> to vector<128xf32>
    %13 = vector.shape_cast %12 : vector<128xf32> to vector<1x128xf32>
    %14 = arith.mulf %3, %3 : vector<1x128xf32>
    %cst_8 = arith.constant 0.000000e+00 : f32
    %15 = vector.broadcast %cst_8 : f32 to vector<1x128xf32>
    %16 = arith.mulf %15, %14 : vector<1x128xf32>
    %17 = arith.subf %13, %16 : vector<1x128xf32>
    %cst_9 = arith.constant 0.001953125 : f32
    %18 = vector.broadcast %cst_9 : f32 to vector<1x128xf32>
    %19 = arith.mulf %10, %18 : vector<1x128xf32>
    %cst_10 = arith.constant 0.001953125 : f32
    %20 = vector.broadcast %cst_10 : f32 to vector<1x128xf32>
    %21 = arith.mulf %17, %20 : vector<1x128xf32>
    %22 = arith.mulf %19, %19 : vector<1x128xf32>
    %23 = arith.subf %21, %22 : vector<1x128xf32>
    %cst_11 = arith.constant 0.000000e+00 : f32
    %24 = vector.broadcast %cst_11 : f32 to vector<1x128xf32>
    %25 = arith.maximumf %23, %24 : vector<1x128xf32>
    %c0_12 = arith.constant 0 : index
    %c0_13 = arith.constant 0 : index
    %26 = vector.load %arg4[%c0_12, %c0_13] : memref<1x128xf32, #tpu.memory_space<vmem>>, vector<1x128xf32>
    %cst_14 = arith.constant 9.99999974E-6 : f32
    %27 = vector.broadcast %cst_14 : f32 to vector<1x128xf32>
    %28 = arith.addf %25, %27 : vector<1x128xf32>
    %29 = math.rsqrt %28 : vector<1x128xf32>
    %30 = arith.mulf %26, %29 : vector<1x128xf32>
    %31 = vector.broadcast %19 : vector<1x128xf32> to vector<512x128xf32>
    %32 = arith.subf %5, %31 : vector<512x128xf32>
    %33 = vector.broadcast %30 : vector<1x128xf32> to vector<512x128xf32>
    %34 = arith.mulf %32, %33 : vector<512x128xf32>
    %c0_15 = arith.constant 0 : index
    %c0_16 = arith.constant 0 : index
    %35 = vector.load %arg5[%c0_15, %c0_16] : memref<1x128xf32, #tpu.memory_space<vmem>>, vector<1x128xf32>
    %36 = vector.broadcast %35 : vector<1x128xf32> to vector<512x128xf32>
    %37 = arith.addf %34, %36 : vector<512x128xf32>
    %c0_17 = arith.constant 0 : index
    %c0_18 = arith.constant 0 : index
    %38 = vector.load %arg6[%c0_17, %c0_18] : memref<512x128xf32, #tpu.memory_space<vmem>>, vector<512x128xf32>
    tpu.vector_store %arg6[%c0_17, %c0_18], %37 {strides = array<i32>} : memref<512x128xf32, #tpu.memory_space<vmem>>, vector<512x128xf32>,
    return
  }
  func.func @transform_0(%arg0: i32) -> (i32, i32) {
    %c0_i32 = arith.constant 0 : i32
    %c0_i32_0 = arith.constant 0 : i32
    return %arg0, %c0_i32 : i32, i32
  }
  func.func @transform_1(%arg0: i32) -> (i32, i32) {
    %c0_i32 = arith.constant 0 : i32
    %c0_i32_0 = arith.constant 0 : i32
    %c0_i32_1 = arith.constant 0 : i32
    return %c0_i32, %c0_i32_0 : i32, i32
  }
  func.func @transform_2(%arg0: i32) -> (i32, i32) {
    %c0_i32 = arith.constant 0 : i32
    %c0_i32_0 = arith.constant 0 : i32
    %c0_i32_1 = arith.constant 0 : i32
    return %c0_i32, %c0_i32_0 : i32, i32
  }
  func.func @transform_3(%arg0: i32) -> (i32, i32) {
    %c0_i32 = arith.constant 0 : i32
    %c0_i32_0 = arith.constant 0 : i32
    %c0_i32_1 = arith.constant 0 : i32
    return %c0_i32, %c0_i32_0 : i32, i32
  }
  func.func @transform_4(%arg0: i32) -> (i32, i32) {
    %c0_i32 = arith.constant 0 : i32
    %c0_i32_0 = arith.constant 0 : i32
    %c0_i32_1 = arith.constant 0 : i32
    return %c0_i32, %c0_i32_0 : i32, i32
  }
  func.func @transform_5(%arg0: i32) -> (i32, i32) {
    %c0_i32 = arith.constant 0 : i32
    %c0_i32_0 = arith.constant 0 : i32
    return %arg0, %c0_i32 : i32, i32
  }
}

module attributes {stable_mosaic.version = 11 : i64} {
  func.func @_conv_bn_kernel(%arg0: i32, %arg1: memref<128x512xbf16, #tpu.memory_space<vmem>>, %arg2: memref<512x128xbf16, #tpu.memory_space<vmem>>, %arg3: memref<1x128xf32, #tpu.memory_space<vmem>>, %arg4: memref<1x128xf32, #tpu.memory_space<vmem>>, %arg5: memref<1x128xf32, #tpu.memory_space<vmem>>, %arg6: memref<128x128xf32, #tpu.memory_space<vmem>>) attributes {dimension_semantics = [#tpu.dimension_semantics<arbitrary>], iteration_bounds = array<i64: 1>, scalar_prefetch = 0 : i64, scratch_operands = 0 : i64, tpu.core_type = #tpu.core_type<tc>, window_params = [{transform_indices = @transform_0, window_bounds = array<i64: 128, 512>}, {pipeline_mode = #tpu.pipeline_mode<synchronous>, transform_indices = @transform_1, window_bounds = array<i64: 512, 128>}, {pipeline_mode = #tpu.pipeline_mode<synchronous>, transform_indices = @transform_2, window_bounds = array<i64: 1, 128>}, {pipeline_mode = #tpu.pipeline_mode<synchronous>, transform_indices = @transform_3, window_bounds = array<i64: 1, 128>}, {pipeline_mode = #tpu.pipeline_mode<synchronous>, transform_indices = @transform_4, window_bounds = array<i64: 1, 128>}, {transform_indices = @transform_5, window_bounds = array<i64: 128, 128>}]} {
    %c0 = arith.constant 0 : index
    %c0_0 = arith.constant 0 : index
    %0 = vector.load %arg1[%c0, %c0_0] : memref<128x512xbf16, #tpu.memory_space<vmem>>, vector<128x512xbf16>
    %c0_1 = arith.constant 0 : index
    %c0_2 = arith.constant 0 : index
    %1 = vector.load %arg2[%c0_1, %c0_2] : memref<512x128xbf16, #tpu.memory_space<vmem>>, vector<512x128xbf16>
    %cst = arith.constant dense<0.000000e+00> : vector<128x128xf32>
    %2 = tpu.matmul %0, %1, %cst {dimension_numbers = #tpu.dot_dimension_numbers<[1], [0], [0], [1], [0, 0, 1, 1], [], []>} : vector<128x512xbf16>, vector<512x128xbf16>, vector<128x128xf32> -> vector<128x128xf32>
    %c0_3 = arith.constant 0 : index
    %c0_4 = arith.constant 0 : index
    %3 = vector.load %arg3[%c0_3, %c0_4] : memref<1x128xf32, #tpu.memory_space<vmem>>, vector<1x128xf32>
    %4 = vector.broadcast %3 : vector<1x128xf32> to vector<128x128xf32>
    %5 = arith.addf %2, %4 : vector<128x128xf32>
    %cst_5 = arith.constant dense<0.000000e+00> : vector<128xf32>
    %6 = vector.multi_reduction <add>, %5, %cst_5 [0] : vector<128x128xf32> to vector<128xf32>
    %7 = vector.shape_cast %6 : vector<128xf32> to vector<1x128xf32>
    %cst_6 = arith.constant 0.000000e+00 : f32
    %8 = vector.broadcast %cst_6 : f32 to vector<1x128xf32>
    %9 = arith.mulf %8, %3 : vector<1x128xf32>
    %10 = arith.subf %7, %9 : vector<1x128xf32>
    %11 = arith.mulf %5, %5 : vector<128x128xf32>
    %cst_7 = arith.constant dense<0.000000e+00> : vector<128xf32>
    %12 = vector.multi_reduction <add>, %11, %cst_7 [0] : vector<128x128xf32> to vector<128xf32>
    %13 = vector.shape_cast %12 : vector<128xf32> to vector<1x128xf32>
    %14 = arith.mulf %3, %3 : vector<1x128xf32>
    %cst_8 = arith.constant 0.000000e+00 : f32
    %15 = vector.broadcast %cst_8 : f32 to vector<1x128xf32>
    %16 = arith.mulf %15, %14 : vector<1x128xf32>
    %17 = arith.subf %13, %16 : vector<1x128xf32>
    %cst_9 = arith.constant 7.812500e-03 : f32
    %18 = vector.broadcast %cst_9 : f32 to vector<1x128xf32>
    %19 = arith.mulf %10, %18 : vector<1x128xf32>
    %cst_10 = arith.constant 7.812500e-03 : f32
    %20 = vector.broadcast %cst_10 : f32 to vector<1x128xf32>
    %21 = arith.mulf %17, %20 : vector<1x128xf32>
    %22 = arith.mulf %19, %19 : vector<1x128xf32>
    %23 = arith.subf %21, %22 : vector<1x128xf32>
    %cst_11 = arith.constant 0.000000e+00 : f32
    %24 = vector.broadcast %cst_11 : f32 to vector<1x128xf32>
    %25 = arith.maximumf %23, %24 : vector<1x128xf32>
    %c0_12 = arith.constant 0 : index
    %c0_13 = arith.constant 0 : index
    %26 = vector.load %arg4[%c0_12, %c0_13] : memref<1x128xf32, #tpu.memory_space<vmem>>, vector<1x128xf32>
    %cst_14 = arith.constant 9.99999974E-6 : f32
    %27 = vector.broadcast %cst_14 : f32 to vector<1x128xf32>
    %28 = arith.addf %25, %27 : vector<1x128xf32>
    %29 = math.rsqrt %28 : vector<1x128xf32>
    %30 = arith.mulf %26, %29 : vector<1x128xf32>
    %31 = vector.broadcast %19 : vector<1x128xf32> to vector<128x128xf32>
    %32 = arith.subf %5, %31 : vector<128x128xf32>
    %33 = vector.broadcast %30 : vector<1x128xf32> to vector<128x128xf32>
    %34 = arith.mulf %32, %33 : vector<128x128xf32>
    %c0_15 = arith.constant 0 : index
    %c0_16 = arith.constant 0 : index
    %35 = vector.load %arg5[%c0_15, %c0_16] : memref<1x128xf32, #tpu.memory_space<vmem>>, vector<1x128xf32>
    %36 = vector.broadcast %35 : vector<1x128xf32> to vector<128x128xf32>
    %37 = arith.addf %34, %36 : vector<128x128xf32>
    %c0_17 = arith.constant 0 : index
    %c0_18 = arith.constant 0 : index
    %38 = vector.load %arg6[%c0_17, %c0_18] : memref<128x128xf32, #tpu.memory_space<vmem>>, vector<128x128xf32>
    tpu.vector_store %arg6[%c0_17, %c0_18], %37 {strides = array<i32>} : memref<128x128xf32, #tpu.memory_space<vmem>>, vector<128x128xf32>,
    return
  }
  func.func @transform_0(%arg0: i32) -> (i32, i32) {
    %c0_i32 = arith.constant 0 : i32
    %c0_i32_0 = arith.constant 0 : i32
    return %arg0, %c0_i32 : i32, i32
  }
  func.func @transform_1(%arg0: i32) -> (i32, i32) {
    %c0_i32 = arith.constant 0 : i32
    %c0_i32_0 = arith.constant 0 : i32
    %c0_i32_1 = arith.constant 0 : i32
    return %c0_i32, %c0_i32_0 : i32, i32
  }
  func.func @transform_2(%arg0: i32) -> (i32, i32) {
    %c0_i32 = arith.constant 0 : i32
    %c0_i32_0 = arith.constant 0 : i32
    %c0_i32_1 = arith.constant 0 : i32
    return %c0_i32, %c0_i32_0 : i32, i32
  }
  func.func @transform_3(%arg0: i32) -> (i32, i32) {
    %c0_i32 = arith.constant 0 : i32
    %c0_i32_0 = arith.constant 0 : i32
    %c0_i32_1 = arith.constant 0 : i32
    return %c0_i32, %c0_i32_0 : i32, i32
  }
  func.func @transform_4(%arg0: i32) -> (i32, i32) {
    %c0_i32 = arith.constant 0 : i32
    %c0_i32_0 = arith.constant 0 : i32
    %c0_i32_1 = arith.constant 0 : i32
    return %c0_i32, %c0_i32_0 : i32, i32
  }
  func.func @transform_5(%arg0: i32) -> (i32, i32) {
    %c0_i32 = arith.constant 0 : i32
    %c0_i32_0 = arith.constant 0 : i32
    return %arg0, %c0_i32 : i32, i32
  }
}

module attributes {stable_mosaic.version = 11 : i64} {
  func.func @_conv_bn_kernel(%arg0: i32, %arg1: memref<112x1024xbf16, #tpu.memory_space<vmem>>, %arg2: memref<1024x128xbf16, #tpu.memory_space<vmem>>, %arg3: memref<1x128xf32, #tpu.memory_space<vmem>>, %arg4: memref<1x128xf32, #tpu.memory_space<vmem>>, %arg5: memref<1x128xf32, #tpu.memory_space<vmem>>, %arg6: memref<112x128xf32, #tpu.memory_space<vmem>>) attributes {dimension_semantics = [#tpu.dimension_semantics<arbitrary>], iteration_bounds = array<i64: 1>, scalar_prefetch = 0 : i64, scratch_operands = 0 : i64, tpu.core_type = #tpu.core_type<tc>, window_params = [{transform_indices = @transform_0, window_bounds = array<i64: 112, 1024>}, {pipeline_mode = #tpu.pipeline_mode<synchronous>, transform_indices = @transform_1, window_bounds = array<i64: 1024, 128>}, {pipeline_mode = #tpu.pipeline_mode<synchronous>, transform_indices = @transform_2, window_bounds = array<i64: 1, 128>}, {pipeline_mode = #tpu.pipeline_mode<synchronous>, transform_indices = @transform_3, window_bounds = array<i64: 1, 128>}, {pipeline_mode = #tpu.pipeline_mode<synchronous>, transform_indices = @transform_4, window_bounds = array<i64: 1, 128>}, {transform_indices = @transform_5, window_bounds = array<i64: 112, 128>}]} {
    %c0 = arith.constant 0 : index
    %c0_0 = arith.constant 0 : index
    %0 = vector.load %arg1[%c0, %c0_0] : memref<112x1024xbf16, #tpu.memory_space<vmem>>, vector<112x1024xbf16>
    %c0_1 = arith.constant 0 : index
    %c0_2 = arith.constant 0 : index
    %1 = vector.load %arg2[%c0_1, %c0_2] : memref<1024x128xbf16, #tpu.memory_space<vmem>>, vector<1024x128xbf16>
    %cst = arith.constant dense<0.000000e+00> : vector<112x128xf32>
    %2 = tpu.matmul %0, %1, %cst {dimension_numbers = #tpu.dot_dimension_numbers<[1], [0], [0], [1], [0, 0, 1, 1], [], []>} : vector<112x1024xbf16>, vector<1024x128xbf16>, vector<112x128xf32> -> vector<112x128xf32>
    %c0_3 = arith.constant 0 : index
    %c0_4 = arith.constant 0 : index
    %3 = vector.load %arg3[%c0_3, %c0_4] : memref<1x128xf32, #tpu.memory_space<vmem>>, vector<1x128xf32>
    %4 = vector.broadcast %3 : vector<1x128xf32> to vector<112x128xf32>
    %5 = arith.addf %2, %4 : vector<112x128xf32>
    %cst_5 = arith.constant dense<0.000000e+00> : vector<128xf32>
    %6 = vector.multi_reduction <add>, %5, %cst_5 [0] : vector<112x128xf32> to vector<128xf32>
    %7 = vector.shape_cast %6 : vector<128xf32> to vector<1x128xf32>
    %cst_6 = arith.constant 1.400000e+01 : f32
    %8 = vector.broadcast %cst_6 : f32 to vector<1x128xf32>
    %9 = arith.mulf %8, %3 : vector<1x128xf32>
    %10 = arith.subf %7, %9 : vector<1x128xf32>
    %11 = arith.mulf %5, %5 : vector<112x128xf32>
    %cst_7 = arith.constant dense<0.000000e+00> : vector<128xf32>
    %12 = vector.multi_reduction <add>, %11, %cst_7 [0] : vector<112x128xf32> to vector<128xf32>
    %13 = vector.shape_cast %12 : vector<128xf32> to vector<1x128xf32>
    %14 = arith.mulf %3, %3 : vector<1x128xf32>
    %cst_8 = arith.constant 1.400000e+01 : f32
    %15 = vector.broadcast %cst_8 : f32 to vector<1x128xf32>
    %16 = arith.mulf %15, %14 : vector<1x128xf32>
    %17 = arith.subf %13, %16 : vector<1x128xf32>
    %cst_9 = arith.constant 0.0102040814 : f32
    %18 = vector.broadcast %cst_9 : f32 to vector<1x128xf32>
    %19 = arith.mulf %10, %18 : vector<1x128xf32>
    %cst_10 = arith.constant 0.0102040814 : f32
    %20 = vector.broadcast %cst_10 : f32 to vector<1x128xf32>
    %21 = arith.mulf %17, %20 : vector<1x128xf32>
    %22 = arith.mulf %19, %19 : vector<1x128xf32>
    %23 = arith.subf %21, %22 : vector<1x128xf32>
    %cst_11 = arith.constant 0.000000e+00 : f32
    %24 = vector.broadcast %cst_11 : f32 to vector<1x128xf32>
    %25 = arith.maximumf %23, %24 : vector<1x128xf32>
    %c0_12 = arith.constant 0 : index
    %c0_13 = arith.constant 0 : index
    %26 = vector.load %arg4[%c0_12, %c0_13] : memref<1x128xf32, #tpu.memory_space<vmem>>, vector<1x128xf32>
    %cst_14 = arith.constant 9.99999974E-6 : f32
    %27 = vector.broadcast %cst_14 : f32 to vector<1x128xf32>
    %28 = arith.addf %25, %27 : vector<1x128xf32>
    %29 = math.rsqrt %28 : vector<1x128xf32>
    %30 = arith.mulf %26, %29 : vector<1x128xf32>
    %31 = vector.broadcast %19 : vector<1x128xf32> to vector<112x128xf32>
    %32 = arith.subf %5, %31 : vector<112x128xf32>
    %33 = vector.broadcast %30 : vector<1x128xf32> to vector<112x128xf32>
    %34 = arith.mulf %32, %33 : vector<112x128xf32>
    %c0_15 = arith.constant 0 : index
    %c0_16 = arith.constant 0 : index
    %35 = vector.load %arg5[%c0_15, %c0_16] : memref<1x128xf32, #tpu.memory_space<vmem>>, vector<1x128xf32>
    %36 = vector.broadcast %35 : vector<1x128xf32> to vector<112x128xf32>
    %37 = arith.addf %34, %36 : vector<112x128xf32>
    %c0_17 = arith.constant 0 : index
    %c0_18 = arith.constant 0 : index
    %38 = vector.load %arg6[%c0_17, %c0_18] : memref<112x128xf32, #tpu.memory_space<vmem>>, vector<112x128xf32>
    tpu.vector_store %arg6[%c0_17, %c0_18], %37 {strides = array<i32>} : memref<112x128xf32, #tpu.memory_space<vmem>>, vector<112x128xf32>,
    return
  }
  func.func @transform_0(%arg0: i32) -> (i32, i32) {
    %c0_i32 = arith.constant 0 : i32
    %c0_i32_0 = arith.constant 0 : i32
    return %arg0, %c0_i32 : i32, i32
  }
  func.func @transform_1(%arg0: i32) -> (i32, i32) {
    %c0_i32 = arith.constant 0 : i32
    %c0_i32_0 = arith.constant 0 : i32
    %c0_i32_1 = arith.constant 0 : i32
    return %c0_i32, %c0_i32_0 : i32, i32
  }
  func.func @transform_2(%arg0: i32) -> (i32, i32) {
    %c0_i32 = arith.constant 0 : i32
    %c0_i32_0 = arith.constant 0 : i32
    %c0_i32_1 = arith.constant 0 : i32
    return %c0_i32, %c0_i32_0 : i32, i32
  }
  func.func @transform_3(%arg0: i32) -> (i32, i32) {
    %c0_i32 = arith.constant 0 : i32
    %c0_i32_0 = arith.constant 0 : i32
    %c0_i32_1 = arith.constant 0 : i32
    return %c0_i32, %c0_i32_0 : i32, i32
  }
  func.func @transform_4(%arg0: i32) -> (i32, i32) {
    %c0_i32 = arith.constant 0 : i32
    %c0_i32_0 = arith.constant 0 : i32
    %c0_i32_1 = arith.constant 0 : i32
    return %c0_i32, %c0_i32_0 : i32, i32
  }
  func.func @transform_5(%arg0: i32) -> (i32, i32) {
    %c0_i32 = arith.constant 0 : i32
    %c0_i32_0 = arith.constant 0 : i32
    return %arg0, %c0_i32 : i32, i32
  }
}

module attributes {stable_mosaic.version = 11 : i64} {
  func.func @_conv_act_kernel(%arg0: i32, %arg1: memref<32x2048xbf16, #tpu.memory_space<vmem>>, %arg2: memref<2048x128xbf16, #tpu.memory_space<vmem>>, %arg3: memref<1x128xf32, #tpu.memory_space<vmem>>, %arg4: memref<32x128xf32, #tpu.memory_space<vmem>>) attributes {dimension_semantics = [#tpu.dimension_semantics<parallel>], iteration_bounds = array<i64: 1>, scalar_prefetch = 0 : i64, scratch_operands = 0 : i64, tpu.core_type = #tpu.core_type<tc>, window_params = [{transform_indices = @transform_0, window_bounds = array<i64: 32, 2048>}, {pipeline_mode = #tpu.pipeline_mode<synchronous>, transform_indices = @transform_1, window_bounds = array<i64: 2048, 128>}, {pipeline_mode = #tpu.pipeline_mode<synchronous>, transform_indices = @transform_2, window_bounds = array<i64: 1, 128>}, {transform_indices = @transform_3, window_bounds = array<i64: 32, 128>}]} {
    %c0 = arith.constant 0 : index
    %c0_0 = arith.constant 0 : index
    %0 = vector.load %arg1[%c0, %c0_0] : memref<32x2048xbf16, #tpu.memory_space<vmem>>, vector<32x2048xbf16>
    %c0_1 = arith.constant 0 : index
    %c0_2 = arith.constant 0 : index
    %1 = vector.load %arg2[%c0_1, %c0_2] : memref<2048x128xbf16, #tpu.memory_space<vmem>>, vector<2048x128xbf16>
    %cst = arith.constant dense<0.000000e+00> : vector<32x128xf32>
    %2 = tpu.matmul %0, %1, %cst {dimension_numbers = #tpu.dot_dimension_numbers<[1], [0], [0], [1], [0, 0, 1, 1], [], []>} : vector<32x2048xbf16>, vector<2048x128xbf16>, vector<32x128xf32> -> vector<32x128xf32>
    %c0_3 = arith.constant 0 : index
    %c0_4 = arith.constant 0 : index
    %3 = vector.load %arg3[%c0_3, %c0_4] : memref<1x128xf32, #tpu.memory_space<vmem>>, vector<1x128xf32>
    %4 = vector.broadcast %3 : vector<1x128xf32> to vector<32x128xf32>
    %5 = arith.addf %2, %4 : vector<32x128xf32>
    %6 = arith.negf %5 : vector<32x128xf32>
    %7 = math.exp %6 : vector<32x128xf32>
    %cst_5 = arith.constant 1.000000e+00 : f32
    %8 = vector.broadcast %cst_5 : f32 to vector<32x128xf32>
    %9 = arith.addf %8, %7 : vector<32x128xf32>
    %10 = arith.divf %8, %9 : vector<32x128xf32>
    %c0_6 = arith.constant 0 : index
    %c0_7 = arith.constant 0 : index
    %11 = vector.load %arg4[%c0_6, %c0_7] : memref<32x128xf32, #tpu.memory_space<vmem>>, vector<32x128xf32>
    tpu.vector_store %arg4[%c0_6, %c0_7], %10 {strides = array<i32>} : memref<32x128xf32, #tpu.memory_space<vmem>>, vector<32x128xf32>,
    return
  }
  func.func @transform_0(%arg0: i32) -> (i32, i32) {
    %c0_i32 = arith.constant 0 : i32
    %c0_i32_0 = arith.constant 0 : i32
    return %arg0, %c0_i32 : i32, i32
  }
  func.func @transform_1(%arg0: i32) -> (i32, i32) {
    %c0_i32 = arith.constant 0 : i32
    %c0_i32_0 = arith.constant 0 : i32
    %c0_i32_1 = arith.constant 0 : i32
    return %c0_i32, %c0_i32_0 : i32, i32
  }
  func.func @transform_2(%arg0: i32) -> (i32, i32) {
    %c0_i32 = arith.constant 0 : i32
    %c0_i32_0 = arith.constant 0 : i32
    %c0_i32_1 = arith.constant 0 : i32
    return %c0_i32, %c0_i32_0 : i32, i32
  }
  func.func @transform_3(%arg0: i32) -> (i32, i32) {
    %c0_i32 = arith.constant 0 : i32
    %c0_i32_0 = arith.constant 0 : i32
    return %arg0, %c0_i32 : i32, i32
  }
}

</mosaic_0001>

<llo_original>
// kernel: discriminator_forward.5
$region0: #{discriminator_forward.5}
  #allocation0 [shape = 'u32[]', space=smem, size = 0x4, offset = 0x4, fixed_abs, tag = 'smem constant byte address 0x4 - core index']
  #allocation1 [shape = 'u32[72,128]{1,0:T(1,128)}', space=vmem, size = 0x9000, scoped, tag = 'internal scratch']
  %s0 = inlined_call_operand.vmem [shape: bf16[2192,128], index: 0, kind: input, shape index: {}]
  %s1 = inlined_call_operand.vmem [shape: bf16[128,128], index: 1, kind: input, shape index: {}]
  %s2 = inlined_call_operand.vmem [shape: f32[1,128], index: 2, kind: input, shape index: {}]
  %s3 = inlined_call_operand.vmem [shape: f32[2192,128], index: 3, kind: output, shape index: {}]
  %s4 = sld [smem:[#allocation0]]
  $region22: #{discriminator_forward.5} parent=0
    _
  %s6 = ssub.s32 1, %s4
  %s7 = scalar_select 0, %s6, %s4
  // Predicated region
  $region2: #{discriminator_forward.5} parent=0 // pred_check
    _
  $region3: #{discriminator_forward.5} parent=0 // pred_check_branch
    %9 = sbr.rel (0) target = $region5
  $region4: #{discriminator_forward.5} parent=0 // pred_region
    _
  $region5: #{discriminator_forward.5} parent=0 // pred_fallthru
    _
  // Predicated region
  $region6: #{discriminator_forward.5} parent=0 // pred_check
    _
  $region7: #{discriminator_forward.5} parent=0 // pred_check_branch
    %11 = sbr.rel (0) target = $region9
  $region8: #{discriminator_forward.5} parent=0 // pred_region
    _
  $region9: #{discriminator_forward.5} parent=0 // pred_fallthru
    _
  // Predicated region
  $region10: #{discriminator_forward.5} parent=0 // pred_check
    _
  $region11: #{discriminator_forward.5} parent=0 // pred_check_branch
    %13 = sbr.rel (0) target = $region13
  $region12: #{discriminator_forward.5} parent=0 // pred_region
    _
  $region13: #{discriminator_forward.5} parent=0 // pred_fallthru
    _
  %v14 = vld [vmem:[%s0] sm:$0xf]
  %v15 = vld [vmem:[%s0 + $0x4] sm:$0xf]
  %v16 = vld [vmem:[%s0 + $0x8] sm:$0xf]
  %v17 = vld [vmem:[%s0 + $0xc] sm:$0xf]
  %v18 = vld [vmem:[%s0 + $0x10] sm:$0xf]
  %v19 = vld [vmem:[%s0 + $0x14] sm:$0xf]
  %v20 = vld [vmem:[%s0 + $0x18] sm:$0xf]
  %v21 = vld [vmem:[%s0 + $0x1c] sm:$0xf]
  %v22 = vld [vmem:[%s0 + $0x20] sm:$0xf]
  %v23 = vld [vmem:[%s0 + $0x24] sm:$0xf]
  %v24 = vld [vmem:[%s0 + $0x28] sm:$0xf]
  %v25 = vld [vmem:[%s0 + $0x2c] sm:$0xf]
  %v26 = vld [vmem:[%s0 + $0x30] sm:$0xf]
  %v27 = vld [vmem:[%s0 + $0x34] sm:$0xf]
  %v28 = vld [vmem:[%s0 + $0x38] sm:$0xf]
  %v29 = vld [vmem:[%s0 + $0x3c] sm:$0xf]
  %v30 = vld [vmem:[%s0 + $0x40] sm:$0xf]
  %v31 = vld [vmem:[%s0 + $0x44] sm:$0xf]
  %v32 = vld [vmem:[%s0 + $0x48] sm:$0xf]
  %v33 = vld [vmem:[%s0 + $0x4c] sm:$0xf]
  %v34 = vld [vmem:[%s0 + $0x50] sm:$0xf]
  %v35 = vld [vmem:[%s0 + $0x54] sm:$0xf]
  %v36 = vld [vmem:[%s0 + $0x58] sm:$0xf]
  %v37 = vld [vmem:[%s0 + $0x5c] sm:$0xf]
  %v38 = vld [vmem:[%s0 + $0x60] sm:$0xf]
  %v39 = vld [vmem:[%s0 + $0x64] sm:$0xf]
  %v40 = vld [vmem:[%s0 + $0x68] sm:$0xf]
  %v41 = vld [vmem:[%s0 + $0x6c] sm:$0xf]
  %v42 = vld [vmem:[%s0 + $0x70] sm:$0xf]
  %v43 = vld [vmem:[%s0 + $0x74] sm:$0xf]
  %v44 = vld [vmem:[%s0 + $0x78] sm:$0xf]
  %v45 = vld [vmem:[%s0 + $0x7c] sm:$0xf]
  %v46 = vld [vmem:[%s0 + $0x80] sm:$0xf]
  %v47 = vld [vmem:[%s0 + $0x84] sm:$0xf]
  %v48 = vld [vmem:[%s0 + $0x88] sm:$0xf]
  %v49 = vld [vmem:[%s0 + $0x8c] sm:$0xf]
  %v50 = vld [vmem:[%s0 + $0x90] sm:$0xf]
  %v51 = vld [vmem:[%s0 + $0x94] sm:$0xf]
  %v52 = vld [vmem:[%s0 + $0x98] sm:$0xf]
  %v53 = vld [vmem:[%s0 + $0x9c] sm:$0xf]
  %v54 = vld [vmem:[%s0 + $0xa0] sm:$0xf]
  %v55 = vld [vmem:[%s0 + $0xa4] sm:$0xf]
  %v56 = vld [vmem:[%s0 + $0xa8] sm:$0xf]
  %v57 = vld [vmem:[%s0 + $0xac] sm:$0xf]
  %v58 = vld [vmem:[%s0 + $0xb0] sm:$0xf]
  %v59 = vld [vmem:[%s0 + $0xb4] sm:$0xf]
  %v60 = vld [vmem:[%s0 + $0xb8] sm:$0xf]
  %v61 = vld [vmem:[%s0 + $0xbc] sm:$0xf]
  %v62 = vld [vmem:[%s0 + $0xc0] sm:$0xf]
  %v63 = vld [vmem:[%s0 + $0xc4] sm:$0xf]
  %v64 = vld [vmem:[%s0 + $0xc8] sm:$0xf]
  %v65 = vld [vmem:[%s0 + $0xcc] sm:$0xf]
  %v66 = vld [vmem:[%s0 + $0xd0] sm:$0xf]
  %v67 = vld [vmem:[%s0 + $0xd4] sm:$0xf]
  %v68 = vld [vmem:[%s0 + $0xd8] sm:$0xf]
  %v69 = vld [vmem:[%s0 + $0xdc] sm:$0xf]
  %v70 = vld [vmem:[%s0 + $0xe0] sm:$0xf]
  %v71 = vld [vmem:[%s0 + $0xe4] sm:$0xf]
  %v72 = vld [vmem:[%s0 + $0xe8] sm:$0xf]
  %v73 = vld [vmem:[%s0 + $0xec] sm:$0xf]
  %v74 = vld [vmem:[%s0 + $0xf0] sm:$0xf]
  %v75 = vld [vmem:[%s0 + $0xf4] sm:$0xf]
  %v76 = vld [vmem:[%s0 + $0xf8] sm:$0xf]
  %v77 = vld [vmem:[%s0 + $0xfc] sm:$0xf]
  %v78 = vld [vmem:[%s0 + $0x100] sm:$0xf]
  %v79 = vld [vmem:[%s0 + $0x104] sm:$0xf]
  %v80 = vld [vmem:[%s0 + $0x108] sm:$0xf]
  %v81 = vld [vmem:[%s0 + $0x10c] sm:$0xf]
  %v82 = vld [vmem:[%s0 + $0x110] sm:$0xf]
  %v83 = vld [vmem:[%s0 + $0x114] sm:$0xf]
  %v84 = vld [vmem:[%s0 + $0x118] sm:$0xf]
  %v85 = vld [vmem:[%s0 + $0x11c] sm:$0xf]
  %v86 = vld [vmem:[%s0 + $0x120] sm:$0xf]
  %v87 = vld [vmem:[%s0 + $0x124] sm:$0xf]
  %v88 = vld [vmem:[%s0 + $0x128] sm:$0xf]
  %v89 = vld [vmem:[%s0 + $0x12c] sm:$0xf]
  %v90 = vld [vmem:[%s0 + $0x130] sm:$0xf]
  %v91 = vld [vmem:[%s0 + $0x134] sm:$0xf]
  %v92 = vld [vmem:[%s0 + $0x138] sm:$0xf]
  %v93 = vld [vmem:[%s0 + $0x13c] sm:$0xf]
  %v94 = vld [vmem:[%s0 + $0x140] sm:$0xf]
  %v95 = vld [vmem:[%s0 + $0x144] sm:$0xf]
  %v96 = vld [vmem:[%s0 + $0x148] sm:$0xf]
  %v97 = vld [vmem:[%s0 + $0x14c] sm:$0xf]
  %v98 = vld [vmem:[%s0 + $0x150] sm:$0xf]
  %v99 = vld [vmem:[%s0 + $0x154] sm:$0xf]
  %v100 = vld [vmem:[%s0 + $0x158] sm:$0xf]
  %v101 = vld [vmem:[%s0 + $0x15c] sm:$0xf]
  %v102 = vld [vmem:[%s0 + $0x160] sm:$0xf]
  %v103 = vld [vmem:[%s0 + $0x164] sm:$0xf]
  %v104 = vld [vmem:[%s0 + $0x168] sm:$0xf]
  %v105 = vld [vmem:[%s0 + $0x16c] sm:$0xf]
  %v106 = vld [vmem:[%s0 + $0x170] sm:$0xf]
  %v107 = vld [vmem:[%s0 + $0x174] sm:$0xf]
  %v108 = vld [vmem:[%s0 + $0x178] sm:$0xf]
  %v109 = vld [vmem:[%s0 + $0x17c] sm:$0xf]
  %v110 = vld [vmem:[%s0 + $0x180] sm:$0xf]
  %v111 = vld [vmem:[%s0 + $0x184] sm:$0xf]
  %v112 = vld [vmem:[%s0 + $0x188] sm:$0xf]
  %v113 = vld [vmem:[%s0 + $0x18c] sm:$0xf]
  %v114 = vld [vmem:[%s0 + $0x190] sm:$0xf]
  %v115 = vld [vmem:[%s0 + $0x194] sm:$0xf]
  %v116 = vld [vmem:[%s0 + $0x198] sm:$0xf]
  %v117 = vld [vmem:[%s0 + $0x19c] sm:$0xf]
  %v118 = vld [vmem:[%s0 + $0x1a0] sm:$0xf]
  %v119 = vld [vmem:[%s0 + $0x1a4] sm:$0xf]
  %v120 = vld [vmem:[%s0 + $0x1a8] sm:$0xf]
  %v121 = vld [vmem:[%s0 + $0x1ac] sm:$0xf]
  %v122 = vld [vmem:[%s0 + $0x1b0] sm:$0xf]
  %v123 = vld [vmem:[%s0 + $0x1b4] sm:$0xf]
  %v124 = vld [vmem:[%s0 + $0x1b8] sm:$0xf]
  %v125 = vld [vmem:[%s0 + $0x1bc] sm:$0xf]
  %v126 = vld [vmem:[%s0 + $0x1c0] sm:$0xf]
  %v127 = vld [vmem:[%s0 + $0x1c4] sm:$0xf]
  %v128 = vld [vmem:[%s0 + $0x1c8] sm:$0xf]
  %v129 = vld [vmem:[%s0 + $0x1cc] sm:$0xf]
  %v130 = vld [vmem:[%s0 + $0x1d0] sm:$0xf]
  %v131 = vld [vmem:[%s0 + $0x1d4] sm:$0xf]
  %v132 = vld [vmem:[%s0 + $0x1d8] sm:$0xf]
  %v133 = vld [vmem:[%s0 + $0x1dc] sm:$0xf]
  %v134 = vld [vmem:[%s0 + $0x1e0] sm:$0xf]
  %v135 = vld [vmem:[%s0 + $0x1e4] sm:$0xf]
  %v136 = vld [vmem:[%s0 + $0x1e8] sm:$0xf]
  %v137 = vld [vmem:[%s0 + $0x1ec] sm:$0xf]
  %v138 = vld [vmem:[%s0 + $0x1f0] sm:$0xf]
  %v139 = vld [vmem:[%s0 + $0x1f4] sm:$0xf]
  %v140 = vld [vmem:[%s0 + $0x1f8] sm:$0xf]
  %v141 = vld [vmem:[%s0 + $0x1fc] sm:$0xf]
  %v142 = vld [vmem:[%s0 + $0x200] sm:$0xf]
  %v143 = vld [vmem:[%s0 + $0x204] sm:$0xf]
  %v144 = vld [vmem:[%s0 + $0x208] sm:$0xf]
  %v145 = vld [vmem:[%s0 + $0x20c] sm:$0xf]
  %v146 = vld [vmem:[%s0 + $0x210] sm:$0xf]
  %v147 = vld [vmem:[%s0 + $0x214] sm:$0xf]
  %v148 = vld [vmem:[%s0 + $0x218] sm:$0xf]
  %v149 = vld [vmem:[%s0 + $0x21c] sm:$0xf]
  %v150 = vld [vmem:[%s0 + $0x220] sm:$0xf]
  %v151 = vld [vmem:[%s0 + $0x224] sm:$0xf]
  %v152 = vld [vmem:[%s0 + $0x228] sm:$0xf]
  %v153 = vld [vmem:[%s0 + $0x22c] sm:$0xf]
  %v154 = vld [vmem:[%s0 + $0x230] sm:$0xf]
  %v155 = vld [vmem:[%s0 + $0x234] sm:$0xf]
  %v156 = vld [vmem:[%s0 + $0x238] sm:$0xf]
  %v157 = vld [vmem:[%s0 + $0x23c] sm:$0xf]
  %v158 = vld [vmem:[%s0 + $0x240] sm:$0xf]
  %v159 = vld [vmem:[%s0 + $0x244] sm:$0xf]
  %v160 = vld [vmem:[%s0 + $0x248] sm:$0xf]
  %v161 = vld [vmem:[%s0 + $0x24c] sm:$0xf]
  %v162 = vld [vmem:[%s0 + $0x250] sm:$0xf]
  %v163 = vld [vmem:[%s0 + $0x254] sm:$0xf]
  %v164 = vld [vmem:[%s0 + $0x258] sm:$0xf]
  %v165 = vld [vmem:[%s0 + $0x25c] sm:$0xf]
  %v166 = vld [vmem:[%s0 + $0x260] sm:$0xf]
  %v167 = vld [vmem:[%s0 + $0x264] sm:$0xf]
  %v168 = vld [vmem:[%s0 + $0x268] sm:$0xf]
  %v169 = vld [vmem:[%s0 + $0x26c] sm:$0xf]
  %v170 = vld [vmem:[%s0 + $0x270] sm:$0xf]
  %v171 = vld [vmem:[%s0 + $0x274] sm:$0xf]
  %v172 = vld [vmem:[%s0 + $0x278] sm:$0xf]
  %v173 = vld [vmem:[%s0 + $0x27c] sm:$0xf]
  %v174 = vld [vmem:[%s0 + $0x280] sm:$0xf]
  %v175 = vld [vmem:[%s0 + $0x284] sm:$0xf]
  %v176 = vld [vmem:[%s0 + $0x288] sm:$0xf]
  %v177 = vld [vmem:[%s0 + $0x28c] sm:$0xf]
  %v178 = vld [vmem:[%s0 + $0x290] sm:$0xf]
  %v179 = vld [vmem:[%s0 + $0x294] sm:$0xf]
  %v180 = vld [vmem:[%s0 + $0x298] sm:$0xf]
  %v181 = vld [vmem:[%s0 + $0x29c] sm:$0xf]
  %v182 = vld [vmem:[%s0 + $0x2a0] sm:$0xf]
  %v183 = vld [vmem:[%s0 + $0x2a4] sm:$0xf]
  %v184 = vld [vmem:[%s0 + $0x2a8] sm:$0xf]
  %v185 = vld [vmem:[%s0 + $0x2ac] sm:$0xf]
  %v186 = vld [vmem:[%s0 + $0x2b0] sm:$0xf]
  %v187 = vld [vmem:[%s0 + $0x2b4] sm:$0xf]
  %v188 = vld [vmem:[%s0 + $0x2b8] sm:$0xf]
  %v189 = vld [vmem:[%s0 + $0x2bc] sm:$0xf]
  %v190 = vld [vmem:[%s0 + $0x2c0] sm:$0xf]
  %v191 = vld [vmem:[%s0 + $0x2c4] sm:$0xf]
  %v192 = vld [vmem:[%s0 + $0x2c8] sm:$0xf]
  %v193 = vld [vmem:[%s0 + $0x2cc] sm:$0xf]
  %v194 = vld [vmem:[%s0 + $0x2d0] sm:$0xf]
  %v195 = vld [vmem:[%s0 + $0x2d4] sm:$0xf]
  %v196 = vld [vmem:[%s0 + $0x2d8] sm:$0xf]
  %v197 = vld [vmem:[%s0 + $0x2dc] sm:$0xf]
  %v198 = vld [vmem:[%s0 + $0x2e0] sm:$0xf]
  %v199 = vld [vmem:[%s0 + $0x2e4] sm:$0xf]
  %v200 = vld [vmem:[%s0 + $0x2e8] sm:$0xf]
  %v201 = vld [vmem:[%s0 + $0x2ec] sm:$0xf]
  %v202 = vld [vmem:[%s0 + $0x2f0] sm:$0xf]
  %v203 = vld [vmem:[%s0 + $0x2f4] sm:$0xf]
  %v204 = vld [vmem:[%s0 + $0x2f8] sm:$0xf]
  %v205 = vld [vmem:[%s0 + $0x2fc] sm:$0xf]
  %v206 = vld [vmem:[%s0 + $0x300] sm:$0xf]
  %v207 = vld [vmem:[%s0 + $0x304] sm:$0xf]
  %v208 = vld [vmem:[%s0 + $0x308] sm:$0xf]
  %v209 = vld [vmem:[%s0 + $0x30c] sm:$0xf]
  %v210 = vld [vmem:[%s0 + $0x310] sm:$0xf]
  %v211 = vld [vmem:[%s0 + $0x314] sm:$0xf]
  %v212 = vld [vmem:[%s0 + $0x318] sm:$0xf]
  %v213 = vld [vmem:[%s0 + $0x31c] sm:$0xf]
  %v214 = vld [vmem:[%s0 + $0x320] sm:$0xf]
  %v215 = vld [vmem:[%s0 + $0x324] sm:$0xf]
  %v216 = vld [vmem:[%s0 + $0x328] sm:$0xf]
  %v217 = vld [vmem:[%s0 + $0x32c] sm:$0xf]
  %v218 = vld [vmem:[%s0 + $0x330] sm:$0xf]
  %v219 = vld [vmem:[%s0 + $0x334] sm:$0xf]
  %v220 = vld [vmem:[%s0 + $0x338] sm:$0xf]
  %v221 = vld [vmem:[%s0 + $0x33c] sm:$0xf]
  %v222 = vld [vmem:[%s0 + $0x340] sm:$0xf]
  %v223 = vld [vmem:[%s0 + $0x344] sm:$0xf]
  %v224 = vld [vmem:[%s0 + $0x348] sm:$0xf]
  %v225 = vld [vmem:[%s0 + $0x34c] sm:$0xf]
  %v226 = vld [vmem:[%s0 + $0x350] sm:$0xf]
  %v227 = vld [vmem:[%s0 + $0x354] sm:$0xf]
  %v228 = vld [vmem:[%s0 + $0x358] sm:$0xf]
  %v229 = vld [vmem:[%s0 + $0x35c] sm:$0xf]
  %v230 = vld [vmem:[%s0 + $0x360] sm:$0xf]
  %v231 = vld [vmem:[%s0 + $0x364] sm:$0xf]
  %v232 = vld [vmem:[%s0 + $0x368] sm:$0xf]
  %v233 = vld [vmem:[%s0 + $0x36c] sm:$0xf]
  %v234 = vld [vmem:[%s0 + $0x370] sm:$0xf]
  %v235 = vld [vmem:[%s0 + $0x374] sm:$0xf]
  %v236 = vld [vmem:[%s0 + $0x378] sm:$0xf]
  %v237 = vld [vmem:[%s0 + $0x37c] sm:$0xf]
  %v238 = vld [vmem:[%s0 + $0x380] sm:$0xf]
  %v239 = vld [vmem:[%s0 + $0x384] sm:$0xf]
  %v240 = vld [vmem:[%s0 + $0x388] sm:$0xf]
  %v241 = vld [vmem:[%s0 + $0x38c] sm:$0xf]
  %v242 = vld [vmem:[%s0 + $0x390] sm:$0xf]
  %v243 = vld [vmem:[%s0 + $0x394] sm:$0xf]
  %v244 = vld [vmem:[%s0 + $0x398] sm:$0xf]
  %v245 = vld [vmem:[%s0 + $0x39c] sm:$0xf]
  %v246 = vld [vmem:[%s0 + $0x3a0] sm:$0xf]
  %v247 = vld [vmem:[%s0 + $0x3a4] sm:$0xf]
  %v248 = vld [vmem:[%s0 + $0x3a8] sm:$0xf]
  %v249 = vld [vmem:[%s0 + $0x3ac] sm:$0xf]
  %v250 = vld [vmem:[%s0 + $0x3b0] sm:$0xf]
  %v251 = vld [vmem:[%s0 + $0x3b4] sm:$0xf]
  %v252 = vld [vmem:[%s0 + $0x3b8] sm:$0xf]
  %v253 = vld [vmem:[%s0 + $0x3bc] sm:$0xf]
  %v254 = vld [vmem:[%s0 + $0x3c0] sm:$0xf]
  %v255 = vld [vmem:[%s0 + $0x3c4] sm:$0xf]
  %v256 = vld [vmem:[%s0 + $0x3c8] sm:$0xf]
  %v257 = vld [vmem:[%s0 + $0x3cc] sm:$0xf]
  %v258 = vld [vmem:[%s0 + $0x3d0] sm:$0xf]
  %v259 = vld [vmem:[%s0 + $0x3d4] sm:$0xf]
  %v260 = vld [vmem:[%s0 + $0x3d8] sm:$0xf]
  %v261 = vld [vmem:[%s0 + $0x3dc] sm:$0xf]
  %v262 = vld [vmem:[%s0 + $0x3e0] sm:$0xf]
  %v263 = vld [vmem:[%s0 + $0x3e4] sm:$0xf]
  %v264 = vld [vmem:[%s0 + $0x3e8] sm:$0xf]
  %v265 = vld [vmem:[%s0 + $0x3ec] sm:$0xf]
  %v266 = vld [vmem:[%s0 + $0x3f0] sm:$0xf]
  %v267 = vld [vmem:[%s0 + $0x3f4] sm:$0xf]
  %v268 = vld [vmem:[%s0 + $0x3f8] sm:$0xf]
  %v269 = vld [vmem:[%s0 + $0x3fc] sm:$0xf]
  %v270 = vld [vmem:[%s0 + $0x400] sm:$0xf]
  %v271 = vld [vmem:[%s0 + $0x404] sm:$0xf]
  %v272 = vld [vmem:[%s0 + $0x408] sm:$0xf]
  %v273 = vld [vmem:[%s0 + $0x40c] sm:$0xf]
  %v274 = vld [vmem:[%s0 + $0x410] sm:$0xf]
  %v275 = vld [vmem:[%s0 + $0x414] sm:$0xf]
  %v276 = vld [vmem:[%s0 + $0x418] sm:$0xf]
  %v277 = vld [vmem:[%s0 + $0x41c] sm:$0xf]
  %v278 = vld [vmem:[%s0 + $0x420] sm:$0xf]
  %v279 = vld [vmem:[%s0 + $0x424] sm:$0xf]
  %v280 = vld [vmem:[%s0 + $0x428] sm:$0xf]
  %v281 = vld [vmem:[%s0 + $0x42c] sm:$0xf]
  %v282 = vld [vmem:[%s0 + $0x430] sm:$0xf]
  %v283 = vld [vmem:[%s0 + $0x434] sm:$0xf]
  %v284 = vld [vmem:[%s0 + $0x438] sm:$0xf]
  %v285 = vld [vmem:[%s0 + $0x43c] sm:$0xf]
  %v286 = vld [vmem:[%s0 + $0x440] sm:$0xf]
  %v287 = vld [vmem:[%s0 + $0x444] sm:$0xf]
  %v288 = vld [vmem:[%s1] sm:$0xf]
  %v289 = vld [vmem:[%s1 + $0x4] sm:$0xf]
  %v290 = vld [vmem:[%s1 + $0x8] sm:$0xf]
  %v291 = vld [vmem:[%s1 + $0xc] sm:$0xf]
  %v292 = vld [vmem:[%s1 + $0x10] sm:$0xf]
  %v293 = vld [vmem:[%s1 + $0x14] sm:$0xf]
  %v294 = vld [vmem:[%s1 + $0x18] sm:$0xf]
  %v295 = vld [vmem:[%s1 + $0x1c] sm:$0xf]
  %v296 = vld [vmem:[%s1 + $0x20] sm:$0xf]
  %v297 = vld [vmem:[%s1 + $0x24] sm:$0xf]
  %v298 = vld [vmem:[%s1 + $0x28] sm:$0xf]
  %v299 = vld [vmem:[%s1 + $0x2c] sm:$0xf]
  %v300 = vld [vmem:[%s1 + $0x30] sm:$0xf]
  %v301 = vld [vmem:[%s1 + $0x34] sm:$0xf]
  %v302 = vld [vmem:[%s1 + $0x38] sm:$0xf]
  %v303 = vld [vmem:[%s1 + $0x3c] sm:$0xf]
  %v304 = vld [vmem:[%s2] sm:$0x1]
  %v306 = vperm.slane %v304, 0
  %v582 = vunpack.c.l.b16 %v14
  %v583 = vunpack.c.l.b16 %v15
  %v584 = vunpack.c.l.b16 %v16
  %v585 = vunpack.c.l.b16 %v17
  %v586 = vunpack.c.l.b16 %v18
  %v587 = vunpack.c.l.b16 %v19
  %v588 = vunpack.c.l.b16 %v20
  %v589 = vunpack.c.l.b16 %v21
  %v590 = vunpack.c.l.b16 %v22
  %v591 = vunpack.c.l.b16 %v23
  %v592 = vunpack.c.l.b16 %v24
  %v593 = vunpack.c.l.b16 %v25
  %v594 = vunpack.c.l.b16 %v26
  %v595 = vunpack.c.l.b16 %v27
  %v596 = vunpack.c.l.b16 %v28
  %v597 = vunpack.c.l.b16 %v29
  %v598 = vunpack.c.l.b16 %v30
  %v599 = vunpack.c.l.b16 %v31
  %v600 = vunpack.c.l.b16 %v32
  %v601 = vunpack.c.l.b16 %v33
  %v602 = vunpack.c.l.b16 %v34
  %v603 = vunpack.c.l.b16 %v35
  %v604 = vunpack.c.l.b16 %v36
  %v605 = vunpack.c.l.b16 %v37
  %v606 = vunpack.c.l.b16 %v38
  %v607 = vunpack.c.l.b16 %v39
  %v608 = vunpack.c.l.b16 %v40
  %v609 = vunpack.c.l.b16 %v41
  %v610 = vunpack.c.l.b16 %v42
  %v611 = vunpack.c.l.b16 %v43
  %v612 = vunpack.c.l.b16 %v44
  %v613 = vunpack.c.l.b16 %v45
  %v614 = vunpack.c.l.b16 %v46
  %v615 = vunpack.c.l.b16 %v47
  %v616 = vunpack.c.l.b16 %v48
  %v617 = vunpack.c.l.b16 %v49
  %v618 = vunpack.c.l.b16 %v50
  %v619 = vunpack.c.l.b16 %v51
  %v620 = vunpack.c.l.b16 %v52
  %v621 = vunpack.c.l.b16 %v53
  %v622 = vunpack.c.l.b16 %v54
  %v623 = vunpack.c.l.b16 %v55
  %v624 = vunpack.c.l.b16 %v56
  %v625 = vunpack.c.l.b16 %v57
  %v626 = vunpack.c.l.b16 %v58
  %v627 = vunpack.c.l.b16 %v59
  %v628 = vunpack.c.l.b16 %v60
  %v629 = vunpack.c.l.b16 %v61
  %v630 = vunpack.c.l.b16 %v62
  %v631 = vunpack.c.l.b16 %v63
  %v632 = vunpack.c.l.b16 %v64
  %v633 = vunpack.c.l.b16 %v65
  %v634 = vunpack.c.l.b16 %v66
  %v635 = vunpack.c.l.b16 %v67
  %v636 = vunpack.c.l.b16 %v68
  %v637 = vunpack.c.l.b16 %v69
  %v638 = vunpack.c.l.b16 %v70
  %v639 = vunpack.c.l.b16 %v71
  %v640 = vunpack.c.l.b16 %v72
  %v641 = vunpack.c.l.b16 %v73
  %v642 = vunpack.c.l.b16 %v74
  %v643 = vunpack.c.l.b16 %v75
  %v644 = vunpack.c.l.b16 %v76
  %v645 = vunpack.c.l.b16 %v77
  %v646 = vunpack.c.l.b16 %v78
  %v647 = vunpack.c.l.b16 %v79
  %v648 = vunpack.c.l.b16 %v80
  %v649 = vunpack.c.l.b16 %v81
  %v650 = vunpack.c.l.b16 %v82
  %v651 = vunpack.c.l.b16 %v83
  %v652 = vunpack.c.l.b16 %v84
  %v653 = vunpack.c.l.b16 %v85
  %v654 = vunpack.c.l.b16 %v86
  %v655 = vunpack.c.l.b16 %v87
  %v656 = vunpack.c.l.b16 %v88
  %v657 = vunpack.c.l.b16 %v89
  %v658 = vunpack.c.l.b16 %v90
  %v659 = vunpack.c.l.b16 %v91
  %v660 = vunpack.c.l.b16 %v92
  %v661 = vunpack.c.l.b16 %v93
  %v662 = vunpack.c.l.b16 %v94
  %v663 = vunpack.c.l.b16 %v95
  %v664 = vunpack.c.l.b16 %v96
  %v665 = vunpack.c.l.b16 %v97
  %v666 = vunpack.c.l.b16 %v98
  %v667 = vunpack.c.l.b16 %v99
  %v668 = vunpack.c.l.b16 %v100
  %v669 = vunpack.c.l.b16 %v101
  %v670 = vunpack.c.l.b16 %v102
  %v671 = vunpack.c.l.b16 %v103
  %v672 = vunpack.c.l.b16 %v104
  %v673 = vunpack.c.l.b16 %v105
  %v674 = vunpack.c.l.b16 %v106
  %v675 = vunpack.c.l.b16 %v107
  %v676 = vunpack.c.l.b16 %v108
  %v677 = vunpack.c.l.b16 %v109
  %v678 = vunpack.c.l.b16 %v110
  %v679 = vunpack.c.l.b16 %v111
  %v680 = vunpack.c.l.b16 %v112
  %v681 = vunpack.c.l.b16 %v113
  %v682 = vunpack.c.l.b16 %v114
  %v683 = vunpack.c.l.b16 %v115
  %v684 = vunpack.c.l.b16 %v116
  %v685 = vunpack.c.l.b16 %v117
  %v686 = vunpack.c.l.b16 %v118
  %v687 = vunpack.c.l.b16 %v119
  %v688 = vunpack.c.l.b16 %v120
  %v689 = vunpack.c.l.b16 %v121
  %v690 = vunpack.c.l.b16 %v122
  %v691 = vunpack.c.l.b16 %v123
  %v692 = vunpack.c.l.b16 %v124
  %v693 = vunpack.c.l.b16 %v125
  %v694 = vunpack.c.l.b16 %v126
  %v695 = vunpack.c.l.b16 %v127
  %v696 = vunpack.c.l.b16 %v128
  %v697 = vunpack.c.l.b16 %v129
  %v698 = vunpack.c.l.b16 %v130
  %v699 = vunpack.c.l.b16 %v131
  %v700 = vunpack.c.l.b16 %v132
  %v701 = vunpack.c.l.b16 %v133
  %v702 = vunpack.c.l.b16 %v134
  %v703 = vunpack.c.l.b16 %v135
  %v704 = vunpack.c.l.b16 %v136
  %v705 = vunpack.c.l.b16 %v137
  %v706 = vunpack.c.l.b16 %v138
  %v707 = vunpack.c.l.b16 %v139
  %v708 = vunpack.c.l.b16 %v140
  %v709 = vunpack.c.l.b16 %v141
  %v710 = vunpack.c.l.b16 %v142
  %v711 = vunpack.c.l.b16 %v143
  %v712 = vunpack.c.l.b16 %v144
  %v713 = vunpack.c.l.b16 %v145
  %v714 = vunpack.c.l.b16 %v146
  %v715 = vunpack.c.l.b16 %v147
  %v716 = vunpack.c.l.b16 %v148
  %v717 = vunpack.c.l.b16 %v149
  %v718 = vunpack.c.l.b16 %v150
  %v719 = vunpack.c.l.b16 %v151
  %v720 = vunpack.c.l.b16 %v152
  %v721 = vunpack.c.l.b16 %v153
  %v722 = vunpack.c.l.b16 %v154
  %v723 = vunpack.c.l.b16 %v155
  %v724 = vunpack.c.l.b16 %v156
  %v725 = vunpack.c.l.b16 %v157
  %v726 = vunpack.c.l.b16 %v158
  %v727 = vunpack.c.l.b16 %v159
  %v728 = vunpack.c.l.b16 %v160
  %v729 = vunpack.c.l.b16 %v161
  %v730 = vunpack.c.l.b16 %v162
  %v731 = vunpack.c.l.b16 %v163
  %v732 = vunpack.c.l.b16 %v164
  %v733 = vunpack.c.l.b16 %v165
  %v734 = vunpack.c.l.b16 %v166
  %v735 = vunpack.c.l.b16 %v167
  %v736 = vunpack.c.l.b16 %v168
  %v737 = vunpack.c.l.b16 %v169
  %v738 = vunpack.c.l.b16 %v170
  %v739 = vunpack.c.l.b16 %v171
  %v740 = vunpack.c.l.b16 %v172
  %v741 = vunpack.c.l.b16 %v173
  %v742 = vunpack.c.l.b16 %v174
  %v743 = vunpack.c.l.b16 %v175
  %v744 = vunpack.c.l.b16 %v176
  %v745 = vunpack.c.l.b16 %v177
  %v746 = vunpack.c.l.b16 %v178
  %v747 = vunpack.c.l.b16 %v179
  %v748 = vunpack.c.l.b16 %v180
  %v749 = vunpack.c.l.b16 %v181
  %v750 = vunpack.c.l.b16 %v182
  %v751 = vunpack.c.l.b16 %v183
  %v752 = vunpack.c.l.b16 %v184
  %v753 = vunpack.c.l.b16 %v185
  %v754 = vunpack.c.l.b16 %v186
  %v755 = vunpack.c.l.b16 %v187
  %v756 = vunpack.c.l.b16 %v188
  %v757 = vunpack.c.l.b16 %v189
  %v758 = vunpack.c.l.b16 %v190
  %v759 = vunpack.c.l.b16 %v191
  %v760 = vunpack.c.l.b16 %v192
  %v761 = vunpack.c.l.b16 %v193
  %v762 = vunpack.c.l.b16 %v194
  %v763 = vunpack.c.l.b16 %v195
  %v764 = vunpack.c.l.b16 %v196
  %v765 = vunpack.c.l.b16 %v197
  %v766 = vunpack.c.l.b16 %v198
  %v767 = vunpack.c.l.b16 %v199
  %v768 = vunpack.c.l.b16 %v200
  %v769 = vunpack.c.l.b16 %v201
  %v770 = vunpack.c.l.b16 %v202
  %v771 = vunpack.c.l.b16 %v203
  %v772 = vunpack.c.l.b16 %v204
  %v773 = vunpack.c.l.b16 %v205
  %v774 = vunpack.c.l.b16 %v206
  %v775 = vunpack.c.l.b16 %v207
  %v776 = vunpack.c.l.b16 %v208
  %v777 = vunpack.c.l.b16 %v209
  %v778 = vunpack.c.l.b16 %v210
  %v779 = vunpack.c.l.b16 %v211
  %v780 = vunpack.c.l.b16 %v212
  %v781 = vunpack.c.l.b16 %v213
  %v782 = vunpack.c.l.b16 %v214
  %v783 = vunpack.c.l.b16 %v215
  %v784 = vunpack.c.l.b16 %v216
  %v785 = vunpack.c.l.b16 %v217
  %v786 = vunpack.c.l.b16 %v218
  %v787 = vunpack.c.l.b16 %v219
  %v788 = vunpack.c.l.b16 %v220
  %v789 = vunpack.c.l.b16 %v221
  %v790 = vunpack.c.l.b16 %v222
  %v791 = vunpack.c.l.b16 %v223
  %v792 = vunpack.c.l.b16 %v224
  %v793 = vunpack.c.l.b16 %v225
  %v794 = vunpack.c.l.b16 %v226
  %v795 = vunpack.c.l.b16 %v227
  %v796 = vunpack.c.l.b16 %v228
  %v797 = vunpack.c.l.b16 %v229
  %v798 = vunpack.c.l.b16 %v230
  %v799 = vunpack.c.l.b16 %v231
  %v800 = vunpack.c.l.b16 %v232
  %v801 = vunpack.c.l.b16 %v233
  %v802 = vunpack.c.l.b16 %v234
  %v803 = vunpack.c.l.b16 %v235
  %v804 = vunpack.c.l.b16 %v236
  %v805 = vunpack.c.l.b16 %v237
  %v806 = vunpack.c.l.b16 %v238
  %v807 = vunpack.c.l.b16 %v239
  %v808 = vunpack.c.l.b16 %v240
  %v809 = vunpack.c.l.b16 %v241
  %v810 = vunpack.c.l.b16 %v242
  %v811 = vunpack.c.l.b16 %v243
  %v812 = vunpack.c.l.b16 %v244
  %v813 = vunpack.c.l.b16 %v245
  %v814 = vunpack.c.l.b16 %v246
  %v815 = vunpack.c.l.b16 %v247
  %v816 = vunpack.c.l.b16 %v248
  %v817 = vunpack.c.l.b16 %v249
  %v818 = vunpack.c.l.b16 %v250
  %v819 = vunpack.c.l.b16 %v251
  %v820 = vunpack.c.l.b16 %v252
  %v821 = vunpack.c.l.b16 %v253
  %v822 = vunpack.c.l.b16 %v254
  %v823 = vunpack.c.l.b16 %v255
  %v824 = vunpack.c.l.b16 %v256
  %v825 = vunpack.c.l.b16 %v257
  %v826 = vunpack.c.l.b16 %v258
  %v827 = vunpack.c.l.b16 %v259
  %v828 = vunpack.c.l.b16 %v260
  %v829 = vunpack.c.l.b16 %v261
  %v830 = vunpack.c.l.b16 %v262
  %v831 = vunpack.c.l.b16 %v263
  %v832 = vunpack.c.l.b16 %v264
  %v833 = vunpack.c.l.b16 %v265
  %v834 = vunpack.c.l.b16 %v266
  %v835 = vunpack.c.l.b16 %v267
  %v836 = vunpack.c.l.b16 %v268
  %v837 = vunpack.c.l.b16 %v269
  %v838 = vunpack.c.l.b16 %v270
  %v839 = vunpack.c.l.b16 %v271
  %v840 = vunpack.c.l.b16 %v272
  %v841 = vunpack.c.l.b16 %v273
  %v842 = vunpack.c.l.b16 %v274
  %v843 = vunpack.c.l.b16 %v275
  %v844 = vunpack.c.l.b16 %v276
  %v845 = vunpack.c.l.b16 %v277
  %v846 = vunpack.c.l.b16 %v278
  %v847 = vunpack.c.l.b16 %v279
  %v848 = vunpack.c.l.b16 %v280
  %v849 = vunpack.c.l.b16 %v281
  %v850 = vunpack.c.l.b16 %v282
  %v851 = vunpack.c.l.b16 %v283
  %v852 = vunpack.c.l.b16 %v284
  %v853 = vunpack.c.l.b16 %v285
  %v854 = vunpack.c.l.b16 %v286
  %v855 = vunpack.c.l.b16 %v287
  %v856 = vpack.c.b16 %v583, %v582
  %v857 = vpack.c.b16 %v585, %v584
  %v858 = vpack.c.b16 %v587, %v586
  %v859 = vpack.c.b16 %v589, %v588
  %v860 = vpack.c.b16 %v591, %v590
  %v861 = vpack.c.b16 %v593, %v592
  %v862 = vpack.c.b16 %v595, %v594
  %v863 = vpack.c.b16 %v597, %v596
  %v864 = vpack.c.b16 %v599, %v598
  %v865 = vpack.c.b16 %v601, %v600
  %v866 = vpack.c.b16 %v603, %v602
  %v867 = vpack.c.b16 %v605, %v604
  %v868 = vpack.c.b16 %v607, %v606
  %v869 = vpack.c.b16 %v609, %v608
  %v870 = vpack.c.b16 %v611, %v610
  %v871 = vpack.c.b16 %v613, %v612
  %v872 = vpack.c.b16 %v615, %v614
  %v873 = vpack.c.b16 %v617, %v616
  %v874 = vpack.c.b16 %v619, %v618
  %v875 = vpack.c.b16 %v621, %v620
  %v876 = vpack.c.b16 %v623, %v622
  %v877 = vpack.c.b16 %v625, %v624
  %v878 = vpack.c.b16 %v627, %v626
  %v879 = vpack.c.b16 %v629, %v628
  %v880 = vpack.c.b16 %v631, %v630
  %v881 = vpack.c.b16 %v633, %v632
  %v882 = vpack.c.b16 %v635, %v634
  %v883 = vpack.c.b16 %v637, %v636
  %v884 = vpack.c.b16 %v639, %v638
  %v885 = vpack.c.b16 %v641, %v640
  %v886 = vpack.c.b16 %v643, %v642
  %v887 = vpack.c.b16 %v645, %v644
  %v888 = vpack.c.b16 %v647, %v646
  %v889 = vpack.c.b16 %v649, %v648
  %v890 = vpack.c.b16 %v651, %v650
  %v891 = vpack.c.b16 %v653, %v652
  %v892 = vpack.c.b16 %v655, %v654
  %v893 = vpack.c.b16 %v657, %v656
  %v894 = vpack.c.b16 %v659, %v658
  %v895 = vpack.c.b16 %v661, %v660
  %v896 = vpack.c.b16 %v663, %v662
  %v897 = vpack.c.b16 %v665, %v664
  %v898 = vpack.c.b16 %v667, %v666
  %v899 = vpack.c.b16 %v669, %v668
  %v900 = vpack.c.b16 %v671, %v670
  %v901 = vpack.c.b16 %v673, %v672
  %v902 = vpack.c.b16 %v675, %v674
  %v903 = vpack.c.b16 %v677, %v676
  %v904 = vpack.c.b16 %v679, %v678
  %v905 = vpack.c.b16 %v681, %v680
  %v906 = vpack.c.b16 %v683, %v682
  %v907 = vpack.c.b16 %v685, %v684
  %v908 = vpack.c.b16 %v687, %v686
  %v909 = vpack.c.b16 %v689, %v688
  %v910 = vpack.c.b16 %v691, %v690
  %v911 = vpack.c.b16 %v693, %v692
  %v912 = vpack.c.b16 %v695, %v694
  %v913 = vpack.c.b16 %v697, %v696
  %v914 = vpack.c.b16 %v699, %v698
  %v915 = vpack.c.b16 %v701, %v700
  %v916 = vpack.c.b16 %v703, %v702
  %v917 = vpack.c.b16 %v705, %v704
  %v918 = vpack.c.b16 %v707, %v706
  %v919 = vpack.c.b16 %v709, %v708
  %v920 = vpack.c.b16 %v711, %v710
  %v921 = vpack.c.b16 %v713, %v712
  %v922 = vpack.c.b16 %v715, %v714
  %v923 = vpack.c.b16 %v717, %v716
  %v924 = vpack.c.b16 %v719, %v718
  %v925 = vpack.c.b16 %v721, %v720
  %v926 = vpack.c.b16 %v723, %v722
  %v927 = vpack.c.b16 %v725, %v724
  %v928 = vpack.c.b16 %v727, %v726
  %v929 = vpack.c.b16 %v729, %v728
  %v930 = vpack.c.b16 %v731, %v730
  %v931 = vpack.c.b16 %v733, %v732
  %v932 = vpack.c.b16 %v735, %v734
  %v933 = vpack.c.b16 %v737, %v736
  %v934 = vpack.c.b16 %v739, %v738
  %v935 = vpack.c.b16 %v741, %v740
  %v936 = vpack.c.b16 %v743, %v742
  %v937 = vpack.c.b16 %v745, %v744
  %v938 = vpack.c.b16 %v747, %v746
  %v939 = vpack.c.b16 %v749, %v748
  %v940 = vpack.c.b16 %v751, %v750
  %v941 = vpack.c.b16 %v753, %v752
  %v942 = vpack.c.b16 %v755, %v754
  %v943 = vpack.c.b16 %v757, %v756
  %v944 = vpack.c.b16 %v759, %v758
  %v945 = vpack.c.b16 %v761, %v760
  %v946 = vpack.c.b16 %v763, %v762
  %v947 = vpack.c.b16 %v765, %v764
  %v948 = vpack.c.b16 %v767, %v766
  %v949 = vpack.c.b16 %v769, %v768
  %v950 = vpack.c.b16 %v771, %v770
  %v951 = vpack.c.b16 %v773, %v772
  %v952 = vpack.c.b16 %v775, %v774
  %v953 = vpack.c.b16 %v777, %v776
  %v954 = vpack.c.b16 %v779, %v778
  %v955 = vpack.c.b16 %v781, %v780
  %v956 = vpack.c.b16 %v783, %v782
  %v957 = vpack.c.b16 %v785, %v784
  %v958 = vpack.c.b16 %v787, %v786
  %v959 = vpack.c.b16 %v789, %v788
  %v960 = vpack.c.b16 %v791, %v790
  %v961 = vpack.c.b16 %v793, %v792
  %v962 = vpack.c.b16 %v795, %v794
  %v963 = vpack.c.b16 %v797, %v796
  %v964 = vpack.c.b16 %v799, %v798
  %v965 = vpack.c.b16 %v801, %v800
  %v966 = vpack.c.b16 %v803, %v802
  %v967 = vpack.c.b16 %v805, %v804
  %v968 = vpack.c.b16 %v807, %v806
  %v969 = vpack.c.b16 %v809, %v808
  %v970 = vpack.c.b16 %v811, %v810
  %v971 = vpack.c.b16 %v813, %v812
  %v972 = vpack.c.b16 %v815, %v814
  %v973 = vpack.c.b16 %v817, %v816
  %v974 = vpack.c.b16 %v819, %v818
  %v975 = vpack.c.b16 %v821, %v820
  %v976 = vpack.c.b16 %v823, %v822
  %v977 = vpack.c.b16 %v825, %v824
  %v978 = vpack.c.b16 %v827, %v826
  %v979 = vpack.c.b16 %v829, %v828
  %v980 = vpack.c.b16 %v831, %v830
  %v981 = vpack.c.b16 %v833, %v832
  %v982 = vpack.c.b16 %v835, %v834
  %v983 = vpack.c.b16 %v837, %v836
  %v984 = vpack.c.b16 %v839, %v838
  %v985 = vpack.c.b16 %v841, %v840
  %v986 = vpack.c.b16 %v843, %v842
  %v987 = vpack.c.b16 %v845, %v844
  %v988 = vpack.c.b16 %v847, %v846
  %v989 = vpack.c.b16 %v849, %v848
  %v990 = vpack.c.b16 %v851, %v850
  %v991 = vpack.c.b16 %v853, %v852
  %v992 = vpack.c.b16 %v855, %v854
  %v1146 = vunpack.c.l.b16 %v288
  %v1147 = vunpack.c.l.b16 %v289
  %v1148 = vunpack.c.l.b16 %v290
  %v1149 = vunpack.c.l.b16 %v291
  %v1150 = vunpack.c.l.b16 %v292
  %v1151 = vunpack.c.l.b16 %v293
  %v1152 = vunpack.c.l.b16 %v294
  %v1153 = vunpack.c.l.b16 %v295
  %v1154 = vunpack.c.l.b16 %v296
  %v1155 = vunpack.c.l.b16 %v297
  %v1156 = vunpack.c.l.b16 %v298
  %v1157 = vunpack.c.l.b16 %v299
  %v1158 = vunpack.c.l.b16 %v300
  %v1159 = vunpack.c.l.b16 %v301
  %v1160 = vunpack.c.l.b16 %v302
  %v1161 = vunpack.c.l.b16 %v303
  %v1162 = vpack.c.b16 %v1147, %v1146
  %v1163 = vpack.c.b16 %v1149, %v1148
  %v1164 = vpack.c.b16 %v1151, %v1150
  %v1165 = vpack.c.b16 %v1153, %v1152
  %v1166 = vpack.c.b16 %v1155, %v1154
  %v1167 = vpack.c.b16 %v1157, %v1156
  %v1168 = vpack.c.b16 %v1159, %v1158
  %v1169 = vpack.c.b16 %v1161, %v1160
  %1178 = vmatpush.bf16.msra.mxu0 %v1169
  %1179 = vmatpush.bf16.msra.mxu0 %v1168
  %1180 = vmatpush.bf16.msra.mxu0 %v1167
  %1181 = vmatpush.bf16.msra.mxu0 %v1166
  %1182 = vmatpush.bf16.msra.mxu0 %v1165
  %1183 = vmatpush.bf16.msra.mxu0 %v1164
  %1184 = vmatpush.bf16.msra.mxu0 %v1163
  %1185 = vmatpush.bf16.msra.mxu0 %v1162
  %1186 = vmatmul.bf16.gmra.mxu0 %v856
  %v1187 = vpop.f32.mrf.mxu0
  %v1188 = vadd.f32 %v306, %v1187
  %v1189 = vpop.f32.mrf.mxu0
  %v1190 = vadd.f32 %v306, %v1189
  %1191 = vmatmul.bf16.gmra.mxu0 %v857
  %v1192 = vpop.f32.mrf.mxu0
  %v1193 = vadd.f32 %v306, %v1192
  %v1194 = vpop.f32.mrf.mxu0
  %v1195 = vadd.f32 %v306, %v1194
  %1196 = vmatmul.bf16.gmra.mxu0 %v858
  %v1197 = vpop.f32.mrf.mxu0
  %v1198 = vadd.f32 %v306, %v1197
  %v1199 = vpop.f32.mrf.mxu0
  %v1200 = vadd.f32 %v306, %v1199
  %1201 = vmatmul.bf16.gmra.mxu0 %v859
  %v1202 = vpop.f32.mrf.mxu0
  %v1203 = vadd.f32 %v306, %v1202
  %v1204 = vpop.f32.mrf.mxu0
  %v1205 = vadd.f32 %v306, %v1204
  %1206 = vmatmul.bf16.gmra.mxu0 %v860
  %v1207 = vpop.f32.mrf.mxu0
  %v1208 = vadd.f32 %v306, %v1207
  %v1209 = vpop.f32.mrf.mxu0
  %v1210 = vadd.f32 %v306, %v1209
  %1211 = vmatmul.bf16.gmra.mxu0 %v861
  %v1212 = vpop.f32.mrf.mxu0
  %v1213 = vadd.f32 %v306, %v1212
  %v1214 = vpop.f32.mrf.mxu0
  %v1215 = vadd.f32 %v306, %v1214
  %1216 = vmatmul.bf16.gmra.mxu0 %v862
  %v1217 = vpop.f32.mrf.mxu0
  %v1218 = vadd.f32 %v306, %v1217
  %v1219 = vpop.f32.mrf.mxu0
  %v1220 = vadd.f32 %v306, %v1219
  %1221 = vmatmul.bf16.gmra.mxu0 %v863
  %v1222 = vpop.f32.mrf.mxu0
  %v1223 = vadd.f32 %v306, %v1222
  %v1224 = vpop.f32.mrf.mxu0
  %v1225 = vadd.f32 %v306, %v1224
  %1226 = vmatmul.bf16.gmra.mxu0 %v864
  %v1227 = vpop.f32.mrf.mxu0
  %v1228 = vadd.f32 %v306, %v1227
  %v1229 = vpop.f32.mrf.mxu0
  %v1230 = vadd.f32 %v306, %v1229
  %1231 = vmatmul.bf16.gmra.mxu0 %v865
  %v1232 = vpop.f32.mrf.mxu0
  %v1233 = vadd.f32 %v306, %v1232
  %v1234 = vpop.f32.mrf.mxu0
  %v1235 = vadd.f32 %v306, %v1234
  %1236 = vmatmul.bf16.gmra.mxu0 %v866
  %v1237 = vpop.f32.mrf.mxu0
  %v1238 = vadd.f32 %v306, %v1237
  %v1239 = vpop.f32.mrf.mxu0
  %v1240 = vadd.f32 %v306, %v1239
  %1241 = vmatmul.bf16.gmra.mxu0 %v867
  %v1242 = vpop.f32.mrf.mxu0
  %v1243 = vadd.f32 %v306, %v1242
  %v1244 = vpop.f32.mrf.mxu0
  %v1245 = vadd.f32 %v306, %v1244
  %1246 = vmatmul.bf16.gmra.mxu0 %v868
  %v1247 = vpop.f32.mrf.mxu0
  %v1248 = vadd.f32 %v306, %v1247
  %v1249 = vpop.f32.mrf.mxu0
  %v1250 = vadd.f32 %v306, %v1249
  %1251 = vmatmul.bf16.gmra.mxu0 %v869
  %v1252 = vpop.f32.mrf.mxu0
  %v1253 = vadd.f32 %v306, %v1252
  %v1254 = vpop.f32.mrf.mxu0
  %v1255 = vadd.f32 %v306, %v1254
  %1256 = vmatmul.bf16.gmra.mxu0 %v870
  %v1257 = vpop.f32.mrf.mxu0
  %v1258 = vadd.f32 %v306, %v1257
  %v1259 = vpop.f32.mrf.mxu0
  %v1260 = vadd.f32 %v306, %v1259
  %1261 = vmatmul.bf16.gmra.mxu0 %v871
  %v1262 = vpop.f32.mrf.mxu0
  %v1263 = vadd.f32 %v306, %v1262
  %v1264 = vpop.f32.mrf.mxu0
  %v1265 = vadd.f32 %v306, %v1264
  %1266 = vmatmul.bf16.gmra.mxu0 %v872
  %v1267 = vpop.f32.mrf.mxu0
  %v1268 = vadd.f32 %v306, %v1267
  %v1269 = vpop.f32.mrf.mxu0
  %v1270 = vadd.f32 %v306, %v1269
  %1271 = vmatmul.bf16.gmra.mxu0 %v873
  %v1272 = vpop.f32.mrf.mxu0
  %v1273 = vadd.f32 %v306, %v1272
  %v1274 = vpop.f32.mrf.mxu0
  %v1275 = vadd.f32 %v306, %v1274
  %1276 = vmatmul.bf16.gmra.mxu0 %v874
  %v1277 = vpop.f32.mrf.mxu0
  %v1278 = vadd.f32 %v306, %v1277
  %v1279 = vpop.f32.mrf.mxu0
  %v1280 = vadd.f32 %v306, %v1279
  %1281 = vmatmul.bf16.gmra.mxu0 %v875
  %v1282 = vpop.f32.mrf.mxu0
  %v1283 = vadd.f32 %v306, %v1282
  %v1284 = vpop.f32.mrf.mxu0
  %v1285 = vadd.f32 %v306, %v1284
  %1286 = vmatmul.bf16.gmra.mxu0 %v876
  %v1287 = vpop.f32.mrf.mxu0
  %v1288 = vadd.f32 %v306, %v1287
  %v1289 = vpop.f32.mrf.mxu0
  %v1290 = vadd.f32 %v306, %v1289
  %1291 = vmatmul.bf16.gmra.mxu0 %v877
  %v1292 = vpop.f32.mrf.mxu0
  %v1293 = vadd.f32 %v306, %v1292
  %v1294 = vpop.f32.mrf.mxu0
  %v1295 = vadd.f32 %v306, %v1294
  %1296 = vmatmul.bf16.gmra.mxu0 %v878
  %v1297 = vpop.f32.mrf.mxu0
  %v1298 = vadd.f32 %v306, %v1297
  %v1299 = vpop.f32.mrf.mxu0
  %v1300 = vadd.f32 %v306, %v1299
  %1301 = vmatmul.bf16.gmra.mxu0 %v879
  %v1302 = vpop.f32.mrf.mxu0
  %v1303 = vadd.f32 %v306, %v1302
  %v1304 = vpop.f32.mrf.mxu0
  %v1305 = vadd.f32 %v306, %v1304
  %1306 = vmatmul.bf16.gmra.mxu0 %v880
  %v1307 = vpop.f32.mrf.mxu0
  %v1308 = vadd.f32 %v306, %v1307
  %v1309 = vpop.f32.mrf.mxu0
  %v1310 = vadd.f32 %v306, %v1309
  %1311 = vmatmul.bf16.gmra.mxu0 %v881
  %v1312 = vpop.f32.mrf.mxu0
  %v1313 = vadd.f32 %v306, %v1312
  %v1314 = vpop.f32.mrf.mxu0
  %v1315 = vadd.f32 %v306, %v1314
  %1316 = vmatmul.bf16.gmra.mxu0 %v882
  %v1317 = vpop.f32.mrf.mxu0
  %v1318 = vadd.f32 %v306, %v1317
  %v1319 = vpop.f32.mrf.mxu0
  %v1320 = vadd.f32 %v306, %v1319
  %1321 = vmatmul.bf16.gmra.mxu0 %v883
  %v1322 = vpop.f32.mrf.mxu0
  %v1323 = vadd.f32 %v306, %v1322
  %v1324 = vpop.f32.mrf.mxu0
  %v1325 = vadd.f32 %v306, %v1324
  %1326 = vmatmul.bf16.gmra.mxu0 %v884
  %v1327 = vpop.f32.mrf.mxu0
  %v1328 = vadd.f32 %v306, %v1327
  %v1329 = vpop.f32.mrf.mxu0
  %v1330 = vadd.f32 %v306, %v1329
  %1331 = vmatmul.bf16.gmra.mxu0 %v885
  %v1332 = vpop.f32.mrf.mxu0
  %v1333 = vadd.f32 %v306, %v1332
  %v1334 = vpop.f32.mrf.mxu0
  %v1335 = vadd.f32 %v306, %v1334
  %1336 = vmatmul.bf16.gmra.mxu0 %v886
  %v1337 = vpop.f32.mrf.mxu0
  %v1338 = vadd.f32 %v306, %v1337
  %v1339 = vpop.f32.mrf.mxu0
  %v1340 = vadd.f32 %v306, %v1339
  %1341 = vmatmul.bf16.gmra.mxu0 %v887
  %v1342 = vpop.f32.mrf.mxu0
  %v1343 = vadd.f32 %v306, %v1342
  %v1344 = vpop.f32.mrf.mxu0
  %v1345 = vadd.f32 %v306, %v1344
  %1346 = vmatmul.bf16.gmra.mxu0 %v888
  %v1347 = vpop.f32.mrf.mxu0
  %v1348 = vadd.f32 %v306, %v1347
  %v1349 = vpop.f32.mrf.mxu0
  %v1350 = vadd.f32 %v306, %v1349
  %1351 = vmatmul.bf16.gmra.mxu0 %v889
  %v1352 = vpop.f32.mrf.mxu0
  %v1353 = vadd.f32 %v306, %v1352
  %v1354 = vpop.f32.mrf.mxu0
  %v1355 = vadd.f32 %v306, %v1354
  %1356 = vmatmul.bf16.gmra.mxu0 %v890
  %v1357 = vpop.f32.mrf.mxu0
  %v1358 = vadd.f32 %v306, %v1357
  %v1359 = vpop.f32.mrf.mxu0
  %v1360 = vadd.f32 %v306, %v1359
  %1361 = vmatmul.bf16.gmra.mxu0 %v891
  %v1362 = vpop.f32.mrf.mxu0
  %v1363 = vadd.f32 %v306, %v1362
  %v1364 = vpop.f32.mrf.mxu0
  %v1365 = vadd.f32 %v306, %v1364
  %1366 = vmatmul.bf16.gmra.mxu0 %v892
  %v1367 = vpop.f32.mrf.mxu0
  %v1368 = vadd.f32 %v306, %v1367
  %v1369 = vpop.f32.mrf.mxu0
  %v1370 = vadd.f32 %v306, %v1369
  %1371 = vmatmul.bf16.gmra.mxu0 %v893
  %v1372 = vpop.f32.mrf.mxu0
  %v1373 = vadd.f32 %v306, %v1372
  %v1374 = vpop.f32.mrf.mxu0
  %v1375 = vadd.f32 %v306, %v1374
  %1376 = vmatmul.bf16.gmra.mxu0 %v894
  %v1377 = vpop.f32.mrf.mxu0
  %v1378 = vadd.f32 %v306, %v1377
  %v1379 = vpop.f32.mrf.mxu0
  %v1380 = vadd.f32 %v306, %v1379
  %1381 = vmatmul.bf16.gmra.mxu0 %v895
  %v1382 = vpop.f32.mrf.mxu0
  %v1383 = vadd.f32 %v306, %v1382
  %v1384 = vpop.f32.mrf.mxu0
  %v1385 = vadd.f32 %v306, %v1384
  %1386 = vmatmul.bf16.gmra.mxu0 %v896
  %v1387 = vpop.f32.mrf.mxu0
  %v1388 = vadd.f32 %v306, %v1387
  %v1389 = vpop.f32.mrf.mxu0
  %v1390 = vadd.f32 %v306, %v1389
  %1391 = vmatmul.bf16.gmra.mxu0 %v897
  %v1392 = vpop.f32.mrf.mxu0
  %v1393 = vadd.f32 %v306, %v1392
  %v1394 = vpop.f32.mrf.mxu0
  %v1395 = vadd.f32 %v306, %v1394
  %1396 = vmatmul.bf16.gmra.mxu0 %v898
  %v1397 = vpop.f32.mrf.mxu0
  %v1398 = vadd.f32 %v306, %v1397
  %v1399 = vpop.f32.mrf.mxu0
  %v1400 = vadd.f32 %v306, %v1399
  %1401 = vmatmul.bf16.gmra.mxu0 %v899
  %v1402 = vpop.f32.mrf.mxu0
  %v1403 = vadd.f32 %v306, %v1402
  %v1404 = vpop.f32.mrf.mxu0
  %v1405 = vadd.f32 %v306, %v1404
  %1406 = vmatmul.bf16.gmra.mxu0 %v900
  %v1407 = vpop.f32.mrf.mxu0
  %v1408 = vadd.f32 %v306, %v1407
  %v1409 = vpop.f32.mrf.mxu0
  %v1410 = vadd.f32 %v306, %v1409
  %1411 = vmatmul.bf16.gmra.mxu0 %v901
  %v1412 = vpop.f32.mrf.mxu0
  %v1413 = vadd.f32 %v306, %v1412
  %v1414 = vpop.f32.mrf.mxu0
  %v1415 = vadd.f32 %v306, %v1414
  %1416 = vmatmul.bf16.gmra.mxu0 %v902
  %v1417 = vpop.f32.mrf.mxu0
  %v1418 = vadd.f32 %v306, %v1417
  %v1419 = vpop.f32.mrf.mxu0
  %v1420 = vadd.f32 %v306, %v1419
  %1421 = vmatmul.bf16.gmra.mxu0 %v903
  %v1422 = vpop.f32.mrf.mxu0
  %v1423 = vadd.f32 %v306, %v1422
  %v1424 = vpop.f32.mrf.mxu0
  %v1425 = vadd.f32 %v306, %v1424
  %1426 = vmatmul.bf16.gmra.mxu0 %v904
  %v1427 = vpop.f32.mrf.mxu0
  %v1428 = vadd.f32 %v306, %v1427
  %v1429 = vpop.f32.mrf.mxu0
  %v1430 = vadd.f32 %v306, %v1429
  %1431 = vmatmul.bf16.gmra.mxu0 %v905
  %v1432 = vpop.f32.mrf.mxu0
  %v1433 = vadd.f32 %v306, %v1432
  %v1434 = vpop.f32.mrf.mxu0
  %v1435 = vadd.f32 %v306, %v1434
  %1436 = vmatmul.bf16.gmra.mxu0 %v906
  %v1437 = vpop.f32.mrf.mxu0
  %v1438 = vadd.f32 %v306, %v1437
  %v1439 = vpop.f32.mrf.mxu0
  %v1440 = vadd.f32 %v306, %v1439
  %1441 = vmatmul.bf16.gmra.mxu0 %v907
  %v1442 = vpop.f32.mrf.mxu0
  %v1443 = vadd.f32 %v306, %v1442
  %v1444 = vpop.f32.mrf.mxu0
  %v1445 = vadd.f32 %v306, %v1444
  %1446 = vmatmul.bf16.gmra.mxu0 %v908
  %v1447 = vpop.f32.mrf.mxu0
  %v1448 = vadd.f32 %v306, %v1447
  %v1449 = vpop.f32.mrf.mxu0
  %v1450 = vadd.f32 %v306, %v1449
  %1451 = vmatmul.bf16.gmra.mxu0 %v909
  %v1452 = vpop.f32.mrf.mxu0
  %v1453 = vadd.f32 %v306, %v1452
  %v1454 = vpop.f32.mrf.mxu0
  %v1455 = vadd.f32 %v306, %v1454
  %1456 = vmatmul.bf16.gmra.mxu0 %v910
  %v1457 = vpop.f32.mrf.mxu0
  %v1458 = vadd.f32 %v306, %v1457
  %v1459 = vpop.f32.mrf.mxu0
  %v1460 = vadd.f32 %v306, %v1459
  %1461 = vmatmul.bf16.gmra.mxu0 %v911
  %v1462 = vpop.f32.mrf.mxu0
  %v1463 = vadd.f32 %v306, %v1462
  %v1464 = vpop.f32.mrf.mxu0
  %v1465 = vadd.f32 %v306, %v1464
  %1466 = vmatmul.bf16.gmra.mxu0 %v912
  %v1467 = vpop.f32.mrf.mxu0
  %v1468 = vadd.f32 %v306, %v1467
  %v1469 = vpop.f32.mrf.mxu0
  %v1470 = vadd.f32 %v306, %v1469
  %1471 = vmatmul.bf16.gmra.mxu0 %v913
  %v1472 = vpop.f32.mrf.mxu0
  %v1473 = vadd.f32 %v306, %v1472
  %v1474 = vpop.f32.mrf.mxu0
  %v1475 = vadd.f32 %v306, %v1474
  %1476 = vmatmul.bf16.gmra.mxu0 %v914
  %v1477 = vpop.f32.mrf.mxu0
  %v1478 = vadd.f32 %v306, %v1477
  %v1479 = vpop.f32.mrf.mxu0
  %v1480 = vadd.f32 %v306, %v1479
  %1481 = vmatmul.bf16.gmra.mxu0 %v915
  %v1482 = vpop.f32.mrf.mxu0
  %v1483 = vadd.f32 %v306, %v1482
  %v1484 = vpop.f32.mrf.mxu0
  %v1485 = vadd.f32 %v306, %v1484
  %1486 = vmatmul.bf16.gmra.mxu0 %v916
  %v1487 = vpop.f32.mrf.mxu0
  %v1488 = vadd.f32 %v306, %v1487
  %v1489 = vpop.f32.mrf.mxu0
  %v1490 = vadd.f32 %v306, %v1489
  %1491 = vmatmul.bf16.gmra.mxu0 %v917
  %v1492 = vpop.f32.mrf.mxu0
  %v1493 = vadd.f32 %v306, %v1492
  %v1494 = vpop.f32.mrf.mxu0
  %v1495 = vadd.f32 %v306, %v1494
  %1496 = vmatmul.bf16.gmra.mxu0 %v918
  %v1497 = vpop.f32.mrf.mxu0
  %v1498 = vadd.f32 %v306, %v1497
  %v1499 = vpop.f32.mrf.mxu0
  %v1500 = vadd.f32 %v306, %v1499
  %1501 = vmatmul.bf16.gmra.mxu0 %v919
  %v1502 = vpop.f32.mrf.mxu0
  %v1503 = vadd.f32 %v306, %v1502
  %v1504 = vpop.f32.mrf.mxu0
  %v1505 = vadd.f32 %v306, %v1504
  %1506 = vmatmul.bf16.gmra.mxu0 %v920
  %v1507 = vpop.f32.mrf.mxu0
  %v1508 = vadd.f32 %v306, %v1507
  %v1509 = vpop.f32.mrf.mxu0
  %v1510 = vadd.f32 %v306, %v1509
  %1511 = vmatmul.bf16.gmra.mxu0 %v921
  %v1512 = vpop.f32.mrf.mxu0
  %v1513 = vadd.f32 %v306, %v1512
  %v1514 = vpop.f32.mrf.mxu0
  %v1515 = vadd.f32 %v306, %v1514
  %1516 = vmatmul.bf16.gmra.mxu0 %v922
  %v1517 = vpop.f32.mrf.mxu0
  %v1518 = vadd.f32 %v306, %v1517
  %v1519 = vpop.f32.mrf.mxu0
  %v1520 = vadd.f32 %v306, %v1519
  %1521 = vmatmul.bf16.gmra.mxu0 %v923
  %v1522 = vpop.f32.mrf.mxu0
  %v1523 = vadd.f32 %v306, %v1522
  %v1524 = vpop.f32.mrf.mxu0
  %v1525 = vadd.f32 %v306, %v1524
  %1526 = vmatmul.bf16.gmra.mxu0 %v924
  %v1527 = vpop.f32.mrf.mxu0
  %v1528 = vadd.f32 %v306, %v1527
  %v1529 = vpop.f32.mrf.mxu0
  %v1530 = vadd.f32 %v306, %v1529
  %1531 = vmatmul.bf16.gmra.mxu0 %v925
  %v1532 = vpop.f32.mrf.mxu0
  %v1533 = vadd.f32 %v306, %v1532
  %v1534 = vpop.f32.mrf.mxu0
  %v1535 = vadd.f32 %v306, %v1534
  %1536 = vmatmul.bf16.gmra.mxu0 %v926
  %v1537 = vpop.f32.mrf.mxu0
  %v1538 = vadd.f32 %v306, %v1537
  %v1539 = vpop.f32.mrf.mxu0
  %v1540 = vadd.f32 %v306, %v1539
  %1541 = vmatmul.bf16.gmra.mxu0 %v927
  %v1542 = vpop.f32.mrf.mxu0
  %v1543 = vadd.f32 %v306, %v1542
  %v1544 = vpop.f32.mrf.mxu0
  %v1545 = vadd.f32 %v306, %v1544
  %1546 = vmatmul.bf16.gmra.mxu0 %v928
  %v1547 = vpop.f32.mrf.mxu0
  %v1548 = vadd.f32 %v306, %v1547
  %v1549 = vpop.f32.mrf.mxu0
  %v1550 = vadd.f32 %v306, %v1549
  %1551 = vmatmul.bf16.gmra.mxu0 %v929
  %v1552 = vpop.f32.mrf.mxu0
  %v1553 = vadd.f32 %v306, %v1552
  %v1554 = vpop.f32.mrf.mxu0
  %v1555 = vadd.f32 %v306, %v1554
  %1556 = vmatmul.bf16.gmra.mxu0 %v930
  %v1557 = vpop.f32.mrf.mxu0
  %v1558 = vadd.f32 %v306, %v1557
  %v1559 = vpop.f32.mrf.mxu0
  %v1560 = vadd.f32 %v306, %v1559
  %1561 = vmatmul.bf16.gmra.mxu0 %v931
  %v1562 = vpop.f32.mrf.mxu0
  %v1563 = vadd.f32 %v306, %v1562
  %v1564 = vpop.f32.mrf.mxu0
  %v1565 = vadd.f32 %v306, %v1564
  %1566 = vmatmul.bf16.gmra.mxu0 %v932
  %v1567 = vpop.f32.mrf.mxu0
  %v1568 = vadd.f32 %v306, %v1567
  %v1569 = vpop.f32.mrf.mxu0
  %v1570 = vadd.f32 %v306, %v1569
  %1571 = vmatmul.bf16.gmra.mxu0 %v933
  %v1572 = vpop.f32.mrf.mxu0
  %v1573 = vadd.f32 %v306, %v1572
  %v1574 = vpop.f32.mrf.mxu0
  %v1575 = vadd.f32 %v306, %v1574
  %1576 = vmatmul.bf16.gmra.mxu0 %v934
  %v1577 = vpop.f32.mrf.mxu0
  %v1578 = vadd.f32 %v306, %v1577
  %v1579 = vpop.f32.mrf.mxu0
  %v1580 = vadd.f32 %v306, %v1579
  %1581 = vmatmul.bf16.gmra.mxu0 %v935
  %v1582 = vpop.f32.mrf.mxu0
  %v1583 = vadd.f32 %v306, %v1582
  %v1584 = vpop.f32.mrf.mxu0
  %v1585 = vadd.f32 %v306, %v1584
  %1586 = vmatmul.bf16.gmra.mxu0 %v936
  %v1587 = vpop.f32.mrf.mxu0
  %v1588 = vadd.f32 %v306, %v1587
  %v1589 = vpop.f32.mrf.mxu0
  %v1590 = vadd.f32 %v306, %v1589
  %1591 = vmatmul.bf16.gmra.mxu0 %v937
  %v1592 = vpop.f32.mrf.mxu0
  %v1593 = vadd.f32 %v306, %v1592
  %v1594 = vpop.f32.mrf.mxu0
  %v1595 = vadd.f32 %v306, %v1594
  %1596 = vmatmul.bf16.gmra.mxu0 %v938
  %v1597 = vpop.f32.mrf.mxu0
  %v1598 = vadd.f32 %v306, %v1597
  %v1599 = vpop.f32.mrf.mxu0
  %v1600 = vadd.f32 %v306, %v1599
  %1601 = vmatmul.bf16.gmra.mxu0 %v939
  %v1602 = vpop.f32.mrf.mxu0
  %v1603 = vadd.f32 %v306, %v1602
  %v1604 = vpop.f32.mrf.mxu0
  %v1605 = vadd.f32 %v306, %v1604
  %1606 = vmatmul.bf16.gmra.mxu0 %v940
  %v1607 = vpop.f32.mrf.mxu0
  %v1608 = vadd.f32 %v306, %v1607
  %v1609 = vpop.f32.mrf.mxu0
  %v1610 = vadd.f32 %v306, %v1609
  %1611 = vmatmul.bf16.gmra.mxu0 %v941
  %v1612 = vpop.f32.mrf.mxu0
  %v1613 = vadd.f32 %v306, %v1612
  %v1614 = vpop.f32.mrf.mxu0
  %v1615 = vadd.f32 %v306, %v1614
  %1616 = vmatmul.bf16.gmra.mxu0 %v942
  %v1617 = vpop.f32.mrf.mxu0
  %v1618 = vadd.f32 %v306, %v1617
  %v1619 = vpop.f32.mrf.mxu0
  %v1620 = vadd.f32 %v306, %v1619
  %1621 = vmatmul.bf16.gmra.mxu0 %v943
  %v1622 = vpop.f32.mrf.mxu0
  %v1623 = vadd.f32 %v306, %v1622
  %v1624 = vpop.f32.mrf.mxu0
  %v1625 = vadd.f32 %v306, %v1624
  %1626 = vmatmul.bf16.gmra.mxu0 %v944
  %v1627 = vpop.f32.mrf.mxu0
  %v1628 = vadd.f32 %v306, %v1627
  %v1629 = vpop.f32.mrf.mxu0
  %v1630 = vadd.f32 %v306, %v1629
  %1631 = vmatmul.bf16.gmra.mxu0 %v945
  %v1632 = vpop.f32.mrf.mxu0
  %v1633 = vadd.f32 %v306, %v1632
  %v1634 = vpop.f32.mrf.mxu0
  %v1635 = vadd.f32 %v306, %v1634
  %1636 = vmatmul.bf16.gmra.mxu0 %v946
  %v1637 = vpop.f32.mrf.mxu0
  %v1638 = vadd.f32 %v306, %v1637
  %v1639 = vpop.f32.mrf.mxu0
  %v1640 = vadd.f32 %v306, %v1639
  %1641 = vmatmul.bf16.gmra.mxu0 %v947
  %v1642 = vpop.f32.mrf.mxu0
  %v1643 = vadd.f32 %v306, %v1642
  %v1644 = vpop.f32.mrf.mxu0
  %v1645 = vadd.f32 %v306, %v1644
  %1646 = vmatmul.bf16.gmra.mxu0 %v948
  %v1647 = vpop.f32.mrf.mxu0
  %v1648 = vadd.f32 %v306, %v1647
  %v1649 = vpop.f32.mrf.mxu0
  %v1650 = vadd.f32 %v306, %v1649
  %1651 = vmatmul.bf16.gmra.mxu0 %v949
  %v1652 = vpop.f32.mrf.mxu0
  %v1653 = vadd.f32 %v306, %v1652
  %v1654 = vpop.f32.mrf.mxu0
  %v1655 = vadd.f32 %v306, %v1654
  %1656 = vmatmul.bf16.gmra.mxu0 %v950
  %v1657 = vpop.f32.mrf.mxu0
  %v1658 = vadd.f32 %v306, %v1657
  %v1659 = vpop.f32.mrf.mxu0
  %v1660 = vadd.f32 %v306, %v1659
  %1661 = vmatmul.bf16.gmra.mxu0 %v951
  %v1662 = vpop.f32.mrf.mxu0
  %v1663 = vadd.f32 %v306, %v1662
  %v1664 = vpop.f32.mrf.mxu0
  %v1665 = vadd.f32 %v306, %v1664
  %1666 = vmatmul.bf16.gmra.mxu0 %v952
  %v1667 = vpop.f32.mrf.mxu0
  %v1668 = vadd.f32 %v306, %v1667
  %v1669 = vpop.f32.mrf.mxu0
  %v1670 = vadd.f32 %v306, %v1669
  %1671 = vmatmul.bf16.gmra.mxu0 %v953
  %v1672 = vpop.f32.mrf.mxu0
  %v1673 = vadd.f32 %v306, %v1672
  %v1674 = vpop.f32.mrf.mxu0
  %v1675 = vadd.f32 %v306, %v1674
  %1676 = vmatmul.bf16.gmra.mxu0 %v954
  %v1677 = vpop.f32.mrf.mxu0
  %v1678 = vadd.f32 %v306, %v1677
  %v1679 = vpop.f32.mrf.mxu0
  %v1680 = vadd.f32 %v306, %v1679
  %1681 = vmatmul.bf16.gmra.mxu0 %v955
  %v1682 = vpop.f32.mrf.mxu0
  %v1683 = vadd.f32 %v306, %v1682
  %v1684 = vpop.f32.mrf.mxu0
  %v1685 = vadd.f32 %v306, %v1684
  %1686 = vmatmul.bf16.gmra.mxu0 %v956
  %v1687 = vpop.f32.mrf.mxu0
  %v1688 = vadd.f32 %v306, %v1687
  %v1689 = vpop.f32.mrf.mxu0
  %v1690 = vadd.f32 %v306, %v1689
  %1691 = vmatmul.bf16.gmra.mxu0 %v957
  %v1692 = vpop.f32.mrf.mxu0
  %v1693 = vadd.f32 %v306, %v1692
  %v1694 = vpop.f32.mrf.mxu0
  %v1695 = vadd.f32 %v306, %v1694
  %1696 = vmatmul.bf16.gmra.mxu0 %v958
  %v1697 = vpop.f32.mrf.mxu0
  %v1698 = vadd.f32 %v306, %v1697
  %v1699 = vpop.f32.mrf.mxu0
  %v1700 = vadd.f32 %v306, %v1699
  %1701 = vmatmul.bf16.gmra.mxu0 %v959
  %v1702 = vpop.f32.mrf.mxu0
  %v1703 = vadd.f32 %v306, %v1702
  %v1704 = vpop.f32.mrf.mxu0
  %v1705 = vadd.f32 %v306, %v1704
  %1706 = vmatmul.bf16.gmra.mxu0 %v960
  %v1707 = vpop.f32.mrf.mxu0
  %v1708 = vadd.f32 %v306, %v1707
  %v1709 = vpop.f32.mrf.mxu0
  %v1710 = vadd.f32 %v306, %v1709
  %1711 = vmatmul.bf16.gmra.mxu0 %v961
  %v1712 = vpop.f32.mrf.mxu0
  %v1713 = vadd.f32 %v306, %v1712
  %v1714 = vpop.f32.mrf.mxu0
  %v1715 = vadd.f32 %v306, %v1714
  %1716 = vmatmul.bf16.gmra.mxu0 %v962
  %v1717 = vpop.f32.mrf.mxu0
  %v1718 = vadd.f32 %v306, %v1717
  %v1719 = vpop.f32.mrf.mxu0
  %v1720 = vadd.f32 %v306, %v1719
  %1721 = vmatmul.bf16.gmra.mxu0 %v963
  %v1722 = vpop.f32.mrf.mxu0
  %v1723 = vadd.f32 %v306, %v1722
  %v1724 = vpop.f32.mrf.mxu0
  %v1725 = vadd.f32 %v306, %v1724
  %1726 = vmatmul.bf16.gmra.mxu0 %v964
  %v1727 = vpop.f32.mrf.mxu0
  %v1728 = vadd.f32 %v306, %v1727
  %v1729 = vpop.f32.mrf.mxu0
  %v1730 = vadd.f32 %v306, %v1729
  %1731 = vmatmul.bf16.gmra.mxu0 %v965
  %v1732 = vpop.f32.mrf.mxu0
  %v1733 = vadd.f32 %v306, %v1732
  %v1734 = vpop.f32.mrf.mxu0
  %v1735 = vadd.f32 %v306, %v1734
  %1736 = vmatmul.bf16.gmra.mxu0 %v966
  %v1737 = vpop.f32.mrf.mxu0
  %v1738 = vadd.f32 %v306, %v1737
  %v1739 = vpop.f32.mrf.mxu0
  %v1740 = vadd.f32 %v306, %v1739
  %1741 = vmatmul.bf16.gmra.mxu0 %v967
  %v1742 = vpop.f32.mrf.mxu0
  %v1743 = vadd.f32 %v306, %v1742
  %v1744 = vpop.f32.mrf.mxu0
  %v1745 = vadd.f32 %v306, %v1744
  %1746 = vmatmul.bf16.gmra.mxu0 %v968
  %v1747 = vpop.f32.mrf.mxu0
  %v1748 = vadd.f32 %v306, %v1747
  %v1749 = vpop.f32.mrf.mxu0
  %v1750 = vadd.f32 %v306, %v1749
  %1751 = vmatmul.bf16.gmra.mxu0 %v969
  %v1752 = vpop.f32.mrf.mxu0
  %v1753 = vadd.f32 %v306, %v1752
  %v1754 = vpop.f32.mrf.mxu0
  %v1755 = vadd.f32 %v306, %v1754
  %1756 = vmatmul.bf16.gmra.mxu0 %v970
  %v1757 = vpop.f32.mrf.mxu0
  %v1758 = vadd.f32 %v306, %v1757
  %v1759 = vpop.f32.mrf.mxu0
  %v1760 = vadd.f32 %v306, %v1759
  %1761 = vmatmul.bf16.gmra.mxu0 %v971
  %v1762 = vpop.f32.mrf.mxu0
  %v1763 = vadd.f32 %v306, %v1762
  %v1764 = vpop.f32.mrf.mxu0
  %v1765 = vadd.f32 %v306, %v1764
  %1766 = vmatmul.bf16.gmra.mxu0 %v972
  %v1767 = vpop.f32.mrf.mxu0
  %v1768 = vadd.f32 %v306, %v1767
  %v1769 = vpop.f32.mrf.mxu0
  %v1770 = vadd.f32 %v306, %v1769
  %1771 = vmatmul.bf16.gmra.mxu0 %v973
  %v1772 = vpop.f32.mrf.mxu0
  %v1773 = vadd.f32 %v306, %v1772
  %v1774 = vpop.f32.mrf.mxu0
  %v1775 = vadd.f32 %v306, %v1774
  %1776 = vmatmul.bf16.gmra.mxu0 %v974
  %v1777 = vpop.f32.mrf.mxu0
  %v1778 = vadd.f32 %v306, %v1777
  %v1779 = vpop.f32.mrf.mxu0
  %v1780 = vadd.f32 %v306, %v1779
  %1781 = vmatmul.bf16.gmra.mxu0 %v975
  %v1782 = vpop.f32.mrf.mxu0
  %v1783 = vadd.f32 %v306, %v1782
  %v1784 = vpop.f32.mrf.mxu0
  %v1785 = vadd.f32 %v306, %v1784
  %1786 = vmatmul.bf16.gmra.mxu0 %v976
  %v1787 = vpop.f32.mrf.mxu0
  %v1788 = vadd.f32 %v306, %v1787
  %v1789 = vpop.f32.mrf.mxu0
  %v1790 = vadd.f32 %v306, %v1789
  %1791 = vmatmul.bf16.gmra.mxu0 %v977
  %v1792 = vpop.f32.mrf.mxu0
  %v1793 = vadd.f32 %v306, %v1792
  %v1794 = vpop.f32.mrf.mxu0
  %v1795 = vadd.f32 %v306, %v1794
  %1796 = vmatmul.bf16.gmra.mxu0 %v978
  %v1797 = vpop.f32.mrf.mxu0
  %v1798 = vadd.f32 %v306, %v1797
  %v1799 = vpop.f32.mrf.mxu0
  %v1800 = vadd.f32 %v306, %v1799
  %1801 = vmatmul.bf16.gmra.mxu0 %v979
  %v1802 = vpop.f32.mrf.mxu0
  %v1803 = vadd.f32 %v306, %v1802
  %v1804 = vpop.f32.mrf.mxu0
  %v1805 = vadd.f32 %v306, %v1804
  %1806 = vmatmul.bf16.gmra.mxu0 %v980
  %v1807 = vpop.f32.mrf.mxu0
  %v1808 = vadd.f32 %v306, %v1807
  %v1809 = vpop.f32.mrf.mxu0
  %v1810 = vadd.f32 %v306, %v1809
  %1811 = vmatmul.bf16.gmra.mxu0 %v981
  %v1812 = vpop.f32.mrf.mxu0
  %v1813 = vadd.f32 %v306, %v1812
  %v1814 = vpop.f32.mrf.mxu0
  %v1815 = vadd.f32 %v306, %v1814
  %1816 = vmatmul.bf16.gmra.mxu0 %v982
  %v1817 = vpop.f32.mrf.mxu0
  %v1818 = vadd.f32 %v306, %v1817
  %v1819 = vpop.f32.mrf.mxu0
  %v1820 = vadd.f32 %v306, %v1819
  %1821 = vmatmul.bf16.gmra.mxu0 %v983
  %v1822 = vpop.f32.mrf.mxu0
  %v1823 = vadd.f32 %v306, %v1822
  %v1824 = vpop.f32.mrf.mxu0
  %v1825 = vadd.f32 %v306, %v1824
  %1826 = vmatmul.bf16.gmra.mxu0 %v984
  %v1827 = vpop.f32.mrf.mxu0
  %v1828 = vadd.f32 %v306, %v1827
  %v1829 = vpop.f32.mrf.mxu0
  %v1830 = vadd.f32 %v306, %v1829
  %1831 = vmatmul.bf16.gmra.mxu0 %v985
  %v1832 = vpop.f32.mrf.mxu0
  %v1833 = vadd.f32 %v306, %v1832
  %v1834 = vpop.f32.mrf.mxu0
  %v1835 = vadd.f32 %v306, %v1834
  %1836 = vmatmul.bf16.gmra.mxu0 %v986
  %v1837 = vpop.f32.mrf.mxu0
  %v1838 = vadd.f32 %v306, %v1837
  %v1839 = vpop.f32.mrf.mxu0
  %v1840 = vadd.f32 %v306, %v1839
  %1841 = vmatmul.bf16.gmra.mxu0 %v987
  %v1842 = vpop.f32.mrf.mxu0
  %v1843 = vadd.f32 %v306, %v1842
  %v1844 = vpop.f32.mrf.mxu0
  %v1845 = vadd.f32 %v306, %v1844
  %1846 = vmatmul.bf16.gmra.mxu0 %v988
  %v1847 = vpop.f32.mrf.mxu0
  %v1848 = vadd.f32 %v306, %v1847
  %v1849 = vpop.f32.mrf.mxu0
  %v1850 = vadd.f32 %v306, %v1849
  %1851 = vmatmul.bf16.gmra.mxu0 %v989
  %v1852 = vpop.f32.mrf.mxu0
  %v1853 = vadd.f32 %v306, %v1852
  %v1854 = vpop.f32.mrf.mxu0
  %v1855 = vadd.f32 %v306, %v1854
  %1856 = vmatmul.bf16.gmra.mxu0 %v990
  %v1857 = vpop.f32.mrf.mxu0
  %v1858 = vadd.f32 %v306, %v1857
  %v1859 = vpop.f32.mrf.mxu0
  %v1860 = vadd.f32 %v306, %v1859
  %1861 = vmatmul.bf16.gmra.mxu0 %v991
  %v1862 = vpop.f32.mrf.mxu0
  %v1863 = vadd.f32 %v306, %v1862
  %v1864 = vpop.f32.mrf.mxu0
  %v1865 = vadd.f32 %v306, %v1864
  %1866 = vmatmul.bf16.gmra.mxu0 %v992
  %v1867 = vpop.f32.mrf.mxu0
  %v1868 = vadd.f32 %v306, %v1867
  %v1869 = vpop.f32.mrf.mxu0
  %v1870 = vadd.f32 %v306, %v1869
  %1871 = vdwg.mxu0
  %vm1872 = vcmp.gt.f32.partialorder %v1188, 0.0
  %vm1873 = vcmp.gt.f32.partialorder %v1190, 0.0
  %vm1874 = vcmp.gt.f32.partialorder %v1193, 0.0
  %vm1875 = vcmp.gt.f32.partialorder %v1195, 0.0
  %vm1876 = vcmp.gt.f32.partialorder %v1198, 0.0
  %vm1877 = vcmp.gt.f32.partialorder %v1200, 0.0
  %vm1878 = vcmp.gt.f32.partialorder %v1203, 0.0
  %vm1879 = vcmp.gt.f32.partialorder %v1205, 0.0
  %vm1880 = vcmp.gt.f32.partialorder %v1208, 0.0
  %vm1881 = vcmp.gt.f32.partialorder %v1210, 0.0
  %vm1882 = vcmp.gt.f32.partialorder %v1213, 0.0
  %vm1883 = vcmp.gt.f32.partialorder %v1215, 0.0
  %vm1884 = vcmp.gt.f32.partialorder %v1218, 0.0
  %vm1885 = vcmp.gt.f32.partialorder %v1220, 0.0
  %vm1886 = vcmp.gt.f32.partialorder %v1223, 0.0
  %vm1887 = vcmp.gt.f32.partialorder %v1225, 0.0
  %vm1888 = vcmp.gt.f32.partialorder %v1228, 0.0
  %vm1889 = vcmp.gt.f32.partialorder %v1230, 0.0
  %vm1890 = vcmp.gt.f32.partialorder %v1233, 0.0
  %vm1891 = vcmp.gt.f32.partialorder %v1235, 0.0
  %vm1892 = vcmp.gt.f32.partialorder %v1238, 0.0
  %vm1893 = vcmp.gt.f32.partialorder %v1240, 0.0
  %vm1894 = vcmp.gt.f32.partialorder %v1243, 0.0
  %vm1895 = vcmp.gt.f32.partialorder %v1245, 0.0
  %vm1896 = vcmp.gt.f32.partialorder %v1248, 0.0
  %vm1897 = vcmp.gt.f32.partialorder %v1250, 0.0
  %vm1898 = vcmp.gt.f32.partialorder %v1253, 0.0
  %vm1899 = vcmp.gt.f32.partialorder %v1255, 0.0
  %vm1900 = vcmp.gt.f32.partialorder %v1258, 0.0
  %vm1901 = vcmp.gt.f32.partialorder %v1260, 0.0
  %vm1902 = vcmp.gt.f32.partialorder %v1263, 0.0
  %vm1903 = vcmp.gt.f32.partialorder %v1265, 0.0
  %vm1904 = vcmp.gt.f32.partialorder %v1268, 0.0
  %vm1905 = vcmp.gt.f32.partialorder %v1270, 0.0
  %vm1906 = vcmp.gt.f32.partialorder %v1273, 0.0
  %vm1907 = vcmp.gt.f32.partialorder %v1275, 0.0
  %vm1908 = vcmp.gt.f32.partialorder %v1278, 0.0
  %vm1909 = vcmp.gt.f32.partialorder %v1280, 0.0
  %vm1910 = vcmp.gt.f32.partialorder %v1283, 0.0
  %vm1911 = vcmp.gt.f32.partialorder %v1285, 0.0
  %vm1912 = vcmp.gt.f32.partialorder %v1288, 0.0
  %vm1913 = vcmp.gt.f32.partialorder %v1290, 0.0
  %vm1914 = vcmp.gt.f32.partialorder %v1293, 0.0
  %vm1915 = vcmp.gt.f32.partialorder %v1295, 0.0
  %vm1916 = vcmp.gt.f32.partialorder %v1298, 0.0
  %vm1917 = vcmp.gt.f32.partialorder %v1300, 0.0
  %vm1918 = vcmp.gt.f32.partialorder %v1303, 0.0
  %vm1919 = vcmp.gt.f32.partialorder %v1305, 0.0
  %vm1920 = vcmp.gt.f32.partialorder %v1308, 0.0
  %vm1921 = vcmp.gt.f32.partialorder %v1310, 0.0
  %vm1922 = vcmp.gt.f32.partialorder %v1313, 0.0
  %vm1923 = vcmp.gt.f32.partialorder %v1315, 0.0
  %vm1924 = vcmp.gt.f32.partialorder %v1318, 0.0
  %vm1925 = vcmp.gt.f32.partialorder %v1320, 0.0
  %vm1926 = vcmp.gt.f32.partialorder %v1323, 0.0
  %vm1927 = vcmp.gt.f32.partialorder %v1325, 0.0
  %vm1928 = vcmp.gt.f32.partialorder %v1328, 0.0
  %vm1929 = vcmp.gt.f32.partialorder %v1330, 0.0
  %vm1930 = vcmp.gt.f32.partialorder %v1333, 0.0
  %vm1931 = vcmp.gt.f32.partialorder %v1335, 0.0
  %vm1932 = vcmp.gt.f32.partialorder %v1338, 0.0
  %vm1933 = vcmp.gt.f32.partialorder %v1340, 0.0
  %vm1934 = vcmp.gt.f32.partialorder %v1343, 0.0
  %vm1935 = vcmp.gt.f32.partialorder %v1345, 0.0
  %vm1936 = vcmp.gt.f32.partialorder %v1348, 0.0
  %vm1937 = vcmp.gt.f32.partialorder %v1350, 0.0
  %vm1938 = vcmp.gt.f32.partialorder %v1353, 0.0
  %vm1939 = vcmp.gt.f32.partialorder %v1355, 0.0
  %vm1940 = vcmp.gt.f32.partialorder %v1358, 0.0
  %vm1941 = vcmp.gt.f32.partialorder %v1360, 0.0
  %vm1942 = vcmp.gt.f32.partialorder %v1363, 0.0
  %vm1943 = vcmp.gt.f32.partialorder %v1365, 0.0
  %vm1944 = vcmp.gt.f32.partialorder %v1368, 0.0
  %vm1945 = vcmp.gt.f32.partialorder %v1370, 0.0
  %vm1946 = vcmp.gt.f32.partialorder %v1373, 0.0
  %vm1947 = vcmp.gt.f32.partialorder %v1375, 0.0
  %vm1948 = vcmp.gt.f32.partialorder %v1378, 0.0
  %vm1949 = vcmp.gt.f32.partialorder %v1380, 0.0
  %vm1950 = vcmp.gt.f32.partialorder %v1383, 0.0
  %vm1951 = vcmp.gt.f32.partialorder %v1385, 0.0
  %vm1952 = vcmp.gt.f32.partialorder %v1388, 0.0
  %vm1953 = vcmp.gt.f32.partialorder %v1390, 0.0
  %vm1954 = vcmp.gt.f32.partialorder %v1393, 0.0
  %vm1955 = vcmp.gt.f32.partialorder %v1395, 0.0
  %vm1956 = vcmp.gt.f32.partialorder %v1398, 0.0
  %vm1957 = vcmp.gt.f32.partialorder %v1400, 0.0
  %vm1958 = vcmp.gt.f32.partialorder %v1403, 0.0
  %vm1959 = vcmp.gt.f32.partialorder %v1405, 0.0
  %vm1960 = vcmp.gt.f32.partialorder %v1408, 0.0
  %vm1961 = vcmp.gt.f32.partialorder %v1410, 0.0
  %vm1962 = vcmp.gt.f32.partialorder %v1413, 0.0
  %vm1963 = vcmp.gt.f32.partialorder %v1415, 0.0
  %vm1964 = vcmp.gt.f32.partialorder %v1418, 0.0
  %vm1965 = vcmp.gt.f32.partialorder %v1420, 0.0
  %vm1966 = vcmp.gt.f32.partialorder %v1423, 0.0
  %vm1967 = vcmp.gt.f32.partialorder %v1425, 0.0
  %vm1968 = vcmp.gt.f32.partialorder %v1428, 0.0
  %vm1969 = vcmp.gt.f32.partialorder %v1430, 0.0
  %vm1970 = vcmp.gt.f32.partialorder %v1433, 0.0
  %vm1971 = vcmp.gt.f32.partialorder %v1435, 0.0
  %vm1972 = vcmp.gt.f32.partialorder %v1438, 0.0
  %vm1973 = vcmp.gt.f32.partialorder %v1440, 0.0
  %vm1974 = vcmp.gt.f32.partialorder %v1443, 0.0
  %vm1975 = vcmp.gt.f32.partialorder %v1445, 0.0
  %vm1976 = vcmp.gt.f32.partialorder %v1448, 0.0
  %vm1977 = vcmp.gt.f32.partialorder %v1450, 0.0
  %vm1978 = vcmp.gt.f32.partialorder %v1453, 0.0
  %vm1979 = vcmp.gt.f32.partialorder %v1455, 0.0
  %vm1980 = vcmp.gt.f32.partialorder %v1458, 0.0
  %vm1981 = vcmp.gt.f32.partialorder %v1460, 0.0
  %vm1982 = vcmp.gt.f32.partialorder %v1463, 0.0
  %vm1983 = vcmp.gt.f32.partialorder %v1465, 0.0
  %vm1984 = vcmp.gt.f32.partialorder %v1468, 0.0
  %vm1985 = vcmp.gt.f32.partialorder %v1470, 0.0
  %vm1986 = vcmp.gt.f32.partialorder %v1473, 0.0
  %vm1987 = vcmp.gt.f32.partialorder %v1475, 0.0
  %vm1988 = vcmp.gt.f32.partialorder %v1478, 0.0
  %vm1989 = vcmp.gt.f32.partialorder %v1480, 0.0
  %vm1990 = vcmp.gt.f32.partialorder %v1483, 0.0
  %vm1991 = vcmp.gt.f32.partialorder %v1485, 0.0
  %vm1992 = vcmp.gt.f32.partialorder %v1488, 0.0
  %vm1993 = vcmp.gt.f32.partialorder %v1490, 0.0
  %vm1994 = vcmp.gt.f32.partialorder %v1493, 0.0
  %vm1995 = vcmp.gt.f32.partialorder %v1495, 0.0
  %vm1996 = vcmp.gt.f32.partialorder %v1498, 0.0
  %vm1997 = vcmp.gt.f32.partialorder %v1500, 0.0
  %vm1998 = vcmp.gt.f32.partialorder %v1503, 0.0
  %vm1999 = vcmp.gt.f32.partialorder %v1505, 0.0
  %vm2000 = vcmp.gt.f32.partialorder %v1508, 0.0
  %vm2001 = vcmp.gt.f32.partialorder %v1510, 0.0
  %vm2002 = vcmp.gt.f32.partialorder %v1513, 0.0
  %vm2003 = vcmp.gt.f32.partialorder %v1515, 0.0
  %vm2004 = vcmp.gt.f32.partialorder %v1518, 0.0
  %vm2005 = vcmp.gt.f32.partialorder %v1520, 0.0
  %vm2006 = vcmp.gt.f32.partialorder %v1523, 0.0
  %vm2007 = vcmp.gt.f32.partialorder %v1525, 0.0
  %vm2008 = vcmp.gt.f32.partialorder %v1528, 0.0
  %vm2009 = vcmp.gt.f32.partialorder %v1530, 0.0
  %vm2010 = vcmp.gt.f32.partialorder %v1533, 0.0
  %vm2011 = vcmp.gt.f32.partialorder %v1535, 0.0
  %vm2012 = vcmp.gt.f32.partialorder %v1538, 0.0
  %vm2013 = vcmp.gt.f32.partialorder %v1540, 0.0
  %vm2014 = vcmp.gt.f32.partialorder %v1543, 0.0
  %vm2015 = vcmp.gt.f32.partialorder %v1545, 0.0
  %vm2016 = vcmp.gt.f32.partialorder %v1548, 0.0
  %vm2017 = vcmp.gt.f32.partialorder %v1550, 0.0
  %vm2018 = vcmp.gt.f32.partialorder %v1553, 0.0
  %vm2019 = vcmp.gt.f32.partialorder %v1555, 0.0
  %vm2020 = vcmp.gt.f32.partialorder %v1558, 0.0
  %vm2021 = vcmp.gt.f32.partialorder %v1560, 0.0
  %vm2022 = vcmp.gt.f32.partialorder %v1563, 0.0
  %vm2023 = vcmp.gt.f32.partialorder %v1565, 0.0
  %vm2024 = vcmp.gt.f32.partialorder %v1568, 0.0
  %vm2025 = vcmp.gt.f32.partialorder %v1570, 0.0
  %vm2026 = vcmp.gt.f32.partialorder %v1573, 0.0
  %vm2027 = vcmp.gt.f32.partialorder %v1575, 0.0
  %vm2028 = vcmp.gt.f32.partialorder %v1578, 0.0
  %vm2029 = vcmp.gt.f32.partialorder %v1580, 0.0
  %vm2030 = vcmp.gt.f32.partialorder %v1583, 0.0
  %vm2031 = vcmp.gt.f32.partialorder %v1585, 0.0
  %vm2032 = vcmp.gt.f32.partialorder %v1588, 0.0
  %vm2033 = vcmp.gt.f32.partialorder %v1590, 0.0
  %vm2034 = vcmp.gt.f32.partialorder %v1593, 0.0
  %vm2035 = vcmp.gt.f32.partialorder %v1595, 0.0
  %vm2036 = vcmp.gt.f32.partialorder %v1598, 0.0
  %vm2037 = vcmp.gt.f32.partialorder %v1600, 0.0
  %vm2038 = vcmp.gt.f32.partialorder %v1603, 0.0
  %vm2039 = vcmp.gt.f32.partialorder %v1605, 0.0
  %vm2040 = vcmp.gt.f32.partialorder %v1608, 0.0
  %vm2041 = vcmp.gt.f32.partialorder %v1610, 0.0
  %vm2042 = vcmp.gt.f32.partialorder %v1613, 0.0
  %vm2043 = vcmp.gt.f32.partialorder %v1615, 0.0
  %vm2044 = vcmp.gt.f32.partialorder %v1618, 0.0
  %vm2045 = vcmp.gt.f32.partialorder %v1620, 0.0
  %vm2046 = vcmp.gt.f32.partialorder %v1623, 0.0
  %vm2047 = vcmp.gt.f32.partialorder %v1625, 0.0
  %vm2048 = vcmp.gt.f32.partialorder %v1628, 0.0
  %vm2049 = vcmp.gt.f32.partialorder %v1630, 0.0
  %vm2050 = vcmp.gt.f32.partialorder %v1633, 0.0
  %vm2051 = vcmp.gt.f32.partialorder %v1635, 0.0
  %vm2052 = vcmp.gt.f32.partialorder %v1638, 0.0
  %vm2053 = vcmp.gt.f32.partialorder %v1640, 0.0
  %vm2054 = vcmp.gt.f32.partialorder %v1643, 0.0
  %vm2055 = vcmp.gt.f32.partialorder %v1645, 0.0
  %vm2056 = vcmp.gt.f32.partialorder %v1648, 0.0
  %vm2057 = vcmp.gt.f32.partialorder %v1650, 0.0
  %vm2058 = vcmp.gt.f32.partialorder %v1653, 0.0
  %vm2059 = vcmp.gt.f32.partialorder %v1655, 0.0
  %vm2060 = vcmp.gt.f32.partialorder %v1658, 0.0
  %vm2061 = vcmp.gt.f32.partialorder %v1660, 0.0
  %vm2062 = vcmp.gt.f32.partialorder %v1663, 0.0
  %vm2063 = vcmp.gt.f32.partialorder %v1665, 0.0
  %vm2064 = vcmp.gt.f32.partialorder %v1668, 0.0
  %vm2065 = vcmp.gt.f32.partialorder %v1670, 0.0
  %vm2066 = vcmp.gt.f32.partialorder %v1673, 0.0
  %vm2067 = vcmp.gt.f32.partialorder %v1675, 0.0
  %vm2068 = vcmp.gt.f32.partialorder %v1678, 0.0
  %vm2069 = vcmp.gt.f32.partialorder %v1680, 0.0
  %vm2070 = vcmp.gt.f32.partialorder %v1683, 0.0
  %vm2071 = vcmp.gt.f32.partialorder %v1685, 0.0
  %vm2072 = vcmp.gt.f32.partialorder %v1688, 0.0
  %vm2073 = vcmp.gt.f32.partialorder %v1690, 0.0
  %vm2074 = vcmp.gt.f32.partialorder %v1693, 0.0
  %vm2075 = vcmp.gt.f32.partialorder %v1695, 0.0
  %vm2076 = vcmp.gt.f32.partialorder %v1698, 0.0
  %vm2077 = vcmp.gt.f32.partialorder %v1700, 0.0
  %vm2078 = vcmp.gt.f32.partialorder %v1703, 0.0
  %vm2079 = vcmp.gt.f32.partialorder %v1705, 0.0
  %vm2080 = vcmp.gt.f32.partialorder %v1708, 0.0
  %vm2081 = vcmp.gt.f32.partialorder %v1710, 0.0
  %vm2082 = vcmp.gt.f32.partialorder %v1713, 0.0
  %vm2083 = vcmp.gt.f32.partialorder %v1715, 0.0
  %vm2084 = vcmp.gt.f32.partialorder %v1718, 0.0
  %vm2085 = vcmp.gt.f32.partialorder %v1720, 0.0
  %vm2086 = vcmp.gt.f32.partialorder %v1723, 0.0
  %vm2087 = vcmp.gt.f32.partialorder %v1725, 0.0
  %vm2088 = vcmp.gt.f32.partialorder %v1728, 0.0
  %vm2089 = vcmp.gt.f32.partialorder %v1730, 0.0
  %vm2090 = vcmp.gt.f32.partialorder %v1733, 0.0
  %vm2091 = vcmp.gt.f32.partialorder %v1735, 0.0
  %vm2092 = vcmp.gt.f32.partialorder %v1738, 0.0
  %vm2093 = vcmp.gt.f32.partialorder %v1740, 0.0
  %vm2094 = vcmp.gt.f32.partialorder %v1743, 0.0
  %vm2095 = vcmp.gt.f32.partialorder %v1745, 0.0
  %vm2096 = vcmp.gt.f32.partialorder %v1748, 0.0
  %vm2097 = vcmp.gt.f32.partialorder %v1750, 0.0
  %vm2098 = vcmp.gt.f32.partialorder %v1753, 0.0
  %vm2099 = vcmp.gt.f32.partialorder %v1755, 0.0
  %vm2100 = vcmp.gt.f32.partialorder %v1758, 0.0
  %vm2101 = vcmp.gt.f32.partialorder %v1760, 0.0
  %vm2102 = vcmp.gt.f32.partialorder %v1763, 0.0
  %vm2103 = vcmp.gt.f32.partialorder %v1765, 0.0
  %vm2104 = vcmp.gt.f32.partialorder %v1768, 0.0
  %vm2105 = vcmp.gt.f32.partialorder %v1770, 0.0
  %vm2106 = vcmp.gt.f32.partialorder %v1773, 0.0
  %vm2107 = vcmp.gt.f32.partialorder %v1775, 0.0
  %vm2108 = vcmp.gt.f32.partialorder %v1778, 0.0
  %vm2109 = vcmp.gt.f32.partialorder %v1780, 0.0
  %vm2110 = vcmp.gt.f32.partialorder %v1783, 0.0
  %vm2111 = vcmp.gt.f32.partialorder %v1785, 0.0
  %vm2112 = vcmp.gt.f32.partialorder %v1788, 0.0
  %vm2113 = vcmp.gt.f32.partialorder %v1790, 0.0
  %vm2114 = vcmp.gt.f32.partialorder %v1793, 0.0
  %vm2115 = vcmp.gt.f32.partialorder %v1795, 0.0
  %vm2116 = vcmp.gt.f32.partialorder %v1798, 0.0
  %vm2117 = vcmp.gt.f32.partialorder %v1800, 0.0
  %vm2118 = vcmp.gt.f32.partialorder %v1803, 0.0
  %vm2119 = vcmp.gt.f32.partialorder %v1805, 0.0
  %vm2120 = vcmp.gt.f32.partialorder %v1808, 0.0
  %vm2121 = vcmp.gt.f32.partialorder %v1810, 0.0
  %vm2122 = vcmp.gt.f32.partialorder %v1813, 0.0
  %vm2123 = vcmp.gt.f32.partialorder %v1815, 0.0
  %vm2124 = vcmp.gt.f32.partialorder %v1818, 0.0
  %vm2125 = vcmp.gt.f32.partialorder %v1820, 0.0
  %vm2126 = vcmp.gt.f32.partialorder %v1823, 0.0
  %vm2127 = vcmp.gt.f32.partialorder %v1825, 0.0
  %vm2128 = vcmp.gt.f32.partialorder %v1828, 0.0
  %vm2129 = vcmp.gt.f32.partialorder %v1830, 0.0
  %vm2130 = vcmp.gt.f32.partialorder %v1833, 0.0
  %vm2131 = vcmp.gt.f32.partialorder %v1835, 0.0
  %vm2132 = vcmp.gt.f32.partialorder %v1838, 0.0
  %vm2133 = vcmp.gt.f32.partialorder %v1840, 0.0
  %vm2134 = vcmp.gt.f32.partialorder %v1843, 0.0
  %vm2135 = vcmp.gt.f32.partialorder %v1845, 0.0
  %vm2136 = vcmp.gt.f32.partialorder %v1848, 0.0
  %vm2137 = vcmp.gt.f32.partialorder %v1850, 0.0
  %vm2138 = vcmp.gt.f32.partialorder %v1853, 0.0
  %vm2139 = vcmp.gt.f32.partialorder %v1855, 0.0
  %vm2140 = vcmp.gt.f32.partialorder %v1858, 0.0
  %vm2141 = vcmp.gt.f32.partialorder %v1860, 0.0
  %vm2142 = vcmp.gt.f32.partialorder %v1863, 0.0
  %vm2143 = vcmp.gt.f32.partialorder %v1865, 0.0
  %vm2144 = vcmp.gt.f32.partialorder %v1868, 0.0
  %vm2145 = vcmp.gt.f32.partialorder %v1870, 0.0
  %v2146 = vmul.f32 %v1188, 0.2
  %v2147 = vmul.f32 %v1190, 0.2
  %v2148 = vmul.f32 %v1193, 0.2
  %v2149 = vmul.f32 %v1195, 0.2
  %v2150 = vmul.f32 %v1198, 0.2
  %v2151 = vmul.f32 %v1200, 0.2
  %v2152 = vmul.f32 %v1203, 0.2
  %v2153 = vmul.f32 %v1205, 0.2
  %v2154 = vmul.f32 %v1208, 0.2
  %v2155 = vmul.f32 %v1210, 0.2
  %v2156 = vmul.f32 %v1213, 0.2
  %v2157 = vmul.f32 %v1215, 0.2
  %v2158 = vmul.f32 %v1218, 0.2
  %v2159 = vmul.f32 %v1220, 0.2
  %v2160 = vmul.f32 %v1223, 0.2
  %v2161 = vmul.f32 %v1225, 0.2
  %v2162 = vmul.f32 %v1228, 0.2
  %v2163 = vmul.f32 %v1230, 0.2
  %v2164 = vmul.f32 %v1233, 0.2
  %v2165 = vmul.f32 %v1235, 0.2
  %v2166 = vmul.f32 %v1238, 0.2
  %v2167 = vmul.f32 %v1240, 0.2
  %v2168 = vmul.f32 %v1243, 0.2
  %v2169 = vmul.f32 %v1245, 0.2
  %v2170 = vmul.f32 %v1248, 0.2
  %v2171 = vmul.f32 %v1250, 0.2
  %v2172 = vmul.f32 %v1253, 0.2
  %v2173 = vmul.f32 %v1255, 0.2
  %v2174 = vmul.f32 %v1258, 0.2
  %v2175 = vmul.f32 %v1260, 0.2
  %v2176 = vmul.f32 %v1263, 0.2
  %v2177 = vmul.f32 %v1265, 0.2
  %v2178 = vmul.f32 %v1268, 0.2
  %v2179 = vmul.f32 %v1270, 0.2
  %v2180 = vmul.f32 %v1273, 0.2
  %v2181 = vmul.f32 %v1275, 0.2
  %v2182 = vmul.f32 %v1278, 0.2
  %v2183 = vmul.f32 %v1280, 0.2
  %v2184 = vmul.f32 %v1283, 0.2
  %v2185 = vmul.f32 %v1285, 0.2
  %v2186 = vmul.f32 %v1288, 0.2
  %v2187 = vmul.f32 %v1290, 0.2
  %v2188 = vmul.f32 %v1293, 0.2
  %v2189 = vmul.f32 %v1295, 0.2
  %v2190 = vmul.f32 %v1298, 0.2
  %v2191 = vmul.f32 %v1300, 0.2
  %v2192 = vmul.f32 %v1303, 0.2
  %v2193 = vmul.f32 %v1305, 0.2
  %v2194 = vmul.f32 %v1308, 0.2
  %v2195 = vmul.f32 %v1310, 0.2
  %v2196 = vmul.f32 %v1313, 0.2
  %v2197 = vmul.f32 %v1315, 0.2
  %v2198 = vmul.f32 %v1318, 0.2
  %v2199 = vmul.f32 %v1320, 0.2
  %v2200 = vmul.f32 %v1323, 0.2
  %v2201 = vmul.f32 %v1325, 0.2
  %v2202 = vmul.f32 %v1328, 0.2
  %v2203 = vmul.f32 %v1330, 0.2
  %v2204 = vmul.f32 %v1333, 0.2
  %v2205 = vmul.f32 %v1335, 0.2
  %v2206 = vmul.f32 %v1338, 0.2
  %v2207 = vmul.f32 %v1340, 0.2
  %v2208 = vmul.f32 %v1343, 0.2
  %v2209 = vmul.f32 %v1345, 0.2
  %v2210 = vmul.f32 %v1348, 0.2
  %v2211 = vmul.f32 %v1350, 0.2
  %v2212 = vmul.f32 %v1353, 0.2
  %v2213 = vmul.f32 %v1355, 0.2
  %v2214 = vmul.f32 %v1358, 0.2
  %v2215 = vmul.f32 %v1360, 0.2
  %v2216 = vmul.f32 %v1363, 0.2
  %v2217 = vmul.f32 %v1365, 0.2
  %v2218 = vmul.f32 %v1368, 0.2
  %v2219 = vmul.f32 %v1370, 0.2
  %v2220 = vmul.f32 %v1373, 0.2
  %v2221 = vmul.f32 %v1375, 0.2
  %v2222 = vmul.f32 %v1378, 0.2
  %v2223 = vmul.f32 %v1380, 0.2
  %v2224 = vmul.f32 %v1383, 0.2
  %v2225 = vmul.f32 %v1385, 0.2
  %v2226 = vmul.f32 %v1388, 0.2
  %v2227 = vmul.f32 %v1390, 0.2
  %v2228 = vmul.f32 %v1393, 0.2
  %v2229 = vmul.f32 %v1395, 0.2
  %v2230 = vmul.f32 %v1398, 0.2
  %v2231 = vmul.f32 %v1400, 0.2
  %v2232 = vmul.f32 %v1403, 0.2
  %v2233 = vmul.f32 %v1405, 0.2
  %v2234 = vmul.f32 %v1408, 0.2
  %v2235 = vmul.f32 %v1410, 0.2
  %v2236 = vmul.f32 %v1413, 0.2
  %v2237 = vmul.f32 %v1415, 0.2
  %v2238 = vmul.f32 %v1418, 0.2
  %v2239 = vmul.f32 %v1420, 0.2
  %v2240 = vmul.f32 %v1423, 0.2
  %v2241 = vmul.f32 %v1425, 0.2
  %v2242 = vmul.f32 %v1428, 0.2
  %v2243 = vmul.f32 %v1430, 0.2
  %v2244 = vmul.f32 %v1433, 0.2
  %v2245 = vmul.f32 %v1435, 0.2
  %v2246 = vmul.f32 %v1438, 0.2
  %v2247 = vmul.f32 %v1440, 0.2
  %v2248 = vmul.f32 %v1443, 0.2
  %v2249 = vmul.f32 %v1445, 0.2
  %v2250 = vmul.f32 %v1448, 0.2
  %v2251 = vmul.f32 %v1450, 0.2
  %v2252 = vmul.f32 %v1453, 0.2
  %v2253 = vmul.f32 %v1455, 0.2
  %v2254 = vmul.f32 %v1458, 0.2
  %v2255 = vmul.f32 %v1460, 0.2
  %v2256 = vmul.f32 %v1463, 0.2
  %v2257 = vmul.f32 %v1465, 0.2
  %v2258 = vmul.f32 %v1468, 0.2
  %v2259 = vmul.f32 %v1470, 0.2
  %v2260 = vmul.f32 %v1473, 0.2
  %v2261 = vmul.f32 %v1475, 0.2
  %v2262 = vmul.f32 %v1478, 0.2
  %v2263 = vmul.f32 %v1480, 0.2
  %v2264 = vmul.f32 %v1483, 0.2
  %v2265 = vmul.f32 %v1485, 0.2
  %v2266 = vmul.f32 %v1488, 0.2
  %v2267 = vmul.f32 %v1490, 0.2
  %v2268 = vmul.f32 %v1493, 0.2
  %v2269 = vmul.f32 %v1495, 0.2
  %v2270 = vmul.f32 %v1498, 0.2
  %v2271 = vmul.f32 %v1500, 0.2
  %v2272 = vmul.f32 %v1503, 0.2
  %v2273 = vmul.f32 %v1505, 0.2
  %v2274 = vmul.f32 %v1508, 0.2
  %v2275 = vmul.f32 %v1510, 0.2
  %v2276 = vmul.f32 %v1513, 0.2
  %v2277 = vmul.f32 %v1515, 0.2
  %v2278 = vmul.f32 %v1518, 0.2
  %v2279 = vmul.f32 %v1520, 0.2
  %v2280 = vmul.f32 %v1523, 0.2
  %v2281 = vmul.f32 %v1525, 0.2
  %v2282 = vmul.f32 %v1528, 0.2
  %v2283 = vmul.f32 %v1530, 0.2
  %v2284 = vmul.f32 %v1533, 0.2
  %v2285 = vmul.f32 %v1535, 0.2
  %v2286 = vmul.f32 %v1538, 0.2
  %v2287 = vmul.f32 %v1540, 0.2
  %v2288 = vmul.f32 %v1543, 0.2
  %v2289 = vmul.f32 %v1545, 0.2
  %v2290 = vmul.f32 %v1548, 0.2
  %v2291 = vmul.f32 %v1550, 0.2
  %v2292 = vmul.f32 %v1553, 0.2
  %v2293 = vmul.f32 %v1555, 0.2
  %v2294 = vmul.f32 %v1558, 0.2
  %v2295 = vmul.f32 %v1560, 0.2
  %v2296 = vmul.f32 %v1563, 0.2
  %v2297 = vmul.f32 %v1565, 0.2
  %v2298 = vmul.f32 %v1568, 0.2
  %v2299 = vmul.f32 %v1570, 0.2
  %v2300 = vmul.f32 %v1573, 0.2
  %v2301 = vmul.f32 %v1575, 0.2
  %v2302 = vmul.f32 %v1578, 0.2
  %v2303 = vmul.f32 %v1580, 0.2
  %v2304 = vmul.f32 %v1583, 0.2
  %v2305 = vmul.f32 %v1585, 0.2
  %v2306 = vmul.f32 %v1588, 0.2
  %v2307 = vmul.f32 %v1590, 0.2
  %v2308 = vmul.f32 %v1593, 0.2
  %v2309 = vmul.f32 %v1595, 0.2
  %v2310 = vmul.f32 %v1598, 0.2
  %v2311 = vmul.f32 %v1600, 0.2
  %v2312 = vmul.f32 %v1603, 0.2
  %v2313 = vmul.f32 %v1605, 0.2
  %v2314 = vmul.f32 %v1608, 0.2
  %v2315 = vmul.f32 %v1610, 0.2
  %v2316 = vmul.f32 %v1613, 0.2
  %v2317 = vmul.f32 %v1615, 0.2
  %v2318 = vmul.f32 %v1618, 0.2
  %v2319 = vmul.f32 %v1620, 0.2
  %v2320 = vmul.f32 %v1623, 0.2
  %v2321 = vmul.f32 %v1625, 0.2
  %v2322 = vmul.f32 %v1628, 0.2
  %v2323 = vmul.f32 %v1630, 0.2
  %v2324 = vmul.f32 %v1633, 0.2
  %v2325 = vmul.f32 %v1635, 0.2
  %v2326 = vmul.f32 %v1638, 0.2
  %v2327 = vmul.f32 %v1640, 0.2
  %v2328 = vmul.f32 %v1643, 0.2
  %v2329 = vmul.f32 %v1645, 0.2
  %v2330 = vmul.f32 %v1648, 0.2
  %v2331 = vmul.f32 %v1650, 0.2
  %v2332 = vmul.f32 %v1653, 0.2
  %v2333 = vmul.f32 %v1655, 0.2
  %v2334 = vmul.f32 %v1658, 0.2
  %v2335 = vmul.f32 %v1660, 0.2
  %v2336 = vmul.f32 %v1663, 0.2
  %v2337 = vmul.f32 %v1665, 0.2
  %v2338 = vmul.f32 %v1668, 0.2
  %v2339 = vmul.f32 %v1670, 0.2
  %v2340 = vmul.f32 %v1673, 0.2
  %v2341 = vmul.f32 %v1675, 0.2
  %v2342 = vmul.f32 %v1678, 0.2
  %v2343 = vmul.f32 %v1680, 0.2
  %v2344 = vmul.f32 %v1683, 0.2
  %v2345 = vmul.f32 %v1685, 0.2
  %v2346 = vmul.f32 %v1688, 0.2
  %v2347 = vmul.f32 %v1690, 0.2
  %v2348 = vmul.f32 %v1693, 0.2
  %v2349 = vmul.f32 %v1695, 0.2
  %v2350 = vmul.f32 %v1698, 0.2
  %v2351 = vmul.f32 %v1700, 0.2
  %v2352 = vmul.f32 %v1703, 0.2
  %v2353 = vmul.f32 %v1705, 0.2
  %v2354 = vmul.f32 %v1708, 0.2
  %v2355 = vmul.f32 %v1710, 0.2
  %v2356 = vmul.f32 %v1713, 0.2
  %v2357 = vmul.f32 %v1715, 0.2
  %v2358 = vmul.f32 %v1718, 0.2
  %v2359 = vmul.f32 %v1720, 0.2
  %v2360 = vmul.f32 %v1723, 0.2
  %v2361 = vmul.f32 %v1725, 0.2
  %v2362 = vmul.f32 %v1728, 0.2
  %v2363 = vmul.f32 %v1730, 0.2
  %v2364 = vmul.f32 %v1733, 0.2
  %v2365 = vmul.f32 %v1735, 0.2
  %v2366 = vmul.f32 %v1738, 0.2
  %v2367 = vmul.f32 %v1740, 0.2
  %v2368 = vmul.f32 %v1743, 0.2
  %v2369 = vmul.f32 %v1745, 0.2
  %v2370 = vmul.f32 %v1748, 0.2
  %v2371 = vmul.f32 %v1750, 0.2
  %v2372 = vmul.f32 %v1753, 0.2
  %v2373 = vmul.f32 %v1755, 0.2
  %v2374 = vmul.f32 %v1758, 0.2
  %v2375 = vmul.f32 %v1760, 0.2
  %v2376 = vmul.f32 %v1763, 0.2
  %v2377 = vmul.f32 %v1765, 0.2
  %v2378 = vmul.f32 %v1768, 0.2
  %v2379 = vmul.f32 %v1770, 0.2
  %v2380 = vmul.f32 %v1773, 0.2
  %v2381 = vmul.f32 %v1775, 0.2
  %v2382 = vmul.f32 %v1778, 0.2
  %v2383 = vmul.f32 %v1780, 0.2
  %v2384 = vmul.f32 %v1783, 0.2
  %v2385 = vmul.f32 %v1785, 0.2
  %v2386 = vmul.f32 %v1788, 0.2
  %v2387 = vmul.f32 %v1790, 0.2
  %v2388 = vmul.f32 %v1793, 0.2
  %v2389 = vmul.f32 %v1795, 0.2
  %v2390 = vmul.f32 %v1798, 0.2
  %v2391 = vmul.f32 %v1800, 0.2
  %v2392 = vmul.f32 %v1803, 0.2
  %v2393 = vmul.f32 %v1805, 0.2
  %v2394 = vmul.f32 %v1808, 0.2
  %v2395 = vmul.f32 %v1810, 0.2
  %v2396 = vmul.f32 %v1813, 0.2
  %v2397 = vmul.f32 %v1815, 0.2
  %v2398 = vmul.f32 %v1818, 0.2
  %v2399 = vmul.f32 %v1820, 0.2
  %v2400 = vmul.f32 %v1823, 0.2
  %v2401 = vmul.f32 %v1825, 0.2
  %v2402 = vmul.f32 %v1828, 0.2
  %v2403 = vmul.f32 %v1830, 0.2
  %v2404 = vmul.f32 %v1833, 0.2
  %v2405 = vmul.f32 %v1835, 0.2
  %v2406 = vmul.f32 %v1838, 0.2
  %v2407 = vmul.f32 %v1840, 0.2
  %v2408 = vmul.f32 %v1843, 0.2
  %v2409 = vmul.f32 %v1845, 0.2
  %v2410 = vmul.f32 %v1848, 0.2
  %v2411 = vmul.f32 %v1850, 0.2
  %v2412 = vmul.f32 %v1853, 0.2
  %v2413 = vmul.f32 %v1855, 0.2
  %v2414 = vmul.f32 %v1858, 0.2
  %v2415 = vmul.f32 %v1860, 0.2
  %v2416 = vmul.f32 %v1863, 0.2
  %v2417 = vmul.f32 %v1865, 0.2
  %v2418 = vmul.f32 %v1868, 0.2
  %v2419 = vmul.f32 %v1870, 0.2
  %v2420 = vsel %vm1872, %v1188, %v2146
  %v2421 = vsel %vm1873, %v1190, %v2147
  %v2422 = vsel %vm1874, %v1193, %v2148
  %v2423 = vsel %vm1875, %v1195, %v2149
  %v2424 = vsel %vm1876, %v1198, %v2150
  %v2425 = vsel %vm1877, %v1200, %v2151
  %v2426 = vsel %vm1878, %v1203, %v2152
  %v2427 = vsel %vm1879, %v1205, %v2153
  %v2428 = vsel %vm1880, %v1208, %v2154
  %v2429 = vsel %vm1881, %v1210, %v2155
  %v2430 = vsel %vm1882, %v1213, %v2156
  %v2431 = vsel %vm1883, %v1215, %v2157
  %v2432 = vsel %vm1884, %v1218, %v2158
  %v2433 = vsel %vm1885, %v1220, %v2159
  %v2434 = vsel %vm1886, %v1223, %v2160
  %v2435 = vsel %vm1887, %v1225, %v2161
  %v2436 = vsel %vm1888, %v1228, %v2162
  %v2437 = vsel %vm1889, %v1230, %v2163
  %v2438 = vsel %vm1890, %v1233, %v2164
  %v2439 = vsel %vm1891, %v1235, %v2165
  %v2440 = vsel %vm1892, %v1238, %v2166
  %v2441 = vsel %vm1893, %v1240, %v2167
  %v2442 = vsel %vm1894, %v1243, %v2168
  %v2443 = vsel %vm1895, %v1245, %v2169
  %v2444 = vsel %vm1896, %v1248, %v2170
  %v2445 = vsel %vm1897, %v1250, %v2171
  %v2446 = vsel %vm1898, %v1253, %v2172
  %v2447 = vsel %vm1899, %v1255, %v2173
  %v2448 = vsel %vm1900, %v1258, %v2174
  %v2449 = vsel %vm1901, %v1260, %v2175
  %v2450 = vsel %vm1902, %v1263, %v2176
  %v2451 = vsel %vm1903, %v1265, %v2177
  %v2452 = vsel %vm1904, %v1268, %v2178
  %v2453 = vsel %vm1905, %v1270, %v2179
  %v2454 = vsel %vm1906, %v1273, %v2180
  %v2455 = vsel %vm1907, %v1275, %v2181
  %v2456 = vsel %vm1908, %v1278, %v2182
  %v2457 = vsel %vm1909, %v1280, %v2183
  %v2458 = vsel %vm1910, %v1283, %v2184
  %v2459 = vsel %vm1911, %v1285, %v2185
  %v2460 = vsel %vm1912, %v1288, %v2186
  %v2461 = vsel %vm1913, %v1290, %v2187
  %v2462 = vsel %vm1914, %v1293, %v2188
  %v2463 = vsel %vm1915, %v1295, %v2189
  %v2464 = vsel %vm1916, %v1298, %v2190
  %v2465 = vsel %vm1917, %v1300, %v2191
  %v2466 = vsel %vm1918, %v1303, %v2192
  %v2467 = vsel %vm1919, %v1305, %v2193
  %v2468 = vsel %vm1920, %v1308, %v2194
  %v2469 = vsel %vm1921, %v1310, %v2195
  %v2470 = vsel %vm1922, %v1313, %v2196
  %v2471 = vsel %vm1923, %v1315, %v2197
  %v2472 = vsel %vm1924, %v1318, %v2198
  %v2473 = vsel %vm1925, %v1320, %v2199
  %v2474 = vsel %vm1926, %v1323, %v2200
  %v2475 = vsel %vm1927, %v1325, %v2201
  %v2476 = vsel %vm1928, %v1328, %v2202
  %v2477 = vsel %vm1929, %v1330, %v2203
  %v2478 = vsel %vm1930, %v1333, %v2204
  %v2479 = vsel %vm1931, %v1335, %v2205
  %v2480 = vsel %vm1932, %v1338, %v2206
  %v2481 = vsel %vm1933, %v1340, %v2207
  %v2482 = vsel %vm1934, %v1343, %v2208
  %v2483 = vsel %vm1935, %v1345, %v2209
  %v2484 = vsel %vm1936, %v1348, %v2210
  %v2485 = vsel %vm1937, %v1350, %v2211
  %v2486 = vsel %vm1938, %v1353, %v2212
  %v2487 = vsel %vm1939, %v1355, %v2213
  %v2488 = vsel %vm1940, %v1358, %v2214
  %v2489 = vsel %vm1941, %v1360, %v2215
  %v2490 = vsel %vm1942, %v1363, %v2216
  %v2491 = vsel %vm1943, %v1365, %v2217
  %v2492 = vsel %vm1944, %v1368, %v2218
  %v2493 = vsel %vm1945, %v1370, %v2219
  %v2494 = vsel %vm1946, %v1373, %v2220
  %v2495 = vsel %vm1947, %v1375, %v2221
  %v2496 = vsel %vm1948, %v1378, %v2222
  %v2497 = vsel %vm1949, %v1380, %v2223
  %v2498 = vsel %vm1950, %v1383, %v2224
  %v2499 = vsel %vm1951, %v1385, %v2225
  %v2500 = vsel %vm1952, %v1388, %v2226
  %v2501 = vsel %vm1953, %v1390, %v2227
  %v2502 = vsel %vm1954, %v1393, %v2228
  %v2503 = vsel %vm1955, %v1395, %v2229
  %v2504 = vsel %vm1956, %v1398, %v2230
  %v2505 = vsel %vm1957, %v1400, %v2231
  %v2506 = vsel %vm1958, %v1403, %v2232
  %v2507 = vsel %vm1959, %v1405, %v2233
  %v2508 = vsel %vm1960, %v1408, %v2234
  %v2509 = vsel %vm1961, %v1410, %v2235
  %v2510 = vsel %vm1962, %v1413, %v2236
  %v2511 = vsel %vm1963, %v1415, %v2237
  %v2512 = vsel %vm1964, %v1418, %v2238
  %v2513 = vsel %vm1965, %v1420, %v2239
  %v2514 = vsel %vm1966, %v1423, %v2240
  %v2515 = vsel %vm1967, %v1425, %v2241
  %v2516 = vsel %vm1968, %v1428, %v2242
  %v2517 = vsel %vm1969, %v1430, %v2243
  %v2518 = vsel %vm1970, %v1433, %v2244
  %v2519 = vsel %vm1971, %v1435, %v2245
  %v2520 = vsel %vm1972, %v1438, %v2246
  %v2521 = vsel %vm1973, %v1440, %v2247
  %v2522 = vsel %vm1974, %v1443, %v2248
  %v2523 = vsel %vm1975, %v1445, %v2249
  %v2524 = vsel %vm1976, %v1448, %v2250
  %v2525 = vsel %vm1977, %v1450, %v2251
  %v2526 = vsel %vm1978, %v1453, %v2252
  %v2527 = vsel %vm1979, %v1455, %v2253
  %v2528 = vsel %vm1980, %v1458, %v2254
  %v2529 = vsel %vm1981, %v1460, %v2255
  %v2530 = vsel %vm1982, %v1463, %v2256
  %v2531 = vsel %vm1983, %v1465, %v2257
  %v2532 = vsel %vm1984, %v1468, %v2258
  %v2533 = vsel %vm1985, %v1470, %v2259
  %v2534 = vsel %vm1986, %v1473, %v2260
  %v2535 = vsel %vm1987, %v1475, %v2261
  %v2536 = vsel %vm1988, %v1478, %v2262
  %v2537 = vsel %vm1989, %v1480, %v2263
  %v2538 = vsel %vm1990, %v1483, %v2264
  %v2539 = vsel %vm1991, %v1485, %v2265
  %v2540 = vsel %vm1992, %v1488, %v2266
  %v2541 = vsel %vm1993, %v1490, %v2267
  %v2542 = vsel %vm1994, %v1493, %v2268
  %v2543 = vsel %vm1995, %v1495, %v2269
  %v2544 = vsel %vm1996, %v1498, %v2270
  %v2545 = vsel %vm1997, %v1500, %v2271
  %v2546 = vsel %vm1998, %v1503, %v2272
  %v2547 = vsel %vm1999, %v1505, %v2273
  %v2548 = vsel %vm2000, %v1508, %v2274
  %v2549 = vsel %vm2001, %v1510, %v2275
  %v2550 = vsel %vm2002, %v1513, %v2276
  %v2551 = vsel %vm2003, %v1515, %v2277
  %v2552 = vsel %vm2004, %v1518, %v2278
  %v2553 = vsel %vm2005, %v1520, %v2279
  %v2554 = vsel %vm2006, %v1523, %v2280
  %v2555 = vsel %vm2007, %v1525, %v2281
  %v2556 = vsel %vm2008, %v1528, %v2282
  %v2557 = vsel %vm2009, %v1530, %v2283
  %v2558 = vsel %vm2010, %v1533, %v2284
  %v2559 = vsel %vm2011, %v1535, %v2285
  %v2560 = vsel %vm2012, %v1538, %v2286
  %v2561 = vsel %vm2013, %v1540, %v2287
  %v2562 = vsel %vm2014, %v1543, %v2288
  %v2563 = vsel %vm2015, %v1545, %v2289
  %v2564 = vsel %vm2016, %v1548, %v2290
  %v2565 = vsel %vm2017, %v1550, %v2291
  %v2566 = vsel %vm2018, %v1553, %v2292
  %v2567 = vsel %vm2019, %v1555, %v2293
  %v2568 = vsel %vm2020, %v1558, %v2294
  %v2569 = vsel %vm2021, %v1560, %v2295
  %v2570 = vsel %vm2022, %v1563, %v2296
  %v2571 = vsel %vm2023, %v1565, %v2297
  %v2572 = vsel %vm2024, %v1568, %v2298
  %v2573 = vsel %vm2025, %v1570, %v2299
  %v2574 = vsel %vm2026, %v1573, %v2300
  %v2575 = vsel %vm2027, %v1575, %v2301
  %v2576 = vsel %vm2028, %v1578, %v2302
  %v2577 = vsel %vm2029, %v1580, %v2303
  %v2578 = vsel %vm2030, %v1583, %v2304
  %v2579 = vsel %vm2031, %v1585, %v2305
  %v2580 = vsel %vm2032, %v1588, %v2306
  %v2581 = vsel %vm2033, %v1590, %v2307
  %v2582 = vsel %vm2034, %v1593, %v2308
  %v2583 = vsel %vm2035, %v1595, %v2309
  %v2584 = vsel %vm2036, %v1598, %v2310
  %v2585 = vsel %vm2037, %v1600, %v2311
  %v2586 = vsel %vm2038, %v1603, %v2312
  %v2587 = vsel %vm2039, %v1605, %v2313
  %v2588 = vsel %vm2040, %v1608, %v2314
  %v2589 = vsel %vm2041, %v1610, %v2315
  %v2590 = vsel %vm2042, %v1613, %v2316
  %v2591 = vsel %vm2043, %v1615, %v2317
  %v2592 = vsel %vm2044, %v1618, %v2318
  %v2593 = vsel %vm2045, %v1620, %v2319
  %v2594 = vsel %vm2046, %v1623, %v2320
  %v2595 = vsel %vm2047, %v1625, %v2321
  %v2596 = vsel %vm2048, %v1628, %v2322
  %v2597 = vsel %vm2049, %v1630, %v2323
  %v2598 = vsel %vm2050, %v1633, %v2324
  %v2599 = vsel %vm2051, %v1635, %v2325
  %v2600 = vsel %vm2052, %v1638, %v2326
  %v2601 = vsel %vm2053, %v1640, %v2327
  %v2602 = vsel %vm2054, %v1643, %v2328
  %v2603 = vsel %vm2055, %v1645, %v2329
  %v2604 = vsel %vm2056, %v1648, %v2330
  %v2605 = vsel %vm2057, %v1650, %v2331
  %v2606 = vsel %vm2058, %v1653, %v2332
  %v2607 = vsel %vm2059, %v1655, %v2333
  %v2608 = vsel %vm2060, %v1658, %v2334
  %v2609 = vsel %vm2061, %v1660, %v2335
  %v2610 = vsel %vm2062, %v1663, %v2336
  %v2611 = vsel %vm2063, %v1665, %v2337
  %v2612 = vsel %vm2064, %v1668, %v2338
  %v2613 = vsel %vm2065, %v1670, %v2339
  %v2614 = vsel %vm2066, %v1673, %v2340
  %v2615 = vsel %vm2067, %v1675, %v2341
  %v2616 = vsel %vm2068, %v1678, %v2342
  %v2617 = vsel %vm2069, %v1680, %v2343
  %v2618 = vsel %vm2070, %v1683, %v2344
  %v2619 = vsel %vm2071, %v1685, %v2345
  %v2620 = vsel %vm2072, %v1688, %v2346
  %v2621 = vsel %vm2073, %v1690, %v2347
  %v2622 = vsel %vm2074, %v1693, %v2348
  %v2623 = vsel %vm2075, %v1695, %v2349
  %v2624 = vsel %vm2076, %v1698, %v2350
  %v2625 = vsel %vm2077, %v1700, %v2351
  %v2626 = vsel %vm2078, %v1703, %v2352
  %v2627 = vsel %vm2079, %v1705, %v2353
  %v2628 = vsel %vm2080, %v1708, %v2354
  %v2629 = vsel %vm2081, %v1710, %v2355
  %v2630 = vsel %vm2082, %v1713, %v2356
  %v2631 = vsel %vm2083, %v1715, %v2357
  %v2632 = vsel %vm2084, %v1718, %v2358
  %v2633 = vsel %vm2085, %v1720, %v2359
  %v2634 = vsel %vm2086, %v1723, %v2360
  %v2635 = vsel %vm2087, %v1725, %v2361
  %v2636 = vsel %vm2088, %v1728, %v2362
  %v2637 = vsel %vm2089, %v1730, %v2363
  %v2638 = vsel %vm2090, %v1733, %v2364
  %v2639 = vsel %vm2091, %v1735, %v2365
  %v2640 = vsel %vm2092, %v1738, %v2366
  %v2641 = vsel %vm2093, %v1740, %v2367
  %v2642 = vsel %vm2094, %v1743, %v2368
  %v2643 = vsel %vm2095, %v1745, %v2369
  %v2644 = vsel %vm2096, %v1748, %v2370
  %v2645 = vsel %vm2097, %v1750, %v2371
  %v2646 = vsel %vm2098, %v1753, %v2372
  %v2647 = vsel %vm2099, %v1755, %v2373
  %v2648 = vsel %vm2100, %v1758, %v2374
  %v2649 = vsel %vm2101, %v1760, %v2375
  %v2650 = vsel %vm2102, %v1763, %v2376
  %v2651 = vsel %vm2103, %v1765, %v2377
  %v2652 = vsel %vm2104, %v1768, %v2378
  %v2653 = vsel %vm2105, %v1770, %v2379
  %v2654 = vsel %vm2106, %v1773, %v2380
  %v2655 = vsel %vm2107, %v1775, %v2381
  %v2656 = vsel %vm2108, %v1778, %v2382
  %v2657 = vsel %vm2109, %v1780, %v2383
  %v2658 = vsel %vm2110, %v1783, %v2384
  %v2659 = vsel %vm2111, %v1785, %v2385
  %v2660 = vsel %vm2112, %v1788, %v2386
  %v2661 = vsel %vm2113, %v1790, %v2387
  %v2662 = vsel %vm2114, %v1793, %v2388
  %v2663 = vsel %vm2115, %v1795, %v2389
  %v2664 = vsel %vm2116, %v1798, %v2390
  %v2665 = vsel %vm2117, %v1800, %v2391
  %v2666 = vsel %vm2118, %v1803, %v2392
  %v2667 = vsel %vm2119, %v1805, %v2393
  %v2668 = vsel %vm2120, %v1808, %v2394
  %v2669 = vsel %vm2121, %v1810, %v2395
  %v2670 = vsel %vm2122, %v1813, %v2396
  %v2671 = vsel %vm2123, %v1815, %v2397
  %v2672 = vsel %vm2124, %v1818, %v2398
  %v2673 = vsel %vm2125, %v1820, %v2399
  %v2674 = vsel %vm2126, %v1823, %v2400
  %v2675 = vsel %vm2127, %v1825, %v2401
  %v2676 = vsel %vm2128, %v1828, %v2402
  %v2677 = vsel %vm2129, %v1830, %v2403
  %v2678 = vsel %vm2130, %v1833, %v2404
  %v2679 = vsel %vm2131, %v1835, %v2405
  %v2680 = vsel %vm2132, %v1838, %v2406
  %v2681 = vsel %vm2133, %v1840, %v2407
  %v2682 = vsel %vm2134, %v1843, %v2408
  %v2683 = vsel %vm2135, %v1845, %v2409
  %v2684 = vsel %vm2136, %v1848, %v2410
  %v2685 = vsel %vm2137, %v1850, %v2411
  %v2686 = vsel %vm2138, %v1853, %v2412
  %v2687 = vsel %vm2139, %v1855, %v2413
  %v2688 = vsel %vm2140, %v1858, %v2414
  %v2689 = vsel %vm2141, %v1860, %v2415
  %v2690 = vsel %vm2142, %v1863, %v2416
  %v2691 = vsel %vm2143, %v1865, %v2417
  %v2692 = vsel %vm2144, %v1868, %v2418
  %v2693 = vsel %vm2145, %v1870, %v2419
  %2694 = vst [vmem:[%s3] sm:$0xff] %v2420
  %2695 = vst [vmem:[%s3 + $0x8] sm:$0xff] %v2421
  %2696 = vst [vmem:[%s3 + $0x10] sm:$0xff] %v2422
  %2697 = vst [vmem:[%s3 + $0x18] sm:$0xff] %v2423
  %2698 = vst [vmem:[%s3 + $0x20] sm:$0xff] %v2424
  %2699 = vst [vmem:[%s3 + $0x28] sm:$0xff] %v2425
  %2700 = vst [vmem:[%s3 + $0x30] sm:$0xff] %v2426
  %2701 = vst [vmem:[%s3 + $0x38] sm:$0xff] %v2427
  %2702 = vst [vmem:[%s3 + $0x40] sm:$0xff] %v2428
  %2703 = vst [vmem:[%s3 + $0x48] sm:$0xff] %v2429
  %2704 = vst [vmem:[%s3 + $0x50] sm:$0xff] %v2430
  %2705 = vst [vmem:[%s3 + $0x58] sm:$0xff] %v2431
  %2706 = vst [vmem:[%s3 + $0x60] sm:$0xff] %v2432
  %2707 = vst [vmem:[%s3 + $0x68] sm:$0xff] %v2433
  %2708 = vst [vmem:[%s3 + $0x70] sm:$0xff] %v2434
  %2709 = vst [vmem:[%s3 + $0x78] sm:$0xff] %v2435
  %2710 = vst [vmem:[%s3 + $0x80] sm:$0xff] %v2436
  %2711 = vst [vmem:[%s3 + $0x88] sm:$0xff] %v2437
  %2712 = vst [vmem:[%s3 + $0x90] sm:$0xff] %v2438
  %2713 = vst [vmem:[%s3 + $0x98] sm:$0xff] %v2439
  %2714 = vst [vmem:[%s3 + $0xa0] sm:$0xff] %v2440
  %2715 = vst [vmem:[%s3 + $0xa8] sm:$0xff] %v2441
  %2716 = vst [vmem:[%s3 + $0xb0] sm:$0xff] %v2442
  %2717 = vst [vmem:[%s3 + $0xb8] sm:$0xff] %v2443
  %2718 = vst [vmem:[%s3 + $0xc0] sm:$0xff] %v2444
  %2719 = vst [vmem:[%s3 + $0xc8] sm:$0xff] %v2445
  %2720 = vst [vmem:[%s3 + $0xd0] sm:$0xff] %v2446
  %2721 = vst [vmem:[%s3 + $0xd8] sm:$0xff] %v2447
  %2722 = vst [vmem:[%s3 + $0xe0] sm:$0xff] %v2448
  %2723 = vst [vmem:[%s3 + $0xe8] sm:$0xff] %v2449
  %2724 = vst [vmem:[%s3 + $0xf0] sm:$0xff] %v2450
  %2725 = vst [vmem:[%s3 + $0xf8] sm:$0xff] %v2451
  %2726 = vst [vmem:[%s3 + $0x100] sm:$0xff] %v2452
  %2727 = vst [vmem:[%s3 + $0x108] sm:$0xff] %v2453
  %2728 = vst [vmem:[%s3 + $0x110] sm:$0xff] %v2454
  %2729 = vst [vmem:[%s3 + $0x118] sm:$0xff] %v2455
  %2730 = vst [vmem:[%s3 + $0x120] sm:$0xff] %v2456
  %2731 = vst [vmem:[%s3 + $0x128] sm:$0xff] %v2457
  %2732 = vst [vmem:[%s3 + $0x130] sm:$0xff] %v2458
  %2733 = vst [vmem:[%s3 + $0x138] sm:$0xff] %v2459
  %2734 = vst [vmem:[%s3 + $0x140] sm:$0xff] %v2460
  %2735 = vst [vmem:[%s3 + $0x148] sm:$0xff] %v2461
  %2736 = vst [vmem:[%s3 + $0x150] sm:$0xff] %v2462
  %2737 = vst [vmem:[%s3 + $0x158] sm:$0xff] %v2463
  %2738 = vst [vmem:[%s3 + $0x160] sm:$0xff] %v2464
  %2739 = vst [vmem:[%s3 + $0x168] sm:$0xff] %v2465
  %2740 = vst [vmem:[%s3 + $0x170] sm:$0xff] %v2466
  %2741 = vst [vmem:[%s3 + $0x178] sm:$0xff] %v2467
  %2742 = vst [vmem:[%s3 + $0x180] sm:$0xff] %v2468
  %2743 = vst [vmem:[%s3 + $0x188] sm:$0xff] %v2469
  %2744 = vst [vmem:[%s3 + $0x190] sm:$0xff] %v2470
  %2745 = vst [vmem:[%s3 + $0x198] sm:$0xff] %v2471
  %2746 = vst [vmem:[%s3 + $0x1a0] sm:$0xff] %v2472
  %2747 = vst [vmem:[%s3 + $0x1a8] sm:$0xff] %v2473
  %2748 = vst [vmem:[%s3 + $0x1b0] sm:$0xff] %v2474
  %2749 = vst [vmem:[%s3 + $0x1b8] sm:$0xff] %v2475
  %2750 = vst [vmem:[%s3 + $0x1c0] sm:$0xff] %v2476
  %2751 = vst [vmem:[%s3 + $0x1c8] sm:$0xff] %v2477
  %2752 = vst [vmem:[%s3 + $0x1d0] sm:$0xff] %v2478
  %2753 = vst [vmem:[%s3 + $0x1d8] sm:$0xff] %v2479
  %2754 = vst [vmem:[%s3 + $0x1e0] sm:$0xff] %v2480
  %2755 = vst [vmem:[%s3 + $0x1e8] sm:$0xff] %v2481
  %2756 = vst [vmem:[%s3 + $0x1f0] sm:$0xff] %v2482
  %2757 = vst [vmem:[%s3 + $0x1f8] sm:$0xff] %v2483
  %2758 = vst [vmem:[%s3 + $0x200] sm:$0xff] %v2484
  %2759 = vst [vmem:[%s3 + $0x208] sm:$0xff] %v2485
  %2760 = vst [vmem:[%s3 + $0x210] sm:$0xff] %v2486
  %2761 = vst [vmem:[%s3 + $0x218] sm:$0xff] %v2487
  %2762 = vst [vmem:[%s3 + $0x220] sm:$0xff] %v2488
  %2763 = vst [vmem:[%s3 + $0x228] sm:$0xff] %v2489
  %2764 = vst [vmem:[%s3 + $0x230] sm:$0xff] %v2490
  %2765 = vst [vmem:[%s3 + $0x238] sm:$0xff] %v2491
  %2766 = vst [vmem:[%s3 + $0x240] sm:$0xff] %v2492
  %2767 = vst [vmem:[%s3 + $0x248] sm:$0xff] %v2493
  %2768 = vst [vmem:[%s3 + $0x250] sm:$0xff] %v2494
  %2769 = vst [vmem:[%s3 + $0x258] sm:$0xff] %v2495
  %2770 = vst [vmem:[%s3 + $0x260] sm:$0xff] %v2496
  %2771 = vst [vmem:[%s3 + $0x268] sm:$0xff] %v2497
  %2772 = vst [vmem:[%s3 + $0x270] sm:$0xff] %v2498
  %2773 = vst [vmem:[%s3 + $0x278] sm:$0xff] %v2499
  %2774 = vst [vmem:[%s3 + $0x280] sm:$0xff] %v2500
  %2775 = vst [vmem:[%s3 + $0x288] sm:$0xff] %v2501
  %2776 = vst [vmem:[%s3 + $0x290] sm:$0xff] %v2502
  %2777 = vst [vmem:[%s3 + $0x298] sm:$0xff] %v2503
  %2778 = vst [vmem:[%s3 + $0x2a0] sm:$0xff] %v2504
  %2779 = vst [vmem:[%s3 + $0x2a8] sm:$0xff] %v2505
  %2780 = vst [vmem:[%s3 + $0x2b0] sm:$0xff] %v2506
  %2781 = vst [vmem:[%s3 + $0x2b8] sm:$0xff] %v2507
  %2782 = vst [vmem:[%s3 + $0x2c0] sm:$0xff] %v2508
  %2783 = vst [vmem:[%s3 + $0x2c8] sm:$0xff] %v2509
  %2784 = vst [vmem:[%s3 + $0x2d0] sm:$0xff] %v2510
  %2785 = vst [vmem:[%s3 + $0x2d8] sm:$0xff] %v2511
  %2786 = vst [vmem:[%s3 + $0x2e0] sm:$0xff] %v2512
  %2787 = vst [vmem:[%s3 + $0x2e8] sm:$0xff] %v2513
  %2788 = vst [vmem:[%s3 + $0x2f0] sm:$0xff] %v2514
  %2789 = vst [vmem:[%s3 + $0x2f8] sm:$0xff] %v2515
  %2790 = vst [vmem:[%s3 + $0x300] sm:$0xff] %v2516
  %2791 = vst [vmem:[%s3 + $0x308] sm:$0xff] %v2517
  %2792 = vst [vmem:[%s3 + $0x310] sm:$0xff] %v2518
  %2793 = vst [vmem:[%s3 + $0x318] sm:$0xff] %v2519
  %2794 = vst [vmem:[%s3 + $0x320] sm:$0xff] %v2520
  %2795 = vst [vmem:[%s3 + $0x328] sm:$0xff] %v2521
  %2796 = vst [vmem:[%s3 + $0x330] sm:$0xff] %v2522
  %2797 = vst [vmem:[%s3 + $0x338] sm:$0xff] %v2523
  %2798 = vst [vmem:[%s3 + $0x340] sm:$0xff] %v2524
  %2799 = vst [vmem:[%s3 + $0x348] sm:$0xff] %v2525
  %2800 = vst [vmem:[%s3 + $0x350] sm:$0xff] %v2526
  %2801 = vst [vmem:[%s3 + $0x358] sm:$0xff] %v2527
  %2802 = vst [vmem:[%s3 + $0x360] sm:$0xff] %v2528
  %2803 = vst [vmem:[%s3 + $0x368] sm:$0xff] %v2529
  %2804 = vst [vmem:[%s3 + $0x370] sm:$0xff] %v2530
  %2805 = vst [vmem:[%s3 + $0x378] sm:$0xff] %v2531
  %2806 = vst [vmem:[%s3 + $0x380] sm:$0xff] %v2532
  %2807 = vst [vmem:[%s3 + $0x388] sm:$0xff] %v2533
  %2808 = vst [vmem:[%s3 + $0x390] sm:$0xff] %v2534
  %2809 = vst [vmem:[%s3 + $0x398] sm:$0xff] %v2535
  %2810 = vst [vmem:[%s3 + $0x3a0] sm:$0xff] %v2536
  %2811 = vst [vmem:[%s3 + $0x3a8] sm:$0xff] %v2537
  %2812 = vst [vmem:[%s3 + $0x3b0] sm:$0xff] %v2538
  %2813 = vst [vmem:[%s3 + $0x3b8] sm:$0xff] %v2539
  %2814 = vst [vmem:[%s3 + $0x3c0] sm:$0xff] %v2540
  %2815 = vst [vmem:[%s3 + $0x3c8] sm:$0xff] %v2541
  %2816 = vst [vmem:[%s3 + $0x3d0] sm:$0xff] %v2542
  %2817 = vst [vmem:[%s3 + $0x3d8] sm:$0xff] %v2543
  %2818 = vst [vmem:[%s3 + $0x3e0] sm:$0xff] %v2544
  %2819 = vst [vmem:[%s3 + $0x3e8] sm:$0xff] %v2545
  %2820 = vst [vmem:[%s3 + $0x3f0] sm:$0xff] %v2546
  %2821 = vst [vmem:[%s3 + $0x3f8] sm:$0xff] %v2547
  %2822 = vst [vmem:[%s3 + $0x400] sm:$0xff] %v2548
  %2823 = vst [vmem:[%s3 + $0x408] sm:$0xff] %v2549
  %2824 = vst [vmem:[%s3 + $0x410] sm:$0xff] %v2550
  %2825 = vst [vmem:[%s3 + $0x418] sm:$0xff] %v2551
  %2826 = vst [vmem:[%s3 + $0x420] sm:$0xff] %v2552
  %2827 = vst [vmem:[%s3 + $0x428] sm:$0xff] %v2553
  %2828 = vst [vmem:[%s3 + $0x430] sm:$0xff] %v2554
  %2829 = vst [vmem:[%s3 + $0x438] sm:$0xff] %v2555
  %2830 = vst [vmem:[%s3 + $0x440] sm:$0xff] %v2556
  %2831 = vst [vmem:[%s3 + $0x448] sm:$0xff] %v2557
  %2832 = vst [vmem:[%s3 + $0x450] sm:$0xff] %v2558
  %2833 = vst [vmem:[%s3 + $0x458] sm:$0xff] %v2559
  %2834 = vst [vmem:[%s3 + $0x460] sm:$0xff] %v2560
  %2835 = vst [vmem:[%s3 + $0x468] sm:$0xff] %v2561
  %2836 = vst [vmem:[%s3 + $0x470] sm:$0xff] %v2562
  %2837 = vst [vmem:[%s3 + $0x478] sm:$0xff] %v2563
  %2838 = vst [vmem:[%s3 + $0x480] sm:$0xff] %v2564
  %2839 = vst [vmem:[%s3 + $0x488] sm:$0xff] %v2565
  %2840 = vst [vmem:[%s3 + $0x490] sm:$0xff] %v2566
  %2841 = vst [vmem:[%s3 + $0x498] sm:$0xff] %v2567
  %2842 = vst [vmem:[%s3 + $0x4a0] sm:$0xff] %v2568
  %2843 = vst [vmem:[%s3 + $0x4a8] sm:$0xff] %v2569
  %2844 = vst [vmem:[%s3 + $0x4b0] sm:$0xff] %v2570
  %2845 = vst [vmem:[%s3 + $0x4b8] sm:$0xff] %v2571
  %2846 = vst [vmem:[%s3 + $0x4c0] sm:$0xff] %v2572
  %2847 = vst [vmem:[%s3 + $0x4c8] sm:$0xff] %v2573
  %2848 = vst [vmem:[%s3 + $0x4d0] sm:$0xff] %v2574
  %2849 = vst [vmem:[%s3 + $0x4d8] sm:$0xff] %v2575
  %2850 = vst [vmem:[%s3 + $0x4e0] sm:$0xff] %v2576
  %2851 = vst [vmem:[%s3 + $0x4e8] sm:$0xff] %v2577
  %2852 = vst [vmem:[%s3 + $0x4f0] sm:$0xff] %v2578
  %2853 = vst [vmem:[%s3 + $0x4f8] sm:$0xff] %v2579
  %2854 = vst [vmem:[%s3 + $0x500] sm:$0xff] %v2580
  %2855 = vst [vmem:[%s3 + $0x508] sm:$0xff] %v2581
  %2856 = vst [vmem:[%s3 + $0x510] sm:$0xff] %v2582
  %2857 = vst [vmem:[%s3 + $0x518] sm:$0xff] %v2583
  %2858 = vst [vmem:[%s3 + $0x520] sm:$0xff] %v2584
  %2859 = vst [vmem:[%s3 + $0x528] sm:$0xff] %v2585
  %2860 = vst [vmem:[%s3 + $0x530] sm:$0xff] %v2586
  %2861 = vst [vmem:[%s3 + $0x538] sm:$0xff] %v2587
  %2862 = vst [vmem:[%s3 + $0x540] sm:$0xff] %v2588
  %2863 = vst [vmem:[%s3 + $0x548] sm:$0xff] %v2589
  %2864 = vst [vmem:[%s3 + $0x550] sm:$0xff] %v2590
  %2865 = vst [vmem:[%s3 + $0x558] sm:$0xff] %v2591
  %2866 = vst [vmem:[%s3 + $0x560] sm:$0xff] %v2592
  %2867 = vst [vmem:[%s3 + $0x568] sm:$0xff] %v2593
  %2868 = vst [vmem:[%s3 + $0x570] sm:$0xff] %v2594
  %2869 = vst [vmem:[%s3 + $0x578] sm:$0xff] %v2595
  %2870 = vst [vmem:[%s3 + $0x580] sm:$0xff] %v2596
  %2871 = vst [vmem:[%s3 + $0x588] sm:$0xff] %v2597
  %2872 = vst [vmem:[%s3 + $0x590] sm:$0xff] %v2598
  %2873 = vst [vmem:[%s3 + $0x598] sm:$0xff] %v2599
  %2874 = vst [vmem:[%s3 + $0x5a0] sm:$0xff] %v2600
  %2875 = vst [vmem:[%s3 + $0x5a8] sm:$0xff] %v2601
  %2876 = vst [vmem:[%s3 + $0x5b0] sm:$0xff] %v2602
  %2877 = vst [vmem:[%s3 + $0x5b8] sm:$0xff] %v2603
  %2878 = vst [vmem:[%s3 + $0x5c0] sm:$0xff] %v2604
  %2879 = vst [vmem:[%s3 + $0x5c8] sm:$0xff] %v2605
  %2880 = vst [vmem:[%s3 + $0x5d0] sm:$0xff] %v2606
  %2881 = vst [vmem:[%s3 + $0x5d8] sm:$0xff] %v2607
  %2882 = vst [vmem:[%s3 + $0x5e0] sm:$0xff] %v2608
  %2883 = vst [vmem:[%s3 + $0x5e8] sm:$0xff] %v2609
  %2884 = vst [vmem:[%s3 + $0x5f0] sm:$0xff] %v2610
  %2885 = vst [vmem:[%s3 + $0x5f8] sm:$0xff] %v2611
  %2886 = vst [vmem:[%s3 + $0x600] sm:$0xff] %v2612
  %2887 = vst [vmem:[%s3 + $0x608] sm:$0xff] %v2613
  %2888 = vst [vmem:[%s3 + $0x610] sm:$0xff] %v2614
  %2889 = vst [vmem:[%s3 + $0x618] sm:$0xff] %v2615
  %2890 = vst [vmem:[%s3 + $0x620] sm:$0xff] %v2616
  %2891 = vst [vmem:[%s3 + $0x628] sm:$0xff] %v2617
  %2892 = vst [vmem:[%s3 + $0x630] sm:$0xff] %v2618
  %2893 = vst [vmem:[%s3 + $0x638] sm:$0xff] %v2619
  %2894 = vst [vmem:[%s3 + $0x640] sm:$0xff] %v2620
  %2895 = vst [vmem:[%s3 + $0x648] sm:$0xff] %v2621
  %2896 = vst [vmem:[%s3 + $0x650] sm:$0xff] %v2622
  %2897 = vst [vmem:[%s3 + $0x658] sm:$0xff] %v2623
  %2898 = vst [vmem:[%s3 + $0x660] sm:$0xff] %v2624
  %2899 = vst [vmem:[%s3 + $0x668] sm:$0xff] %v2625
  %2900 = vst [vmem:[%s3 + $0x670] sm:$0xff] %v2626
  %2901 = vst [vmem:[%s3 + $0x678] sm:$0xff] %v2627
  %2902 = vst [vmem:[%s3 + $0x680] sm:$0xff] %v2628
  %2903 = vst [vmem:[%s3 + $0x688] sm:$0xff] %v2629
  %2904 = vst [vmem:[%s3 + $0x690] sm:$0xff] %v2630
  %2905 = vst [vmem:[%s3 + $0x698] sm:$0xff] %v2631
  %2906 = vst [vmem:[%s3 + $0x6a0] sm:$0xff] %v2632
  %2907 = vst [vmem:[%s3 + $0x6a8] sm:$0xff] %v2633
  %2908 = vst [vmem:[%s3 + $0x6b0] sm:$0xff] %v2634
  %2909 = vst [vmem:[%s3 + $0x6b8] sm:$0xff] %v2635
  %2910 = vst [vmem:[%s3 + $0x6c0] sm:$0xff] %v2636
  %2911 = vst [vmem:[%s3 + $0x6c8] sm:$0xff] %v2637
  %2912 = vst [vmem:[%s3 + $0x6d0] sm:$0xff] %v2638
  %2913 = vst [vmem:[%s3 + $0x6d8] sm:$0xff] %v2639
  %2914 = vst [vmem:[%s3 + $0x6e0] sm:$0xff] %v2640
  %2915 = vst [vmem:[%s3 + $0x6e8] sm:$0xff] %v2641
  %2916 = vst [vmem:[%s3 + $0x6f0] sm:$0xff] %v2642
  %2917 = vst [vmem:[%s3 + $0x6f8] sm:$0xff] %v2643
  %2918 = vst [vmem:[%s3 + $0x700] sm:$0xff] %v2644
  %2919 = vst [vmem:[%s3 + $0x708] sm:$0xff] %v2645
  %2920 = vst [vmem:[%s3 + $0x710] sm:$0xff] %v2646
  %2921 = vst [vmem:[%s3 + $0x718] sm:$0xff] %v2647
  %2922 = vst [vmem:[%s3 + $0x720] sm:$0xff] %v2648
  %2923 = vst [vmem:[%s3 + $0x728] sm:$0xff] %v2649
  %2924 = vst [vmem:[%s3 + $0x730] sm:$0xff] %v2650
  %2925 = vst [vmem:[%s3 + $0x738] sm:$0xff] %v2651
  %2926 = vst [vmem:[%s3 + $0x740] sm:$0xff] %v2652
  %2927 = vst [vmem:[%s3 + $0x748] sm:$0xff] %v2653
  %2928 = vst [vmem:[%s3 + $0x750] sm:$0xff] %v2654
  %2929 = vst [vmem:[%s3 + $0x758] sm:$0xff] %v2655
  %2930 = vst [vmem:[%s3 + $0x760] sm:$0xff] %v2656
  %2931 = vst [vmem:[%s3 + $0x768] sm:$0xff] %v2657
  %2932 = vst [vmem:[%s3 + $0x770] sm:$0xff] %v2658
  %2933 = vst [vmem:[%s3 + $0x778] sm:$0xff] %v2659
  %2934 = vst [vmem:[%s3 + $0x780] sm:$0xff] %v2660
  %2935 = vst [vmem:[%s3 + $0x788] sm:$0xff] %v2661
  %2936 = vst [vmem:[%s3 + $0x790] sm:$0xff] %v2662
  %2937 = vst [vmem:[%s3 + $0x798] sm:$0xff] %v2663
  %2938 = vst [vmem:[%s3 + $0x7a0] sm:$0xff] %v2664
  %2939 = vst [vmem:[%s3 + $0x7a8] sm:$0xff] %v2665
  %2940 = vst [vmem:[%s3 + $0x7b0] sm:$0xff] %v2666
  %2941 = vst [vmem:[%s3 + $0x7b8] sm:$0xff] %v2667
  %2942 = vst [vmem:[%s3 + $0x7c0] sm:$0xff] %v2668
  %2943 = vst [vmem:[%s3 + $0x7c8] sm:$0xff] %v2669
  %2944 = vst [vmem:[%s3 + $0x7d0] sm:$0xff] %v2670
  %2945 = vst [vmem:[%s3 + $0x7d8] sm:$0xff] %v2671
  %2946 = vst [vmem:[%s3 + $0x7e0] sm:$0xff] %v2672
  %2947 = vst [vmem:[%s3 + $0x7e8] sm:$0xff] %v2673
  %2948 = vst [vmem:[%s3 + $0x7f0] sm:$0xff] %v2674
  %2949 = vst [vmem:[%s3 + $0x7f8] sm:$0xff] %v2675
  %2950 = vst [vmem:[%s3 + $0x800] sm:$0xff] %v2676
  %2951 = vst [vmem:[%s3 + $0x808] sm:$0xff] %v2677
  %2952 = vst [vmem:[%s3 + $0x810] sm:$0xff] %v2678
  %2953 = vst [vmem:[%s3 + $0x818] sm:$0xff] %v2679
  %2954 = vst [vmem:[%s3 + $0x820] sm:$0xff] %v2680
  %2955 = vst [vmem:[%s3 + $0x828] sm:$0xff] %v2681
  %2956 = vst [vmem:[%s3 + $0x830] sm:$0xff] %v2682
  %2957 = vst [vmem:[%s3 + $0x838] sm:$0xff] %v2683
  %2958 = vst [vmem:[%s3 + $0x840] sm:$0xff] %v2684
  %2959 = vst [vmem:[%s3 + $0x848] sm:$0xff] %v2685
  %2960 = vst [vmem:[%s3 + $0x850] sm:$0xff] %v2686
  %2961 = vst [vmem:[%s3 + $0x858] sm:$0xff] %v2687
  %2962 = vst [vmem:[%s3 + $0x860] sm:$0xff] %v2688
  %2963 = vst [vmem:[%s3 + $0x868] sm:$0xff] %v2689
  %2964 = vst [vmem:[%s3 + $0x870] sm:$0xff] %v2690
  %2965 = vst [vmem:[%s3 + $0x878] sm:$0xff] %v2691
  %2966 = vst [vmem:[%s3 + $0x880] sm:$0xff] %v2692
  %2967 = vst [vmem:[%s3 + $0x888] sm:$0xff] %v2693
  // Predicated region
  $region14: #{discriminator_forward.5} parent=0 // pred_check
    _
  $region15: #{discriminator_forward.5} parent=0 // pred_check_branch
    %2969 = sbr.rel (0) target = $region17
  $region16: #{discriminator_forward.5} parent=0 // pred_region
    _
  $region17: #{discriminator_forward.5} parent=0 // pred_fallthru
    _
  // Predicated region
  $region18: #{discriminator_forward.5} parent=0 // pred_check
    _
  $region19: #{discriminator_forward.5} parent=0 // pred_check_branch
    %2971 = sbr.rel (0) target = $region21
  $region20: #{discriminator_forward.5} parent=0 // pred_region
    _
  $region21: #{discriminator_forward.5} parent=0 // pred_fallthru
    _

// kernel: discriminator_forward.6
$region0: #{discriminator_forward.6}
  #allocation0 [shape = 'u32[]', space=smem, size = 0x4, offset = 0x4, fixed_abs, tag = 'smem constant byte address 0x4 - core index']
  #allocation1 [shape = 'u32[72,128]{1,0:T(1,128)}', space=vmem, size = 0x9000, scoped, tag = 'internal scratch']
  %s0 = inlined_call_operand.vmem [shape: bf16[512,256], index: 0, kind: input, shape index: {}]
  %s1 = inlined_call_operand.vmem [shape: bf16[256,128], index: 1, kind: input, shape index: {}]
  %s2 = inlined_call_operand.vmem [shape: f32[1,128], index: 2, kind: input, shape index: {}]
  %s3 = inlined_call_operand.vmem [shape: f32[1,128], index: 3, kind: input, shape index: {}]
  %s4 = inlined_call_operand.vmem [shape: f32[1,128], index: 4, kind: input, shape index: {}]
  %s5 = inlined_call_operand.vmem [shape: f32[512,128], index: 5, kind: output, shape index: {}]
  %s6 = sld [smem:[#allocation0]]
  $region30: #{discriminator_forward.6} parent=0
    _
  %s8 = ssub.s32 1, %s6
  %s9 = scalar_select 0, %s8, %s6
  // Predicated region
  $region2: #{discriminator_forward.6} parent=0 // pred_check
    _
  $region3: #{discriminator_forward.6} parent=0 // pred_check_branch
    %11 = sbr.rel (0) target = $region5
  $region4: #{discriminator_forward.6} parent=0 // pred_region
    _
  $region5: #{discriminator_forward.6} parent=0 // pred_fallthru
    _
  // Predicated region
  $region6: #{discriminator_forward.6} parent=0 // pred_check
    _
  $region7: #{discriminator_forward.6} parent=0 // pred_check_branch
    %13 = sbr.rel (0) target = $region9
  $region8: #{discriminator_forward.6} parent=0 // pred_region
    _
  $region9: #{discriminator_forward.6} parent=0 // pred_fallthru
    _
  // Predicated region
  $region10: #{discriminator_forward.6} parent=0 // pred_check
    _
  $region11: #{discriminator_forward.6} parent=0 // pred_check_branch
    %15 = sbr.rel (0) target = $region13
  $region12: #{discriminator_forward.6} parent=0 // pred_region
    _
  $region13: #{discriminator_forward.6} parent=0 // pred_fallthru
    _
  // Predicated region
  $region14: #{discriminator_forward.6} parent=0 // pred_check
    _
  $region15: #{discriminator_forward.6} parent=0 // pred_check_branch
    %17 = sbr.rel (0) target = $region17
  $region16: #{discriminator_forward.6} parent=0 // pred_region
    _
  $region17: #{discriminator_forward.6} parent=0 // pred_fallthru
    _
  // Predicated region
  $region18: #{discriminator_forward.6} parent=0 // pred_check
    _
  $region19: #{discriminator_forward.6} parent=0 // pred_check_branch
    %19 = sbr.rel (0) target = $region21
  $region20: #{discriminator_forward.6} parent=0 // pred_region
    _
  $region21: #{discriminator_forward.6} parent=0 // pred_fallthru
    _
  %v20 = vld [vmem:[%s0] sm:$0xff]
  %v21 = vld [vmem:[%s0 + $0x8] sm:$0xff]
  %v22 = vld [vmem:[%s0 + $0x10] sm:$0xff]
  %v23 = vld [vmem:[%s0 + $0x18] sm:$0xff]
  %v24 = vld [vmem:[%s0 + $0x20] sm:$0xff]
  %v25 = vld [vmem:[%s0 + $0x28] sm:$0xff]
  %v26 = vld [vmem:[%s0 + $0x30] sm:$0xff]
  %v27 = vld [vmem:[%s0 + $0x38] sm:$0xff]
  %v28 = vld [vmem:[%s0 + $0x40] sm:$0xff]
  %v29 = vld [vmem:[%s0 + $0x48] sm:$0xff]
  %v30 = vld [vmem:[%s0 + $0x50] sm:$0xff]
  %v31 = vld [vmem:[%s0 + $0x58] sm:$0xff]
  %v32 = vld [vmem:[%s0 + $0x60] sm:$0xff]
  %v33 = vld [vmem:[%s0 + $0x68] sm:$0xff]
  %v34 = vld [vmem:[%s0 + $0x70] sm:$0xff]
  %v35 = vld [vmem:[%s0 + $0x78] sm:$0xff]
  %v36 = vld [vmem:[%s0 + $0x80] sm:$0xff]
  %v37 = vld [vmem:[%s0 + $0x88] sm:$0xff]
  %v38 = vld [vmem:[%s0 + $0x90] sm:$0xff]
  %v39 = vld [vmem:[%s0 + $0x98] sm:$0xff]
  %v40 = vld [vmem:[%s0 + $0xa0] sm:$0xff]
  %v41 = vld [vmem:[%s0 + $0xa8] sm:$0xff]
  %v42 = vld [vmem:[%s0 + $0xb0] sm:$0xff]
  %v43 = vld [vmem:[%s0 + $0xb8] sm:$0xff]
  %v44 = vld [vmem:[%s0 + $0xc0] sm:$0xff]
  %v45 = vld [vmem:[%s0 + $0xc8] sm:$0xff]
  %v46 = vld [vmem:[%s0 + $0xd0] sm:$0xff]
  %v47 = vld [vmem:[%s0 + $0xd8] sm:$0xff]
  %v48 = vld [vmem:[%s0 + $0xe0] sm:$0xff]
  %v49 = vld [vmem:[%s0 + $0xe8] sm:$0xff]
  %v50 = vld [vmem:[%s0 + $0xf0] sm:$0xff]
  %v51 = vld [vmem:[%s0 + $0xf8] sm:$0xff]
  %v52 = vld [vmem:[%s0 + $0x100] sm:$0xff]
  %v53 = vld [vmem:[%s0 + $0x108] sm:$0xff]
  %v54 = vld [vmem:[%s0 + $0x110] sm:$0xff]
  %v55 = vld [vmem:[%s0 + $0x118] sm:$0xff]
  %v56 = vld [vmem:[%s0 + $0x120] sm:$0xff]
  %v57 = vld [vmem:[%s0 + $0x128] sm:$0xff]
  %v58 = vld [vmem:[%s0 + $0x130] sm:$0xff]
  %v59 = vld [vmem:[%s0 + $0x138] sm:$0xff]
  %v60 = vld [vmem:[%s0 + $0x140] sm:$0xff]
  %v61 = vld [vmem:[%s0 + $0x148] sm:$0xff]
  %v62 = vld [vmem:[%s0 + $0x150] sm:$0xff]
  %v63 = vld [vmem:[%s0 + $0x158] sm:$0xff]
  %v64 = vld [vmem:[%s0 + $0x160] sm:$0xff]
  %v65 = vld [vmem:[%s0 + $0x168] sm:$0xff]
  %v66 = vld [vmem:[%s0 + $0x170] sm:$0xff]
  %v67 = vld [vmem:[%s0 + $0x178] sm:$0xff]
  %v68 = vld [vmem:[%s0 + $0x180] sm:$0xff]
  %v69 = vld [vmem:[%s0 + $0x188] sm:$0xff]
  %v70 = vld [vmem:[%s0 + $0x190] sm:$0xff]
  %v71 = vld [vmem:[%s0 + $0x198] sm:$0xff]
  %v72 = vld [vmem:[%s0 + $0x1a0] sm:$0xff]
  %v73 = vld [vmem:[%s0 + $0x1a8] sm:$0xff]
  %v74 = vld [vmem:[%s0 + $0x1b0] sm:$0xff]
  %v75 = vld [vmem:[%s0 + $0x1b8] sm:$0xff]
  %v76 = vld [vmem:[%s0 + $0x1c0] sm:$0xff]
  %v77 = vld [vmem:[%s0 + $0x1c8] sm:$0xff]
  %v78 = vld [vmem:[%s0 + $0x1d0] sm:$0xff]
  %v79 = vld [vmem:[%s0 + $0x1d8] sm:$0xff]
  %v80 = vld [vmem:[%s0 + $0x1e0] sm:$0xff]
  %v81 = vld [vmem:[%s0 + $0x1e8] sm:$0xff]
  %v82 = vld [vmem:[%s0 + $0x1f0] sm:$0xff]
  %v83 = vld [vmem:[%s0 + $0x1f8] sm:$0xff]
  %v84 = vld [vmem:[%s1] sm:$0xf]
  %v85 = vld [vmem:[%s1 + $0x4] sm:$0xf]
  %v86 = vld [vmem:[%s1 + $0x8] sm:$0xf]
  %v87 = vld [vmem:[%s1 + $0xc] sm:$0xf]
  %v88 = vld [vmem:[%s1 + $0x10] sm:$0xf]
  %v89 = vld [vmem:[%s1 + $0x14] sm:$0xf]
  %v90 = vld [vmem:[%s1 + $0x18] sm:$0xf]
  %v91 = vld [vmem:[%s1 + $0x1c] sm:$0xf]
  %v92 = vld [vmem:[%s1 + $0x20] sm:$0xf]
  %v93 = vld [vmem:[%s1 + $0x24] sm:$0xf]
  %v94 = vld [vmem:[%s1 + $0x28] sm:$0xf]
  %v95 = vld [vmem:[%s1 + $0x2c] sm:$0xf]
  %v96 = vld [vmem:[%s1 + $0x30] sm:$0xf]
  %v97 = vld [vmem:[%s1 + $0x34] sm:$0xf]
  %v98 = vld [vmem:[%s1 + $0x38] sm:$0xf]
  %v99 = vld [vmem:[%s1 + $0x3c] sm:$0xf]
  %v100 = vld [vmem:[%s1 + $0x40] sm:$0xf]
  %v101 = vld [vmem:[%s1 + $0x44] sm:$0xf]
  %v102 = vld [vmem:[%s1 + $0x48] sm:$0xf]
  %v103 = vld [vmem:[%s1 + $0x4c] sm:$0xf]
  %v104 = vld [vmem:[%s1 + $0x50] sm:$0xf]
  %v105 = vld [vmem:[%s1 + $0x54] sm:$0xf]
  %v106 = vld [vmem:[%s1 + $0x58] sm:$0xf]
  %v107 = vld [vmem:[%s1 + $0x5c] sm:$0xf]
  %v108 = vld [vmem:[%s1 + $0x60] sm:$0xf]
  %v109 = vld [vmem:[%s1 + $0x64] sm:$0xf]
  %v110 = vld [vmem:[%s1 + $0x68] sm:$0xf]
  %v111 = vld [vmem:[%s1 + $0x6c] sm:$0xf]
  %v112 = vld [vmem:[%s1 + $0x70] sm:$0xf]
  %v113 = vld [vmem:[%s1 + $0x74] sm:$0xf]
  %v114 = vld [vmem:[%s1 + $0x78] sm:$0xf]
  %v115 = vld [vmem:[%s1 + $0x7c] sm:$0xf]
  %v116 = vld [vmem:[%s2] sm:$0x1]
  %v118 = vperm.slane %v116, 0
  %v184 = vunpack.c.l.b16 %v20
  %v185 = vunpack.c.h.b16 %v20
  %v186 = vunpack.c.l.b16 %v21
  %v187 = vunpack.c.h.b16 %v21
  %v188 = vunpack.c.l.b16 %v22
  %v189 = vunpack.c.h.b16 %v22
  %v190 = vunpack.c.l.b16 %v23
  %v191 = vunpack.c.h.b16 %v23
  %v192 = vunpack.c.l.b16 %v24
  %v193 = vunpack.c.h.b16 %v24
  %v194 = vunpack.c.l.b16 %v25
  %v195 = vunpack.c.h.b16 %v25
  %v196 = vunpack.c.l.b16 %v26
  %v197 = vunpack.c.h.b16 %v26
  %v198 = vunpack.c.l.b16 %v27
  %v199 = vunpack.c.h.b16 %v27
  %v200 = vunpack.c.l.b16 %v28
  %v201 = vunpack.c.h.b16 %v28
  %v202 = vunpack.c.l.b16 %v29
  %v203 = vunpack.c.h.b16 %v29
  %v204 = vunpack.c.l.b16 %v30
  %v205 = vunpack.c.h.b16 %v30
  %v206 = vunpack.c.l.b16 %v31
  %v207 = vunpack.c.h.b16 %v31
  %v208 = vunpack.c.l.b16 %v32
  %v209 = vunpack.c.h.b16 %v32
  %v210 = vunpack.c.l.b16 %v33
  %v211 = vunpack.c.h.b16 %v33
  %v212 = vunpack.c.l.b16 %v34
  %v213 = vunpack.c.h.b16 %v34
  %v214 = vunpack.c.l.b16 %v35
  %v215 = vunpack.c.h.b16 %v35
  %v216 = vunpack.c.l.b16 %v36
  %v217 = vunpack.c.h.b16 %v36
  %v218 = vunpack.c.l.b16 %v37
  %v219 = vunpack.c.h.b16 %v37
  %v220 = vunpack.c.l.b16 %v38
  %v221 = vunpack.c.h.b16 %v38
  %v222 = vunpack.c.l.b16 %v39
  %v223 = vunpack.c.h.b16 %v39
  %v224 = vunpack.c.l.b16 %v40
  %v225 = vunpack.c.h.b16 %v40
  %v226 = vunpack.c.l.b16 %v41
  %v227 = vunpack.c.h.b16 %v41
  %v228 = vunpack.c.l.b16 %v42
  %v229 = vunpack.c.h.b16 %v42
  %v230 = vunpack.c.l.b16 %v43
  %v231 = vunpack.c.h.b16 %v43
  %v232 = vunpack.c.l.b16 %v44
  %v233 = vunpack.c.h.b16 %v44
  %v234 = vunpack.c.l.b16 %v45
  %v235 = vunpack.c.h.b16 %v45
  %v236 = vunpack.c.l.b16 %v46
  %v237 = vunpack.c.h.b16 %v46
  %v238 = vunpack.c.l.b16 %v47
  %v239 = vunpack.c.h.b16 %v47
  %v240 = vunpack.c.l.b16 %v48
  %v241 = vunpack.c.h.b16 %v48
  %v242 = vunpack.c.l.b16 %v49
  %v243 = vunpack.c.h.b16 %v49
  %v244 = vunpack.c.l.b16 %v50
  %v245 = vunpack.c.h.b16 %v50
  %v246 = vunpack.c.l.b16 %v51
  %v247 = vunpack.c.h.b16 %v51
  %v248 = vunpack.c.l.b16 %v52
  %v249 = vunpack.c.h.b16 %v52
  %v250 = vunpack.c.l.b16 %v53
  %v251 = vunpack.c.h.b16 %v53
  %v252 = vunpack.c.l.b16 %v54
  %v253 = vunpack.c.h.b16 %v54
  %v254 = vunpack.c.l.b16 %v55
  %v255 = vunpack.c.h.b16 %v55
  %v256 = vunpack.c.l.b16 %v56
  %v257 = vunpack.c.h.b16 %v56
  %v258 = vunpack.c.l.b16 %v57
  %v259 = vunpack.c.h.b16 %v57
  %v260 = vunpack.c.l.b16 %v58
  %v261 = vunpack.c.h.b16 %v58
  %v262 = vunpack.c.l.b16 %v59
  %v263 = vunpack.c.h.b16 %v59
  %v264 = vunpack.c.l.b16 %v60
  %v265 = vunpack.c.h.b16 %v60
  %v266 = vunpack.c.l.b16 %v61
  %v267 = vunpack.c.h.b16 %v61
  %v268 = vunpack.c.l.b16 %v62
  %v269 = vunpack.c.h.b16 %v62
  %v270 = vunpack.c.l.b16 %v63
  %v271 = vunpack.c.h.b16 %v63
  %v272 = vunpack.c.l.b16 %v64
  %v273 = vunpack.c.h.b16 %v64
  %v274 = vunpack.c.l.b16 %v65
  %v275 = vunpack.c.h.b16 %v65
  %v276 = vunpack.c.l.b16 %v66
  %v277 = vunpack.c.h.b16 %v66
  %v278 = vunpack.c.l.b16 %v67
  %v279 = vunpack.c.h.b16 %v67
  %v280 = vunpack.c.l.b16 %v68
  %v281 = vunpack.c.h.b16 %v68
  %v282 = vunpack.c.l.b16 %v69
  %v283 = vunpack.c.h.b16 %v69
  %v284 = vunpack.c.l.b16 %v70
  %v285 = vunpack.c.h.b16 %v70
  %v286 = vunpack.c.l.b16 %v71
  %v287 = vunpack.c.h.b16 %v71
  %v288 = vunpack.c.l.b16 %v72
  %v289 = vunpack.c.h.b16 %v72
  %v290 = vunpack.c.l.b16 %v73
  %v291 = vunpack.c.h.b16 %v73
  %v292 = vunpack.c.l.b16 %v74
  %v293 = vunpack.c.h.b16 %v74
  %v294 = vunpack.c.l.b16 %v75
  %v295 = vunpack.c.h.b16 %v75
  %v296 = vunpack.c.l.b16 %v76
  %v297 = vunpack.c.h.b16 %v76
  %v298 = vunpack.c.l.b16 %v77
  %v299 = vunpack.c.h.b16 %v77
  %v300 = vunpack.c.l.b16 %v78
  %v301 = vunpack.c.h.b16 %v78
  %v302 = vunpack.c.l.b16 %v79
  %v303 = vunpack.c.h.b16 %v79
  %v304 = vunpack.c.l.b16 %v80
  %v305 = vunpack.c.h.b16 %v80
  %v306 = vunpack.c.l.b16 %v81
  %v307 = vunpack.c.h.b16 %v81
  %v308 = vunpack.c.l.b16 %v82
  %v309 = vunpack.c.h.b16 %v82
  %v310 = vunpack.c.l.b16 %v83
  %v311 = vunpack.c.h.b16 %v83
  %v312 = vpack.c.b16 %v186, %v184
  %v313 = vpack.c.b16 %v187, %v185
  %v314 = vpack.c.b16 %v190, %v188
  %v315 = vpack.c.b16 %v191, %v189
  %v316 = vpack.c.b16 %v194, %v192
  %v317 = vpack.c.b16 %v195, %v193
  %v318 = vpack.c.b16 %v198, %v196
  %v319 = vpack.c.b16 %v199, %v197
  %v320 = vpack.c.b16 %v202, %v200
  %v321 = vpack.c.b16 %v203, %v201
  %v322 = vpack.c.b16 %v206, %v204
  %v323 = vpack.c.b16 %v207, %v205
  %v324 = vpack.c.b16 %v210, %v208
  %v325 = vpack.c.b16 %v211, %v209
  %v326 = vpack.c.b16 %v214, %v212
  %v327 = vpack.c.b16 %v215, %v213
  %v328 = vpack.c.b16 %v218, %v216
  %v329 = vpack.c.b16 %v219, %v217
  %v330 = vpack.c.b16 %v222, %v220
  %v331 = vpack.c.b16 %v223, %v221
  %v332 = vpack.c.b16 %v226, %v224
  %v333 = vpack.c.b16 %v227, %v225
  %v334 = vpack.c.b16 %v230, %v228
  %v335 = vpack.c.b16 %v231, %v229
  %v336 = vpack.c.b16 %v234, %v232
  %v337 = vpack.c.b16 %v235, %v233
  %v338 = vpack.c.b16 %v238, %v236
  %v339 = vpack.c.b16 %v239, %v237
  %v340 = vpack.c.b16 %v242, %v240
  %v341 = vpack.c.b16 %v243, %v241
  %v342 = vpack.c.b16 %v246, %v244
  %v343 = vpack.c.b16 %v247, %v245
  %v344 = vpack.c.b16 %v250, %v248
  %v345 = vpack.c.b16 %v251, %v249
  %v346 = vpack.c.b16 %v254, %v252
  %v347 = vpack.c.b16 %v255, %v253
  %v348 = vpack.c.b16 %v258, %v256
  %v349 = vpack.c.b16 %v259, %v257
  %v350 = vpack.c.b16 %v262, %v260
  %v351 = vpack.c.b16 %v263, %v261
  %v352 = vpack.c.b16 %v266, %v264
  %v353 = vpack.c.b16 %v267, %v265
  %v354 = vpack.c.b16 %v270, %v268
  %v355 = vpack.c.b16 %v271, %v269
  %v356 = vpack.c.b16 %v274, %v272
  %v357 = vpack.c.b16 %v275, %v273
  %v358 = vpack.c.b16 %v278, %v276
  %v359 = vpack.c.b16 %v279, %v277
  %v360 = vpack.c.b16 %v282, %v280
  %v361 = vpack.c.b16 %v283, %v281
  %v362 = vpack.c.b16 %v286, %v284
  %v363 = vpack.c.b16 %v287, %v285
  %v364 = vpack.c.b16 %v290, %v288
  %v365 = vpack.c.b16 %v291, %v289
  %v366 = vpack.c.b16 %v294, %v292
  %v367 = vpack.c.b16 %v295, %v293
  %v368 = vpack.c.b16 %v298, %v296
  %v369 = vpack.c.b16 %v299, %v297
  %v370 = vpack.c.b16 %v302, %v300
  %v371 = vpack.c.b16 %v303, %v301
  %v372 = vpack.c.b16 %v306, %v304
  %v373 = vpack.c.b16 %v307, %v305
  %v374 = vpack.c.b16 %v310, %v308
  %v375 = vpack.c.b16 %v311, %v309
  %v472 = vunpack.c.l.b16 %v84
  %v473 = vunpack.c.l.b16 %v85
  %v474 = vunpack.c.l.b16 %v86
  %v475 = vunpack.c.l.b16 %v87
  %v476 = vunpack.c.l.b16 %v88
  %v477 = vunpack.c.l.b16 %v89
  %v478 = vunpack.c.l.b16 %v90
  %v479 = vunpack.c.l.b16 %v91
  %v480 = vunpack.c.l.b16 %v92
  %v481 = vunpack.c.l.b16 %v93
  %v482 = vunpack.c.l.b16 %v94
  %v483 = vunpack.c.l.b16 %v95
  %v484 = vunpack.c.l.b16 %v96
  %v485 = vunpack.c.l.b16 %v97
  %v486 = vunpack.c.l.b16 %v98
  %v487 = vunpack.c.l.b16 %v99
  %v488 = vunpack.c.l.b16 %v100
  %v489 = vunpack.c.l.b16 %v101
  %v490 = vunpack.c.l.b16 %v102
  %v491 = vunpack.c.l.b16 %v103
  %v492 = vunpack.c.l.b16 %v104
  %v493 = vunpack.c.l.b16 %v105
  %v494 = vunpack.c.l.b16 %v106
  %v495 = vunpack.c.l.b16 %v107
  %v496 = vunpack.c.l.b16 %v108
  %v497 = vunpack.c.l.b16 %v109
  %v498 = vunpack.c.l.b16 %v110
  %v499 = vunpack.c.l.b16 %v111
  %v500 = vunpack.c.l.b16 %v112
  %v501 = vunpack.c.l.b16 %v113
  %v502 = vunpack.c.l.b16 %v114
  %v503 = vunpack.c.l.b16 %v115
  %v504 = vpack.c.b16 %v473, %v472
  %v505 = vpack.c.b16 %v475, %v474
  %v506 = vpack.c.b16 %v477, %v476
  %v507 = vpack.c.b16 %v479, %v478
  %v508 = vpack.c.b16 %v481, %v480
  %v509 = vpack.c.b16 %v483, %v482
  %v510 = vpack.c.b16 %v485, %v484
  %v511 = vpack.c.b16 %v487, %v486
  %v512 = vpack.c.b16 %v489, %v488
  %v513 = vpack.c.b16 %v491, %v490
  %v514 = vpack.c.b16 %v493, %v492
  %v515 = vpack.c.b16 %v495, %v494
  %v516 = vpack.c.b16 %v497, %v496
  %v517 = vpack.c.b16 %v499, %v498
  %v518 = vpack.c.b16 %v501, %v500
  %v519 = vpack.c.b16 %v503, %v502
  %536 = vmatpush.bf16.msra.mxu0 %v511
  %537 = vmatpush.bf16.msra.mxu0 %v510
  %538 = vmatpush.bf16.msra.mxu0 %v509
  %539 = vmatpush.bf16.msra.mxu0 %v508
  %540 = vmatpush.bf16.msra.mxu0 %v507
  %541 = vmatpush.bf16.msra.mxu0 %v506
  %542 = vmatpush.bf16.msra.mxu0 %v505
  %543 = vmatpush.bf16.msra.mxu0 %v504
  %544 = vmatmul.bf16.gmra.mxu0 %v312
  %v545 = vpop.f32.mrf.mxu0
  %v546 = vadd.f32 %v118, %v545
  %v547 = vpop.f32.mrf.mxu0
  %v548 = vadd.f32 %v118, %v547
  %549 = vmatmul.bf16.gmra.mxu0 %v314
  %v550 = vpop.f32.mrf.mxu0
  %v551 = vadd.f32 %v118, %v550
  %v552 = vpop.f32.mrf.mxu0
  %v553 = vadd.f32 %v118, %v552
  %554 = vmatmul.bf16.gmra.mxu0 %v316
  %v555 = vpop.f32.mrf.mxu0
  %v556 = vadd.f32 %v118, %v555
  %v557 = vpop.f32.mrf.mxu0
  %v558 = vadd.f32 %v118, %v557
  %559 = vmatmul.bf16.gmra.mxu0 %v318
  %v560 = vpop.f32.mrf.mxu0
  %v561 = vadd.f32 %v118, %v560
  %v562 = vpop.f32.mrf.mxu0
  %v563 = vadd.f32 %v118, %v562
  %564 = vmatmul.bf16.gmra.mxu0 %v320
  %v565 = vpop.f32.mrf.mxu0
  %v566 = vadd.f32 %v118, %v565
  %v567 = vpop.f32.mrf.mxu0
  %v568 = vadd.f32 %v118, %v567
  %569 = vmatmul.bf16.gmra.mxu0 %v322
  %v570 = vpop.f32.mrf.mxu0
  %v571 = vadd.f32 %v118, %v570
  %v572 = vpop.f32.mrf.mxu0
  %v573 = vadd.f32 %v118, %v572
  %574 = vmatmul.bf16.gmra.mxu0 %v324
  %v575 = vpop.f32.mrf.mxu0
  %v576 = vadd.f32 %v118, %v575
  %v577 = vpop.f32.mrf.mxu0
  %v578 = vadd.f32 %v118, %v577
  %579 = vmatmul.bf16.gmra.mxu0 %v326
  %v580 = vpop.f32.mrf.mxu0
  %v581 = vadd.f32 %v118, %v580
  %v582 = vpop.f32.mrf.mxu0
  %v583 = vadd.f32 %v118, %v582
  %584 = vmatmul.bf16.gmra.mxu0 %v328
  %v585 = vpop.f32.mrf.mxu0
  %v586 = vadd.f32 %v118, %v585
  %v587 = vpop.f32.mrf.mxu0
  %v588 = vadd.f32 %v118, %v587
  %589 = vmatmul.bf16.gmra.mxu0 %v330
  %v590 = vpop.f32.mrf.mxu0
  %v591 = vadd.f32 %v118, %v590
  %v592 = vpop.f32.mrf.mxu0
  %v593 = vadd.f32 %v118, %v592
  %594 = vmatmul.bf16.gmra.mxu0 %v332
  %v595 = vpop.f32.mrf.mxu0
  %v596 = vadd.f32 %v118, %v595
  %v597 = vpop.f32.mrf.mxu0
  %v598 = vadd.f32 %v118, %v597
  %599 = vmatmul.bf16.gmra.mxu0 %v334
  %v600 = vpop.f32.mrf.mxu0
  %v601 = vadd.f32 %v118, %v600
  %v602 = vpop.f32.mrf.mxu0
  %v603 = vadd.f32 %v118, %v602
  %604 = vmatmul.bf16.gmra.mxu0 %v336
  %v605 = vpop.f32.mrf.mxu0
  %v606 = vadd.f32 %v118, %v605
  %v607 = vpop.f32.mrf.mxu0
  %v608 = vadd.f32 %v118, %v607
  %609 = vmatmul.bf16.gmra.mxu0 %v338
  %v610 = vpop.f32.mrf.mxu0
  %v611 = vadd.f32 %v118, %v610
  %v612 = vpop.f32.mrf.mxu0
  %v613 = vadd.f32 %v118, %v612
  %614 = vmatmul.bf16.gmra.mxu0 %v340
  %v615 = vpop.f32.mrf.mxu0
  %v616 = vadd.f32 %v118, %v615
  %v617 = vpop.f32.mrf.mxu0
  %v618 = vadd.f32 %v118, %v617
  %619 = vmatmul.bf16.gmra.mxu0 %v342
  %v620 = vpop.f32.mrf.mxu0
  %v621 = vadd.f32 %v118, %v620
  %v622 = vpop.f32.mrf.mxu0
  %v623 = vadd.f32 %v118, %v622
  %624 = vmatmul.bf16.gmra.mxu0 %v344
  %v625 = vpop.f32.mrf.mxu0
  %v626 = vadd.f32 %v118, %v625
  %v627 = vpop.f32.mrf.mxu0
  %v628 = vadd.f32 %v118, %v627
  %629 = vmatmul.bf16.gmra.mxu0 %v346
  %v630 = vpop.f32.mrf.mxu0
  %v631 = vadd.f32 %v118, %v630
  %v632 = vpop.f32.mrf.mxu0
  %v633 = vadd.f32 %v118, %v632
  %634 = vmatmul.bf16.gmra.mxu0 %v348
  %v635 = vpop.f32.mrf.mxu0
  %v636 = vadd.f32 %v118, %v635
  %v637 = vpop.f32.mrf.mxu0
  %v638 = vadd.f32 %v118, %v637
  %639 = vmatmul.bf16.gmra.mxu0 %v350
  %v640 = vpop.f32.mrf.mxu0
  %v641 = vadd.f32 %v118, %v640
  %v642 = vpop.f32.mrf.mxu0
  %v643 = vadd.f32 %v118, %v642
  %644 = vmatmul.bf16.gmra.mxu0 %v352
  %v645 = vpop.f32.mrf.mxu0
  %v646 = vadd.f32 %v118, %v645
  %v647 = vpop.f32.mrf.mxu0
  %v648 = vadd.f32 %v118, %v647
  %649 = vmatmul.bf16.gmra.mxu0 %v354
  %v650 = vpop.f32.mrf.mxu0
  %v651 = vadd.f32 %v118, %v650
  %v652 = vpop.f32.mrf.mxu0
  %v653 = vadd.f32 %v118, %v652
  %654 = vmatmul.bf16.gmra.mxu0 %v356
  %v655 = vpop.f32.mrf.mxu0
  %v656 = vadd.f32 %v118, %v655
  %v657 = vpop.f32.mrf.mxu0
  %v658 = vadd.f32 %v118, %v657
  %659 = vmatmul.bf16.gmra.mxu0 %v358
  %v660 = vpop.f32.mrf.mxu0
  %v661 = vadd.f32 %v118, %v660
  %v662 = vpop.f32.mrf.mxu0
  %v663 = vadd.f32 %v118, %v662
  %664 = vmatmul.bf16.gmra.mxu0 %v360
  %v665 = vpop.f32.mrf.mxu0
  %v666 = vadd.f32 %v118, %v665
  %v667 = vpop.f32.mrf.mxu0
  %v668 = vadd.f32 %v118, %v667
  %669 = vmatmul.bf16.gmra.mxu0 %v362
  %v670 = vpop.f32.mrf.mxu0
  %v671 = vadd.f32 %v118, %v670
  %v672 = vpop.f32.mrf.mxu0
  %v673 = vadd.f32 %v118, %v672
  %674 = vmatmul.bf16.gmra.mxu0 %v364
  %v675 = vpop.f32.mrf.mxu0
  %v676 = vadd.f32 %v118, %v675
  %v677 = vpop.f32.mrf.mxu0
  %v678 = vadd.f32 %v118, %v677
  %679 = vmatmul.bf16.gmra.mxu0 %v366
  %v680 = vpop.f32.mrf.mxu0
  %v681 = vadd.f32 %v118, %v680
  %v682 = vpop.f32.mrf.mxu0
  %v683 = vadd.f32 %v118, %v682
  %684 = vmatmul.bf16.gmra.mxu0 %v368
  %v685 = vpop.f32.mrf.mxu0
  %v686 = vadd.f32 %v118, %v685
  %v687 = vpop.f32.mrf.mxu0
  %v688 = vadd.f32 %v118, %v687
  %689 = vmatmul.bf16.gmra.mxu0 %v370
  %v690 = vpop.f32.mrf.mxu0
  %v691 = vadd.f32 %v118, %v690
  %v692 = vpop.f32.mrf.mxu0
  %v693 = vadd.f32 %v118, %v692
  %694 = vmatmul.bf16.gmra.mxu0 %v372
  %v695 = vpop.f32.mrf.mxu0
  %v696 = vadd.f32 %v118, %v695
  %v697 = vpop.f32.mrf.mxu0
  %v698 = vadd.f32 %v118, %v697
  %699 = vmatmul.bf16.gmra.mxu0 %v374
  %v700 = vpop.f32.mrf.mxu0
  %v701 = vadd.f32 %v118, %v700
  %v702 = vpop.f32.mrf.mxu0
  %v703 = vadd.f32 %v118, %v702
  %704 = vdwg.mxu0
  %705 = vmatpush.bf16.msra.mxu0 %v519
  %706 = vmatpush.bf16.msra.mxu0 %v518
  %707 = vmatpush.bf16.msra.mxu0 %v517
  %708 = vmatpush.bf16.msra.mxu0 %v516
  %709 = vmatpush.bf16.msra.mxu0 %v515
  %710 = vmatpush.bf16.msra.mxu0 %v514
  %711 = vmatpush.bf16.msra.mxu0 %v513
  %712 = vmatpush.bf16.msra.mxu0 %v512
  %713 = vmatmul.bf16.gmra.mxu0 %v313
  %v714 = vpop.f32.mrf.mxu0
  %v715 = vadd.f32 %v546, %v714
  %v716 = vpop.f32.mrf.mxu0
  %v717 = vadd.f32 %v548, %v716
  %718 = vmatmul.bf16.gmra.mxu0 %v315
  %v719 = vpop.f32.mrf.mxu0
  %v720 = vadd.f32 %v551, %v719
  %v721 = vpop.f32.mrf.mxu0
  %v722 = vadd.f32 %v553, %v721
  %723 = vmatmul.bf16.gmra.mxu0 %v317
  %v724 = vpop.f32.mrf.mxu0
  %v725 = vadd.f32 %v556, %v724
  %v726 = vpop.f32.mrf.mxu0
  %v727 = vadd.f32 %v558, %v726
  %728 = vmatmul.bf16.gmra.mxu0 %v319
  %v729 = vpop.f32.mrf.mxu0
  %v730 = vadd.f32 %v561, %v729
  %v731 = vpop.f32.mrf.mxu0
  %v732 = vadd.f32 %v563, %v731
  %733 = vmatmul.bf16.gmra.mxu0 %v321
  %v734 = vpop.f32.mrf.mxu0
  %v735 = vadd.f32 %v566, %v734
  %v736 = vpop.f32.mrf.mxu0
  %v737 = vadd.f32 %v568, %v736
  %738 = vmatmul.bf16.gmra.mxu0 %v323
  %v739 = vpop.f32.mrf.mxu0
  %v740 = vadd.f32 %v571, %v739
  %v741 = vpop.f32.mrf.mxu0
  %v742 = vadd.f32 %v573, %v741
  %743 = vmatmul.bf16.gmra.mxu0 %v325
  %v744 = vpop.f32.mrf.mxu0
  %v745 = vadd.f32 %v576, %v744
  %v746 = vpop.f32.mrf.mxu0
  %v747 = vadd.f32 %v578, %v746
  %748 = vmatmul.bf16.gmra.mxu0 %v327
  %v749 = vpop.f32.mrf.mxu0
  %v750 = vadd.f32 %v581, %v749
  %v751 = vpop.f32.mrf.mxu0
  %v752 = vadd.f32 %v583, %v751
  %753 = vmatmul.bf16.gmra.mxu0 %v329
  %v754 = vpop.f32.mrf.mxu0
  %v755 = vadd.f32 %v586, %v754
  %v756 = vpop.f32.mrf.mxu0
  %v757 = vadd.f32 %v588, %v756
  %758 = vmatmul.bf16.gmra.mxu0 %v331
  %v759 = vpop.f32.mrf.mxu0
  %v760 = vadd.f32 %v591, %v759
  %v761 = vpop.f32.mrf.mxu0
  %v762 = vadd.f32 %v593, %v761
  %763 = vmatmul.bf16.gmra.mxu0 %v333
  %v764 = vpop.f32.mrf.mxu0
  %v765 = vadd.f32 %v596, %v764
  %v766 = vpop.f32.mrf.mxu0
  %v767 = vadd.f32 %v598, %v766
  %768 = vmatmul.bf16.gmra.mxu0 %v335
  %v769 = vpop.f32.mrf.mxu0
  %v770 = vadd.f32 %v601, %v769
  %v771 = vpop.f32.mrf.mxu0
  %v772 = vadd.f32 %v603, %v771
  %773 = vmatmul.bf16.gmra.mxu0 %v337
  %v774 = vpop.f32.mrf.mxu0
  %v775 = vadd.f32 %v606, %v774
  %v776 = vpop.f32.mrf.mxu0
  %v777 = vadd.f32 %v608, %v776
  %778 = vmatmul.bf16.gmra.mxu0 %v339
  %v779 = vpop.f32.mrf.mxu0
  %v780 = vadd.f32 %v611, %v779
  %v781 = vpop.f32.mrf.mxu0
  %v782 = vadd.f32 %v613, %v781
  %783 = vmatmul.bf16.gmra.mxu0 %v341
  %v784 = vpop.f32.mrf.mxu0
  %v785 = vadd.f32 %v616, %v784
  %v786 = vpop.f32.mrf.mxu0
  %v787 = vadd.f32 %v618, %v786
  %788 = vmatmul.bf16.gmra.mxu0 %v343
  %v789 = vpop.f32.mrf.mxu0
  %v790 = vadd.f32 %v621, %v789
  %v791 = vpop.f32.mrf.mxu0
  %v792 = vadd.f32 %v623, %v791
  %793 = vmatmul.bf16.gmra.mxu0 %v345
  %v794 = vpop.f32.mrf.mxu0
  %v795 = vadd.f32 %v626, %v794
  %v796 = vpop.f32.mrf.mxu0
  %v797 = vadd.f32 %v628, %v796
  %798 = vmatmul.bf16.gmra.mxu0 %v347
  %v799 = vpop.f32.mrf.mxu0
  %v800 = vadd.f32 %v631, %v799
  %v801 = vpop.f32.mrf.mxu0
  %v802 = vadd.f32 %v633, %v801
  %803 = vmatmul.bf16.gmra.mxu0 %v349
  %v804 = vpop.f32.mrf.mxu0
  %v805 = vadd.f32 %v636, %v804
  %v806 = vpop.f32.mrf.mxu0
  %v807 = vadd.f32 %v638, %v806
  %808 = vmatmul.bf16.gmra.mxu0 %v351
  %v809 = vpop.f32.mrf.mxu0
  %v810 = vadd.f32 %v641, %v809
  %v811 = vpop.f32.mrf.mxu0
  %v812 = vadd.f32 %v643, %v811
  %813 = vmatmul.bf16.gmra.mxu0 %v353
  %v814 = vpop.f32.mrf.mxu0
  %v815 = vadd.f32 %v646, %v814
  %v816 = vpop.f32.mrf.mxu0
  %v817 = vadd.f32 %v648, %v816
  %818 = vmatmul.bf16.gmra.mxu0 %v355
  %v819 = vpop.f32.mrf.mxu0
  %v820 = vadd.f32 %v651, %v819
  %v821 = vpop.f32.mrf.mxu0
  %v822 = vadd.f32 %v653, %v821
  %823 = vmatmul.bf16.gmra.mxu0 %v357
  %v824 = vpop.f32.mrf.mxu0
  %v825 = vadd.f32 %v656, %v824
  %v826 = vpop.f32.mrf.mxu0
  %v827 = vadd.f32 %v658, %v826
  %828 = vmatmul.bf16.gmra.mxu0 %v359
  %v829 = vpop.f32.mrf.mxu0
  %v830 = vadd.f32 %v661, %v829
  %v831 = vpop.f32.mrf.mxu0
  %v832 = vadd.f32 %v663, %v831
  %833 = vmatmul.bf16.gmra.mxu0 %v361
  %v834 = vpop.f32.mrf.mxu0
  %v835 = vadd.f32 %v666, %v834
  %v836 = vpop.f32.mrf.mxu0
  %v837 = vadd.f32 %v668, %v836
  %838 = vmatmul.bf16.gmra.mxu0 %v363
  %v839 = vpop.f32.mrf.mxu0
  %v840 = vadd.f32 %v671, %v839
  %v841 = vpop.f32.mrf.mxu0
  %v842 = vadd.f32 %v673, %v841
  %843 = vmatmul.bf16.gmra.mxu0 %v365
  %v844 = vpop.f32.mrf.mxu0
  %v845 = vadd.f32 %v676, %v844
  %v846 = vpop.f32.mrf.mxu0
  %v847 = vadd.f32 %v678, %v846
  %848 = vmatmul.bf16.gmra.mxu0 %v367
  %v849 = vpop.f32.mrf.mxu0
  %v850 = vadd.f32 %v681, %v849
  %v851 = vpop.f32.mrf.mxu0
  %v852 = vadd.f32 %v683, %v851
  %853 = vmatmul.bf16.gmra.mxu0 %v369
  %v854 = vpop.f32.mrf.mxu0
  %v855 = vadd.f32 %v686, %v854
  %v856 = vpop.f32.mrf.mxu0
  %v857 = vadd.f32 %v688, %v856
  %858 = vmatmul.bf16.gmra.mxu0 %v371
  %v859 = vpop.f32.mrf.mxu0
  %v860 = vadd.f32 %v691, %v859
  %v861 = vpop.f32.mrf.mxu0
  %v862 = vadd.f32 %v693, %v861
  %863 = vmatmul.bf16.gmra.mxu0 %v373
  %v864 = vpop.f32.mrf.mxu0
  %v865 = vadd.f32 %v696, %v864
  %v866 = vpop.f32.mrf.mxu0
  %v867 = vadd.f32 %v698, %v866
  %868 = vmatmul.bf16.gmra.mxu0 %v375
  %v869 = vpop.f32.mrf.mxu0
  %v870 = vadd.f32 %v701, %v869
  %v871 = vpop.f32.mrf.mxu0
  %v872 = vadd.f32 %v703, %v871
  %873 = vdwg.mxu0
  %v874 = vadd.f32 %v715, %v717
  %v875 = vadd.f32 %v874, %v720
  %v876 = vadd.f32 %v875, %v722
  %v877 = vadd.f32 %v876, %v725
  %v878 = vadd.f32 %v877, %v727
  %v879 = vadd.f32 %v878, %v730
  %v880 = vadd.f32 %v879, %v732
  %v881 = vadd.f32 %v880, %v735
  %v882 = vadd.f32 %v881, %v737
  %v883 = vadd.f32 %v882, %v740
  %v884 = vadd.f32 %v883, %v742
  %v885 = vadd.f32 %v884, %v745
  %v886 = vadd.f32 %v885, %v747
  %v887 = vadd.f32 %v886, %v750
  %v888 = vadd.f32 %v887, %v752
  %v889 = vadd.f32 %v888, %v755
  %v890 = vadd.f32 %v889, %v757
  %v891 = vadd.f32 %v890, %v760
  %v892 = vadd.f32 %v891, %v762
  %v893 = vadd.f32 %v892, %v765
  %v894 = vadd.f32 %v893, %v767
  %v895 = vadd.f32 %v894, %v770
  %v896 = vadd.f32 %v895, %v772
  %v897 = vadd.f32 %v896, %v775
  %v898 = vadd.f32 %v897, %v777
  %v899 = vadd.f32 %v898, %v780
  %v900 = vadd.f32 %v899, %v782
  %v901 = vadd.f32 %v900, %v785
  %v902 = vadd.f32 %v901, %v787
  %v903 = vadd.f32 %v902, %v790
  %v904 = vadd.f32 %v903, %v792
  %v905 = vadd.f32 %v904, %v795
  %v906 = vadd.f32 %v905, %v797
  %v907 = vadd.f32 %v906, %v800
  %v908 = vadd.f32 %v907, %v802
  %v909 = vadd.f32 %v908, %v805
  %v910 = vadd.f32 %v909, %v807
  %v911 = vadd.f32 %v910, %v810
  %v912 = vadd.f32 %v911, %v812
  %v913 = vadd.f32 %v912, %v815
  %v914 = vadd.f32 %v913, %v817
  %v915 = vadd.f32 %v914, %v820
  %v916 = vadd.f32 %v915, %v822
  %v917 = vadd.f32 %v916, %v825
  %v918 = vadd.f32 %v917, %v827
  %v919 = vadd.f32 %v918, %v830
  %v920 = vadd.f32 %v919, %v832
  %v921 = vadd.f32 %v920, %v835
  %v922 = vadd.f32 %v921, %v837
  %v923 = vadd.f32 %v922, %v840
  %v924 = vadd.f32 %v923, %v842
  %v925 = vadd.f32 %v924, %v845
  %v926 = vadd.f32 %v925, %v847
  %v927 = vadd.f32 %v926, %v850
  %v928 = vadd.f32 %v927, %v852
  %v929 = vadd.f32 %v928, %v855
  %v930 = vadd.f32 %v929, %v857
  %v931 = vadd.f32 %v930, %v860
  %v932 = vadd.f32 %v931, %v862
  %v933 = vadd.f32 %v932, %v865
  %v934 = vadd.f32 %v933, %v867
  %v935 = vadd.f32 %v934, %v870
  %v936 = vadd.f32 %v935, %v872
  %v937 = vrot.slane %v936, 4
  %v938 = vadd.f32 %v936, %v937
  %v939 = vrot.slane %v938, 2
  %v940 = vadd.f32 %v938, %v939
  %v941 = vrot.slane %v940, 1
  %v942 = vadd.f32 %v940, %v941
  %v943 = vmul.f32 %v116, 0.0
  %v944 = vsub.f32 %v942, %v943
  %v945 = vmul.f32 %v715, %v715
  %v946 = vmul.f32 %v717, %v717
  %v947 = vmul.f32 %v720, %v720
  %v948 = vmul.f32 %v722, %v722
  %v949 = vmul.f32 %v725, %v725
  %v950 = vmul.f32 %v727, %v727
  %v951 = vmul.f32 %v730, %v730
  %v952 = vmul.f32 %v732, %v732
  %v953 = vmul.f32 %v735, %v735
  %v954 = vmul.f32 %v737, %v737
  %v955 = vmul.f32 %v740, %v740
  %v956 = vmul.f32 %v742, %v742
  %v957 = vmul.f32 %v745, %v745
  %v958 = vmul.f32 %v747, %v747
  %v959 = vmul.f32 %v750, %v750
  %v960 = vmul.f32 %v752, %v752
  %v961 = vmul.f32 %v755, %v755
  %v962 = vmul.f32 %v757, %v757
  %v963 = vmul.f32 %v760, %v760
  %v964 = vmul.f32 %v762, %v762
  %v965 = vmul.f32 %v765, %v765
  %v966 = vmul.f32 %v767, %v767
  %v967 = vmul.f32 %v770, %v770
  %v968 = vmul.f32 %v772, %v772
  %v969 = vmul.f32 %v775, %v775
  %v970 = vmul.f32 %v777, %v777
  %v971 = vmul.f32 %v780, %v780
  %v972 = vmul.f32 %v782, %v782
  %v973 = vmul.f32 %v785, %v785
  %v974 = vmul.f32 %v787, %v787
  %v975 = vmul.f32 %v790, %v790
  %v976 = vmul.f32 %v792, %v792
  %v977 = vmul.f32 %v795, %v795
  %v978 = vmul.f32 %v797, %v797
  %v979 = vmul.f32 %v800, %v800
  %v980 = vmul.f32 %v802, %v802
  %v981 = vmul.f32 %v805, %v805
  %v982 = vmul.f32 %v807, %v807
  %v983 = vmul.f32 %v810, %v810
  %v984 = vmul.f32 %v812, %v812
  %v985 = vmul.f32 %v815, %v815
  %v986 = vmul.f32 %v817, %v817
  %v987 = vmul.f32 %v820, %v820
  %v988 = vmul.f32 %v822, %v822
  %v989 = vmul.f32 %v825, %v825
  %v990 = vmul.f32 %v827, %v827
  %v991 = vmul.f32 %v830, %v830
  %v992 = vmul.f32 %v832, %v832
  %v993 = vmul.f32 %v835, %v835
  %v994 = vmul.f32 %v837, %v837
  %v995 = vmul.f32 %v840, %v840
  %v996 = vmul.f32 %v842, %v842
  %v997 = vmul.f32 %v845, %v845
  %v998 = vmul.f32 %v847, %v847
  %v999 = vmul.f32 %v850, %v850
  %v1000 = vmul.f32 %v852, %v852
  %v1001 = vmul.f32 %v855, %v855
  %v1002 = vmul.f32 %v857, %v857
  %v1003 = vmul.f32 %v860, %v860
  %v1004 = vmul.f32 %v862, %v862
  %v1005 = vmul.f32 %v865, %v865
  %v1006 = vmul.f32 %v867, %v867
  %v1007 = vmul.f32 %v870, %v870
  %v1008 = vmul.f32 %v872, %v872
  %v1009 = vadd.f32 %v945, %v946
  %v1010 = vadd.f32 %v1009, %v947
  %v1011 = vadd.f32 %v1010, %v948
  %v1012 = vadd.f32 %v1011, %v949
  %v1013 = vadd.f32 %v1012, %v950
  %v1014 = vadd.f32 %v1013, %v951
  %v1015 = vadd.f32 %v1014, %v952
  %v1016 = vadd.f32 %v1015, %v953
  %v1017 = vadd.f32 %v1016, %v954
  %v1018 = vadd.f32 %v1017, %v955
  %v1019 = vadd.f32 %v1018, %v956
  %v1020 = vadd.f32 %v1019, %v957
  %v1021 = vadd.f32 %v1020, %v958
  %v1022 = vadd.f32 %v1021, %v959
  %v1023 = vadd.f32 %v1022, %v960
  %v1024 = vadd.f32 %v1023, %v961
  %v1025 = vadd.f32 %v1024, %v962
  %v1026 = vadd.f32 %v1025, %v963
  %v1027 = vadd.f32 %v1026, %v964
  %v1028 = vadd.f32 %v1027, %v965
  %v1029 = vadd.f32 %v1028, %v966
  %v1030 = vadd.f32 %v1029, %v967
  %v1031 = vadd.f32 %v1030, %v968
  %v1032 = vadd.f32 %v1031, %v969
  %v1033 = vadd.f32 %v1032, %v970
  %v1034 = vadd.f32 %v1033, %v971
  %v1035 = vadd.f32 %v1034, %v972
  %v1036 = vadd.f32 %v1035, %v973
  %v1037 = vadd.f32 %v1036, %v974
  %v1038 = vadd.f32 %v1037, %v975
  %v1039 = vadd.f32 %v1038, %v976
  %v1040 = vadd.f32 %v1039, %v977
  %v1041 = vadd.f32 %v1040, %v978
  %v1042 = vadd.f32 %v1041, %v979
  %v1043 = vadd.f32 %v1042, %v980
  %v1044 = vadd.f32 %v1043, %v981
  %v1045 = vadd.f32 %v1044, %v982
  %v1046 = vadd.f32 %v1045, %v983
  %v1047 = vadd.f32 %v1046, %v984
  %v1048 = vadd.f32 %v1047, %v985
  %v1049 = vadd.f32 %v1048, %v986
  %v1050 = vadd.f32 %v1049, %v987
  %v1051 = vadd.f32 %v1050, %v988
  %v1052 = vadd.f32 %v1051, %v989
  %v1053 = vadd.f32 %v1052, %v990
  %v1054 = vadd.f32 %v1053, %v991
  %v1055 = vadd.f32 %v1054, %v992
  %v1056 = vadd.f32 %v1055, %v993
  %v1057 = vadd.f32 %v1056, %v994
  %v1058 = vadd.f32 %v1057, %v995
  %v1059 = vadd.f32 %v1058, %v996
  %v1060 = vadd.f32 %v1059, %v997
  %v1061 = vadd.f32 %v1060, %v998
  %v1062 = vadd.f32 %v1061, %v999
  %v1063 = vadd.f32 %v1062, %v1000
  %v1064 = vadd.f32 %v1063, %v1001
  %v1065 = vadd.f32 %v1064, %v1002
  %v1066 = vadd.f32 %v1065, %v1003
  %v1067 = vadd.f32 %v1066, %v1004
  %v1068 = vadd.f32 %v1067, %v1005
  %v1069 = vadd.f32 %v1068, %v1006
  %v1070 = vadd.f32 %v1069, %v1007
  %v1071 = vadd.f32 %v1070, %v1008
  %v1072 = vrot.slane %v1071, 4
  %v1073 = vadd.f32 %v1071, %v1072
  %v1074 = vrot.slane %v1073, 2
  %v1075 = vadd.f32 %v1073, %v1074
  %v1076 = vrot.slane %v1075, 1
  %v1077 = vadd.f32 %v1075, %v1076
  %v1078 = vmul.f32 %v116, %v116
  %v1079 = vmul.f32 %v1078, 0.0
  %v1080 = vsub.f32 %v1077, %v1079
  %v1081 = vmul.f32 %v944, 0.001953125
  %v1082 = vmul.f32 %v1080, 0.001953125
  %v1083 = vmul.f32 %v1081, %v1081
  %v1084 = vsub.f32 %v1082, %v1083
  %v1085 = vmax.f32 %v1084, 0.0
  %v1086 = vld [vmem:[%s3] sm:$0x1]
  %v1087 = vadd.f32 %v1085, 1e-05
  %v1088 = vrsqrt.pop %v1087
  %v1089 = vmul.f32 %v1088, %v1087
  %v1090 = vmul.f32 %v1089, %v1088
  %v1091 = vmul.f32 0.5, %v1090
  %v1092 = vsub.f32 1.5, %v1091
  %v1093 = vmul.f32 %v1088, %v1092
  %vm1094 = vweird.f32 %v1087
  %vm1095 = vweird.f32 %v1088
  %vm1096 = vmor %vm1094, %vm1095
  %v1097 = vsel %vm1096, %v1088, %v1093
  %v1098 = vmul.f32 %v1086, %v1097
  %v1099 = vperm.slane %v1081, 0
  %v1100 = vsub.f32 %v715, %v1099
  %v1101 = vsub.f32 %v717, %v1099
  %v1102 = vsub.f32 %v720, %v1099
  %v1103 = vsub.f32 %v722, %v1099
  %v1104 = vsub.f32 %v725, %v1099
  %v1105 = vsub.f32 %v727, %v1099
  %v1106 = vsub.f32 %v730, %v1099
  %v1107 = vsub.f32 %v732, %v1099
  %v1108 = vsub.f32 %v735, %v1099
  %v1109 = vsub.f32 %v737, %v1099
  %v1110 = vsub.f32 %v740, %v1099
  %v1111 = vsub.f32 %v742, %v1099
  %v1112 = vsub.f32 %v745, %v1099
  %v1113 = vsub.f32 %v747, %v1099
  %v1114 = vsub.f32 %v750, %v1099
  %v1115 = vsub.f32 %v752, %v1099
  %v1116 = vsub.f32 %v755, %v1099
  %v1117 = vsub.f32 %v757, %v1099
  %v1118 = vsub.f32 %v760, %v1099
  %v1119 = vsub.f32 %v762, %v1099
  %v1120 = vsub.f32 %v765, %v1099
  %v1121 = vsub.f32 %v767, %v1099
  %v1122 = vsub.f32 %v770, %v1099
  %v1123 = vsub.f32 %v772, %v1099
  %v1124 = vsub.f32 %v775, %v1099
  %v1125 = vsub.f32 %v777, %v1099
  %v1126 = vsub.f32 %v780, %v1099
  %v1127 = vsub.f32 %v782, %v1099
  %v1128 = vsub.f32 %v785, %v1099
  %v1129 = vsub.f32 %v787, %v1099
  %v1130 = vsub.f32 %v790, %v1099
  %v1131 = vsub.f32 %v792, %v1099
  %v1132 = vsub.f32 %v795, %v1099
  %v1133 = vsub.f32 %v797, %v1099
  %v1134 = vsub.f32 %v800, %v1099
  %v1135 = vsub.f32 %v802, %v1099
  %v1136 = vsub.f32 %v805, %v1099
  %v1137 = vsub.f32 %v807, %v1099
  %v1138 = vsub.f32 %v810, %v1099
  %v1139 = vsub.f32 %v812, %v1099
  %v1140 = vsub.f32 %v815, %v1099
  %v1141 = vsub.f32 %v817, %v1099
  %v1142 = vsub.f32 %v820, %v1099
  %v1143 = vsub.f32 %v822, %v1099
  %v1144 = vsub.f32 %v825, %v1099
  %v1145 = vsub.f32 %v827, %v1099
  %v1146 = vsub.f32 %v830, %v1099
  %v1147 = vsub.f32 %v832, %v1099
  %v1148 = vsub.f32 %v835, %v1099
  %v1149 = vsub.f32 %v837, %v1099
  %v1150 = vsub.f32 %v840, %v1099
  %v1151 = vsub.f32 %v842, %v1099
  %v1152 = vsub.f32 %v845, %v1099
  %v1153 = vsub.f32 %v847, %v1099
  %v1154 = vsub.f32 %v850, %v1099
  %v1155 = vsub.f32 %v852, %v1099
  %v1156 = vsub.f32 %v855, %v1099
  %v1157 = vsub.f32 %v857, %v1099
  %v1158 = vsub.f32 %v860, %v1099
  %v1159 = vsub.f32 %v862, %v1099
  %v1160 = vsub.f32 %v865, %v1099
  %v1161 = vsub.f32 %v867, %v1099
  %v1162 = vsub.f32 %v870, %v1099
  %v1163 = vsub.f32 %v872, %v1099
  %v1165 = vperm.slane %v1098, 0
  %v1167 = vmul.f32 %v1100, %v1165
  %v1168 = vmul.f32 %v1101, %v1165
  %v1169 = vmul.f32 %v1102, %v1165
  %v1170 = vmul.f32 %v1103, %v1165
  %v1171 = vmul.f32 %v1104, %v1165
  %v1172 = vmul.f32 %v1105, %v1165
  %v1173 = vmul.f32 %v1106, %v1165
  %v1174 = vmul.f32 %v1107, %v1165
  %v1175 = vmul.f32 %v1108, %v1165
  %v1176 = vmul.f32 %v1109, %v1165
  %v1177 = vmul.f32 %v1110, %v1165
  %v1178 = vmul.f32 %v1111, %v1165
  %v1179 = vmul.f32 %v1112, %v1165
  %v1180 = vmul.f32 %v1113, %v1165
  %v1181 = vmul.f32 %v1114, %v1165
  %v1182 = vmul.f32 %v1115, %v1165
  %v1183 = vmul.f32 %v1116, %v1165
  %v1184 = vmul.f32 %v1117, %v1165
  %v1185 = vmul.f32 %v1118, %v1165
  %v1186 = vmul.f32 %v1119, %v1165
  %v1187 = vmul.f32 %v1120, %v1165
  %v1188 = vmul.f32 %v1121, %v1165
  %v1189 = vmul.f32 %v1122, %v1165
  %v1190 = vmul.f32 %v1123, %v1165
  %v1191 = vmul.f32 %v1124, %v1165
  %v1192 = vmul.f32 %v1125, %v1165
  %v1193 = vmul.f32 %v1126, %v1165
  %v1194 = vmul.f32 %v1127, %v1165
  %v1195 = vmul.f32 %v1128, %v1165
  %v1196 = vmul.f32 %v1129, %v1165
  %v1197 = vmul.f32 %v1130, %v1165
  %v1198 = vmul.f32 %v1131, %v1165
  %v1199 = vmul.f32 %v1132, %v1165
  %v1200 = vmul.f32 %v1133, %v1165
  %v1201 = vmul.f32 %v1134, %v1165
  %v1202 = vmul.f32 %v1135, %v1165
  %v1203 = vmul.f32 %v1136, %v1165
  %v1204 = vmul.f32 %v1137, %v1165
  %v1205 = vmul.f32 %v1138, %v1165
  %v1206 = vmul.f32 %v1139, %v1165
  %v1207 = vmul.f32 %v1140, %v1165
  %v1208 = vmul.f32 %v1141, %v1165
  %v1209 = vmul.f32 %v1142, %v1165
  %v1210 = vmul.f32 %v1143, %v1165
  %v1211 = vmul.f32 %v1144, %v1165
  %v1212 = vmul.f32 %v1145, %v1165
  %v1213 = vmul.f32 %v1146, %v1165
  %v1214 = vmul.f32 %v1147, %v1165
  %v1215 = vmul.f32 %v1148, %v1165
  %v1216 = vmul.f32 %v1149, %v1165
  %v1217 = vmul.f32 %v1150, %v1165
  %v1218 = vmul.f32 %v1151, %v1165
  %v1219 = vmul.f32 %v1152, %v1165
  %v1220 = vmul.f32 %v1153, %v1165
  %v1221 = vmul.f32 %v1154, %v1165
  %v1222 = vmul.f32 %v1155, %v1165
  %v1223 = vmul.f32 %v1156, %v1165
  %v1224 = vmul.f32 %v1157, %v1165
  %v1225 = vmul.f32 %v1158, %v1165
  %v1226 = vmul.f32 %v1159, %v1165
  %v1227 = vmul.f32 %v1160, %v1165
  %v1228 = vmul.f32 %v1161, %v1165
  %v1229 = vmul.f32 %v1162, %v1165
  %v1230 = vmul.f32 %v1163, %v1165
  %v1231 = vld [vmem:[%s4] sm:$0x1]
  %v1233 = vperm.slane %v1231, 0
  %v1235 = vadd.f32 %v1167, %v1233
  %v1236 = vadd.f32 %v1168, %v1233
  %v1237 = vadd.f32 %v1169, %v1233
  %v1238 = vadd.f32 %v1170, %v1233
  %v1239 = vadd.f32 %v1171, %v1233
  %v1240 = vadd.f32 %v1172, %v1233
  %v1241 = vadd.f32 %v1173, %v1233
  %v1242 = vadd.f32 %v1174, %v1233
  %v1243 = vadd.f32 %v1175, %v1233
  %v1244 = vadd.f32 %v1176, %v1233
  %v1245 = vadd.f32 %v1177, %v1233
  %v1246 = vadd.f32 %v1178, %v1233
  %v1247 = vadd.f32 %v1179, %v1233
  %v1248 = vadd.f32 %v1180, %v1233
  %v1249 = vadd.f32 %v1181, %v1233
  %v1250 = vadd.f32 %v1182, %v1233
  %v1251 = vadd.f32 %v1183, %v1233
  %v1252 = vadd.f32 %v1184, %v1233
  %v1253 = vadd.f32 %v1185, %v1233
  %v1254 = vadd.f32 %v1186, %v1233
  %v1255 = vadd.f32 %v1187, %v1233
  %v1256 = vadd.f32 %v1188, %v1233
  %v1257 = vadd.f32 %v1189, %v1233
  %v1258 = vadd.f32 %v1190, %v1233
  %v1259 = vadd.f32 %v1191, %v1233
  %v1260 = vadd.f32 %v1192, %v1233
  %v1261 = vadd.f32 %v1193, %v1233
  %v1262 = vadd.f32 %v1194, %v1233
  %v1263 = vadd.f32 %v1195, %v1233
  %v1264 = vadd.f32 %v1196, %v1233
  %v1265 = vadd.f32 %v1197, %v1233
  %v1266 = vadd.f32 %v1198, %v1233
  %v1267 = vadd.f32 %v1199, %v1233
  %v1268 = vadd.f32 %v1200, %v1233
  %v1269 = vadd.f32 %v1201, %v1233
  %v1270 = vadd.f32 %v1202, %v1233
  %v1271 = vadd.f32 %v1203, %v1233
  %v1272 = vadd.f32 %v1204, %v1233
  %v1273 = vadd.f32 %v1205, %v1233
  %v1274 = vadd.f32 %v1206, %v1233
  %v1275 = vadd.f32 %v1207, %v1233
  %v1276 = vadd.f32 %v1208, %v1233
  %v1277 = vadd.f32 %v1209, %v1233
  %v1278 = vadd.f32 %v1210, %v1233
  %v1279 = vadd.f32 %v1211, %v1233
  %v1280 = vadd.f32 %v1212, %v1233
  %v1281 = vadd.f32 %v1213, %v1233
  %v1282 = vadd.f32 %v1214, %v1233
  %v1283 = vadd.f32 %v1215, %v1233
  %v1284 = vadd.f32 %v1216, %v1233
  %v1285 = vadd.f32 %v1217, %v1233
  %v1286 = vadd.f32 %v1218, %v1233
  %v1287 = vadd.f32 %v1219, %v1233
  %v1288 = vadd.f32 %v1220, %v1233
  %v1289 = vadd.f32 %v1221, %v1233
  %v1290 = vadd.f32 %v1222, %v1233
  %v1291 = vadd.f32 %v1223, %v1233
  %v1292 = vadd.f32 %v1224, %v1233
  %v1293 = vadd.f32 %v1225, %v1233
  %v1294 = vadd.f32 %v1226, %v1233
  %v1295 = vadd.f32 %v1227, %v1233
  %v1296 = vadd.f32 %v1228, %v1233
  %v1297 = vadd.f32 %v1229, %v1233
  %v1298 = vadd.f32 %v1230, %v1233
  %1299 = vst [vmem:[%s5] sm:$0xff] %v1235
  %1300 = vst [vmem:[%s5 + $0x8] sm:$0xff] %v1236
  %1301 = vst [vmem:[%s5 + $0x10] sm:$0xff] %v1237
  %1302 = vst [vmem:[%s5 + $0x18] sm:$0xff] %v1238
  %1303 = vst [vmem:[%s5 + $0x20] sm:$0xff] %v1239
  %1304 = vst [vmem:[%s5 + $0x28] sm:$0xff] %v1240
  %1305 = vst [vmem:[%s5 + $0x30] sm:$0xff] %v1241
  %1306 = vst [vmem:[%s5 + $0x38] sm:$0xff] %v1242
  %1307 = vst [vmem:[%s5 + $0x40] sm:$0xff] %v1243
  %1308 = vst [vmem:[%s5 + $0x48] sm:$0xff] %v1244
  %1309 = vst [vmem:[%s5 + $0x50] sm:$0xff] %v1245
  %1310 = vst [vmem:[%s5 + $0x58] sm:$0xff] %v1246
  %1311 = vst [vmem:[%s5 + $0x60] sm:$0xff] %v1247
  %1312 = vst [vmem:[%s5 + $0x68] sm:$0xff] %v1248
  %1313 = vst [vmem:[%s5 + $0x70] sm:$0xff] %v1249
  %1314 = vst [vmem:[%s5 + $0x78] sm:$0xff] %v1250
  %1315 = vst [vmem:[%s5 + $0x80] sm:$0xff] %v1251
  %1316 = vst [vmem:[%s5 + $0x88] sm:$0xff] %v1252
  %1317 = vst [vmem:[%s5 + $0x90] sm:$0xff] %v1253
  %1318 = vst [vmem:[%s5 + $0x98] sm:$0xff] %v1254
  %1319 = vst [vmem:[%s5 + $0xa0] sm:$0xff] %v1255
  %1320 = vst [vmem:[%s5 + $0xa8] sm:$0xff] %v1256
  %1321 = vst [vmem:[%s5 + $0xb0] sm:$0xff] %v1257
  %1322 = vst [vmem:[%s5 + $0xb8] sm:$0xff] %v1258
  %1323 = vst [vmem:[%s5 + $0xc0] sm:$0xff] %v1259
  %1324 = vst [vmem:[%s5 + $0xc8] sm:$0xff] %v1260
  %1325 = vst [vmem:[%s5 + $0xd0] sm:$0xff] %v1261
  %1326 = vst [vmem:[%s5 + $0xd8] sm:$0xff] %v1262
  %1327 = vst [vmem:[%s5 + $0xe0] sm:$0xff] %v1263
  %1328 = vst [vmem:[%s5 + $0xe8] sm:$0xff] %v1264
  %1329 = vst [vmem:[%s5 + $0xf0] sm:$0xff] %v1265
  %1330 = vst [vmem:[%s5 + $0xf8] sm:$0xff] %v1266
  %1331 = vst [vmem:[%s5 + $0x100] sm:$0xff] %v1267
  %1332 = vst [vmem:[%s5 + $0x108] sm:$0xff] %v1268
  %1333 = vst [vmem:[%s5 + $0x110] sm:$0xff] %v1269
  %1334 = vst [vmem:[%s5 + $0x118] sm:$0xff] %v1270
  %1335 = vst [vmem:[%s5 + $0x120] sm:$0xff] %v1271
  %1336 = vst [vmem:[%s5 + $0x128] sm:$0xff] %v1272
  %1337 = vst [vmem:[%s5 + $0x130] sm:$0xff] %v1273
  %1338 = vst [vmem:[%s5 + $0x138] sm:$0xff] %v1274
  %1339 = vst [vmem:[%s5 + $0x140] sm:$0xff] %v1275
  %1340 = vst [vmem:[%s5 + $0x148] sm:$0xff] %v1276
  %1341 = vst [vmem:[%s5 + $0x150] sm:$0xff] %v1277
  %1342 = vst [vmem:[%s5 + $0x158] sm:$0xff] %v1278
  %1343 = vst [vmem:[%s5 + $0x160] sm:$0xff] %v1279
  %1344 = vst [vmem:[%s5 + $0x168] sm:$0xff] %v1280
  %1345 = vst [vmem:[%s5 + $0x170] sm:$0xff] %v1281
  %1346 = vst [vmem:[%s5 + $0x178] sm:$0xff] %v1282
  %1347 = vst [vmem:[%s5 + $0x180] sm:$0xff] %v1283
  %1348 = vst [vmem:[%s5 + $0x188] sm:$0xff] %v1284
  %1349 = vst [vmem:[%s5 + $0x190] sm:$0xff] %v1285
  %1350 = vst [vmem:[%s5 + $0x198] sm:$0xff] %v1286
  %1351 = vst [vmem:[%s5 + $0x1a0] sm:$0xff] %v1287
  %1352 = vst [vmem:[%s5 + $0x1a8] sm:$0xff] %v1288
  %1353 = vst [vmem:[%s5 + $0x1b0] sm:$0xff] %v1289
  %1354 = vst [vmem:[%s5 + $0x1b8] sm:$0xff] %v1290
  %1355 = vst [vmem:[%s5 + $0x1c0] sm:$0xff] %v1291
  %1356 = vst [vmem:[%s5 + $0x1c8] sm:$0xff] %v1292
  %1357 = vst [vmem:[%s5 + $0x1d0] sm:$0xff] %v1293
  %1358 = vst [vmem:[%s5 + $0x1d8] sm:$0xff] %v1294
  %1359 = vst [vmem:[%s5 + $0x1e0] sm:$0xff] %v1295
  %1360 = vst [vmem:[%s5 + $0x1e8] sm:$0xff] %v1296
  %1361 = vst [vmem:[%s5 + $0x1f0] sm:$0xff] %v1297
  %1362 = vst [vmem:[%s5 + $0x1f8] sm:$0xff] %v1298
  // Predicated region
  $region22: #{discriminator_forward.6} parent=0 // pred_check
    _
  $region23: #{discriminator_forward.6} parent=0 // pred_check_branch
    %1364 = sbr.rel (0) target = $region25
  $region24: #{discriminator_forward.6} parent=0 // pred_region
    _
  $region25: #{discriminator_forward.6} parent=0 // pred_fallthru
    _
  // Predicated region
  $region26: #{discriminator_forward.6} parent=0 // pred_check
    _
  $region27: #{discriminator_forward.6} parent=0 // pred_check_branch
    %1366 = sbr.rel (0) target = $region29
  $region28: #{discriminator_forward.6} parent=0 // pred_region
    _
  $region29: #{discriminator_forward.6} parent=0 // pred_fallthru
    _

// kernel: discriminator_forward.7
$region0: #{discriminator_forward.7}
  #allocation0 [shape = 'u32[]', space=smem, size = 0x4, offset = 0x4, fixed_abs, tag = 'smem constant byte address 0x4 - core index']
  #allocation1 [shape = 'u32[72,128]{1,0:T(1,128)}', space=vmem, size = 0x9000, scoped, tag = 'internal scratch']
  %s0 = inlined_call_operand.vmem [shape: bf16[128,512], index: 0, kind: input, shape index: {}]
  %s1 = inlined_call_operand.vmem [shape: bf16[512,128], index: 1, kind: input, shape index: {}]
  %s2 = inlined_call_operand.vmem [shape: f32[1,128], index: 2, kind: input, shape index: {}]
  %s3 = inlined_call_operand.vmem [shape: f32[1,128], index: 3, kind: input, shape index: {}]
  %s4 = inlined_call_operand.vmem [shape: f32[1,128], index: 4, kind: input, shape index: {}]
  %s5 = inlined_call_operand.vmem [shape: f32[128,128], index: 5, kind: output, shape index: {}]
  %s6 = sld [smem:[#allocation0]]
  $region30: #{discriminator_forward.7} parent=0
    _
  %s8 = ssub.s32 1, %s6
  %s9 = scalar_select 0, %s8, %s6
  // Predicated region
  $region2: #{discriminator_forward.7} parent=0 // pred_check
    _
  $region3: #{discriminator_forward.7} parent=0 // pred_check_branch
    %11 = sbr.rel (0) target = $region5
  $region4: #{discriminator_forward.7} parent=0 // pred_region
    _
  $region5: #{discriminator_forward.7} parent=0 // pred_fallthru
    _
  // Predicated region
  $region6: #{discriminator_forward.7} parent=0 // pred_check
    _
  $region7: #{discriminator_forward.7} parent=0 // pred_check_branch
    %13 = sbr.rel (0) target = $region9
  $region8: #{discriminator_forward.7} parent=0 // pred_region
    _
  $region9: #{discriminator_forward.7} parent=0 // pred_fallthru
    _
  // Predicated region
  $region10: #{discriminator_forward.7} parent=0 // pred_check
    _
  $region11: #{discriminator_forward.7} parent=0 // pred_check_branch
    %15 = sbr.rel (0) target = $region13
  $region12: #{discriminator_forward.7} parent=0 // pred_region
    _
  $region13: #{discriminator_forward.7} parent=0 // pred_fallthru
    _
  // Predicated region
  $region14: #{discriminator_forward.7} parent=0 // pred_check
    _
  $region15: #{discriminator_forward.7} parent=0 // pred_check_branch
    %17 = sbr.rel (0) target = $region17
  $region16: #{discriminator_forward.7} parent=0 // pred_region
    _
  $region17: #{discriminator_forward.7} parent=0 // pred_fallthru
    _
  // Predicated region
  $region18: #{discriminator_forward.7} parent=0 // pred_check
    _
  $region19: #{discriminator_forward.7} parent=0 // pred_check_branch
    %19 = sbr.rel (0) target = $region21
  $region20: #{discriminator_forward.7} parent=0 // pred_region
    _
  $region21: #{discriminator_forward.7} parent=0 // pred_fallthru
    _
  %v20 = vld [vmem:[%s0] sm:$0xff]
  %v21 = vld [vmem:[%s0 + $0x8] sm:$0xff]
  %v22 = vld [vmem:[%s0 + $0x10] sm:$0xff]
  %v23 = vld [vmem:[%s0 + $0x18] sm:$0xff]
  %v24 = vld [vmem:[%s0 + $0x20] sm:$0xff]
  %v25 = vld [vmem:[%s0 + $0x28] sm:$0xff]
  %v26 = vld [vmem:[%s0 + $0x30] sm:$0xff]
  %v27 = vld [vmem:[%s0 + $0x38] sm:$0xff]
  %v28 = vld [vmem:[%s0 + $0x40] sm:$0xff]
  %v29 = vld [vmem:[%s0 + $0x48] sm:$0xff]
  %v30 = vld [vmem:[%s0 + $0x50] sm:$0xff]
  %v31 = vld [vmem:[%s0 + $0x58] sm:$0xff]
  %v32 = vld [vmem:[%s0 + $0x60] sm:$0xff]
  %v33 = vld [vmem:[%s0 + $0x68] sm:$0xff]
  %v34 = vld [vmem:[%s0 + $0x70] sm:$0xff]
  %v35 = vld [vmem:[%s0 + $0x78] sm:$0xff]
  %v36 = vld [vmem:[%s0 + $0x80] sm:$0xff]
  %v37 = vld [vmem:[%s0 + $0x88] sm:$0xff]
  %v38 = vld [vmem:[%s0 + $0x90] sm:$0xff]
  %v39 = vld [vmem:[%s0 + $0x98] sm:$0xff]
  %v40 = vld [vmem:[%s0 + $0xa0] sm:$0xff]
  %v41 = vld [vmem:[%s0 + $0xa8] sm:$0xff]
  %v42 = vld [vmem:[%s0 + $0xb0] sm:$0xff]
  %v43 = vld [vmem:[%s0 + $0xb8] sm:$0xff]
  %v44 = vld [vmem:[%s0 + $0xc0] sm:$0xff]
  %v45 = vld [vmem:[%s0 + $0xc8] sm:$0xff]
  %v46 = vld [vmem:[%s0 + $0xd0] sm:$0xff]
  %v47 = vld [vmem:[%s0 + $0xd8] sm:$0xff]
  %v48 = vld [vmem:[%s0 + $0xe0] sm:$0xff]
  %v49 = vld [vmem:[%s0 + $0xe8] sm:$0xff]
  %v50 = vld [vmem:[%s0 + $0xf0] sm:$0xff]
  %v51 = vld [vmem:[%s0 + $0xf8] sm:$0xff]
  %v52 = vld [vmem:[%s1] sm:$0xf]
  %v53 = vld [vmem:[%s1 + $0x4] sm:$0xf]
  %v54 = vld [vmem:[%s1 + $0x8] sm:$0xf]
  %v55 = vld [vmem:[%s1 + $0xc] sm:$0xf]
  %v56 = vld [vmem:[%s1 + $0x10] sm:$0xf]
  %v57 = vld [vmem:[%s1 + $0x14] sm:$0xf]
  %v58 = vld [vmem:[%s1 + $0x18] sm:$0xf]
  %v59 = vld [vmem:[%s1 + $0x1c] sm:$0xf]
  %v60 = vld [vmem:[%s1 + $0x20] sm:$0xf]
  %v61 = vld [vmem:[%s1 + $0x24] sm:$0xf]
  %v62 = vld [vmem:[%s1 + $0x28] sm:$0xf]
  %v63 = vld [vmem:[%s1 + $0x2c] sm:$0xf]
  %v64 = vld [vmem:[%s1 + $0x30] sm:$0xf]
  %v65 = vld [vmem:[%s1 + $0x34] sm:$0xf]
  %v66 = vld [vmem:[%s1 + $0x38] sm:$0xf]
  %v67 = vld [vmem:[%s1 + $0x3c] sm:$0xf]
  %v68 = vld [vmem:[%s1 + $0x40] sm:$0xf]
  %v69 = vld [vmem:[%s1 + $0x44] sm:$0xf]
  %v70 = vld [vmem:[%s1 + $0x48] sm:$0xf]
  %v71 = vld [vmem:[%s1 + $0x4c] sm:$0xf]
  %v72 = vld [vmem:[%s1 + $0x50] sm:$0xf]
  %v73 = vld [vmem:[%s1 + $0x54] sm:$0xf]
  %v74 = vld [vmem:[%s1 + $0x58] sm:$0xf]
  %v75 = vld [vmem:[%s1 + $0x5c] sm:$0xf]
  %v76 = vld [vmem:[%s1 + $0x60] sm:$0xf]
  %v77 = vld [vmem:[%s1 + $0x64] sm:$0xf]
  %v78 = vld [vmem:[%s1 + $0x68] sm:$0xf]
  %v79 = vld [vmem:[%s1 + $0x6c] sm:$0xf]
  %v80 = vld [vmem:[%s1 + $0x70] sm:$0xf]
  %v81 = vld [vmem:[%s1 + $0x74] sm:$0xf]
  %v82 = vld [vmem:[%s1 + $0x78] sm:$0xf]
  %v83 = vld [vmem:[%s1 + $0x7c] sm:$0xf]
  %v84 = vld [vmem:[%s1 + $0x80] sm:$0xf]
  %v85 = vld [vmem:[%s1 + $0x84] sm:$0xf]
  %v86 = vld [vmem:[%s1 + $0x88] sm:$0xf]
  %v87 = vld [vmem:[%s1 + $0x8c] sm:$0xf]
  %v88 = vld [vmem:[%s1 + $0x90] sm:$0xf]
  %v89 = vld [vmem:[%s1 + $0x94] sm:$0xf]
  %v90 = vld [vmem:[%s1 + $0x98] sm:$0xf]
  %v91 = vld [vmem:[%s1 + $0x9c] sm:$0xf]
  %v92 = vld [vmem:[%s1 + $0xa0] sm:$0xf]
  %v93 = vld [vmem:[%s1 + $0xa4] sm:$0xf]
  %v94 = vld [vmem:[%s1 + $0xa8] sm:$0xf]
  %v95 = vld [vmem:[%s1 + $0xac] sm:$0xf]
  %v96 = vld [vmem:[%s1 + $0xb0] sm:$0xf]
  %v97 = vld [vmem:[%s1 + $0xb4] sm:$0xf]
  %v98 = vld [vmem:[%s1 + $0xb8] sm:$0xf]
  %v99 = vld [vmem:[%s1 + $0xbc] sm:$0xf]
  %v100 = vld [vmem:[%s1 + $0xc0] sm:$0xf]
  %v101 = vld [vmem:[%s1 + $0xc4] sm:$0xf]
  %v102 = vld [vmem:[%s1 + $0xc8] sm:$0xf]
  %v103 = vld [vmem:[%s1 + $0xcc] sm:$0xf]
  %v104 = vld [vmem:[%s1 + $0xd0] sm:$0xf]
  %v105 = vld [vmem:[%s1 + $0xd4] sm:$0xf]
  %v106 = vld [vmem:[%s1 + $0xd8] sm:$0xf]
  %v107 = vld [vmem:[%s1 + $0xdc] sm:$0xf]
  %v108 = vld [vmem:[%s1 + $0xe0] sm:$0xf]
  %v109 = vld [vmem:[%s1 + $0xe4] sm:$0xf]
  %v110 = vld [vmem:[%s1 + $0xe8] sm:$0xf]
  %v111 = vld [vmem:[%s1 + $0xec] sm:$0xf]
  %v112 = vld [vmem:[%s1 + $0xf0] sm:$0xf]
  %v113 = vld [vmem:[%s1 + $0xf4] sm:$0xf]
  %v114 = vld [vmem:[%s1 + $0xf8] sm:$0xf]
  %v115 = vld [vmem:[%s1 + $0xfc] sm:$0xf]
  %v116 = vld [vmem:[%s2] sm:$0x1]
  %v118 = vperm.slane %v116, 0
  %v152 = vunpack.c.l.b16 %v20
  %v153 = vunpack.c.h.b16 %v20
  %v154 = vunpack.c.l.b16 %v21
  %v155 = vunpack.c.h.b16 %v21
  %v156 = vunpack.c.l.b16 %v22
  %v157 = vunpack.c.h.b16 %v22
  %v158 = vunpack.c.l.b16 %v23
  %v159 = vunpack.c.h.b16 %v23
  %v160 = vunpack.c.l.b16 %v24
  %v161 = vunpack.c.h.b16 %v24
  %v162 = vunpack.c.l.b16 %v25
  %v163 = vunpack.c.h.b16 %v25
  %v164 = vunpack.c.l.b16 %v26
  %v165 = vunpack.c.h.b16 %v26
  %v166 = vunpack.c.l.b16 %v27
  %v167 = vunpack.c.h.b16 %v27
  %v168 = vunpack.c.l.b16 %v28
  %v169 = vunpack.c.h.b16 %v28
  %v170 = vunpack.c.l.b16 %v29
  %v171 = vunpack.c.h.b16 %v29
  %v172 = vunpack.c.l.b16 %v30
  %v173 = vunpack.c.h.b16 %v30
  %v174 = vunpack.c.l.b16 %v31
  %v175 = vunpack.c.h.b16 %v31
  %v176 = vunpack.c.l.b16 %v32
  %v177 = vunpack.c.h.b16 %v32
  %v178 = vunpack.c.l.b16 %v33
  %v179 = vunpack.c.h.b16 %v33
  %v180 = vunpack.c.l.b16 %v34
  %v181 = vunpack.c.h.b16 %v34
  %v182 = vunpack.c.l.b16 %v35
  %v183 = vunpack.c.h.b16 %v35
  %v184 = vunpack.c.l.b16 %v36
  %v185 = vunpack.c.h.b16 %v36
  %v186 = vunpack.c.l.b16 %v37
  %v187 = vunpack.c.h.b16 %v37
  %v188 = vunpack.c.l.b16 %v38
  %v189 = vunpack.c.h.b16 %v38
  %v190 = vunpack.c.l.b16 %v39
  %v191 = vunpack.c.h.b16 %v39
  %v192 = vunpack.c.l.b16 %v40
  %v193 = vunpack.c.h.b16 %v40
  %v194 = vunpack.c.l.b16 %v41
  %v195 = vunpack.c.h.b16 %v41
  %v196 = vunpack.c.l.b16 %v42
  %v197 = vunpack.c.h.b16 %v42
  %v198 = vunpack.c.l.b16 %v43
  %v199 = vunpack.c.h.b16 %v43
  %v200 = vunpack.c.l.b16 %v44
  %v201 = vunpack.c.h.b16 %v44
  %v202 = vunpack.c.l.b16 %v45
  %v203 = vunpack.c.h.b16 %v45
  %v204 = vunpack.c.l.b16 %v46
  %v205 = vunpack.c.h.b16 %v46
  %v206 = vunpack.c.l.b16 %v47
  %v207 = vunpack.c.h.b16 %v47
  %v208 = vunpack.c.l.b16 %v48
  %v209 = vunpack.c.h.b16 %v48
  %v210 = vunpack.c.l.b16 %v49
  %v211 = vunpack.c.h.b16 %v49
  %v212 = vunpack.c.l.b16 %v50
  %v213 = vunpack.c.h.b16 %v50
  %v214 = vunpack.c.l.b16 %v51
  %v215 = vunpack.c.h.b16 %v51
  %v216 = vpack.c.b16 %v156, %v152
  %v217 = vpack.c.b16 %v157, %v153
  %v218 = vpack.c.b16 %v158, %v154
  %v219 = vpack.c.b16 %v159, %v155
  %v220 = vpack.c.b16 %v164, %v160
  %v221 = vpack.c.b16 %v165, %v161
  %v222 = vpack.c.b16 %v166, %v162
  %v223 = vpack.c.b16 %v167, %v163
  %v224 = vpack.c.b16 %v172, %v168
  %v225 = vpack.c.b16 %v173, %v169
  %v226 = vpack.c.b16 %v174, %v170
  %v227 = vpack.c.b16 %v175, %v171
  %v228 = vpack.c.b16 %v180, %v176
  %v229 = vpack.c.b16 %v181, %v177
  %v230 = vpack.c.b16 %v182, %v178
  %v231 = vpack.c.b16 %v183, %v179
  %v232 = vpack.c.b16 %v188, %v184
  %v233 = vpack.c.b16 %v189, %v185
  %v234 = vpack.c.b16 %v190, %v186
  %v235 = vpack.c.b16 %v191, %v187
  %v236 = vpack.c.b16 %v196, %v192
  %v237 = vpack.c.b16 %v197, %v193
  %v238 = vpack.c.b16 %v198, %v194
  %v239 = vpack.c.b16 %v199, %v195
  %v240 = vpack.c.b16 %v204, %v200
  %v241 = vpack.c.b16 %v205, %v201
  %v242 = vpack.c.b16 %v206, %v202
  %v243 = vpack.c.b16 %v207, %v203
  %v244 = vpack.c.b16 %v212, %v208
  %v245 = vpack.c.b16 %v213, %v209
  %v246 = vpack.c.b16 %v214, %v210
  %v247 = vpack.c.b16 %v215, %v211
  %v344 = vunpack.c.l.b16 %v52
  %v345 = vunpack.c.l.b16 %v53
  %v346 = vunpack.c.l.b16 %v54
  %v347 = vunpack.c.l.b16 %v55
  %v348 = vunpack.c.l.b16 %v56
  %v349 = vunpack.c.l.b16 %v57
  %v350 = vunpack.c.l.b16 %v58
  %v351 = vunpack.c.l.b16 %v59
  %v352 = vunpack.c.l.b16 %v60
  %v353 = vunpack.c.l.b16 %v61
  %v354 = vunpack.c.l.b16 %v62
  %v355 = vunpack.c.l.b16 %v63
  %v356 = vunpack.c.l.b16 %v64
  %v357 = vunpack.c.l.b16 %v65
  %v358 = vunpack.c.l.b16 %v66
  %v359 = vunpack.c.l.b16 %v67
  %v360 = vunpack.c.l.b16 %v68
  %v361 = vunpack.c.l.b16 %v69
  %v362 = vunpack.c.l.b16 %v70
  %v363 = vunpack.c.l.b16 %v71
  %v364 = vunpack.c.l.b16 %v72
  %v365 = vunpack.c.l.b16 %v73
  %v366 = vunpack.c.l.b16 %v74
  %v367 = vunpack.c.l.b16 %v75
  %v368 = vunpack.c.l.b16 %v76
  %v369 = vunpack.c.l.b16 %v77
  %v370 = vunpack.c.l.b16 %v78
  %v371 = vunpack.c.l.b16 %v79
  %v372 = vunpack.c.l.b16 %v80
  %v373 = vunpack.c.l.b16 %v81
  %v374 = vunpack.c.l.b16 %v82
  %v375 = vunpack.c.l.b16 %v83
  %v376 = vunpack.c.l.b16 %v84
  %v377 = vunpack.c.l.b16 %v85
  %v378 = vunpack.c.l.b16 %v86
  %v379 = vunpack.c.l.b16 %v87
  %v380 = vunpack.c.l.b16 %v88
  %v381 = vunpack.c.l.b16 %v89
  %v382 = vunpack.c.l.b16 %v90
  %v383 = vunpack.c.l.b16 %v91
  %v384 = vunpack.c.l.b16 %v92
  %v385 = vunpack.c.l.b16 %v93
  %v386 = vunpack.c.l.b16 %v94
  %v387 = vunpack.c.l.b16 %v95
  %v388 = vunpack.c.l.b16 %v96
  %v389 = vunpack.c.l.b16 %v97
  %v390 = vunpack.c.l.b16 %v98
  %v391 = vunpack.c.l.b16 %v99
  %v392 = vunpack.c.l.b16 %v100
  %v393 = vunpack.c.l.b16 %v101
  %v394 = vunpack.c.l.b16 %v102
  %v395 = vunpack.c.l.b16 %v103
  %v396 = vunpack.c.l.b16 %v104
  %v397 = vunpack.c.l.b16 %v105
  %v398 = vunpack.c.l.b16 %v106
  %v399 = vunpack.c.l.b16 %v107
  %v400 = vunpack.c.l.b16 %v108
  %v401 = vunpack.c.l.b16 %v109
  %v402 = vunpack.c.l.b16 %v110
  %v403 = vunpack.c.l.b16 %v111
  %v404 = vunpack.c.l.b16 %v112
  %v405 = vunpack.c.l.b16 %v113
  %v406 = vunpack.c.l.b16 %v114
  %v407 = vunpack.c.l.b16 %v115
  %v408 = vpack.c.b16 %v345, %v344
  %v409 = vpack.c.b16 %v347, %v346
  %v410 = vpack.c.b16 %v349, %v348
  %v411 = vpack.c.b16 %v351, %v350
  %v412 = vpack.c.b16 %v353, %v352
  %v413 = vpack.c.b16 %v355, %v354
  %v414 = vpack.c.b16 %v357, %v356
  %v415 = vpack.c.b16 %v359, %v358
  %v416 = vpack.c.b16 %v361, %v360
  %v417 = vpack.c.b16 %v363, %v362
  %v418 = vpack.c.b16 %v365, %v364
  %v419 = vpack.c.b16 %v367, %v366
  %v420 = vpack.c.b16 %v369, %v368
  %v421 = vpack.c.b16 %v371, %v370
  %v422 = vpack.c.b16 %v373, %v372
  %v423 = vpack.c.b16 %v375, %v374
  %v424 = vpack.c.b16 %v377, %v376
  %v425 = vpack.c.b16 %v379, %v378
  %v426 = vpack.c.b16 %v381, %v380
  %v427 = vpack.c.b16 %v383, %v382
  %v428 = vpack.c.b16 %v385, %v384
  %v429 = vpack.c.b16 %v387, %v386
  %v430 = vpack.c.b16 %v389, %v388
  %v431 = vpack.c.b16 %v391, %v390
  %v432 = vpack.c.b16 %v393, %v392
  %v433 = vpack.c.b16 %v395, %v394
  %v434 = vpack.c.b16 %v397, %v396
  %v435 = vpack.c.b16 %v399, %v398
  %v436 = vpack.c.b16 %v401, %v400
  %v437 = vpack.c.b16 %v403, %v402
  %v438 = vpack.c.b16 %v405, %v404
  %v439 = vpack.c.b16 %v407, %v406
  %472 = vmatpush.bf16.msra.mxu0 %v415
  %473 = vmatpush.bf16.msra.mxu0 %v414
  %474 = vmatpush.bf16.msra.mxu0 %v413
  %475 = vmatpush.bf16.msra.mxu0 %v412
  %476 = vmatpush.bf16.msra.mxu0 %v411
  %477 = vmatpush.bf16.msra.mxu0 %v410
  %478 = vmatpush.bf16.msra.mxu0 %v409
  %479 = vmatpush.bf16.msra.mxu0 %v408
  %480 = vmatmul.bf16.gmra.mxu0 %v216
  %v481 = vpop.f32.mrf.mxu0
  %v482 = vadd.f32 %v118, %v481
  %v483 = vpop.f32.mrf.mxu0
  %v484 = vadd.f32 %v118, %v483
  %485 = vmatmul.bf16.gmra.mxu0 %v220
  %v486 = vpop.f32.mrf.mxu0
  %v487 = vadd.f32 %v118, %v486
  %v488 = vpop.f32.mrf.mxu0
  %v489 = vadd.f32 %v118, %v488
  %490 = vmatmul.bf16.gmra.mxu0 %v224
  %v491 = vpop.f32.mrf.mxu0
  %v492 = vadd.f32 %v118, %v491
  %v493 = vpop.f32.mrf.mxu0
  %v494 = vadd.f32 %v118, %v493
  %495 = vmatmul.bf16.gmra.mxu0 %v228
  %v496 = vpop.f32.mrf.mxu0
  %v497 = vadd.f32 %v118, %v496
  %v498 = vpop.f32.mrf.mxu0
  %v499 = vadd.f32 %v118, %v498
  %500 = vmatmul.bf16.gmra.mxu0 %v232
  %v501 = vpop.f32.mrf.mxu0
  %v502 = vadd.f32 %v118, %v501
  %v503 = vpop.f32.mrf.mxu0
  %v504 = vadd.f32 %v118, %v503
  %505 = vmatmul.bf16.gmra.mxu0 %v236
  %v506 = vpop.f32.mrf.mxu0
  %v507 = vadd.f32 %v118, %v506
  %v508 = vpop.f32.mrf.mxu0
  %v509 = vadd.f32 %v118, %v508
  %510 = vmatmul.bf16.gmra.mxu0 %v240
  %v511 = vpop.f32.mrf.mxu0
  %v512 = vadd.f32 %v118, %v511
  %v513 = vpop.f32.mrf.mxu0
  %v514 = vadd.f32 %v118, %v513
  %515 = vmatmul.bf16.gmra.mxu0 %v244
  %v516 = vpop.f32.mrf.mxu0
  %v517 = vadd.f32 %v118, %v516
  %v518 = vpop.f32.mrf.mxu0
  %v519 = vadd.f32 %v118, %v518
  %520 = vdwg.mxu0
  %521 = vmatpush.bf16.msra.mxu0 %v423
  %522 = vmatpush.bf16.msra.mxu0 %v422
  %523 = vmatpush.bf16.msra.mxu0 %v421
  %524 = vmatpush.bf16.msra.mxu0 %v420
  %525 = vmatpush.bf16.msra.mxu0 %v419
  %526 = vmatpush.bf16.msra.mxu0 %v418
  %527 = vmatpush.bf16.msra.mxu0 %v417
  %528 = vmatpush.bf16.msra.mxu0 %v416
  %529 = vmatmul.bf16.gmra.mxu0 %v217
  %v530 = vpop.f32.mrf.mxu0
  %v531 = vadd.f32 %v482, %v530
  %v532 = vpop.f32.mrf.mxu0
  %v533 = vadd.f32 %v484, %v532
  %534 = vmatmul.bf16.gmra.mxu0 %v221
  %v535 = vpop.f32.mrf.mxu0
  %v536 = vadd.f32 %v487, %v535
  %v537 = vpop.f32.mrf.mxu0
  %v538 = vadd.f32 %v489, %v537
  %539 = vmatmul.bf16.gmra.mxu0 %v225
  %v540 = vpop.f32.mrf.mxu0
  %v541 = vadd.f32 %v492, %v540
  %v542 = vpop.f32.mrf.mxu0
  %v543 = vadd.f32 %v494, %v542
  %544 = vmatmul.bf16.gmra.mxu0 %v229
  %v545 = vpop.f32.mrf.mxu0
  %v546 = vadd.f32 %v497, %v545
  %v547 = vpop.f32.mrf.mxu0
  %v548 = vadd.f32 %v499, %v547
  %549 = vmatmul.bf16.gmra.mxu0 %v233
  %v550 = vpop.f32.mrf.mxu0
  %v551 = vadd.f32 %v502, %v550
  %v552 = vpop.f32.mrf.mxu0
  %v553 = vadd.f32 %v504, %v552
  %554 = vmatmul.bf16.gmra.mxu0 %v237
  %v555 = vpop.f32.mrf.mxu0
  %v556 = vadd.f32 %v507, %v555
  %v557 = vpop.f32.mrf.mxu0
  %v558 = vadd.f32 %v509, %v557
  %559 = vmatmul.bf16.gmra.mxu0 %v241
  %v560 = vpop.f32.mrf.mxu0
  %v561 = vadd.f32 %v512, %v560
  %v562 = vpop.f32.mrf.mxu0
  %v563 = vadd.f32 %v514, %v562
  %564 = vmatmul.bf16.gmra.mxu0 %v245
  %v565 = vpop.f32.mrf.mxu0
  %v566 = vadd.f32 %v517, %v565
  %v567 = vpop.f32.mrf.mxu0
  %v568 = vadd.f32 %v519, %v567
  %569 = vdwg.mxu0
  %570 = vmatpush.bf16.msra.mxu0 %v431
  %571 = vmatpush.bf16.msra.mxu0 %v430
  %572 = vmatpush.bf16.msra.mxu0 %v429
  %573 = vmatpush.bf16.msra.mxu0 %v428
  %574 = vmatpush.bf16.msra.mxu0 %v427
  %575 = vmatpush.bf16.msra.mxu0 %v426
  %576 = vmatpush.bf16.msra.mxu0 %v425
  %577 = vmatpush.bf16.msra.mxu0 %v424
  %578 = vmatmul.bf16.gmra.mxu0 %v218
  %v579 = vpop.f32.mrf.mxu0
  %v580 = vadd.f32 %v531, %v579
  %v581 = vpop.f32.mrf.mxu0
  %v582 = vadd.f32 %v533, %v581
  %583 = vmatmul.bf16.gmra.mxu0 %v222
  %v584 = vpop.f32.mrf.mxu0
  %v585 = vadd.f32 %v536, %v584
  %v586 = vpop.f32.mrf.mxu0
  %v587 = vadd.f32 %v538, %v586
  %588 = vmatmul.bf16.gmra.mxu0 %v226
  %v589 = vpop.f32.mrf.mxu0
  %v590 = vadd.f32 %v541, %v589
  %v591 = vpop.f32.mrf.mxu0
  %v592 = vadd.f32 %v543, %v591
  %593 = vmatmul.bf16.gmra.mxu0 %v230
  %v594 = vpop.f32.mrf.mxu0
  %v595 = vadd.f32 %v546, %v594
  %v596 = vpop.f32.mrf.mxu0
  %v597 = vadd.f32 %v548, %v596
  %598 = vmatmul.bf16.gmra.mxu0 %v234
  %v599 = vpop.f32.mrf.mxu0
  %v600 = vadd.f32 %v551, %v599
  %v601 = vpop.f32.mrf.mxu0
  %v602 = vadd.f32 %v553, %v601
  %603 = vmatmul.bf16.gmra.mxu0 %v238
  %v604 = vpop.f32.mrf.mxu0
  %v605 = vadd.f32 %v556, %v604
  %v606 = vpop.f32.mrf.mxu0
  %v607 = vadd.f32 %v558, %v606
  %608 = vmatmul.bf16.gmra.mxu0 %v242
  %v609 = vpop.f32.mrf.mxu0
  %v610 = vadd.f32 %v561, %v609
  %v611 = vpop.f32.mrf.mxu0
  %v612 = vadd.f32 %v563, %v611
  %613 = vmatmul.bf16.gmra.mxu0 %v246
  %v614 = vpop.f32.mrf.mxu0
  %v615 = vadd.f32 %v566, %v614
  %v616 = vpop.f32.mrf.mxu0
  %v617 = vadd.f32 %v568, %v616
  %618 = vdwg.mxu0
  %619 = vmatpush.bf16.msra.mxu0 %v439
  %620 = vmatpush.bf16.msra.mxu0 %v438
  %621 = vmatpush.bf16.msra.mxu0 %v437
  %622 = vmatpush.bf16.msra.mxu0 %v436
  %623 = vmatpush.bf16.msra.mxu0 %v435
  %624 = vmatpush.bf16.msra.mxu0 %v434
  %625 = vmatpush.bf16.msra.mxu0 %v433
  %626 = vmatpush.bf16.msra.mxu0 %v432
  %627 = vmatmul.bf16.gmra.mxu0 %v219
  %v628 = vpop.f32.mrf.mxu0
  %v629 = vadd.f32 %v580, %v628
  %v630 = vpop.f32.mrf.mxu0
  %v631 = vadd.f32 %v582, %v630
  %632 = vmatmul.bf16.gmra.mxu0 %v223
  %v633 = vpop.f32.mrf.mxu0
  %v634 = vadd.f32 %v585, %v633
  %v635 = vpop.f32.mrf.mxu0
  %v636 = vadd.f32 %v587, %v635
  %637 = vmatmul.bf16.gmra.mxu0 %v227
  %v638 = vpop.f32.mrf.mxu0
  %v639 = vadd.f32 %v590, %v638
  %v640 = vpop.f32.mrf.mxu0
  %v641 = vadd.f32 %v592, %v640
  %642 = vmatmul.bf16.gmra.mxu0 %v231
  %v643 = vpop.f32.mrf.mxu0
  %v644 = vadd.f32 %v595, %v643
  %v645 = vpop.f32.mrf.mxu0
  %v646 = vadd.f32 %v597, %v645
  %647 = vmatmul.bf16.gmra.mxu0 %v235
  %v648 = vpop.f32.mrf.mxu0
  %v649 = vadd.f32 %v600, %v648
  %v650 = vpop.f32.mrf.mxu0
  %v651 = vadd.f32 %v602, %v650
  %652 = vmatmul.bf16.gmra.mxu0 %v239
  %v653 = vpop.f32.mrf.mxu0
  %v654 = vadd.f32 %v605, %v653
  %v655 = vpop.f32.mrf.mxu0
  %v656 = vadd.f32 %v607, %v655
  %657 = vmatmul.bf16.gmra.mxu0 %v243
  %v658 = vpop.f32.mrf.mxu0
  %v659 = vadd.f32 %v610, %v658
  %v660 = vpop.f32.mrf.mxu0
  %v661 = vadd.f32 %v612, %v660
  %662 = vmatmul.bf16.gmra.mxu0 %v247
  %v663 = vpop.f32.mrf.mxu0
  %v664 = vadd.f32 %v615, %v663
  %v665 = vpop.f32.mrf.mxu0
  %v666 = vadd.f32 %v617, %v665
  %667 = vdwg.mxu0
  %v668 = vadd.f32 %v629, %v631
  %v669 = vadd.f32 %v668, %v634
  %v670 = vadd.f32 %v669, %v636
  %v671 = vadd.f32 %v670, %v639
  %v672 = vadd.f32 %v671, %v641
  %v673 = vadd.f32 %v672, %v644
  %v674 = vadd.f32 %v673, %v646
  %v675 = vadd.f32 %v674, %v649
  %v676 = vadd.f32 %v675, %v651
  %v677 = vadd.f32 %v676, %v654
  %v678 = vadd.f32 %v677, %v656
  %v679 = vadd.f32 %v678, %v659
  %v680 = vadd.f32 %v679, %v661
  %v681 = vadd.f32 %v680, %v664
  %v682 = vadd.f32 %v681, %v666
  %v683 = vrot.slane %v682, 4
  %v684 = vadd.f32 %v682, %v683
  %v685 = vrot.slane %v684, 2
  %v686 = vadd.f32 %v684, %v685
  %v687 = vrot.slane %v686, 1
  %v688 = vadd.f32 %v686, %v687
  %v689 = vmul.f32 %v116, 0.0
  %v690 = vsub.f32 %v688, %v689
  %v691 = vmul.f32 %v629, %v629
  %v692 = vmul.f32 %v631, %v631
  %v693 = vmul.f32 %v634, %v634
  %v694 = vmul.f32 %v636, %v636
  %v695 = vmul.f32 %v639, %v639
  %v696 = vmul.f32 %v641, %v641
  %v697 = vmul.f32 %v644, %v644
  %v698 = vmul.f32 %v646, %v646
  %v699 = vmul.f32 %v649, %v649
  %v700 = vmul.f32 %v651, %v651
  %v701 = vmul.f32 %v654, %v654
  %v702 = vmul.f32 %v656, %v656
  %v703 = vmul.f32 %v659, %v659
  %v704 = vmul.f32 %v661, %v661
  %v705 = vmul.f32 %v664, %v664
  %v706 = vmul.f32 %v666, %v666
  %v707 = vadd.f32 %v691, %v692
  %v708 = vadd.f32 %v707, %v693
  %v709 = vadd.f32 %v708, %v694
  %v710 = vadd.f32 %v709, %v695
  %v711 = vadd.f32 %v710, %v696
  %v712 = vadd.f32 %v711, %v697
  %v713 = vadd.f32 %v712, %v698
  %v714 = vadd.f32 %v713, %v699
  %v715 = vadd.f32 %v714, %v700
  %v716 = vadd.f32 %v715, %v701
  %v717 = vadd.f32 %v716, %v702
  %v718 = vadd.f32 %v717, %v703
  %v719 = vadd.f32 %v718, %v704
  %v720 = vadd.f32 %v719, %v705
  %v721 = vadd.f32 %v720, %v706
  %v722 = vrot.slane %v721, 4
  %v723 = vadd.f32 %v721, %v722
  %v724 = vrot.slane %v723, 2
  %v725 = vadd.f32 %v723, %v724
  %v726 = vrot.slane %v725, 1
  %v727 = vadd.f32 %v725, %v726
  %v728 = vmul.f32 %v116, %v116
  %v729 = vmul.f32 %v728, 0.0
  %v730 = vsub.f32 %v727, %v729
  %v731 = vmul.f32 %v690, 0.0078125
  %v732 = vmul.f32 %v730, 0.0078125
  %v733 = vmul.f32 %v731, %v731
  %v734 = vsub.f32 %v732, %v733
  %v735 = vmax.f32 %v734, 0.0
  %v736 = vld [vmem:[%s3] sm:$0x1]
  %v737 = vadd.f32 %v735, 1e-05
  %v738 = vrsqrt.pop %v737
  %v739 = vmul.f32 %v738, %v737
  %v740 = vmul.f32 %v739, %v738
  %v741 = vmul.f32 0.5, %v740
  %v742 = vsub.f32 1.5, %v741
  %v743 = vmul.f32 %v738, %v742
  %vm744 = vweird.f32 %v737
  %vm745 = vweird.f32 %v738
  %vm746 = vmor %vm744, %vm745
  %v747 = vsel %vm746, %v738, %v743
  %v748 = vmul.f32 %v736, %v747
  %v749 = vperm.slane %v731, 0
  %v750 = vsub.f32 %v629, %v749
  %v751 = vsub.f32 %v631, %v749
  %v752 = vsub.f32 %v634, %v749
  %v753 = vsub.f32 %v636, %v749
  %v754 = vsub.f32 %v639, %v749
  %v755 = vsub.f32 %v641, %v749
  %v756 = vsub.f32 %v644, %v749
  %v757 = vsub.f32 %v646, %v749
  %v758 = vsub.f32 %v649, %v749
  %v759 = vsub.f32 %v651, %v749
  %v760 = vsub.f32 %v654, %v749
  %v761 = vsub.f32 %v656, %v749
  %v762 = vsub.f32 %v659, %v749
  %v763 = vsub.f32 %v661, %v749
  %v764 = vsub.f32 %v664, %v749
  %v765 = vsub.f32 %v666, %v749
  %v767 = vperm.slane %v748, 0
  %v769 = vmul.f32 %v750, %v767
  %v770 = vmul.f32 %v751, %v767
  %v771 = vmul.f32 %v752, %v767
  %v772 = vmul.f32 %v753, %v767
  %v773 = vmul.f32 %v754, %v767
  %v774 = vmul.f32 %v755, %v767
  %v775 = vmul.f32 %v756, %v767
  %v776 = vmul.f32 %v757, %v767
  %v777 = vmul.f32 %v758, %v767
  %v778 = vmul.f32 %v759, %v767
  %v779 = vmul.f32 %v760, %v767
  %v780 = vmul.f32 %v761, %v767
  %v781 = vmul.f32 %v762, %v767
  %v782 = vmul.f32 %v763, %v767
  %v783 = vmul.f32 %v764, %v767
  %v784 = vmul.f32 %v765, %v767
  %v785 = vld [vmem:[%s4] sm:$0x1]
  %v787 = vperm.slane %v785, 0
  %v789 = vadd.f32 %v769, %v787
  %v790 = vadd.f32 %v770, %v787
  %v791 = vadd.f32 %v771, %v787
  %v792 = vadd.f32 %v772, %v787
  %v793 = vadd.f32 %v773, %v787
  %v794 = vadd.f32 %v774, %v787
  %v795 = vadd.f32 %v775, %v787
  %v796 = vadd.f32 %v776, %v787
  %v797 = vadd.f32 %v777, %v787
  %v798 = vadd.f32 %v778, %v787
  %v799 = vadd.f32 %v779, %v787
  %v800 = vadd.f32 %v780, %v787
  %v801 = vadd.f32 %v781, %v787
  %v802 = vadd.f32 %v782, %v787
  %v803 = vadd.f32 %v783, %v787
  %v804 = vadd.f32 %v784, %v787
  %805 = vst [vmem:[%s5] sm:$0xff] %v789
  %806 = vst [vmem:[%s5 + $0x8] sm:$0xff] %v790
  %807 = vst [vmem:[%s5 + $0x10] sm:$0xff] %v791
  %808 = vst [vmem:[%s5 + $0x18] sm:$0xff] %v792
  %809 = vst [vmem:[%s5 + $0x20] sm:$0xff] %v793
  %810 = vst [vmem:[%s5 + $0x28] sm:$0xff] %v794
  %811 = vst [vmem:[%s5 + $0x30] sm:$0xff] %v795
  %812 = vst [vmem:[%s5 + $0x38] sm:$0xff] %v796
  %813 = vst [vmem:[%s5 + $0x40] sm:$0xff] %v797
  %814 = vst [vmem:[%s5 + $0x48] sm:$0xff] %v798
  %815 = vst [vmem:[%s5 + $0x50] sm:$0xff] %v799
  %816 = vst [vmem:[%s5 + $0x58] sm:$0xff] %v800
  %817 = vst [vmem:[%s5 + $0x60] sm:$0xff] %v801
  %818 = vst [vmem:[%s5 + $0x68] sm:$0xff] %v802
  %819 = vst [vmem:[%s5 + $0x70] sm:$0xff] %v803
  %820 = vst [vmem:[%s5 + $0x78] sm:$0xff] %v804
  // Predicated region
  $region22: #{discriminator_forward.7} parent=0 // pred_check
    _
  $region23: #{discriminator_forward.7} parent=0 // pred_check_branch
    %822 = sbr.rel (0) target = $region25
  $region24: #{discriminator_forward.7} parent=0 // pred_region
    _
  $region25: #{discriminator_forward.7} parent=0 // pred_fallthru
    _
  // Predicated region
  $region26: #{discriminator_forward.7} parent=0 // pred_check
    _
  $region27: #{discriminator_forward.7} parent=0 // pred_check_branch
    %824 = sbr.rel (0) target = $region29
  $region28: #{discriminator_forward.7} parent=0 // pred_region
    _
  $region29: #{discriminator_forward.7} parent=0 // pred_fallthru
    _

// kernel: discriminator_forward.8
$region0: #{discriminator_forward.8}
  #allocation0 [shape = 'u32[]', space=smem, size = 0x4, offset = 0x4, fixed_abs, tag = 'smem constant byte address 0x4 - core index']
  #allocation1 [shape = 'u32[72,128]{1,0:T(1,128)}', space=vmem, size = 0x9000, scoped, tag = 'internal scratch']
  %s0 = inlined_call_operand.vmem [shape: bf16[112,1024], index: 0, kind: input, shape index: {}]
  %s1 = inlined_call_operand.vmem [shape: bf16[1024,128], index: 1, kind: input, shape index: {}]
  %s2 = inlined_call_operand.vmem [shape: f32[1,128], index: 2, kind: input, shape index: {}]
  %s3 = inlined_call_operand.vmem [shape: f32[1,128], index: 3, kind: input, shape index: {}]
  %s4 = inlined_call_operand.vmem [shape: f32[1,128], index: 4, kind: input, shape index: {}]
  %s5 = inlined_call_operand.vmem [shape: f32[112,128], index: 5, kind: output, shape index: {}]
  %s6 = sld [smem:[#allocation0]]
  $region30: #{discriminator_forward.8} parent=0
    _
  %s8 = ssub.s32 1, %s6
  %s9 = scalar_select 0, %s8, %s6
  // Predicated region
  $region2: #{discriminator_forward.8} parent=0 // pred_check
    _
  $region3: #{discriminator_forward.8} parent=0 // pred_check_branch
    %11 = sbr.rel (0) target = $region5
  $region4: #{discriminator_forward.8} parent=0 // pred_region
    _
  $region5: #{discriminator_forward.8} parent=0 // pred_fallthru
    _
  // Predicated region
  $region6: #{discriminator_forward.8} parent=0 // pred_check
    _
  $region7: #{discriminator_forward.8} parent=0 // pred_check_branch
    %13 = sbr.rel (0) target = $region9
  $region8: #{discriminator_forward.8} parent=0 // pred_region
    _
  $region9: #{discriminator_forward.8} parent=0 // pred_fallthru
    _
  // Predicated region
  $region10: #{discriminator_forward.8} parent=0 // pred_check
    _
  $region11: #{discriminator_forward.8} parent=0 // pred_check_branch
    %15 = sbr.rel (0) target = $region13
  $region12: #{discriminator_forward.8} parent=0 // pred_region
    _
  $region13: #{discriminator_forward.8} parent=0 // pred_fallthru
    _
  // Predicated region
  $region14: #{discriminator_forward.8} parent=0 // pred_check
    _
  $region15: #{discriminator_forward.8} parent=0 // pred_check_branch
    %17 = sbr.rel (0) target = $region17
  $region16: #{discriminator_forward.8} parent=0 // pred_region
    _
  $region17: #{discriminator_forward.8} parent=0 // pred_fallthru
    _
  // Predicated region
  $region18: #{discriminator_forward.8} parent=0 // pred_check
    _
  $region19: #{discriminator_forward.8} parent=0 // pred_check_branch
    %19 = sbr.rel (0) target = $region21
  $region20: #{discriminator_forward.8} parent=0 // pred_region
    _
  $region21: #{discriminator_forward.8} parent=0 // pred_fallthru
    _
  %v20 = vld [vmem:[%s0] sm:$0xff]
  %v21 = vld [vmem:[%s0 + $0x8] sm:$0xff]
  %v22 = vld [vmem:[%s0 + $0x10] sm:$0xff]
  %v23 = vld [vmem:[%s0 + $0x18] sm:$0xff]
  %v24 = vld [vmem:[%s0 + $0x20] sm:$0xff]
  %v25 = vld [vmem:[%s0 + $0x28] sm:$0xff]
  %v26 = vld [vmem:[%s0 + $0x30] sm:$0xff]
  %v27 = vld [vmem:[%s0 + $0x38] sm:$0xff]
  %v28 = vld [vmem:[%s0 + $0x40] sm:$0xff]
  %v29 = vld [vmem:[%s0 + $0x48] sm:$0xff]
  %v30 = vld [vmem:[%s0 + $0x50] sm:$0xff]
  %v31 = vld [vmem:[%s0 + $0x58] sm:$0xff]
  %v32 = vld [vmem:[%s0 + $0x60] sm:$0xff]
  %v33 = vld [vmem:[%s0 + $0x68] sm:$0xff]
  %v34 = vld [vmem:[%s0 + $0x70] sm:$0xff]
  %v35 = vld [vmem:[%s0 + $0x78] sm:$0xff]
  %v36 = vld [vmem:[%s0 + $0x80] sm:$0xff]
  %v37 = vld [vmem:[%s0 + $0x88] sm:$0xff]
  %v38 = vld [vmem:[%s0 + $0x90] sm:$0xff]
  %v39 = vld [vmem:[%s0 + $0x98] sm:$0xff]
  %v40 = vld [vmem:[%s0 + $0xa0] sm:$0xff]
  %v41 = vld [vmem:[%s0 + $0xa8] sm:$0xff]
  %v42 = vld [vmem:[%s0 + $0xb0] sm:$0xff]
  %v43 = vld [vmem:[%s0 + $0xb8] sm:$0xff]
  %v44 = vld [vmem:[%s0 + $0xc0] sm:$0xff]
  %v45 = vld [vmem:[%s0 + $0xc8] sm:$0xff]
  %v46 = vld [vmem:[%s0 + $0xd0] sm:$0xff]
  %v47 = vld [vmem:[%s0 + $0xd8] sm:$0xff]
  %v48 = vld [vmem:[%s0 + $0xe0] sm:$0xff]
  %v49 = vld [vmem:[%s0 + $0xe8] sm:$0xff]
  %v50 = vld [vmem:[%s0 + $0xf0] sm:$0xff]
  %v51 = vld [vmem:[%s0 + $0xf8] sm:$0xff]
  %v52 = vld [vmem:[%s0 + $0x100] sm:$0xff]
  %v53 = vld [vmem:[%s0 + $0x108] sm:$0xff]
  %v54 = vld [vmem:[%s0 + $0x110] sm:$0xff]
  %v55 = vld [vmem:[%s0 + $0x118] sm:$0xff]
  %v56 = vld [vmem:[%s0 + $0x120] sm:$0xff]
  %v57 = vld [vmem:[%s0 + $0x128] sm:$0xff]
  %v58 = vld [vmem:[%s0 + $0x130] sm:$0xff]
  %v59 = vld [vmem:[%s0 + $0x138] sm:$0xff]
  %v60 = vld [vmem:[%s0 + $0x140] sm:$0xff]
  %v61 = vld [vmem:[%s0 + $0x148] sm:$0xff]
  %v62 = vld [vmem:[%s0 + $0x150] sm:$0xff]
  %v63 = vld [vmem:[%s0 + $0x158] sm:$0xff]
  %v64 = vld [vmem:[%s0 + $0x160] sm:$0xff]
  %v65 = vld [vmem:[%s0 + $0x168] sm:$0xff]
  %v66 = vld [vmem:[%s0 + $0x170] sm:$0xff]
  %v67 = vld [vmem:[%s0 + $0x178] sm:$0xff]
  %v68 = vld [vmem:[%s0 + $0x180] sm:$0xff]
  %v69 = vld [vmem:[%s0 + $0x188] sm:$0xff]
  %v70 = vld [vmem:[%s0 + $0x190] sm:$0xff]
  %v71 = vld [vmem:[%s0 + $0x198] sm:$0xff]
  %v72 = vld [vmem:[%s0 + $0x1a0] sm:$0xff]
  %v73 = vld [vmem:[%s0 + $0x1a8] sm:$0xff]
  %v74 = vld [vmem:[%s0 + $0x1b0] sm:$0xff]
  %v75 = vld [vmem:[%s0 + $0x1b8] sm:$0xff]
  %v76 = vld [vmem:[%s1] sm:$0xf]
  %v77 = vld [vmem:[%s1 + $0x4] sm:$0xf]
  %v78 = vld [vmem:[%s1 + $0x8] sm:$0xf]
  %v79 = vld [vmem:[%s1 + $0xc] sm:$0xf]
  %v80 = vld [vmem:[%s1 + $0x10] sm:$0xf]
  %v81 = vld [vmem:[%s1 + $0x14] sm:$0xf]
  %v82 = vld [vmem:[%s1 + $0x18] sm:$0xf]
  %v83 = vld [vmem:[%s1 + $0x1c] sm:$0xf]
  %v84 = vld [vmem:[%s1 + $0x20] sm:$0xf]
  %v85 = vld [vmem:[%s1 + $0x24] sm:$0xf]
  %v86 = vld [vmem:[%s1 + $0x28] sm:$0xf]
  %v87 = vld [vmem:[%s1 + $0x2c] sm:$0xf]
  %v88 = vld [vmem:[%s1 + $0x30] sm:$0xf]
  %v89 = vld [vmem:[%s1 + $0x34] sm:$0xf]
  %v90 = vld [vmem:[%s1 + $0x38] sm:$0xf]
  %v91 = vld [vmem:[%s1 + $0x3c] sm:$0xf]
  %v92 = vld [vmem:[%s1 + $0x40] sm:$0xf]
  %v93 = vld [vmem:[%s1 + $0x44] sm:$0xf]
  %v94 = vld [vmem:[%s1 + $0x48] sm:$0xf]
  %v95 = vld [vmem:[%s1 + $0x4c] sm:$0xf]
  %v96 = vld [vmem:[%s1 + $0x50] sm:$0xf]
  %v97 = vld [vmem:[%s1 + $0x54] sm:$0xf]
  %v98 = vld [vmem:[%s1 + $0x58] sm:$0xf]
  %v99 = vld [vmem:[%s1 + $0x5c] sm:$0xf]
  %v100 = vld [vmem:[%s1 + $0x60] sm:$0xf]
  %v101 = vld [vmem:[%s1 + $0x64] sm:$0xf]
  %v102 = vld [vmem:[%s1 + $0x68] sm:$0xf]
  %v103 = vld [vmem:[%s1 + $0x6c] sm:$0xf]
  %v104 = vld [vmem:[%s1 + $0x70] sm:$0xf]
  %v105 = vld [vmem:[%s1 + $0x74] sm:$0xf]
  %v106 = vld [vmem:[%s1 + $0x78] sm:$0xf]
  %v107 = vld [vmem:[%s1 + $0x7c] sm:$0xf]
  %v108 = vld [vmem:[%s1 + $0x80] sm:$0xf]
  %v109 = vld [vmem:[%s1 + $0x84] sm:$0xf]
  %v110 = vld [vmem:[%s1 + $0x88] sm:$0xf]
  %v111 = vld [vmem:[%s1 + $0x8c] sm:$0xf]
  %v112 = vld [vmem:[%s1 + $0x90] sm:$0xf]
  %v113 = vld [vmem:[%s1 + $0x94] sm:$0xf]
  %v114 = vld [vmem:[%s1 + $0x98] sm:$0xf]
  %v115 = vld [vmem:[%s1 + $0x9c] sm:$0xf]
  %v116 = vld [vmem:[%s1 + $0xa0] sm:$0xf]
  %v117 = vld [vmem:[%s1 + $0xa4] sm:$0xf]
  %v118 = vld [vmem:[%s1 + $0xa8] sm:$0xf]
  %v119 = vld [vmem:[%s1 + $0xac] sm:$0xf]
  %v120 = vld [vmem:[%s1 + $0xb0] sm:$0xf]
  %v121 = vld [vmem:[%s1 + $0xb4] sm:$0xf]
  %v122 = vld [vmem:[%s1 + $0xb8] sm:$0xf]
  %v123 = vld [vmem:[%s1 + $0xbc] sm:$0xf]
  %v124 = vld [vmem:[%s1 + $0xc0] sm:$0xf]
  %v125 = vld [vmem:[%s1 + $0xc4] sm:$0xf]
  %v126 = vld [vmem:[%s1 + $0xc8] sm:$0xf]
  %v127 = vld [vmem:[%s1 + $0xcc] sm:$0xf]
  %v128 = vld [vmem:[%s1 + $0xd0] sm:$0xf]
  %v129 = vld [vmem:[%s1 + $0xd4] sm:$0xf]
  %v130 = vld [vmem:[%s1 + $0xd8] sm:$0xf]
  %v131 = vld [vmem:[%s1 + $0xdc] sm:$0xf]
  %v132 = vld [vmem:[%s1 + $0xe0] sm:$0xf]
  %v133 = vld [vmem:[%s1 + $0xe4] sm:$0xf]
  %v134 = vld [vmem:[%s1 + $0xe8] sm:$0xf]
  %v135 = vld [vmem:[%s1 + $0xec] sm:$0xf]
  %v136 = vld [vmem:[%s1 + $0xf0] sm:$0xf]
  %v137 = vld [vmem:[%s1 + $0xf4] sm:$0xf]
  %v138 = vld [vmem:[%s1 + $0xf8] sm:$0xf]
  %v139 = vld [vmem:[%s1 + $0xfc] sm:$0xf]
  %v140 = vld [vmem:[%s1 + $0x100] sm:$0xf]
  %v141 = vld [vmem:[%s1 + $0x104] sm:$0xf]
  %v142 = vld [vmem:[%s1 + $0x108] sm:$0xf]
  %v143 = vld [vmem:[%s1 + $0x10c] sm:$0xf]
  %v144 = vld [vmem:[%s1 + $0x110] sm:$0xf]
  %v145 = vld [vmem:[%s1 + $0x114] sm:$0xf]
  %v146 = vld [vmem:[%s1 + $0x118] sm:$0xf]
  %v147 = vld [vmem:[%s1 + $0x11c] sm:$0xf]
  %v148 = vld [vmem:[%s1 + $0x120] sm:$0xf]
  %v149 = vld [vmem:[%s1 + $0x124] sm:$0xf]
  %v150 = vld [vmem:[%s1 + $0x128] sm:$0xf]
  %v151 = vld [vmem:[%s1 + $0x12c] sm:$0xf]
  %v152 = vld [vmem:[%s1 + $0x130] sm:$0xf]
  %v153 = vld [vmem:[%s1 + $0x134] sm:$0xf]
  %v154 = vld [vmem:[%s1 + $0x138] sm:$0xf]
  %v155 = vld [vmem:[%s1 + $0x13c] sm:$0xf]
  %v156 = vld [vmem:[%s1 + $0x140] sm:$0xf]
  %v157 = vld [vmem:[%s1 + $0x144] sm:$0xf]
  %v158 = vld [vmem:[%s1 + $0x148] sm:$0xf]
  %v159 = vld [vmem:[%s1 + $0x14c] sm:$0xf]
  %v160 = vld [vmem:[%s1 + $0x150] sm:$0xf]
  %v161 = vld [vmem:[%s1 + $0x154] sm:$0xf]
  %v162 = vld [vmem:[%s1 + $0x158] sm:$0xf]
  %v163 = vld [vmem:[%s1 + $0x15c] sm:$0xf]
  %v164 = vld [vmem:[%s1 + $0x160] sm:$0xf]
  %v165 = vld [vmem:[%s1 + $0x164] sm:$0xf]
  %v166 = vld [vmem:[%s1 + $0x168] sm:$0xf]
  %v167 = vld [vmem:[%s1 + $0x16c] sm:$0xf]
  %v168 = vld [vmem:[%s1 + $0x170] sm:$0xf]
  %v169 = vld [vmem:[%s1 + $0x174] sm:$0xf]
  %v170 = vld [vmem:[%s1 + $0x178] sm:$0xf]
  %v171 = vld [vmem:[%s1 + $0x17c] sm:$0xf]
  %v172 = vld [vmem:[%s1 + $0x180] sm:$0xf]
  %v173 = vld [vmem:[%s1 + $0x184] sm:$0xf]
  %v174 = vld [vmem:[%s1 + $0x188] sm:$0xf]
  %v175 = vld [vmem:[%s1 + $0x18c] sm:$0xf]
  %v176 = vld [vmem:[%s1 + $0x190] sm:$0xf]
  %v177 = vld [vmem:[%s1 + $0x194] sm:$0xf]
  %v178 = vld [vmem:[%s1 + $0x198] sm:$0xf]
  %v179 = vld [vmem:[%s1 + $0x19c] sm:$0xf]
  %v180 = vld [vmem:[%s1 + $0x1a0] sm:$0xf]
  %v181 = vld [vmem:[%s1 + $0x1a4] sm:$0xf]
  %v182 = vld [vmem:[%s1 + $0x1a8] sm:$0xf]
  %v183 = vld [vmem:[%s1 + $0x1ac] sm:$0xf]
  %v184 = vld [vmem:[%s1 + $0x1b0] sm:$0xf]
  %v185 = vld [vmem:[%s1 + $0x1b4] sm:$0xf]
  %v186 = vld [vmem:[%s1 + $0x1b8] sm:$0xf]
  %v187 = vld [vmem:[%s1 + $0x1bc] sm:$0xf]
  %v188 = vld [vmem:[%s1 + $0x1c0] sm:$0xf]
  %v189 = vld [vmem:[%s1 + $0x1c4] sm:$0xf]
  %v190 = vld [vmem:[%s1 + $0x1c8] sm:$0xf]
  %v191 = vld [vmem:[%s1 + $0x1cc] sm:$0xf]
  %v192 = vld [vmem:[%s1 + $0x1d0] sm:$0xf]
  %v193 = vld [vmem:[%s1 + $0x1d4] sm:$0xf]
  %v194 = vld [vmem:[%s1 + $0x1d8] sm:$0xf]
  %v195 = vld [vmem:[%s1 + $0x1dc] sm:$0xf]
  %v196 = vld [vmem:[%s1 + $0x1e0] sm:$0xf]
  %v197 = vld [vmem:[%s1 + $0x1e4] sm:$0xf]
  %v198 = vld [vmem:[%s1 + $0x1e8] sm:$0xf]
  %v199 = vld [vmem:[%s1 + $0x1ec] sm:$0xf]
  %v200 = vld [vmem:[%s1 + $0x1f0] sm:$0xf]
  %v201 = vld [vmem:[%s1 + $0x1f4] sm:$0xf]
  %v202 = vld [vmem:[%s1 + $0x1f8] sm:$0xf]
  %v203 = vld [vmem:[%s1 + $0x1fc] sm:$0xf]
  %v204 = vld [vmem:[%s2] sm:$0x1]
  %v206 = vperm.slane %v204, 0
  %v264 = vunpack.c.l.b16 %v20
  %v265 = vunpack.c.h.b16 %v20
  %v266 = vunpack.c.l.b16 %v21
  %v267 = vunpack.c.h.b16 %v21
  %v268 = vunpack.c.l.b16 %v22
  %v269 = vunpack.c.h.b16 %v22
  %v270 = vunpack.c.l.b16 %v23
  %v271 = vunpack.c.h.b16 %v23
  %v272 = vunpack.c.l.b16 %v24
  %v273 = vunpack.c.h.b16 %v24
  %v274 = vunpack.c.l.b16 %v25
  %v275 = vunpack.c.h.b16 %v25
  %v276 = vunpack.c.l.b16 %v26
  %v277 = vunpack.c.h.b16 %v26
  %v278 = vunpack.c.l.b16 %v27
  %v279 = vunpack.c.h.b16 %v27
  %v280 = vunpack.c.l.b16 %v28
  %v281 = vunpack.c.h.b16 %v28
  %v282 = vunpack.c.l.b16 %v29
  %v283 = vunpack.c.h.b16 %v29
  %v284 = vunpack.c.l.b16 %v30
  %v285 = vunpack.c.h.b16 %v30
  %v286 = vunpack.c.l.b16 %v31
  %v287 = vunpack.c.h.b16 %v31
  %v288 = vunpack.c.l.b16 %v32
  %v289 = vunpack.c.h.b16 %v32
  %v290 = vunpack.c.l.b16 %v33
  %v291 = vunpack.c.h.b16 %v33
  %v292 = vunpack.c.l.b16 %v34
  %v293 = vunpack.c.h.b16 %v34
  %v294 = vunpack.c.l.b16 %v35
  %v295 = vunpack.c.h.b16 %v35
  %v296 = vunpack.c.l.b16 %v36
  %v297 = vunpack.c.h.b16 %v36
  %v298 = vunpack.c.l.b16 %v37
  %v299 = vunpack.c.h.b16 %v37
  %v300 = vunpack.c.l.b16 %v38
  %v301 = vunpack.c.h.b16 %v38
  %v302 = vunpack.c.l.b16 %v39
  %v303 = vunpack.c.h.b16 %v39
  %v304 = vunpack.c.l.b16 %v40
  %v305 = vunpack.c.h.b16 %v40
  %v306 = vunpack.c.l.b16 %v41
  %v307 = vunpack.c.h.b16 %v41
  %v308 = vunpack.c.l.b16 %v42
  %v309 = vunpack.c.h.b16 %v42
  %v310 = vunpack.c.l.b16 %v43
  %v311 = vunpack.c.h.b16 %v43
  %v312 = vunpack.c.l.b16 %v44
  %v313 = vunpack.c.h.b16 %v44
  %v314 = vunpack.c.l.b16 %v45
  %v315 = vunpack.c.h.b16 %v45
  %v316 = vunpack.c.l.b16 %v46
  %v317 = vunpack.c.h.b16 %v46
  %v318 = vunpack.c.l.b16 %v47
  %v319 = vunpack.c.h.b16 %v47
  %v320 = vunpack.c.l.b16 %v48
  %v321 = vunpack.c.h.b16 %v48
  %v322 = vunpack.c.l.b16 %v49
  %v323 = vunpack.c.h.b16 %v49
  %v324 = vunpack.c.l.b16 %v50
  %v325 = vunpack.c.h.b16 %v50
  %v326 = vunpack.c.l.b16 %v51
  %v327 = vunpack.c.h.b16 %v51
  %v328 = vunpack.c.l.b16 %v52
  %v329 = vunpack.c.h.b16 %v52
  %v330 = vunpack.c.l.b16 %v53
  %v331 = vunpack.c.h.b16 %v53
  %v332 = vunpack.c.l.b16 %v54
  %v333 = vunpack.c.h.b16 %v54
  %v334 = vunpack.c.l.b16 %v55
  %v335 = vunpack.c.h.b16 %v55
  %v336 = vunpack.c.l.b16 %v56
  %v337 = vunpack.c.h.b16 %v56
  %v338 = vunpack.c.l.b16 %v57
  %v339 = vunpack.c.h.b16 %v57
  %v340 = vunpack.c.l.b16 %v58
  %v341 = vunpack.c.h.b16 %v58
  %v342 = vunpack.c.l.b16 %v59
  %v343 = vunpack.c.h.b16 %v59
  %v344 = vunpack.c.l.b16 %v60
  %v345 = vunpack.c.h.b16 %v60
  %v346 = vunpack.c.l.b16 %v61
  %v347 = vunpack.c.h.b16 %v61
  %v348 = vunpack.c.l.b16 %v62
  %v349 = vunpack.c.h.b16 %v62
  %v350 = vunpack.c.l.b16 %v63
  %v351 = vunpack.c.h.b16 %v63
  %v352 = vunpack.c.l.b16 %v64
  %v353 = vunpack.c.h.b16 %v64
  %v354 = vunpack.c.l.b16 %v65
  %v355 = vunpack.c.h.b16 %v65
  %v356 = vunpack.c.l.b16 %v66
  %v357 = vunpack.c.h.b16 %v66
  %v358 = vunpack.c.l.b16 %v67
  %v359 = vunpack.c.h.b16 %v67
  %v360 = vunpack.c.l.b16 %v68
  %v361 = vunpack.c.h.b16 %v68
  %v362 = vunpack.c.l.b16 %v69
  %v363 = vunpack.c.h.b16 %v69
  %v364 = vunpack.c.l.b16 %v70
  %v365 = vunpack.c.h.b16 %v70
  %v366 = vunpack.c.l.b16 %v71
  %v367 = vunpack.c.h.b16 %v71
  %v368 = vunpack.c.l.b16 %v72
  %v369 = vunpack.c.h.b16 %v72
  %v370 = vunpack.c.l.b16 %v73
  %v371 = vunpack.c.h.b16 %v73
  %v372 = vunpack.c.l.b16 %v74
  %v373 = vunpack.c.h.b16 %v74
  %v374 = vunpack.c.l.b16 %v75
  %v375 = vunpack.c.h.b16 %v75
  %v376 = vpack.c.b16 %v272, %v264
  %v377 = vpack.c.b16 %v273, %v265
  %v378 = vpack.c.b16 %v274, %v266
  %v379 = vpack.c.b16 %v275, %v267
  %v380 = vpack.c.b16 %v276, %v268
  %v381 = vpack.c.b16 %v277, %v269
  %v382 = vpack.c.b16 %v278, %v270
  %v383 = vpack.c.b16 %v279, %v271
  %v384 = vpack.c.b16 %v288, %v280
  %v385 = vpack.c.b16 %v289, %v281
  %v386 = vpack.c.b16 %v290, %v282
  %v387 = vpack.c.b16 %v291, %v283
  %v388 = vpack.c.b16 %v292, %v284
  %v389 = vpack.c.b16 %v293, %v285
  %v390 = vpack.c.b16 %v294, %v286
  %v391 = vpack.c.b16 %v295, %v287
  %v392 = vpack.c.b16 %v304, %v296
  %v393 = vpack.c.b16 %v305, %v297
  %v394 = vpack.c.b16 %v306, %v298
  %v395 = vpack.c.b16 %v307, %v299
  %v396 = vpack.c.b16 %v308, %v300
  %v397 = vpack.c.b16 %v309, %v301
  %v398 = vpack.c.b16 %v310, %v302
  %v399 = vpack.c.b16 %v311, %v303
  %v400 = vpack.c.b16 %v320, %v312
  %v401 = vpack.c.b16 %v321, %v313
  %v402 = vpack.c.b16 %v322, %v314
  %v403 = vpack.c.b16 %v323, %v315
  %v404 = vpack.c.b16 %v324, %v316
  %v405 = vpack.c.b16 %v325, %v317
  %v406 = vpack.c.b16 %v326, %v318
  %v407 = vpack.c.b16 %v327, %v319
  %v408 = vpack.c.b16 %v336, %v328
  %v409 = vpack.c.b16 %v337, %v329
  %v410 = vpack.c.b16 %v338, %v330
  %v411 = vpack.c.b16 %v339, %v331
  %v412 = vpack.c.b16 %v340, %v332
  %v413 = vpack.c.b16 %v341, %v333
  %v414 = vpack.c.b16 %v342, %v334
  %v415 = vpack.c.b16 %v343, %v335
  %v416 = vpack.c.b16 %v352, %v344
  %v417 = vpack.c.b16 %v353, %v345
  %v418 = vpack.c.b16 %v354, %v346
  %v419 = vpack.c.b16 %v355, %v347
  %v420 = vpack.c.b16 %v356, %v348
  %v421 = vpack.c.b16 %v357, %v349
  %v422 = vpack.c.b16 %v358, %v350
  %v423 = vpack.c.b16 %v359, %v351
  %v424 = vpack.c.b16 %v368, %v360
  %v425 = vpack.c.b16 %v369, %v361
  %v426 = vpack.c.b16 %v370, %v362
  %v427 = vpack.c.b16 %v371, %v363
  %v428 = vpack.c.b16 %v372, %v364
  %v429 = vpack.c.b16 %v373, %v365
  %v430 = vpack.c.b16 %v374, %v366
  %v431 = vpack.c.b16 %v375, %v367
  %v616 = vunpack.c.l.b16 %v76
  %v617 = vunpack.c.l.b16 %v77
  %v618 = vunpack.c.l.b16 %v78
  %v619 = vunpack.c.l.b16 %v79
  %v620 = vunpack.c.l.b16 %v80
  %v621 = vunpack.c.l.b16 %v81
  %v622 = vunpack.c.l.b16 %v82
  %v623 = vunpack.c.l.b16 %v83
  %v624 = vunpack.c.l.b16 %v84
  %v625 = vunpack.c.l.b16 %v85
  %v626 = vunpack.c.l.b16 %v86
  %v627 = vunpack.c.l.b16 %v87
  %v628 = vunpack.c.l.b16 %v88
  %v629 = vunpack.c.l.b16 %v89
  %v630 = vunpack.c.l.b16 %v90
  %v631 = vunpack.c.l.b16 %v91
  %v632 = vunpack.c.l.b16 %v92
  %v633 = vunpack.c.l.b16 %v93
  %v634 = vunpack.c.l.b16 %v94
  %v635 = vunpack.c.l.b16 %v95
  %v636 = vunpack.c.l.b16 %v96
  %v637 = vunpack.c.l.b16 %v97
  %v638 = vunpack.c.l.b16 %v98
  %v639 = vunpack.c.l.b16 %v99
  %v640 = vunpack.c.l.b16 %v100
  %v641 = vunpack.c.l.b16 %v101
  %v642 = vunpack.c.l.b16 %v102
  %v643 = vunpack.c.l.b16 %v103
  %v644 = vunpack.c.l.b16 %v104
  %v645 = vunpack.c.l.b16 %v105
  %v646 = vunpack.c.l.b16 %v106
  %v647 = vunpack.c.l.b16 %v107
  %v648 = vunpack.c.l.b16 %v108
  %v649 = vunpack.c.l.b16 %v109
  %v650 = vunpack.c.l.b16 %v110
  %v651 = vunpack.c.l.b16 %v111
  %v652 = vunpack.c.l.b16 %v112
  %v653 = vunpack.c.l.b16 %v113
  %v654 = vunpack.c.l.b16 %v114
  %v655 = vunpack.c.l.b16 %v115
  %v656 = vunpack.c.l.b16 %v116
  %v657 = vunpack.c.l.b16 %v117
  %v658 = vunpack.c.l.b16 %v118
  %v659 = vunpack.c.l.b16 %v119
  %v660 = vunpack.c.l.b16 %v120
  %v661 = vunpack.c.l.b16 %v121
  %v662 = vunpack.c.l.b16 %v122
  %v663 = vunpack.c.l.b16 %v123
  %v664 = vunpack.c.l.b16 %v124
  %v665 = vunpack.c.l.b16 %v125
  %v666 = vunpack.c.l.b16 %v126
  %v667 = vunpack.c.l.b16 %v127
  %v668 = vunpack.c.l.b16 %v128
  %v669 = vunpack.c.l.b16 %v129
  %v670 = vunpack.c.l.b16 %v130
  %v671 = vunpack.c.l.b16 %v131
  %v672 = vunpack.c.l.b16 %v132
  %v673 = vunpack.c.l.b16 %v133
  %v674 = vunpack.c.l.b16 %v134
  %v675 = vunpack.c.l.b16 %v135
  %v676 = vunpack.c.l.b16 %v136
  %v677 = vunpack.c.l.b16 %v137
  %v678 = vunpack.c.l.b16 %v138
  %v679 = vunpack.c.l.b16 %v139
  %v680 = vunpack.c.l.b16 %v140
  %v681 = vunpack.c.l.b16 %v141
  %v682 = vunpack.c.l.b16 %v142
  %v683 = vunpack.c.l.b16 %v143
  %v684 = vunpack.c.l.b16 %v144
  %v685 = vunpack.c.l.b16 %v145
  %v686 = vunpack.c.l.b16 %v146
  %v687 = vunpack.c.l.b16 %v147
  %v688 = vunpack.c.l.b16 %v148
  %v689 = vunpack.c.l.b16 %v149
  %v690 = vunpack.c.l.b16 %v150
  %v691 = vunpack.c.l.b16 %v151
  %v692 = vunpack.c.l.b16 %v152
  %v693 = vunpack.c.l.b16 %v153
  %v694 = vunpack.c.l.b16 %v154
  %v695 = vunpack.c.l.b16 %v155
  %v696 = vunpack.c.l.b16 %v156
  %v697 = vunpack.c.l.b16 %v157
  %v698 = vunpack.c.l.b16 %v158
  %v699 = vunpack.c.l.b16 %v159
  %v700 = vunpack.c.l.b16 %v160
  %v701 = vunpack.c.l.b16 %v161
  %v702 = vunpack.c.l.b16 %v162
  %v703 = vunpack.c.l.b16 %v163
  %v704 = vunpack.c.l.b16 %v164
  %v705 = vunpack.c.l.b16 %v165
  %v706 = vunpack.c.l.b16 %v166
  %v707 = vunpack.c.l.b16 %v167
  %v708 = vunpack.c.l.b16 %v168
  %v709 = vunpack.c.l.b16 %v169
  %v710 = vunpack.c.l.b16 %v170
  %v711 = vunpack.c.l.b16 %v171
  %v712 = vunpack.c.l.b16 %v172
  %v713 = vunpack.c.l.b16 %v173
  %v714 = vunpack.c.l.b16 %v174
  %v715 = vunpack.c.l.b16 %v175
  %v716 = vunpack.c.l.b16 %v176
  %v717 = vunpack.c.l.b16 %v177
  %v718 = vunpack.c.l.b16 %v178
  %v719 = vunpack.c.l.b16 %v179
  %v720 = vunpack.c.l.b16 %v180
  %v721 = vunpack.c.l.b16 %v181
  %v722 = vunpack.c.l.b16 %v182
  %v723 = vunpack.c.l.b16 %v183
  %v724 = vunpack.c.l.b16 %v184
  %v725 = vunpack.c.l.b16 %v185
  %v726 = vunpack.c.l.b16 %v186
  %v727 = vunpack.c.l.b16 %v187
  %v728 = vunpack.c.l.b16 %v188
  %v729 = vunpack.c.l.b16 %v189
  %v730 = vunpack.c.l.b16 %v190
  %v731 = vunpack.c.l.b16 %v191
  %v732 = vunpack.c.l.b16 %v192
  %v733 = vunpack.c.l.b16 %v193
  %v734 = vunpack.c.l.b16 %v194
  %v735 = vunpack.c.l.b16 %v195
  %v736 = vunpack.c.l.b16 %v196
  %v737 = vunpack.c.l.b16 %v197
  %v738 = vunpack.c.l.b16 %v198
  %v739 = vunpack.c.l.b16 %v199
  %v740 = vunpack.c.l.b16 %v200
  %v741 = vunpack.c.l.b16 %v201
  %v742 = vunpack.c.l.b16 %v202
  %v743 = vunpack.c.l.b16 %v203
  %v744 = vpack.c.b16 %v617, %v616
  %v745 = vpack.c.b16 %v619, %v618
  %v746 = vpack.c.b16 %v621, %v620
  %v747 = vpack.c.b16 %v623, %v622
  %v748 = vpack.c.b16 %v625, %v624
  %v749 = vpack.c.b16 %v627, %v626
  %v750 = vpack.c.b16 %v629, %v628
  %v751 = vpack.c.b16 %v631, %v630
  %v752 = vpack.c.b16 %v633, %v632
  %v753 = vpack.c.b16 %v635, %v634
  %v754 = vpack.c.b16 %v637, %v636
  %v755 = vpack.c.b16 %v639, %v638
  %v756 = vpack.c.b16 %v641, %v640
  %v757 = vpack.c.b16 %v643, %v642
  %v758 = vpack.c.b16 %v645, %v644
  %v759 = vpack.c.b16 %v647, %v646
  %v760 = vpack.c.b16 %v649, %v648
  %v761 = vpack.c.b16 %v651, %v650
  %v762 = vpack.c.b16 %v653, %v652
  %v763 = vpack.c.b16 %v655, %v654
  %v764 = vpack.c.b16 %v657, %v656
  %v765 = vpack.c.b16 %v659, %v658
  %v766 = vpack.c.b16 %v661, %v660
  %v767 = vpack.c.b16 %v663, %v662
  %v768 = vpack.c.b16 %v665, %v664
  %v769 = vpack.c.b16 %v667, %v666
  %v770 = vpack.c.b16 %v669, %v668
  %v771 = vpack.c.b16 %v671, %v670
  %v772 = vpack.c.b16 %v673, %v672
  %v773 = vpack.c.b16 %v675, %v674
  %v774 = vpack.c.b16 %v677, %v676
  %v775 = vpack.c.b16 %v679, %v678
  %v776 = vpack.c.b16 %v681, %v680
  %v777 = vpack.c.b16 %v683, %v682
  %v778 = vpack.c.b16 %v685, %v684
  %v779 = vpack.c.b16 %v687, %v686
  %v780 = vpack.c.b16 %v689, %v688
  %v781 = vpack.c.b16 %v691, %v690
  %v782 = vpack.c.b16 %v693, %v692
  %v783 = vpack.c.b16 %v695, %v694
  %v784 = vpack.c.b16 %v697, %v696
  %v785 = vpack.c.b16 %v699, %v698
  %v786 = vpack.c.b16 %v701, %v700
  %v787 = vpack.c.b16 %v703, %v702
  %v788 = vpack.c.b16 %v705, %v704
  %v789 = vpack.c.b16 %v707, %v706
  %v790 = vpack.c.b16 %v709, %v708
  %v791 = vpack.c.b16 %v711, %v710
  %v792 = vpack.c.b16 %v713, %v712
  %v793 = vpack.c.b16 %v715, %v714
  %v794 = vpack.c.b16 %v717, %v716
  %v795 = vpack.c.b16 %v719, %v718
  %v796 = vpack.c.b16 %v721, %v720
  %v797 = vpack.c.b16 %v723, %v722
  %v798 = vpack.c.b16 %v725, %v724
  %v799 = vpack.c.b16 %v727, %v726
  %v800 = vpack.c.b16 %v729, %v728
  %v801 = vpack.c.b16 %v731, %v730
  %v802 = vpack.c.b16 %v733, %v732
  %v803 = vpack.c.b16 %v735, %v734
  %v804 = vpack.c.b16 %v737, %v736
  %v805 = vpack.c.b16 %v739, %v738
  %v806 = vpack.c.b16 %v741, %v740
  %v807 = vpack.c.b16 %v743, %v742
  %872 = vmatpush.bf16.msra.mxu0 %v751
  %873 = vmatpush.bf16.msra.mxu0 %v750
  %874 = vmatpush.bf16.msra.mxu0 %v749
  %875 = vmatpush.bf16.msra.mxu0 %v748
  %876 = vmatpush.bf16.msra.mxu0 %v747
  %877 = vmatpush.bf16.msra.mxu0 %v746
  %878 = vmatpush.bf16.msra.mxu0 %v745
  %879 = vmatpush.bf16.msra.mxu0 %v744
  %880 = vmatmul.bf16.gmra.mxu0 %v376
  %v881 = vpop.f32.mrf.mxu0
  %v882 = vadd.f32 %v206, %v881
  %v883 = vpop.f32.mrf.mxu0
  %v884 = vadd.f32 %v206, %v883
  %885 = vmatmul.bf16.gmra.mxu0 %v384
  %v886 = vpop.f32.mrf.mxu0
  %v887 = vadd.f32 %v206, %v886
  %v888 = vpop.f32.mrf.mxu0
  %v889 = vadd.f32 %v206, %v888
  %890 = vmatmul.bf16.gmra.mxu0 %v392
  %v891 = vpop.f32.mrf.mxu0
  %v892 = vadd.f32 %v206, %v891
  %v893 = vpop.f32.mrf.mxu0
  %v894 = vadd.f32 %v206, %v893
  %895 = vmatmul.bf16.gmra.mxu0 %v400
  %v896 = vpop.f32.mrf.mxu0
  %v897 = vadd.f32 %v206, %v896
  %v898 = vpop.f32.mrf.mxu0
  %v899 = vadd.f32 %v206, %v898
  %900 = vmatmul.bf16.gmra.mxu0 %v408
  %v901 = vpop.f32.mrf.mxu0
  %v902 = vadd.f32 %v206, %v901
  %v903 = vpop.f32.mrf.mxu0
  %v904 = vadd.f32 %v206, %v903
  %905 = vmatmul.bf16.gmra.mxu0 %v416
  %v906 = vpop.f32.mrf.mxu0
  %v907 = vadd.f32 %v206, %v906
  %v908 = vpop.f32.mrf.mxu0
  %v909 = vadd.f32 %v206, %v908
  %910 = vmatmul.bf16.gmra.mxu0 %v424
  %v911 = vpop.f32.mrf.mxu0
  %v912 = vadd.f32 %v206, %v911
  %v913 = vpop.f32.mrf.mxu0
  %v914 = vadd.f32 %v206, %v913
  %915 = vdwg.mxu0
  %916 = vmatpush.bf16.msra.mxu0 %v759
  %917 = vmatpush.bf16.msra.mxu0 %v758
  %918 = vmatpush.bf16.msra.mxu0 %v757
  %919 = vmatpush.bf16.msra.mxu0 %v756
  %920 = vmatpush.bf16.msra.mxu0 %v755
  %921 = vmatpush.bf16.msra.mxu0 %v754
  %922 = vmatpush.bf16.msra.mxu0 %v753
  %923 = vmatpush.bf16.msra.mxu0 %v752
  %924 = vmatmul.bf16.gmra.mxu0 %v377
  %v925 = vpop.f32.mrf.mxu0
  %v926 = vadd.f32 %v882, %v925
  %v927 = vpop.f32.mrf.mxu0
  %v928 = vadd.f32 %v884, %v927
  %929 = vmatmul.bf16.gmra.mxu0 %v385
  %v930 = vpop.f32.mrf.mxu0
  %v931 = vadd.f32 %v887, %v930
  %v932 = vpop.f32.mrf.mxu0
  %v933 = vadd.f32 %v889, %v932
  %934 = vmatmul.bf16.gmra.mxu0 %v393
  %v935 = vpop.f32.mrf.mxu0
  %v936 = vadd.f32 %v892, %v935
  %v937 = vpop.f32.mrf.mxu0
  %v938 = vadd.f32 %v894, %v937
  %939 = vmatmul.bf16.gmra.mxu0 %v401
  %v940 = vpop.f32.mrf.mxu0
  %v941 = vadd.f32 %v897, %v940
  %v942 = vpop.f32.mrf.mxu0
  %v943 = vadd.f32 %v899, %v942
  %944 = vmatmul.bf16.gmra.mxu0 %v409
  %v945 = vpop.f32.mrf.mxu0
  %v946 = vadd.f32 %v902, %v945
  %v947 = vpop.f32.mrf.mxu0
  %v948 = vadd.f32 %v904, %v947
  %949 = vmatmul.bf16.gmra.mxu0 %v417
  %v950 = vpop.f32.mrf.mxu0
  %v951 = vadd.f32 %v907, %v950
  %v952 = vpop.f32.mrf.mxu0
  %v953 = vadd.f32 %v909, %v952
  %954 = vmatmul.bf16.gmra.mxu0 %v425
  %v955 = vpop.f32.mrf.mxu0
  %v956 = vadd.f32 %v912, %v955
  %v957 = vpop.f32.mrf.mxu0
  %v958 = vadd.f32 %v914, %v957
  %959 = vdwg.mxu0
  %960 = vmatpush.bf16.msra.mxu0 %v767
  %961 = vmatpush.bf16.msra.mxu0 %v766
  %962 = vmatpush.bf16.msra.mxu0 %v765
  %963 = vmatpush.bf16.msra.mxu0 %v764
  %964 = vmatpush.bf16.msra.mxu0 %v763
  %965 = vmatpush.bf16.msra.mxu0 %v762
  %966 = vmatpush.bf16.msra.mxu0 %v761
  %967 = vmatpush.bf16.msra.mxu0 %v760
  %968 = vmatmul.bf16.gmra.mxu0 %v378
  %v969 = vpop.f32.mrf.mxu0
  %v970 = vadd.f32 %v926, %v969
  %v971 = vpop.f32.mrf.mxu0
  %v972 = vadd.f32 %v928, %v971
  %973 = vmatmul.bf16.gmra.mxu0 %v386
  %v974 = vpop.f32.mrf.mxu0
  %v975 = vadd.f32 %v931, %v974
  %v976 = vpop.f32.mrf.mxu0
  %v977 = vadd.f32 %v933, %v976
  %978 = vmatmul.bf16.gmra.mxu0 %v394
  %v979 = vpop.f32.mrf.mxu0
  %v980 = vadd.f32 %v936, %v979
  %v981 = vpop.f32.mrf.mxu0
  %v982 = vadd.f32 %v938, %v981
  %983 = vmatmul.bf16.gmra.mxu0 %v402
  %v984 = vpop.f32.mrf.mxu0
  %v985 = vadd.f32 %v941, %v984
  %v986 = vpop.f32.mrf.mxu0
  %v987 = vadd.f32 %v943, %v986
  %988 = vmatmul.bf16.gmra.mxu0 %v410
  %v989 = vpop.f32.mrf.mxu0
  %v990 = vadd.f32 %v946, %v989
  %v991 = vpop.f32.mrf.mxu0
  %v992 = vadd.f32 %v948, %v991
  %993 = vmatmul.bf16.gmra.mxu0 %v418
  %v994 = vpop.f32.mrf.mxu0
  %v995 = vadd.f32 %v951, %v994
  %v996 = vpop.f32.mrf.mxu0
  %v997 = vadd.f32 %v953, %v996
  %998 = vmatmul.bf16.gmra.mxu0 %v426
  %v999 = vpop.f32.mrf.mxu0
  %v1000 = vadd.f32 %v956, %v999
  %v1001 = vpop.f32.mrf.mxu0
  %v1002 = vadd.f32 %v958, %v1001
  %1003 = vdwg.mxu0
  %1004 = vmatpush.bf16.msra.mxu0 %v775
  %1005 = vmatpush.bf16.msra.mxu0 %v774
  %1006 = vmatpush.bf16.msra.mxu0 %v773
  %1007 = vmatpush.bf16.msra.mxu0 %v772
  %1008 = vmatpush.bf16.msra.mxu0 %v771
  %1009 = vmatpush.bf16.msra.mxu0 %v770
  %1010 = vmatpush.bf16.msra.mxu0 %v769
  %1011 = vmatpush.bf16.msra.mxu0 %v768
  %1012 = vmatmul.bf16.gmra.mxu0 %v379
  %v1013 = vpop.f32.mrf.mxu0
  %v1014 = vadd.f32 %v970, %v1013
  %v1015 = vpop.f32.mrf.mxu0
  %v1016 = vadd.f32 %v972, %v1015
  %1017 = vmatmul.bf16.gmra.mxu0 %v387
  %v1018 = vpop.f32.mrf.mxu0
  %v1019 = vadd.f32 %v975, %v1018
  %v1020 = vpop.f32.mrf.mxu0
  %v1021 = vadd.f32 %v977, %v1020
  %1022 = vmatmul.bf16.gmra.mxu0 %v395
  %v1023 = vpop.f32.mrf.mxu0
  %v1024 = vadd.f32 %v980, %v1023
  %v1025 = vpop.f32.mrf.mxu0
  %v1026 = vadd.f32 %v982, %v1025
  %1027 = vmatmul.bf16.gmra.mxu0 %v403
  %v1028 = vpop.f32.mrf.mxu0
  %v1029 = vadd.f32 %v985, %v1028
  %v1030 = vpop.f32.mrf.mxu0
  %v1031 = vadd.f32 %v987, %v1030
  %1032 = vmatmul.bf16.gmra.mxu0 %v411
  %v1033 = vpop.f32.mrf.mxu0
  %v1034 = vadd.f32 %v990, %v1033
  %v1035 = vpop.f32.mrf.mxu0
  %v1036 = vadd.f32 %v992, %v1035
  %1037 = vmatmul.bf16.gmra.mxu0 %v419
  %v1038 = vpop.f32.mrf.mxu0
  %v1039 = vadd.f32 %v995, %v1038
  %v1040 = vpop.f32.mrf.mxu0
  %v1041 = vadd.f32 %v997, %v1040
  %1042 = vmatmul.bf16.gmra.mxu0 %v427
  %v1043 = vpop.f32.mrf.mxu0
  %v1044 = vadd.f32 %v1000, %v1043
  %v1045 = vpop.f32.mrf.mxu0
  %v1046 = vadd.f32 %v1002, %v1045
  %1047 = vdwg.mxu0
  %1048 = vmatpush.bf16.msra.mxu0 %v783
  %1049 = vmatpush.bf16.msra.mxu0 %v782
  %1050 = vmatpush.bf16.msra.mxu0 %v781
  %1051 = vmatpush.bf16.msra.mxu0 %v780
  %1052 = vmatpush.bf16.msra.mxu0 %v779
  %1053 = vmatpush.bf16.msra.mxu0 %v778
  %1054 = vmatpush.bf16.msra.mxu0 %v777
  %1055 = vmatpush.bf16.msra.mxu0 %v776
  %1056 = vmatmul.bf16.gmra.mxu0 %v380
  %v1057 = vpop.f32.mrf.mxu0
  %v1058 = vadd.f32 %v1014, %v1057
  %v1059 = vpop.f32.mrf.mxu0
  %v1060 = vadd.f32 %v1016, %v1059
  %1061 = vmatmul.bf16.gmra.mxu0 %v388
  %v1062 = vpop.f32.mrf.mxu0
  %v1063 = vadd.f32 %v1019, %v1062
  %v1064 = vpop.f32.mrf.mxu0
  %v1065 = vadd.f32 %v1021, %v1064
  %1066 = vmatmul.bf16.gmra.mxu0 %v396
  %v1067 = vpop.f32.mrf.mxu0
  %v1068 = vadd.f32 %v1024, %v1067
  %v1069 = vpop.f32.mrf.mxu0
  %v1070 = vadd.f32 %v1026, %v1069
  %1071 = vmatmul.bf16.gmra.mxu0 %v404
  %v1072 = vpop.f32.mrf.mxu0
  %v1073 = vadd.f32 %v1029, %v1072
  %v1074 = vpop.f32.mrf.mxu0
  %v1075 = vadd.f32 %v1031, %v1074
  %1076 = vmatmul.bf16.gmra.mxu0 %v412
  %v1077 = vpop.f32.mrf.mxu0
  %v1078 = vadd.f32 %v1034, %v1077
  %v1079 = vpop.f32.mrf.mxu0
  %v1080 = vadd.f32 %v1036, %v1079
  %1081 = vmatmul.bf16.gmra.mxu0 %v420
  %v1082 = vpop.f32.mrf.mxu0
  %v1083 = vadd.f32 %v1039, %v1082
  %v1084 = vpop.f32.mrf.mxu0
  %v1085 = vadd.f32 %v1041, %v1084
  %1086 = vmatmul.bf16.gmra.mxu0 %v428
  %v1087 = vpop.f32.mrf.mxu0
  %v1088 = vadd.f32 %v1044, %v1087
  %v1089 = vpop.f32.mrf.mxu0
  %v1090 = vadd.f32 %v1046, %v1089
  %1091 = vdwg.mxu0
  %1092 = vmatpush.bf16.msra.mxu0 %v791
  %1093 = vmatpush.bf16.msra.mxu0 %v790
  %1094 = vmatpush.bf16.msra.mxu0 %v789
  %1095 = vmatpush.bf16.msra.mxu0 %v788
  %1096 = vmatpush.bf16.msra.mxu0 %v787
  %1097 = vmatpush.bf16.msra.mxu0 %v786
  %1098 = vmatpush.bf16.msra.mxu0 %v785
  %1099 = vmatpush.bf16.msra.mxu0 %v784
  %1100 = vmatmul.bf16.gmra.mxu0 %v381
  %v1101 = vpop.f32.mrf.mxu0
  %v1102 = vadd.f32 %v1058, %v1101
  %v1103 = vpop.f32.mrf.mxu0
  %v1104 = vadd.f32 %v1060, %v1103
  %1105 = vmatmul.bf16.gmra.mxu0 %v389
  %v1106 = vpop.f32.mrf.mxu0
  %v1107 = vadd.f32 %v1063, %v1106
  %v1108 = vpop.f32.mrf.mxu0
  %v1109 = vadd.f32 %v1065, %v1108
  %1110 = vmatmul.bf16.gmra.mxu0 %v397
  %v1111 = vpop.f32.mrf.mxu0
  %v1112 = vadd.f32 %v1068, %v1111
  %v1113 = vpop.f32.mrf.mxu0
  %v1114 = vadd.f32 %v1070, %v1113
  %1115 = vmatmul.bf16.gmra.mxu0 %v405
  %v1116 = vpop.f32.mrf.mxu0
  %v1117 = vadd.f32 %v1073, %v1116
  %v1118 = vpop.f32.mrf.mxu0
  %v1119 = vadd.f32 %v1075, %v1118
  %1120 = vmatmul.bf16.gmra.mxu0 %v413
  %v1121 = vpop.f32.mrf.mxu0
  %v1122 = vadd.f32 %v1078, %v1121
  %v1123 = vpop.f32.mrf.mxu0
  %v1124 = vadd.f32 %v1080, %v1123
  %1125 = vmatmul.bf16.gmra.mxu0 %v421
  %v1126 = vpop.f32.mrf.mxu0
  %v1127 = vadd.f32 %v1083, %v1126
  %v1128 = vpop.f32.mrf.mxu0
  %v1129 = vadd.f32 %v1085, %v1128
  %1130 = vmatmul.bf16.gmra.mxu0 %v429
  %v1131 = vpop.f32.mrf.mxu0
  %v1132 = vadd.f32 %v1088, %v1131
  %v1133 = vpop.f32.mrf.mxu0
  %v1134 = vadd.f32 %v1090, %v1133
  %1135 = vdwg.mxu0
  %1136 = vmatpush.bf16.msra.mxu0 %v799
  %1137 = vmatpush.bf16.msra.mxu0 %v798
  %1138 = vmatpush.bf16.msra.mxu0 %v797
  %1139 = vmatpush.bf16.msra.mxu0 %v796
  %1140 = vmatpush.bf16.msra.mxu0 %v795
  %1141 = vmatpush.bf16.msra.mxu0 %v794
  %1142 = vmatpush.bf16.msra.mxu0 %v793
  %1143 = vmatpush.bf16.msra.mxu0 %v792
  %1144 = vmatmul.bf16.gmra.mxu0 %v382
  %v1145 = vpop.f32.mrf.mxu0
  %v1146 = vadd.f32 %v1102, %v1145
  %v1147 = vpop.f32.mrf.mxu0
  %v1148 = vadd.f32 %v1104, %v1147
  %1149 = vmatmul.bf16.gmra.mxu0 %v390
  %v1150 = vpop.f32.mrf.mxu0
  %v1151 = vadd.f32 %v1107, %v1150
  %v1152 = vpop.f32.mrf.mxu0
  %v1153 = vadd.f32 %v1109, %v1152
  %1154 = vmatmul.bf16.gmra.mxu0 %v398
  %v1155 = vpop.f32.mrf.mxu0
  %v1156 = vadd.f32 %v1112, %v1155
  %v1157 = vpop.f32.mrf.mxu0
  %v1158 = vadd.f32 %v1114, %v1157
  %1159 = vmatmul.bf16.gmra.mxu0 %v406
  %v1160 = vpop.f32.mrf.mxu0
  %v1161 = vadd.f32 %v1117, %v1160
  %v1162 = vpop.f32.mrf.mxu0
  %v1163 = vadd.f32 %v1119, %v1162
  %1164 = vmatmul.bf16.gmra.mxu0 %v414
  %v1165 = vpop.f32.mrf.mxu0
  %v1166 = vadd.f32 %v1122, %v1165
  %v1167 = vpop.f32.mrf.mxu0
  %v1168 = vadd.f32 %v1124, %v1167
  %1169 = vmatmul.bf16.gmra.mxu0 %v422
  %v1170 = vpop.f32.mrf.mxu0
  %v1171 = vadd.f32 %v1127, %v1170
  %v1172 = vpop.f32.mrf.mxu0
  %v1173 = vadd.f32 %v1129, %v1172
  %1174 = vmatmul.bf16.gmra.mxu0 %v430
  %v1175 = vpop.f32.mrf.mxu0
  %v1176 = vadd.f32 %v1132, %v1175
  %v1177 = vpop.f32.mrf.mxu0
  %v1178 = vadd.f32 %v1134, %v1177
  %1179 = vdwg.mxu0
  %1180 = vmatpush.bf16.msra.mxu0 %v807
  %1181 = vmatpush.bf16.msra.mxu0 %v806
  %1182 = vmatpush.bf16.msra.mxu0 %v805
  %1183 = vmatpush.bf16.msra.mxu0 %v804
  %1184 = vmatpush.bf16.msra.mxu0 %v803
  %1185 = vmatpush.bf16.msra.mxu0 %v802
  %1186 = vmatpush.bf16.msra.mxu0 %v801
  %1187 = vmatpush.bf16.msra.mxu0 %v800
  %1188 = vmatmul.bf16.gmra.mxu0 %v383
  %v1189 = vpop.f32.mrf.mxu0
  %v1190 = vadd.f32 %v1146, %v1189
  %v1191 = vpop.f32.mrf.mxu0
  %v1192 = vadd.f32 %v1148, %v1191
  %1193 = vmatmul.bf16.gmra.mxu0 %v391
  %v1194 = vpop.f32.mrf.mxu0
  %v1195 = vadd.f32 %v1151, %v1194
  %v1196 = vpop.f32.mrf.mxu0
  %v1197 = vadd.f32 %v1153, %v1196
  %1198 = vmatmul.bf16.gmra.mxu0 %v399
  %v1199 = vpop.f32.mrf.mxu0
  %v1200 = vadd.f32 %v1156, %v1199
  %v1201 = vpop.f32.mrf.mxu0
  %v1202 = vadd.f32 %v1158, %v1201
  %1203 = vmatmul.bf16.gmra.mxu0 %v407
  %v1204 = vpop.f32.mrf.mxu0
  %v1205 = vadd.f32 %v1161, %v1204
  %v1206 = vpop.f32.mrf.mxu0
  %v1207 = vadd.f32 %v1163, %v1206
  %1208 = vmatmul.bf16.gmra.mxu0 %v415
  %v1209 = vpop.f32.mrf.mxu0
  %v1210 = vadd.f32 %v1166, %v1209
  %v1211 = vpop.f32.mrf.mxu0
  %v1212 = vadd.f32 %v1168, %v1211
  %1213 = vmatmul.bf16.gmra.mxu0 %v423
  %v1214 = vpop.f32.mrf.mxu0
  %v1215 = vadd.f32 %v1171, %v1214
  %v1216 = vpop.f32.mrf.mxu0
  %v1217 = vadd.f32 %v1173, %v1216
  %1218 = vmatmul.bf16.gmra.mxu0 %v431
  %v1219 = vpop.f32.mrf.mxu0
  %v1220 = vadd.f32 %v1176, %v1219
  %v1221 = vpop.f32.mrf.mxu0
  %v1222 = vadd.f32 %v1178, %v1221
  %1223 = vdwg.mxu0
  %v1224 = vadd.f32 %v1190, %v1192
  %v1225 = vadd.f32 %v1224, %v1195
  %v1226 = vadd.f32 %v1225, %v1197
  %v1227 = vadd.f32 %v1226, %v1200
  %v1228 = vadd.f32 %v1227, %v1202
  %v1229 = vadd.f32 %v1228, %v1205
  %v1230 = vadd.f32 %v1229, %v1207
  %v1231 = vadd.f32 %v1230, %v1210
  %v1232 = vadd.f32 %v1231, %v1212
  %v1233 = vadd.f32 %v1232, %v1215
  %v1234 = vadd.f32 %v1233, %v1217
  %v1235 = vadd.f32 %v1234, %v1220
  %v1236 = vadd.f32 %v1235, %v1222
  %v1237 = vrot.slane %v1236, 4
  %v1238 = vadd.f32 %v1236, %v1237
  %v1239 = vrot.slane %v1238, 2
  %v1240 = vadd.f32 %v1238, %v1239
  %v1241 = vrot.slane %v1240, 1
  %v1242 = vadd.f32 %v1240, %v1241
  %v1243 = vmul.f32 %v204, 14.0
  %v1244 = vsub.f32 %v1242, %v1243
  %v1245 = vmul.f32 %v1190, %v1190
  %v1246 = vmul.f32 %v1192, %v1192
  %v1247 = vmul.f32 %v1195, %v1195
  %v1248 = vmul.f32 %v1197, %v1197
  %v1249 = vmul.f32 %v1200, %v1200
  %v1250 = vmul.f32 %v1202, %v1202
  %v1251 = vmul.f32 %v1205, %v1205
  %v1252 = vmul.f32 %v1207, %v1207
  %v1253 = vmul.f32 %v1210, %v1210
  %v1254 = vmul.f32 %v1212, %v1212
  %v1255 = vmul.f32 %v1215, %v1215
  %v1256 = vmul.f32 %v1217, %v1217
  %v1257 = vmul.f32 %v1220, %v1220
  %v1258 = vmul.f32 %v1222, %v1222
  %v1259 = vadd.f32 %v1245, %v1246
  %v1260 = vadd.f32 %v1259, %v1247
  %v1261 = vadd.f32 %v1260, %v1248
  %v1262 = vadd.f32 %v1261, %v1249
  %v1263 = vadd.f32 %v1262, %v1250
  %v1264 = vadd.f32 %v1263, %v1251
  %v1265 = vadd.f32 %v1264, %v1252
  %v1266 = vadd.f32 %v1265, %v1253
  %v1267 = vadd.f32 %v1266, %v1254
  %v1268 = vadd.f32 %v1267, %v1255
  %v1269 = vadd.f32 %v1268, %v1256
  %v1270 = vadd.f32 %v1269, %v1257
  %v1271 = vadd.f32 %v1270, %v1258
  %v1272 = vrot.slane %v1271, 4
  %v1273 = vadd.f32 %v1271, %v1272
  %v1274 = vrot.slane %v1273, 2
  %v1275 = vadd.f32 %v1273, %v1274
  %v1276 = vrot.slane %v1275, 1
  %v1277 = vadd.f32 %v1275, %v1276
  %v1278 = vmul.f32 %v204, %v204
  %v1279 = vmul.f32 %v1278, 14.0
  %v1280 = vsub.f32 %v1277, %v1279
  %v1281 = vmul.f32 %v1244, 0.010204081
  %v1282 = vmul.f32 %v1280, 0.010204081
  %v1283 = vmul.f32 %v1281, %v1281
  %v1284 = vsub.f32 %v1282, %v1283
  %v1285 = vmax.f32 %v1284, 0.0
  %v1286 = vld [vmem:[%s3] sm:$0x1]
  %v1287 = vadd.f32 %v1285, 1e-05
  %v1288 = vrsqrt.pop %v1287
  %v1289 = vmul.f32 %v1288, %v1287
  %v1290 = vmul.f32 %v1289, %v1288
  %v1291 = vmul.f32 0.5, %v1290
  %v1292 = vsub.f32 1.5, %v1291
  %v1293 = vmul.f32 %v1288, %v1292
  %vm1294 = vweird.f32 %v1287
  %vm1295 = vweird.f32 %v1288
  %vm1296 = vmor %vm1294, %vm1295
  %v1297 = vsel %vm1296, %v1288, %v1293
  %v1298 = vmul.f32 %v1286, %v1297
  %v1299 = vperm.slane %v1281, 0
  %v1300 = vsub.f32 %v1190, %v1299
  %v1301 = vsub.f32 %v1192, %v1299
  %v1302 = vsub.f32 %v1195, %v1299
  %v1303 = vsub.f32 %v1197, %v1299
  %v1304 = vsub.f32 %v1200, %v1299
  %v1305 = vsub.f32 %v1202, %v1299
  %v1306 = vsub.f32 %v1205, %v1299
  %v1307 = vsub.f32 %v1207, %v1299
  %v1308 = vsub.f32 %v1210, %v1299
  %v1309 = vsub.f32 %v1212, %v1299
  %v1310 = vsub.f32 %v1215, %v1299
  %v1311 = vsub.f32 %v1217, %v1299
  %v1312 = vsub.f32 %v1220, %v1299
  %v1313 = vsub.f32 %v1222, %v1299
  %v1315 = vperm.slane %v1298, 0
  %v1317 = vmul.f32 %v1300, %v1315
  %v1318 = vmul.f32 %v1301, %v1315
  %v1319 = vmul.f32 %v1302, %v1315
  %v1320 = vmul.f32 %v1303, %v1315
  %v1321 = vmul.f32 %v1304, %v1315
  %v1322 = vmul.f32 %v1305, %v1315
  %v1323 = vmul.f32 %v1306, %v1315
  %v1324 = vmul.f32 %v1307, %v1315
  %v1325 = vmul.f32 %v1308, %v1315
  %v1326 = vmul.f32 %v1309, %v1315
  %v1327 = vmul.f32 %v1310, %v1315
  %v1328 = vmul.f32 %v1311, %v1315
  %v1329 = vmul.f32 %v1312, %v1315
  %v1330 = vmul.f32 %v1313, %v1315
  %v1331 = vld [vmem:[%s4] sm:$0x1]
  %v1333 = vperm.slane %v1331, 0
  %v1335 = vadd.f32 %v1317, %v1333
  %v1336 = vadd.f32 %v1318, %v1333
  %v1337 = vadd.f32 %v1319, %v1333
  %v1338 = vadd.f32 %v1320, %v1333
  %v1339 = vadd.f32 %v1321, %v1333
  %v1340 = vadd.f32 %v1322, %v1333
  %v1341 = vadd.f32 %v1323, %v1333
  %v1342 = vadd.f32 %v1324, %v1333
  %v1343 = vadd.f32 %v1325, %v1333
  %v1344 = vadd.f32 %v1326, %v1333
  %v1345 = vadd.f32 %v1327, %v1333
  %v1346 = vadd.f32 %v1328, %v1333
  %v1347 = vadd.f32 %v1329, %v1333
  %v1348 = vadd.f32 %v1330, %v1333
  %1349 = vst [vmem:[%s5] sm:$0xff] %v1335
  %1350 = vst [vmem:[%s5 + $0x8] sm:$0xff] %v1336
  %1351 = vst [vmem:[%s5 + $0x10] sm:$0xff] %v1337
  %1352 = vst [vmem:[%s5 + $0x18] sm:$0xff] %v1338
  %1353 = vst [vmem:[%s5 + $0x20] sm:$0xff] %v1339
  %1354 = vst [vmem:[%s5 + $0x28] sm:$0xff] %v1340
  %1355 = vst [vmem:[%s5 + $0x30] sm:$0xff] %v1341
  %1356 = vst [vmem:[%s5 + $0x38] sm:$0xff] %v1342
  %1357 = vst [vmem:[%s5 + $0x40] sm:$0xff] %v1343
  %1358 = vst [vmem:[%s5 + $0x48] sm:$0xff] %v1344
  %1359 = vst [vmem:[%s5 + $0x50] sm:$0xff] %v1345
  %1360 = vst [vmem:[%s5 + $0x58] sm:$0xff] %v1346
  %1361 = vst [vmem:[%s5 + $0x60] sm:$0xff] %v1347
  %1362 = vst [vmem:[%s5 + $0x68] sm:$0xff] %v1348
  // Predicated region
  $region22: #{discriminator_forward.8} parent=0 // pred_check
    _
  $region23: #{discriminator_forward.8} parent=0 // pred_check_branch
    %1364 = sbr.rel (0) target = $region25
  $region24: #{discriminator_forward.8} parent=0 // pred_region
    _
  $region25: #{discriminator_forward.8} parent=0 // pred_fallthru
    _
  // Predicated region
  $region26: #{discriminator_forward.8} parent=0 // pred_check
    _
  $region27: #{discriminator_forward.8} parent=0 // pred_check_branch
    %1366 = sbr.rel (0) target = $region29
  $region28: #{discriminator_forward.8} parent=0 // pred_region
    _
  $region29: #{discriminator_forward.8} parent=0 // pred_fallthru
    _

// kernel: discriminator_forward.9
$region0: #{discriminator_forward.9}
  #allocation0 [shape = 'u32[]', space=smem, size = 0x4, offset = 0x4, fixed_abs, tag = 'smem constant byte address 0x4 - core index']
  #allocation1 [shape = 'u32[72,128]{1,0:T(1,128)}', space=vmem, size = 0x9000, scoped, tag = 'internal scratch']
  %s0 = inlined_call_operand.vmem [shape: bf16[32,2048], index: 0, kind: input, shape index: {}]
  %s1 = inlined_call_operand.vmem [shape: bf16[2048,128], index: 1, kind: input, shape index: {}]
  %s2 = inlined_call_operand.vmem [shape: f32[1,128], index: 2, kind: input, shape index: {}]
  %s3 = inlined_call_operand.vmem [shape: f32[32,128], index: 3, kind: output, shape index: {}]
  %s4 = sld [smem:[#allocation0]]
  $region22: #{discriminator_forward.9} parent=0
    _
  %s6 = ssub.s32 1, %s4
  %s7 = scalar_select 0, %s6, %s4
  // Predicated region
  $region2: #{discriminator_forward.9} parent=0 // pred_check
    _
  $region3: #{discriminator_forward.9} parent=0 // pred_check_branch
    %9 = sbr.rel (0) target = $region5
  $region4: #{discriminator_forward.9} parent=0 // pred_region
    _
  $region5: #{discriminator_forward.9} parent=0 // pred_fallthru
    _
  // Predicated region
  $region6: #{discriminator_forward.9} parent=0 // pred_check
    _
  $region7: #{discriminator_forward.9} parent=0 // pred_check_branch
    %11 = sbr.rel (0) target = $region9
  $region8: #{discriminator_forward.9} parent=0 // pred_region
    _
  $region9: #{discriminator_forward.9} parent=0 // pred_fallthru
    _
  // Predicated region
  $region10: #{discriminator_forward.9} parent=0 // pred_check
    _
  $region11: #{discriminator_forward.9} parent=0 // pred_check_branch
    %13 = sbr.rel (0) target = $region13
  $region12: #{discriminator_forward.9} parent=0 // pred_region
    _
  $region13: #{discriminator_forward.9} parent=0 // pred_fallthru
    _
  %v14 = vld [vmem:[%s0] sm:$0xff]
  %v15 = vld [vmem:[%s0 + $0x8] sm:$0xff]
  %v16 = vld [vmem:[%s0 + $0x10] sm:$0xff]
  %v17 = vld [vmem:[%s0 + $0x18] sm:$0xff]
  %v18 = vld [vmem:[%s0 + $0x20] sm:$0xff]
  %v19 = vld [vmem:[%s0 + $0x28] sm:$0xff]
  %v20 = vld [vmem:[%s0 + $0x30] sm:$0xff]
  %v21 = vld [vmem:[%s0 + $0x38] sm:$0xff]
  %v22 = vld [vmem:[%s0 + $0x40] sm:$0xff]
  %v23 = vld [vmem:[%s0 + $0x48] sm:$0xff]
  %v24 = vld [vmem:[%s0 + $0x50] sm:$0xff]
  %v25 = vld [vmem:[%s0 + $0x58] sm:$0xff]
  %v26 = vld [vmem:[%s0 + $0x60] sm:$0xff]
  %v27 = vld [vmem:[%s0 + $0x68] sm:$0xff]
  %v28 = vld [vmem:[%s0 + $0x70] sm:$0xff]
  %v29 = vld [vmem:[%s0 + $0x78] sm:$0xff]
  %v30 = vld [vmem:[%s0 + $0x80] sm:$0xff]
  %v31 = vld [vmem:[%s0 + $0x88] sm:$0xff]
  %v32 = vld [vmem:[%s0 + $0x90] sm:$0xff]
  %v33 = vld [vmem:[%s0 + $0x98] sm:$0xff]
  %v34 = vld [vmem:[%s0 + $0xa0] sm:$0xff]
  %v35 = vld [vmem:[%s0 + $0xa8] sm:$0xff]
  %v36 = vld [vmem:[%s0 + $0xb0] sm:$0xff]
  %v37 = vld [vmem:[%s0 + $0xb8] sm:$0xff]
  %v38 = vld [vmem:[%s0 + $0xc0] sm:$0xff]
  %v39 = vld [vmem:[%s0 + $0xc8] sm:$0xff]
  %v40 = vld [vmem:[%s0 + $0xd0] sm:$0xff]
  %v41 = vld [vmem:[%s0 + $0xd8] sm:$0xff]
  %v42 = vld [vmem:[%s0 + $0xe0] sm:$0xff]
  %v43 = vld [vmem:[%s0 + $0xe8] sm:$0xff]
  %v44 = vld [vmem:[%s0 + $0xf0] sm:$0xff]
  %v45 = vld [vmem:[%s0 + $0xf8] sm:$0xff]
  %v46 = vld [vmem:[%s1] sm:$0xf]
  %v47 = vld [vmem:[%s1 + $0x4] sm:$0xf]
  %v48 = vld [vmem:[%s1 + $0x8] sm:$0xf]
  %v49 = vld [vmem:[%s1 + $0xc] sm:$0xf]
  %v50 = vld [vmem:[%s1 + $0x10] sm:$0xf]
  %v51 = vld [vmem:[%s1 + $0x14] sm:$0xf]
  %v52 = vld [vmem:[%s1 + $0x18] sm:$0xf]
  %v53 = vld [vmem:[%s1 + $0x1c] sm:$0xf]
  %v54 = vld [vmem:[%s1 + $0x20] sm:$0xf]
  %v55 = vld [vmem:[%s1 + $0x24] sm:$0xf]
  %v56 = vld [vmem:[%s1 + $0x28] sm:$0xf]
  %v57 = vld [vmem:[%s1 + $0x2c] sm:$0xf]
  %v58 = vld [vmem:[%s1 + $0x30] sm:$0xf]
  %v59 = vld [vmem:[%s1 + $0x34] sm:$0xf]
  %v60 = vld [vmem:[%s1 + $0x38] sm:$0xf]
  %v61 = vld [vmem:[%s1 + $0x3c] sm:$0xf]
  %v62 = vld [vmem:[%s1 + $0x40] sm:$0xf]
  %v63 = vld [vmem:[%s1 + $0x44] sm:$0xf]
  %v64 = vld [vmem:[%s1 + $0x48] sm:$0xf]
  %v65 = vld [vmem:[%s1 + $0x4c] sm:$0xf]
  %v66 = vld [vmem:[%s1 + $0x50] sm:$0xf]
  %v67 = vld [vmem:[%s1 + $0x54] sm:$0xf]
  %v68 = vld [vmem:[%s1 + $0x58] sm:$0xf]
  %v69 = vld [vmem:[%s1 + $0x5c] sm:$0xf]
  %v70 = vld [vmem:[%s1 + $0x60] sm:$0xf]
  %v71 = vld [vmem:[%s1 + $0x64] sm:$0xf]
  %v72 = vld [vmem:[%s1 + $0x68] sm:$0xf]
  %v73 = vld [vmem:[%s1 + $0x6c] sm:$0xf]
  %v74 = vld [vmem:[%s1 + $0x70] sm:$0xf]
  %v75 = vld [vmem:[%s1 + $0x74] sm:$0xf]
  %v76 = vld [vmem:[%s1 + $0x78] sm:$0xf]
  %v77 = vld [vmem:[%s1 + $0x7c] sm:$0xf]
  %v78 = vld [vmem:[%s1 + $0x80] sm:$0xf]
  %v79 = vld [vmem:[%s1 + $0x84] sm:$0xf]
  %v80 = vld [vmem:[%s1 + $0x88] sm:$0xf]
  %v81 = vld [vmem:[%s1 + $0x8c] sm:$0xf]
  %v82 = vld [vmem:[%s1 + $0x90] sm:$0xf]
  %v83 = vld [vmem:[%s1 + $0x94] sm:$0xf]
  %v84 = vld [vmem:[%s1 + $0x98] sm:$0xf]
  %v85 = vld [vmem:[%s1 + $0x9c] sm:$0xf]
  %v86 = vld [vmem:[%s1 + $0xa0] sm:$0xf]
  %v87 = vld [vmem:[%s1 + $0xa4] sm:$0xf]
  %v88 = vld [vmem:[%s1 + $0xa8] sm:$0xf]
  %v89 = vld [vmem:[%s1 + $0xac] sm:$0xf]
  %v90 = vld [vmem:[%s1 + $0xb0] sm:$0xf]
  %v91 = vld [vmem:[%s1 + $0xb4] sm:$0xf]
  %v92 = vld [vmem:[%s1 + $0xb8] sm:$0xf]
  %v93 = vld [vmem:[%s1 + $0xbc] sm:$0xf]
  %v94 = vld [vmem:[%s1 + $0xc0] sm:$0xf]
  %v95 = vld [vmem:[%s1 + $0xc4] sm:$0xf]
  %v96 = vld [vmem:[%s1 + $0xc8] sm:$0xf]
  %v97 = vld [vmem:[%s1 + $0xcc] sm:$0xf]
  %v98 = vld [vmem:[%s1 + $0xd0] sm:$0xf]
  %v99 = vld [vmem:[%s1 + $0xd4] sm:$0xf]
  %v100 = vld [vmem:[%s1 + $0xd8] sm:$0xf]
  %v101 = vld [vmem:[%s1 + $0xdc] sm:$0xf]
  %v102 = vld [vmem:[%s1 + $0xe0] sm:$0xf]
  %v103 = vld [vmem:[%s1 + $0xe4] sm:$0xf]
  %v104 = vld [vmem:[%s1 + $0xe8] sm:$0xf]
  %v105 = vld [vmem:[%s1 + $0xec] sm:$0xf]
  %v106 = vld [vmem:[%s1 + $0xf0] sm:$0xf]
  %v107 = vld [vmem:[%s1 + $0xf4] sm:$0xf]
  %v108 = vld [vmem:[%s1 + $0xf8] sm:$0xf]
  %v109 = vld [vmem:[%s1 + $0xfc] sm:$0xf]
  %v110 = vld [vmem:[%s1 + $0x100] sm:$0xf]
  %v111 = vld [vmem:[%s1 + $0x104] sm:$0xf]
  %v112 = vld [vmem:[%s1 + $0x108] sm:$0xf]
  %v113 = vld [vmem:[%s1 + $0x10c] sm:$0xf]
  %v114 = vld [vmem:[%s1 + $0x110] sm:$0xf]
  %v115 = vld [vmem:[%s1 + $0x114] sm:$0xf]
  %v116 = vld [vmem:[%s1 + $0x118] sm:$0xf]
  %v117 = vld [vmem:[%s1 + $0x11c] sm:$0xf]
  %v118 = vld [vmem:[%s1 + $0x120] sm:$0xf]
  %v119 = vld [vmem:[%s1 + $0x124] sm:$0xf]
  %v120 = vld [vmem:[%s1 + $0x128] sm:$0xf]
  %v121 = vld [vmem:[%s1 + $0x12c] sm:$0xf]
  %v122 = vld [vmem:[%s1 + $0x130] sm:$0xf]
  %v123 = vld [vmem:[%s1 + $0x134] sm:$0xf]
  %v124 = vld [vmem:[%s1 + $0x138] sm:$0xf]
  %v125 = vld [vmem:[%s1 + $0x13c] sm:$0xf]
  %v126 = vld [vmem:[%s1 + $0x140] sm:$0xf]
  %v127 = vld [vmem:[%s1 + $0x144] sm:$0xf]
  %v128 = vld [vmem:[%s1 + $0x148] sm:$0xf]
  %v129 = vld [vmem:[%s1 + $0x14c] sm:$0xf]
  %v130 = vld [vmem:[%s1 + $0x150] sm:$0xf]
  %v131 = vld [vmem:[%s1 + $0x154] sm:$0xf]
  %v132 = vld [vmem:[%s1 + $0x158] sm:$0xf]
  %v133 = vld [vmem:[%s1 + $0x15c] sm:$0xf]
  %v134 = vld [vmem:[%s1 + $0x160] sm:$0xf]
  %v135 = vld [vmem:[%s1 + $0x164] sm:$0xf]
  %v136 = vld [vmem:[%s1 + $0x168] sm:$0xf]
  %v137 = vld [vmem:[%s1 + $0x16c] sm:$0xf]
  %v138 = vld [vmem:[%s1 + $0x170] sm:$0xf]
  %v139 = vld [vmem:[%s1 + $0x174] sm:$0xf]
  %v140 = vld [vmem:[%s1 + $0x178] sm:$0xf]
  %v141 = vld [vmem:[%s1 + $0x17c] sm:$0xf]
  %v142 = vld [vmem:[%s1 + $0x180] sm:$0xf]
  %v143 = vld [vmem:[%s1 + $0x184] sm:$0xf]
  %v144 = vld [vmem:[%s1 + $0x188] sm:$0xf]
  %v145 = vld [vmem:[%s1 + $0x18c] sm:$0xf]
  %v146 = vld [vmem:[%s1 + $0x190] sm:$0xf]
  %v147 = vld [vmem:[%s1 + $0x194] sm:$0xf]
  %v148 = vld [vmem:[%s1 + $0x198] sm:$0xf]
  %v149 = vld [vmem:[%s1 + $0x19c] sm:$0xf]
  %v150 = vld [vmem:[%s1 + $0x1a0] sm:$0xf]
  %v151 = vld [vmem:[%s1 + $0x1a4] sm:$0xf]
  %v152 = vld [vmem:[%s1 + $0x1a8] sm:$0xf]
  %v153 = vld [vmem:[%s1 + $0x1ac] sm:$0xf]
  %v154 = vld [vmem:[%s1 + $0x1b0] sm:$0xf]
  %v155 = vld [vmem:[%s1 + $0x1b4] sm:$0xf]
  %v156 = vld [vmem:[%s1 + $0x1b8] sm:$0xf]
  %v157 = vld [vmem:[%s1 + $0x1bc] sm:$0xf]
  %v158 = vld [vmem:[%s1 + $0x1c0] sm:$0xf]
  %v159 = vld [vmem:[%s1 + $0x1c4] sm:$0xf]
  %v160 = vld [vmem:[%s1 + $0x1c8] sm:$0xf]
  %v161 = vld [vmem:[%s1 + $0x1cc] sm:$0xf]
  %v162 = vld [vmem:[%s1 + $0x1d0] sm:$0xf]
  %v163 = vld [vmem:[%s1 + $0x1d4] sm:$0xf]
  %v164 = vld [vmem:[%s1 + $0x1d8] sm:$0xf]
  %v165 = vld [vmem:[%s1 + $0x1dc] sm:$0xf]
  %v166 = vld [vmem:[%s1 + $0x1e0] sm:$0xf]
  %v167 = vld [vmem:[%s1 + $0x1e4] sm:$0xf]
  %v168 = vld [vmem:[%s1 + $0x1e8] sm:$0xf]
  %v169 = vld [vmem:[%s1 + $0x1ec] sm:$0xf]
  %v170 = vld [vmem:[%s1 + $0x1f0] sm:$0xf]
  %v171 = vld [vmem:[%s1 + $0x1f4] sm:$0xf]
  %v172 = vld [vmem:[%s1 + $0x1f8] sm:$0xf]
  %v173 = vld [vmem:[%s1 + $0x1fc] sm:$0xf]
  %v174 = vld [vmem:[%s1 + $0x200] sm:$0xf]
  %v175 = vld [vmem:[%s1 + $0x204] sm:$0xf]
  %v176 = vld [vmem:[%s1 + $0x208] sm:$0xf]
  %v177 = vld [vmem:[%s1 + $0x20c] sm:$0xf]
  %v178 = vld [vmem:[%s1 + $0x210] sm:$0xf]
  %v179 = vld [vmem:[%s1 + $0x214] sm:$0xf]
  %v180 = vld [vmem:[%s1 + $0x218] sm:$0xf]
  %v181 = vld [vmem:[%s1 + $0x21c] sm:$0xf]
  %v182 = vld [vmem:[%s1 + $0x220] sm:$0xf]
  %v183 = vld [vmem:[%s1 + $0x224] sm:$0xf]
  %v184 = vld [vmem:[%s1 + $0x228] sm:$0xf]
  %v185 = vld [vmem:[%s1 + $0x22c] sm:$0xf]
  %v186 = vld [vmem:[%s1 + $0x230] sm:$0xf]
  %v187 = vld [vmem:[%s1 + $0x234] sm:$0xf]
  %v188 = vld [vmem:[%s1 + $0x238] sm:$0xf]
  %v189 = vld [vmem:[%s1 + $0x23c] sm:$0xf]
  %v190 = vld [vmem:[%s1 + $0x240] sm:$0xf]
  %v191 = vld [vmem:[%s1 + $0x244] sm:$0xf]
  %v192 = vld [vmem:[%s1 + $0x248] sm:$0xf]
  %v193 = vld [vmem:[%s1 + $0x24c] sm:$0xf]
  %v194 = vld [vmem:[%s1 + $0x250] sm:$0xf]
  %v195 = vld [vmem:[%s1 + $0x254] sm:$0xf]
  %v196 = vld [vmem:[%s1 + $0x258] sm:$0xf]
  %v197 = vld [vmem:[%s1 + $0x25c] sm:$0xf]
  %v198 = vld [vmem:[%s1 + $0x260] sm:$0xf]
  %v199 = vld [vmem:[%s1 + $0x264] sm:$0xf]
  %v200 = vld [vmem:[%s1 + $0x268] sm:$0xf]
  %v201 = vld [vmem:[%s1 + $0x26c] sm:$0xf]
  %v202 = vld [vmem:[%s1 + $0x270] sm:$0xf]
  %v203 = vld [vmem:[%s1 + $0x274] sm:$0xf]
  %v204 = vld [vmem:[%s1 + $0x278] sm:$0xf]
  %v205 = vld [vmem:[%s1 + $0x27c] sm:$0xf]
  %v206 = vld [vmem:[%s1 + $0x280] sm:$0xf]
  %v207 = vld [vmem:[%s1 + $0x284] sm:$0xf]
  %v208 = vld [vmem:[%s1 + $0x288] sm:$0xf]
  %v209 = vld [vmem:[%s1 + $0x28c] sm:$0xf]
  %v210 = vld [vmem:[%s1 + $0x290] sm:$0xf]
  %v211 = vld [vmem:[%s1 + $0x294] sm:$0xf]
  %v212 = vld [vmem:[%s1 + $0x298] sm:$0xf]
  %v213 = vld [vmem:[%s1 + $0x29c] sm:$0xf]
  %v214 = vld [vmem:[%s1 + $0x2a0] sm:$0xf]
  %v215 = vld [vmem:[%s1 + $0x2a4] sm:$0xf]
  %v216 = vld [vmem:[%s1 + $0x2a8] sm:$0xf]
  %v217 = vld [vmem:[%s1 + $0x2ac] sm:$0xf]
  %v218 = vld [vmem:[%s1 + $0x2b0] sm:$0xf]
  %v219 = vld [vmem:[%s1 + $0x2b4] sm:$0xf]
  %v220 = vld [vmem:[%s1 + $0x2b8] sm:$0xf]
  %v221 = vld [vmem:[%s1 + $0x2bc] sm:$0xf]
  %v222 = vld [vmem:[%s1 + $0x2c0] sm:$0xf]
  %v223 = vld [vmem:[%s1 + $0x2c4] sm:$0xf]
  %v224 = vld [vmem:[%s1 + $0x2c8] sm:$0xf]
  %v225 = vld [vmem:[%s1 + $0x2cc] sm:$0xf]
  %v226 = vld [vmem:[%s1 + $0x2d0] sm:$0xf]
  %v227 = vld [vmem:[%s1 + $0x2d4] sm:$0xf]
  %v228 = vld [vmem:[%s1 + $0x2d8] sm:$0xf]
  %v229 = vld [vmem:[%s1 + $0x2dc] sm:$0xf]
  %v230 = vld [vmem:[%s1 + $0x2e0] sm:$0xf]
  %v231 = vld [vmem:[%s1 + $0x2e4] sm:$0xf]
  %v232 = vld [vmem:[%s1 + $0x2e8] sm:$0xf]
  %v233 = vld [vmem:[%s1 + $0x2ec] sm:$0xf]
  %v234 = vld [vmem:[%s1 + $0x2f0] sm:$0xf]
  %v235 = vld [vmem:[%s1 + $0x2f4] sm:$0xf]
  %v236 = vld [vmem:[%s1 + $0x2f8] sm:$0xf]
  %v237 = vld [vmem:[%s1 + $0x2fc] sm:$0xf]
  %v238 = vld [vmem:[%s1 + $0x300] sm:$0xf]
  %v239 = vld [vmem:[%s1 + $0x304] sm:$0xf]
  %v240 = vld [vmem:[%s1 + $0x308] sm:$0xf]
  %v241 = vld [vmem:[%s1 + $0x30c] sm:$0xf]
  %v242 = vld [vmem:[%s1 + $0x310] sm:$0xf]
  %v243 = vld [vmem:[%s1 + $0x314] sm:$0xf]
  %v244 = vld [vmem:[%s1 + $0x318] sm:$0xf]
  %v245 = vld [vmem:[%s1 + $0x31c] sm:$0xf]
  %v246 = vld [vmem:[%s1 + $0x320] sm:$0xf]
  %v247 = vld [vmem:[%s1 + $0x324] sm:$0xf]
  %v248 = vld [vmem:[%s1 + $0x328] sm:$0xf]
  %v249 = vld [vmem:[%s1 + $0x32c] sm:$0xf]
  %v250 = vld [vmem:[%s1 + $0x330] sm:$0xf]
  %v251 = vld [vmem:[%s1 + $0x334] sm:$0xf]
  %v252 = vld [vmem:[%s1 + $0x338] sm:$0xf]
  %v253 = vld [vmem:[%s1 + $0x33c] sm:$0xf]
  %v254 = vld [vmem:[%s1 + $0x340] sm:$0xf]
  %v255 = vld [vmem:[%s1 + $0x344] sm:$0xf]
  %v256 = vld [vmem:[%s1 + $0x348] sm:$0xf]
  %v257 = vld [vmem:[%s1 + $0x34c] sm:$0xf]
  %v258 = vld [vmem:[%s1 + $0x350] sm:$0xf]
  %v259 = vld [vmem:[%s1 + $0x354] sm:$0xf]
  %v260 = vld [vmem:[%s1 + $0x358] sm:$0xf]
  %v261 = vld [vmem:[%s1 + $0x35c] sm:$0xf]
  %v262 = vld [vmem:[%s1 + $0x360] sm:$0xf]
  %v263 = vld [vmem:[%s1 + $0x364] sm:$0xf]
  %v264 = vld [vmem:[%s1 + $0x368] sm:$0xf]
  %v265 = vld [vmem:[%s1 + $0x36c] sm:$0xf]
  %v266 = vld [vmem:[%s1 + $0x370] sm:$0xf]
  %v267 = vld [vmem:[%s1 + $0x374] sm:$0xf]
  %v268 = vld [vmem:[%s1 + $0x378] sm:$0xf]
  %v269 = vld [vmem:[%s1 + $0x37c] sm:$0xf]
  %v270 = vld [vmem:[%s1 + $0x380] sm:$0xf]
  %v271 = vld [vmem:[%s1 + $0x384] sm:$0xf]
  %v272 = vld [vmem:[%s1 + $0x388] sm:$0xf]
  %v273 = vld [vmem:[%s1 + $0x38c] sm:$0xf]
  %v274 = vld [vmem:[%s1 + $0x390] sm:$0xf]
  %v275 = vld [vmem:[%s1 + $0x394] sm:$0xf]
  %v276 = vld [vmem:[%s1 + $0x398] sm:$0xf]
  %v277 = vld [vmem:[%s1 + $0x39c] sm:$0xf]
  %v278 = vld [vmem:[%s1 + $0x3a0] sm:$0xf]
  %v279 = vld [vmem:[%s1 + $0x3a4] sm:$0xf]
  %v280 = vld [vmem:[%s1 + $0x3a8] sm:$0xf]
  %v281 = vld [vmem:[%s1 + $0x3ac] sm:$0xf]
  %v282 = vld [vmem:[%s1 + $0x3b0] sm:$0xf]
  %v283 = vld [vmem:[%s1 + $0x3b4] sm:$0xf]
  %v284 = vld [vmem:[%s1 + $0x3b8] sm:$0xf]
  %v285 = vld [vmem:[%s1 + $0x3bc] sm:$0xf]
  %v286 = vld [vmem:[%s1 + $0x3c0] sm:$0xf]
  %v287 = vld [vmem:[%s1 + $0x3c4] sm:$0xf]
  %v288 = vld [vmem:[%s1 + $0x3c8] sm:$0xf]
  %v289 = vld [vmem:[%s1 + $0x3cc] sm:$0xf]
  %v290 = vld [vmem:[%s1 + $0x3d0] sm:$0xf]
  %v291 = vld [vmem:[%s1 + $0x3d4] sm:$0xf]
  %v292 = vld [vmem:[%s1 + $0x3d8] sm:$0xf]
  %v293 = vld [vmem:[%s1 + $0x3dc] sm:$0xf]
  %v294 = vld [vmem:[%s1 + $0x3e0] sm:$0xf]
  %v295 = vld [vmem:[%s1 + $0x3e4] sm:$0xf]
  %v296 = vld [vmem:[%s1 + $0x3e8] sm:$0xf]
  %v297 = vld [vmem:[%s1 + $0x3ec] sm:$0xf]
  %v298 = vld [vmem:[%s1 + $0x3f0] sm:$0xf]
  %v299 = vld [vmem:[%s1 + $0x3f4] sm:$0xf]
  %v300 = vld [vmem:[%s1 + $0x3f8] sm:$0xf]
  %v301 = vld [vmem:[%s1 + $0x3fc] sm:$0xf]
  %v302 = vld [vmem:[%s2] sm:$0x1]
  %v304 = vperm.slane %v302, 0
  %v338 = vunpack.c.l.b16 %v14
  %v339 = vunpack.c.h.b16 %v14
  %v340 = vunpack.c.l.b16 %v15
  %v341 = vunpack.c.h.b16 %v15
  %v342 = vunpack.c.l.b16 %v16
  %v343 = vunpack.c.h.b16 %v16
  %v344 = vunpack.c.l.b16 %v17
  %v345 = vunpack.c.h.b16 %v17
  %v346 = vunpack.c.l.b16 %v18
  %v347 = vunpack.c.h.b16 %v18
  %v348 = vunpack.c.l.b16 %v19
  %v349 = vunpack.c.h.b16 %v19
  %v350 = vunpack.c.l.b16 %v20
  %v351 = vunpack.c.h.b16 %v20
  %v352 = vunpack.c.l.b16 %v21
  %v353 = vunpack.c.h.b16 %v21
  %v354 = vunpack.c.l.b16 %v22
  %v355 = vunpack.c.h.b16 %v22
  %v356 = vunpack.c.l.b16 %v23
  %v357 = vunpack.c.h.b16 %v23
  %v358 = vunpack.c.l.b16 %v24
  %v359 = vunpack.c.h.b16 %v24
  %v360 = vunpack.c.l.b16 %v25
  %v361 = vunpack.c.h.b16 %v25
  %v362 = vunpack.c.l.b16 %v26
  %v363 = vunpack.c.h.b16 %v26
  %v364 = vunpack.c.l.b16 %v27
  %v365 = vunpack.c.h.b16 %v27
  %v366 = vunpack.c.l.b16 %v28
  %v367 = vunpack.c.h.b16 %v28
  %v368 = vunpack.c.l.b16 %v29
  %v369 = vunpack.c.h.b16 %v29
  %v370 = vunpack.c.l.b16 %v30
  %v371 = vunpack.c.h.b16 %v30
  %v372 = vunpack.c.l.b16 %v31
  %v373 = vunpack.c.h.b16 %v31
  %v374 = vunpack.c.l.b16 %v32
  %v375 = vunpack.c.h.b16 %v32
  %v376 = vunpack.c.l.b16 %v33
  %v377 = vunpack.c.h.b16 %v33
  %v378 = vunpack.c.l.b16 %v34
  %v379 = vunpack.c.h.b16 %v34
  %v380 = vunpack.c.l.b16 %v35
  %v381 = vunpack.c.h.b16 %v35
  %v382 = vunpack.c.l.b16 %v36
  %v383 = vunpack.c.h.b16 %v36
  %v384 = vunpack.c.l.b16 %v37
  %v385 = vunpack.c.h.b16 %v37
  %v386 = vunpack.c.l.b16 %v38
  %v387 = vunpack.c.h.b16 %v38
  %v388 = vunpack.c.l.b16 %v39
  %v389 = vunpack.c.h.b16 %v39
  %v390 = vunpack.c.l.b16 %v40
  %v391 = vunpack.c.h.b16 %v40
  %v392 = vunpack.c.l.b16 %v41
  %v393 = vunpack.c.h.b16 %v41
  %v394 = vunpack.c.l.b16 %v42
  %v395 = vunpack.c.h.b16 %v42
  %v396 = vunpack.c.l.b16 %v43
  %v397 = vunpack.c.h.b16 %v43
  %v398 = vunpack.c.l.b16 %v44
  %v399 = vunpack.c.h.b16 %v44
  %v400 = vunpack.c.l.b16 %v45
  %v401 = vunpack.c.h.b16 %v45
  %v402 = vpack.c.b16 %v354, %v338
  %v403 = vpack.c.b16 %v355, %v339
  %v404 = vpack.c.b16 %v356, %v340
  %v405 = vpack.c.b16 %v357, %v341
  %v406 = vpack.c.b16 %v358, %v342
  %v407 = vpack.c.b16 %v359, %v343
  %v408 = vpack.c.b16 %v360, %v344
  %v409 = vpack.c.b16 %v361, %v345
  %v410 = vpack.c.b16 %v362, %v346
  %v411 = vpack.c.b16 %v363, %v347
  %v412 = vpack.c.b16 %v364, %v348
  %v413 = vpack.c.b16 %v365, %v349
  %v414 = vpack.c.b16 %v366, %v350
  %v415 = vpack.c.b16 %v367, %v351
  %v416 = vpack.c.b16 %v368, %v352
  %v417 = vpack.c.b16 %v369, %v353
  %v418 = vpack.c.b16 %v386, %v370
  %v419 = vpack.c.b16 %v387, %v371
  %v420 = vpack.c.b16 %v388, %v372
  %v421 = vpack.c.b16 %v389, %v373
  %v422 = vpack.c.b16 %v390, %v374
  %v423 = vpack.c.b16 %v391, %v375
  %v424 = vpack.c.b16 %v392, %v376
  %v425 = vpack.c.b16 %v393, %v377
  %v426 = vpack.c.b16 %v394, %v378
  %v427 = vpack.c.b16 %v395, %v379
  %v428 = vpack.c.b16 %v396, %v380
  %v429 = vpack.c.b16 %v397, %v381
  %v430 = vpack.c.b16 %v398, %v382
  %v431 = vpack.c.b16 %v399, %v383
  %v432 = vpack.c.b16 %v400, %v384
  %v433 = vpack.c.b16 %v401, %v385
  %v722 = vunpack.c.l.b16 %v46
  %v723 = vunpack.c.l.b16 %v47
  %v724 = vunpack.c.l.b16 %v48
  %v725 = vunpack.c.l.b16 %v49
  %v726 = vunpack.c.l.b16 %v50
  %v727 = vunpack.c.l.b16 %v51
  %v728 = vunpack.c.l.b16 %v52
  %v729 = vunpack.c.l.b16 %v53
  %v730 = vunpack.c.l.b16 %v54
  %v731 = vunpack.c.l.b16 %v55
  %v732 = vunpack.c.l.b16 %v56
  %v733 = vunpack.c.l.b16 %v57
  %v734 = vunpack.c.l.b16 %v58
  %v735 = vunpack.c.l.b16 %v59
  %v736 = vunpack.c.l.b16 %v60
  %v737 = vunpack.c.l.b16 %v61
  %v738 = vunpack.c.l.b16 %v62
  %v739 = vunpack.c.l.b16 %v63
  %v740 = vunpack.c.l.b16 %v64
  %v741 = vunpack.c.l.b16 %v65
  %v742 = vunpack.c.l.b16 %v66
  %v743 = vunpack.c.l.b16 %v67
  %v744 = vunpack.c.l.b16 %v68
  %v745 = vunpack.c.l.b16 %v69
  %v746 = vunpack.c.l.b16 %v70
  %v747 = vunpack.c.l.b16 %v71
  %v748 = vunpack.c.l.b16 %v72
  %v749 = vunpack.c.l.b16 %v73
  %v750 = vunpack.c.l.b16 %v74
  %v751 = vunpack.c.l.b16 %v75
  %v752 = vunpack.c.l.b16 %v76
  %v753 = vunpack.c.l.b16 %v77
  %v754 = vunpack.c.l.b16 %v78
  %v755 = vunpack.c.l.b16 %v79
  %v756 = vunpack.c.l.b16 %v80
  %v757 = vunpack.c.l.b16 %v81
  %v758 = vunpack.c.l.b16 %v82
  %v759 = vunpack.c.l.b16 %v83
  %v760 = vunpack.c.l.b16 %v84
  %v761 = vunpack.c.l.b16 %v85
  %v762 = vunpack.c.l.b16 %v86
  %v763 = vunpack.c.l.b16 %v87
  %v764 = vunpack.c.l.b16 %v88
  %v765 = vunpack.c.l.b16 %v89
  %v766 = vunpack.c.l.b16 %v90
  %v767 = vunpack.c.l.b16 %v91
  %v768 = vunpack.c.l.b16 %v92
  %v769 = vunpack.c.l.b16 %v93
  %v770 = vunpack.c.l.b16 %v94
  %v771 = vunpack.c.l.b16 %v95
  %v772 = vunpack.c.l.b16 %v96
  %v773 = vunpack.c.l.b16 %v97
  %v774 = vunpack.c.l.b16 %v98
  %v775 = vunpack.c.l.b16 %v99
  %v776 = vunpack.c.l.b16 %v100
  %v777 = vunpack.c.l.b16 %v101
  %v778 = vunpack.c.l.b16 %v102
  %v779 = vunpack.c.l.b16 %v103
  %v780 = vunpack.c.l.b16 %v104
  %v781 = vunpack.c.l.b16 %v105
  %v782 = vunpack.c.l.b16 %v106
  %v783 = vunpack.c.l.b16 %v107
  %v784 = vunpack.c.l.b16 %v108
  %v785 = vunpack.c.l.b16 %v109
  %v786 = vunpack.c.l.b16 %v110
  %v787 = vunpack.c.l.b16 %v111
  %v788 = vunpack.c.l.b16 %v112
  %v789 = vunpack.c.l.b16 %v113
  %v790 = vunpack.c.l.b16 %v114
  %v791 = vunpack.c.l.b16 %v115
  %v792 = vunpack.c.l.b16 %v116
  %v793 = vunpack.c.l.b16 %v117
  %v794 = vunpack.c.l.b16 %v118
  %v795 = vunpack.c.l.b16 %v119
  %v796 = vunpack.c.l.b16 %v120
  %v797 = vunpack.c.l.b16 %v121
  %v798 = vunpack.c.l.b16 %v122
  %v799 = vunpack.c.l.b16 %v123
  %v800 = vunpack.c.l.b16 %v124
  %v801 = vunpack.c.l.b16 %v125
  %v802 = vunpack.c.l.b16 %v126
  %v803 = vunpack.c.l.b16 %v127
  %v804 = vunpack.c.l.b16 %v128
  %v805 = vunpack.c.l.b16 %v129
  %v806 = vunpack.c.l.b16 %v130
  %v807 = vunpack.c.l.b16 %v131
  %v808 = vunpack.c.l.b16 %v132
  %v809 = vunpack.c.l.b16 %v133
  %v810 = vunpack.c.l.b16 %v134
  %v811 = vunpack.c.l.b16 %v135
  %v812 = vunpack.c.l.b16 %v136
  %v813 = vunpack.c.l.b16 %v137
  %v814 = vunpack.c.l.b16 %v138
  %v815 = vunpack.c.l.b16 %v139
  %v816 = vunpack.c.l.b16 %v140
  %v817 = vunpack.c.l.b16 %v141
  %v818 = vunpack.c.l.b16 %v142
  %v819 = vunpack.c.l.b16 %v143
  %v820 = vunpack.c.l.b16 %v144
  %v821 = vunpack.c.l.b16 %v145
  %v822 = vunpack.c.l.b16 %v146
  %v823 = vunpack.c.l.b16 %v147
  %v824 = vunpack.c.l.b16 %v148
  %v825 = vunpack.c.l.b16 %v149
  %v826 = vunpack.c.l.b16 %v150
  %v827 = vunpack.c.l.b16 %v151
  %v828 = vunpack.c.l.b16 %v152
  %v829 = vunpack.c.l.b16 %v153
  %v830 = vunpack.c.l.b16 %v154
  %v831 = vunpack.c.l.b16 %v155
  %v832 = vunpack.c.l.b16 %v156
  %v833 = vunpack.c.l.b16 %v157
  %v834 = vunpack.c.l.b16 %v158
  %v835 = vunpack.c.l.b16 %v159
  %v836 = vunpack.c.l.b16 %v160
  %v837 = vunpack.c.l.b16 %v161
  %v838 = vunpack.c.l.b16 %v162
  %v839 = vunpack.c.l.b16 %v163
  %v840 = vunpack.c.l.b16 %v164
  %v841 = vunpack.c.l.b16 %v165
  %v842 = vunpack.c.l.b16 %v166
  %v843 = vunpack.c.l.b16 %v167
  %v844 = vunpack.c.l.b16 %v168
  %v845 = vunpack.c.l.b16 %v169
  %v846 = vunpack.c.l.b16 %v170
  %v847 = vunpack.c.l.b16 %v171
  %v848 = vunpack.c.l.b16 %v172
  %v849 = vunpack.c.l.b16 %v173
  %v850 = vunpack.c.l.b16 %v174
  %v851 = vunpack.c.l.b16 %v175
  %v852 = vunpack.c.l.b16 %v176
  %v853 = vunpack.c.l.b16 %v177
  %v854 = vunpack.c.l.b16 %v178
  %v855 = vunpack.c.l.b16 %v179
  %v856 = vunpack.c.l.b16 %v180
  %v857 = vunpack.c.l.b16 %v181
  %v858 = vunpack.c.l.b16 %v182
  %v859 = vunpack.c.l.b16 %v183
  %v860 = vunpack.c.l.b16 %v184
  %v861 = vunpack.c.l.b16 %v185
  %v862 = vunpack.c.l.b16 %v186
  %v863 = vunpack.c.l.b16 %v187
  %v864 = vunpack.c.l.b16 %v188
  %v865 = vunpack.c.l.b16 %v189
  %v866 = vunpack.c.l.b16 %v190
  %v867 = vunpack.c.l.b16 %v191
  %v868 = vunpack.c.l.b16 %v192
  %v869 = vunpack.c.l.b16 %v193
  %v870 = vunpack.c.l.b16 %v194
  %v871 = vunpack.c.l.b16 %v195
  %v872 = vunpack.c.l.b16 %v196
  %v873 = vunpack.c.l.b16 %v197
  %v874 = vunpack.c.l.b16 %v198
  %v875 = vunpack.c.l.b16 %v199
  %v876 = vunpack.c.l.b16 %v200
  %v877 = vunpack.c.l.b16 %v201
  %v878 = vunpack.c.l.b16 %v202
  %v879 = vunpack.c.l.b16 %v203
  %v880 = vunpack.c.l.b16 %v204
  %v881 = vunpack.c.l.b16 %v205
  %v882 = vunpack.c.l.b16 %v206
  %v883 = vunpack.c.l.b16 %v207
  %v884 = vunpack.c.l.b16 %v208
  %v885 = vunpack.c.l.b16 %v209
  %v886 = vunpack.c.l.b16 %v210
  %v887 = vunpack.c.l.b16 %v211
  %v888 = vunpack.c.l.b16 %v212
  %v889 = vunpack.c.l.b16 %v213
  %v890 = vunpack.c.l.b16 %v214
  %v891 = vunpack.c.l.b16 %v215
  %v892 = vunpack.c.l.b16 %v216
  %v893 = vunpack.c.l.b16 %v217
  %v894 = vunpack.c.l.b16 %v218
  %v895 = vunpack.c.l.b16 %v219
  %v896 = vunpack.c.l.b16 %v220
  %v897 = vunpack.c.l.b16 %v221
  %v898 = vunpack.c.l.b16 %v222
  %v899 = vunpack.c.l.b16 %v223
  %v900 = vunpack.c.l.b16 %v224
  %v901 = vunpack.c.l.b16 %v225
  %v902 = vunpack.c.l.b16 %v226
  %v903 = vunpack.c.l.b16 %v227
  %v904 = vunpack.c.l.b16 %v228
  %v905 = vunpack.c.l.b16 %v229
  %v906 = vunpack.c.l.b16 %v230
  %v907 = vunpack.c.l.b16 %v231
  %v908 = vunpack.c.l.b16 %v232
  %v909 = vunpack.c.l.b16 %v233
  %v910 = vunpack.c.l.b16 %v234
  %v911 = vunpack.c.l.b16 %v235
  %v912 = vunpack.c.l.b16 %v236
  %v913 = vunpack.c.l.b16 %v237
  %v914 = vunpack.c.l.b16 %v238
  %v915 = vunpack.c.l.b16 %v239
  %v916 = vunpack.c.l.b16 %v240
  %v917 = vunpack.c.l.b16 %v241
  %v918 = vunpack.c.l.b16 %v242
  %v919 = vunpack.c.l.b16 %v243
  %v920 = vunpack.c.l.b16 %v244
  %v921 = vunpack.c.l.b16 %v245
  %v922 = vunpack.c.l.b16 %v246
  %v923 = vunpack.c.l.b16 %v247
  %v924 = vunpack.c.l.b16 %v248
  %v925 = vunpack.c.l.b16 %v249
  %v926 = vunpack.c.l.b16 %v250
  %v927 = vunpack.c.l.b16 %v251
  %v928 = vunpack.c.l.b16 %v252
  %v929 = vunpack.c.l.b16 %v253
  %v930 = vunpack.c.l.b16 %v254
  %v931 = vunpack.c.l.b16 %v255
  %v932 = vunpack.c.l.b16 %v256
  %v933 = vunpack.c.l.b16 %v257
  %v934 = vunpack.c.l.b16 %v258
  %v935 = vunpack.c.l.b16 %v259
  %v936 = vunpack.c.l.b16 %v260
  %v937 = vunpack.c.l.b16 %v261
  %v938 = vunpack.c.l.b16 %v262
  %v939 = vunpack.c.l.b16 %v263
  %v940 = vunpack.c.l.b16 %v264
  %v941 = vunpack.c.l.b16 %v265
  %v942 = vunpack.c.l.b16 %v266
  %v943 = vunpack.c.l.b16 %v267
  %v944 = vunpack.c.l.b16 %v268
  %v945 = vunpack.c.l.b16 %v269
  %v946 = vunpack.c.l.b16 %v270
  %v947 = vunpack.c.l.b16 %v271
  %v948 = vunpack.c.l.b16 %v272
  %v949 = vunpack.c.l.b16 %v273
  %v950 = vunpack.c.l.b16 %v274
  %v951 = vunpack.c.l.b16 %v275
  %v952 = vunpack.c.l.b16 %v276
  %v953 = vunpack.c.l.b16 %v277
  %v954 = vunpack.c.l.b16 %v278
  %v955 = vunpack.c.l.b16 %v279
  %v956 = vunpack.c.l.b16 %v280
  %v957 = vunpack.c.l.b16 %v281
  %v958 = vunpack.c.l.b16 %v282
  %v959 = vunpack.c.l.b16 %v283
  %v960 = vunpack.c.l.b16 %v284
  %v961 = vunpack.c.l.b16 %v285
  %v962 = vunpack.c.l.b16 %v286
  %v963 = vunpack.c.l.b16 %v287
  %v964 = vunpack.c.l.b16 %v288
  %v965 = vunpack.c.l.b16 %v289
  %v966 = vunpack.c.l.b16 %v290
  %v967 = vunpack.c.l.b16 %v291
  %v968 = vunpack.c.l.b16 %v292
  %v969 = vunpack.c.l.b16 %v293
  %v970 = vunpack.c.l.b16 %v294
  %v971 = vunpack.c.l.b16 %v295
  %v972 = vunpack.c.l.b16 %v296
  %v973 = vunpack.c.l.b16 %v297
  %v974 = vunpack.c.l.b16 %v298
  %v975 = vunpack.c.l.b16 %v299
  %v976 = vunpack.c.l.b16 %v300
  %v977 = vunpack.c.l.b16 %v301
  %v978 = vpack.c.b16 %v723, %v722
  %v979 = vpack.c.b16 %v725, %v724
  %v980 = vpack.c.b16 %v727, %v726
  %v981 = vpack.c.b16 %v729, %v728
  %v982 = vpack.c.b16 %v731, %v730
  %v983 = vpack.c.b16 %v733, %v732
  %v984 = vpack.c.b16 %v735, %v734
  %v985 = vpack.c.b16 %v737, %v736
  %v986 = vpack.c.b16 %v739, %v738
  %v987 = vpack.c.b16 %v741, %v740
  %v988 = vpack.c.b16 %v743, %v742
  %v989 = vpack.c.b16 %v745, %v744
  %v990 = vpack.c.b16 %v747, %v746
  %v991 = vpack.c.b16 %v749, %v748
  %v992 = vpack.c.b16 %v751, %v750
  %v993 = vpack.c.b16 %v753, %v752
  %v994 = vpack.c.b16 %v755, %v754
  %v995 = vpack.c.b16 %v757, %v756
  %v996 = vpack.c.b16 %v759, %v758
  %v997 = vpack.c.b16 %v761, %v760
  %v998 = vpack.c.b16 %v763, %v762
  %v999 = vpack.c.b16 %v765, %v764
  %v1000 = vpack.c.b16 %v767, %v766
  %v1001 = vpack.c.b16 %v769, %v768
  %v1002 = vpack.c.b16 %v771, %v770
  %v1003 = vpack.c.b16 %v773, %v772
  %v1004 = vpack.c.b16 %v775, %v774
  %v1005 = vpack.c.b16 %v777, %v776
  %v1006 = vpack.c.b16 %v779, %v778
  %v1007 = vpack.c.b16 %v781, %v780
  %v1008 = vpack.c.b16 %v783, %v782
  %v1009 = vpack.c.b16 %v785, %v784
  %v1010 = vpack.c.b16 %v787, %v786
  %v1011 = vpack.c.b16 %v789, %v788
  %v1012 = vpack.c.b16 %v791, %v790
  %v1013 = vpack.c.b16 %v793, %v792
  %v1014 = vpack.c.b16 %v795, %v794
  %v1015 = vpack.c.b16 %v797, %v796
  %v1016 = vpack.c.b16 %v799, %v798
  %v1017 = vpack.c.b16 %v801, %v800
  %v1018 = vpack.c.b16 %v803, %v802
  %v1019 = vpack.c.b16 %v805, %v804
  %v1020 = vpack.c.b16 %v807, %v806
  %v1021 = vpack.c.b16 %v809, %v808
  %v1022 = vpack.c.b16 %v811, %v810
  %v1023 = vpack.c.b16 %v813, %v812
  %v1024 = vpack.c.b16 %v815, %v814
  %v1025 = vpack.c.b16 %v817, %v816
  %v1026 = vpack.c.b16 %v819, %v818
  %v1027 = vpack.c.b16 %v821, %v820
  %v1028 = vpack.c.b16 %v823, %v822
  %v1029 = vpack.c.b16 %v825, %v824
  %v1030 = vpack.c.b16 %v827, %v826
  %v1031 = vpack.c.b16 %v829, %v828
  %v1032 = vpack.c.b16 %v831, %v830
  %v1033 = vpack.c.b16 %v833, %v832
  %v1034 = vpack.c.b16 %v835, %v834
  %v1035 = vpack.c.b16 %v837, %v836
  %v1036 = vpack.c.b16 %v839, %v838
  %v1037 = vpack.c.b16 %v841, %v840
  %v1038 = vpack.c.b16 %v843, %v842
  %v1039 = vpack.c.b16 %v845, %v844
  %v1040 = vpack.c.b16 %v847, %v846
  %v1041 = vpack.c.b16 %v849, %v848
  %v1042 = vpack.c.b16 %v851, %v850
  %v1043 = vpack.c.b16 %v853, %v852
  %v1044 = vpack.c.b16 %v855, %v854
  %v1045 = vpack.c.b16 %v857, %v856
  %v1046 = vpack.c.b16 %v859, %v858
  %v1047 = vpack.c.b16 %v861, %v860
  %v1048 = vpack.c.b16 %v863, %v862
  %v1049 = vpack.c.b16 %v865, %v864
  %v1050 = vpack.c.b16 %v867, %v866
  %v1051 = vpack.c.b16 %v869, %v868
  %v1052 = vpack.c.b16 %v871, %v870
  %v1053 = vpack.c.b16 %v873, %v872
  %v1054 = vpack.c.b16 %v875, %v874
  %v1055 = vpack.c.b16 %v877, %v876
  %v1056 = vpack.c.b16 %v879, %v878
  %v1057 = vpack.c.b16 %v881, %v880
  %v1058 = vpack.c.b16 %v883, %v882
  %v1059 = vpack.c.b16 %v885, %v884
  %v1060 = vpack.c.b16 %v887, %v886
  %v1061 = vpack.c.b16 %v889, %v888
  %v1062 = vpack.c.b16 %v891, %v890
  %v1063 = vpack.c.b16 %v893, %v892
  %v1064 = vpack.c.b16 %v895, %v894
  %v1065 = vpack.c.b16 %v897, %v896
  %v1066 = vpack.c.b16 %v899, %v898
  %v1067 = vpack.c.b16 %v901, %v900
  %v1068 = vpack.c.b16 %v903, %v902
  %v1069 = vpack.c.b16 %v905, %v904
  %v1070 = vpack.c.b16 %v907, %v906
  %v1071 = vpack.c.b16 %v909, %v908
  %v1072 = vpack.c.b16 %v911, %v910
  %v1073 = vpack.c.b16 %v913, %v912
  %v1074 = vpack.c.b16 %v915, %v914
  %v1075 = vpack.c.b16 %v917, %v916
  %v1076 = vpack.c.b16 %v919, %v918
  %v1077 = vpack.c.b16 %v921, %v920
  %v1078 = vpack.c.b16 %v923, %v922
  %v1079 = vpack.c.b16 %v925, %v924
  %v1080 = vpack.c.b16 %v927, %v926
  %v1081 = vpack.c.b16 %v929, %v928
  %v1082 = vpack.c.b16 %v931, %v930
  %v1083 = vpack.c.b16 %v933, %v932
  %v1084 = vpack.c.b16 %v935, %v934
  %v1085 = vpack.c.b16 %v937, %v936
  %v1086 = vpack.c.b16 %v939, %v938
  %v1087 = vpack.c.b16 %v941, %v940
  %v1088 = vpack.c.b16 %v943, %v942
  %v1089 = vpack.c.b16 %v945, %v944
  %v1090 = vpack.c.b16 %v947, %v946
  %v1091 = vpack.c.b16 %v949, %v948
  %v1092 = vpack.c.b16 %v951, %v950
  %v1093 = vpack.c.b16 %v953, %v952
  %v1094 = vpack.c.b16 %v955, %v954
  %v1095 = vpack.c.b16 %v957, %v956
  %v1096 = vpack.c.b16 %v959, %v958
  %v1097 = vpack.c.b16 %v961, %v960
  %v1098 = vpack.c.b16 %v963, %v962
  %v1099 = vpack.c.b16 %v965, %v964
  %v1100 = vpack.c.b16 %v967, %v966
  %v1101 = vpack.c.b16 %v969, %v968
  %v1102 = vpack.c.b16 %v971, %v970
  %v1103 = vpack.c.b16 %v973, %v972
  %v1104 = vpack.c.b16 %v975, %v974
  %v1105 = vpack.c.b16 %v977, %v976
  %1234 = vmatpush.bf16.msra.mxu0 %v985
  %1235 = vmatpush.bf16.msra.mxu0 %v984
  %1236 = vmatpush.bf16.msra.mxu0 %v983
  %1237 = vmatpush.bf16.msra.mxu0 %v982
  %1238 = vmatpush.bf16.msra.mxu0 %v981
  %1239 = vmatpush.bf16.msra.mxu0 %v980
  %1240 = vmatpush.bf16.msra.mxu0 %v979
  %1241 = vmatpush.bf16.msra.mxu0 %v978
  %1242 = vmatmul.bf16.gmra.mxu0 %v402
  %v1243 = vpop.f32.mrf.mxu0
  %v1244 = vadd.f32 %v304, %v1243
  %v1245 = vpop.f32.mrf.mxu0
  %v1246 = vadd.f32 %v304, %v1245
  %1247 = vmatmul.bf16.gmra.mxu0 %v418
  %v1248 = vpop.f32.mrf.mxu0
  %v1249 = vadd.f32 %v304, %v1248
  %v1250 = vpop.f32.mrf.mxu0
  %v1251 = vadd.f32 %v304, %v1250
  %1252 = vdwg.mxu0
  %1253 = vmatpush.bf16.msra.mxu0 %v993
  %1254 = vmatpush.bf16.msra.mxu0 %v992
  %1255 = vmatpush.bf16.msra.mxu0 %v991
  %1256 = vmatpush.bf16.msra.mxu0 %v990
  %1257 = vmatpush.bf16.msra.mxu0 %v989
  %1258 = vmatpush.bf16.msra.mxu0 %v988
  %1259 = vmatpush.bf16.msra.mxu0 %v987
  %1260 = vmatpush.bf16.msra.mxu0 %v986
  %1261 = vmatmul.bf16.gmra.mxu0 %v403
  %v1262 = vpop.f32.mrf.mxu0
  %v1263 = vadd.f32 %v1244, %v1262
  %v1264 = vpop.f32.mrf.mxu0
  %v1265 = vadd.f32 %v1246, %v1264
  %1266 = vmatmul.bf16.gmra.mxu0 %v419
  %v1267 = vpop.f32.mrf.mxu0
  %v1268 = vadd.f32 %v1249, %v1267
  %v1269 = vpop.f32.mrf.mxu0
  %v1270 = vadd.f32 %v1251, %v1269
  %1271 = vdwg.mxu0
  %1272 = vmatpush.bf16.msra.mxu0 %v1001
  %1273 = vmatpush.bf16.msra.mxu0 %v1000
  %1274 = vmatpush.bf16.msra.mxu0 %v999
  %1275 = vmatpush.bf16.msra.mxu0 %v998
  %1276 = vmatpush.bf16.msra.mxu0 %v997
  %1277 = vmatpush.bf16.msra.mxu0 %v996
  %1278 = vmatpush.bf16.msra.mxu0 %v995
  %1279 = vmatpush.bf16.msra.mxu0 %v994
  %1280 = vmatmul.bf16.gmra.mxu0 %v404
  %v1281 = vpop.f32.mrf.mxu0
  %v1282 = vadd.f32 %v1263, %v1281
  %v1283 = vpop.f32.mrf.mxu0
  %v1284 = vadd.f32 %v1265, %v1283
  %1285 = vmatmul.bf16.gmra.mxu0 %v420
  %v1286 = vpop.f32.mrf.mxu0
  %v1287 = vadd.f32 %v1268, %v1286
  %v1288 = vpop.f32.mrf.mxu0
  %v1289 = vadd.f32 %v1270, %v1288
  %1290 = vdwg.mxu0
  %1291 = vmatpush.bf16.msra.mxu0 %v1009
  %1292 = vmatpush.bf16.msra.mxu0 %v1008
  %1293 = vmatpush.bf16.msra.mxu0 %v1007
  %1294 = vmatpush.bf16.msra.mxu0 %v1006
  %1295 = vmatpush.bf16.msra.mxu0 %v1005
  %1296 = vmatpush.bf16.msra.mxu0 %v1004
  %1297 = vmatpush.bf16.msra.mxu0 %v1003
  %1298 = vmatpush.bf16.msra.mxu0 %v1002
  %1299 = vmatmul.bf16.gmra.mxu0 %v405
  %v1300 = vpop.f32.mrf.mxu0
  %v1301 = vadd.f32 %v1282, %v1300
  %v1302 = vpop.f32.mrf.mxu0
  %v1303 = vadd.f32 %v1284, %v1302
  %1304 = vmatmul.bf16.gmra.mxu0 %v421
  %v1305 = vpop.f32.mrf.mxu0
  %v1306 = vadd.f32 %v1287, %v1305
  %v1307 = vpop.f32.mrf.mxu0
  %v1308 = vadd.f32 %v1289, %v1307
  %1309 = vdwg.mxu0
  %1310 = vmatpush.bf16.msra.mxu0 %v1017
  %1311 = vmatpush.bf16.msra.mxu0 %v1016
  %1312 = vmatpush.bf16.msra.mxu0 %v1015
  %1313 = vmatpush.bf16.msra.mxu0 %v1014
  %1314 = vmatpush.bf16.msra.mxu0 %v1013
  %1315 = vmatpush.bf16.msra.mxu0 %v1012
  %1316 = vmatpush.bf16.msra.mxu0 %v1011
  %1317 = vmatpush.bf16.msra.mxu0 %v1010
  %1318 = vmatmul.bf16.gmra.mxu0 %v406
  %v1319 = vpop.f32.mrf.mxu0
  %v1320 = vadd.f32 %v1301, %v1319
  %v1321 = vpop.f32.mrf.mxu0
  %v1322 = vadd.f32 %v1303, %v1321
  %1323 = vmatmul.bf16.gmra.mxu0 %v422
  %v1324 = vpop.f32.mrf.mxu0
  %v1325 = vadd.f32 %v1306, %v1324
  %v1326 = vpop.f32.mrf.mxu0
  %v1327 = vadd.f32 %v1308, %v1326
  %1328 = vdwg.mxu0
  %1329 = vmatpush.bf16.msra.mxu0 %v1025
  %1330 = vmatpush.bf16.msra.mxu0 %v1024
  %1331 = vmatpush.bf16.msra.mxu0 %v1023
  %1332 = vmatpush.bf16.msra.mxu0 %v1022
  %1333 = vmatpush.bf16.msra.mxu0 %v1021
  %1334 = vmatpush.bf16.msra.mxu0 %v1020
  %1335 = vmatpush.bf16.msra.mxu0 %v1019
  %1336 = vmatpush.bf16.msra.mxu0 %v1018
  %1337 = vmatmul.bf16.gmra.mxu0 %v407
  %v1338 = vpop.f32.mrf.mxu0
  %v1339 = vadd.f32 %v1320, %v1338
  %v1340 = vpop.f32.mrf.mxu0
  %v1341 = vadd.f32 %v1322, %v1340
  %1342 = vmatmul.bf16.gmra.mxu0 %v423
  %v1343 = vpop.f32.mrf.mxu0
  %v1344 = vadd.f32 %v1325, %v1343
  %v1345 = vpop.f32.mrf.mxu0
  %v1346 = vadd.f32 %v1327, %v1345
  %1347 = vdwg.mxu0
  %1348 = vmatpush.bf16.msra.mxu0 %v1033
  %1349 = vmatpush.bf16.msra.mxu0 %v1032
  %1350 = vmatpush.bf16.msra.mxu0 %v1031
  %1351 = vmatpush.bf16.msra.mxu0 %v1030
  %1352 = vmatpush.bf16.msra.mxu0 %v1029
  %1353 = vmatpush.bf16.msra.mxu0 %v1028
  %1354 = vmatpush.bf16.msra.mxu0 %v1027
  %1355 = vmatpush.bf16.msra.mxu0 %v1026
  %1356 = vmatmul.bf16.gmra.mxu0 %v408
  %v1357 = vpop.f32.mrf.mxu0
  %v1358 = vadd.f32 %v1339, %v1357
  %v1359 = vpop.f32.mrf.mxu0
  %v1360 = vadd.f32 %v1341, %v1359
  %1361 = vmatmul.bf16.gmra.mxu0 %v424
  %v1362 = vpop.f32.mrf.mxu0
  %v1363 = vadd.f32 %v1344, %v1362
  %v1364 = vpop.f32.mrf.mxu0
  %v1365 = vadd.f32 %v1346, %v1364
  %1366 = vdwg.mxu0
  %1367 = vmatpush.bf16.msra.mxu0 %v1041
  %1368 = vmatpush.bf16.msra.mxu0 %v1040
  %1369 = vmatpush.bf16.msra.mxu0 %v1039
  %1370 = vmatpush.bf16.msra.mxu0 %v1038
  %1371 = vmatpush.bf16.msra.mxu0 %v1037
  %1372 = vmatpush.bf16.msra.mxu0 %v1036
  %1373 = vmatpush.bf16.msra.mxu0 %v1035
  %1374 = vmatpush.bf16.msra.mxu0 %v1034
  %1375 = vmatmul.bf16.gmra.mxu0 %v409
  %v1376 = vpop.f32.mrf.mxu0
  %v1377 = vadd.f32 %v1358, %v1376
  %v1378 = vpop.f32.mrf.mxu0
  %v1379 = vadd.f32 %v1360, %v1378
  %1380 = vmatmul.bf16.gmra.mxu0 %v425
  %v1381 = vpop.f32.mrf.mxu0
  %v1382 = vadd.f32 %v1363, %v1381
  %v1383 = vpop.f32.mrf.mxu0
  %v1384 = vadd.f32 %v1365, %v1383
  %1385 = vdwg.mxu0
  %1386 = vmatpush.bf16.msra.mxu0 %v1049
  %1387 = vmatpush.bf16.msra.mxu0 %v1048
  %1388 = vmatpush.bf16.msra.mxu0 %v1047
  %1389 = vmatpush.bf16.msra.mxu0 %v1046
  %1390 = vmatpush.bf16.msra.mxu0 %v1045
  %1391 = vmatpush.bf16.msra.mxu0 %v1044
  %1392 = vmatpush.bf16.msra.mxu0 %v1043
  %1393 = vmatpush.bf16.msra.mxu0 %v1042
  %1394 = vmatmul.bf16.gmra.mxu0 %v410
  %v1395 = vpop.f32.mrf.mxu0
  %v1396 = vadd.f32 %v1377, %v1395
  %v1397 = vpop.f32.mrf.mxu0
  %v1398 = vadd.f32 %v1379, %v1397
  %1399 = vmatmul.bf16.gmra.mxu0 %v426
  %v1400 = vpop.f32.mrf.mxu0
  %v1401 = vadd.f32 %v1382, %v1400
  %v1402 = vpop.f32.mrf.mxu0
  %v1403 = vadd.f32 %v1384, %v1402
  %1404 = vdwg.mxu0
  %1405 = vmatpush.bf16.msra.mxu0 %v1057
  %1406 = vmatpush.bf16.msra.mxu0 %v1056
  %1407 = vmatpush.bf16.msra.mxu0 %v1055
  %1408 = vmatpush.bf16.msra.mxu0 %v1054
  %1409 = vmatpush.bf16.msra.mxu0 %v1053
  %1410 = vmatpush.bf16.msra.mxu0 %v1052
  %1411 = vmatpush.bf16.msra.mxu0 %v1051
  %1412 = vmatpush.bf16.msra.mxu0 %v1050
  %1413 = vmatmul.bf16.gmra.mxu0 %v411
  %v1414 = vpop.f32.mrf.mxu0
  %v1415 = vadd.f32 %v1396, %v1414
  %v1416 = vpop.f32.mrf.mxu0
  %v1417 = vadd.f32 %v1398, %v1416
  %1418 = vmatmul.bf16.gmra.mxu0 %v427
  %v1419 = vpop.f32.mrf.mxu0
  %v1420 = vadd.f32 %v1401, %v1419
  %v1421 = vpop.f32.mrf.mxu0
  %v1422 = vadd.f32 %v1403, %v1421
  %1423 = vdwg.mxu0
  %1424 = vmatpush.bf16.msra.mxu0 %v1065
  %1425 = vmatpush.bf16.msra.mxu0 %v1064
  %1426 = vmatpush.bf16.msra.mxu0 %v1063
  %1427 = vmatpush.bf16.msra.mxu0 %v1062
  %1428 = vmatpush.bf16.msra.mxu0 %v1061
  %1429 = vmatpush.bf16.msra.mxu0 %v1060
  %1430 = vmatpush.bf16.msra.mxu0 %v1059
  %1431 = vmatpush.bf16.msra.mxu0 %v1058
  %1432 = vmatmul.bf16.gmra.mxu0 %v412
  %v1433 = vpop.f32.mrf.mxu0
  %v1434 = vadd.f32 %v1415, %v1433
  %v1435 = vpop.f32.mrf.mxu0
  %v1436 = vadd.f32 %v1417, %v1435
  %1437 = vmatmul.bf16.gmra.mxu0 %v428
  %v1438 = vpop.f32.mrf.mxu0
  %v1439 = vadd.f32 %v1420, %v1438
  %v1440 = vpop.f32.mrf.mxu0
  %v1441 = vadd.f32 %v1422, %v1440
  %1442 = vdwg.mxu0
  %1443 = vmatpush.bf16.msra.mxu0 %v1073
  %1444 = vmatpush.bf16.msra.mxu0 %v1072
  %1445 = vmatpush.bf16.msra.mxu0 %v1071
  %1446 = vmatpush.bf16.msra.mxu0 %v1070
  %1447 = vmatpush.bf16.msra.mxu0 %v1069
  %1448 = vmatpush.bf16.msra.mxu0 %v1068
  %1449 = vmatpush.bf16.msra.mxu0 %v1067
  %1450 = vmatpush.bf16.msra.mxu0 %v1066
  %1451 = vmatmul.bf16.gmra.mxu0 %v413
  %v1452 = vpop.f32.mrf.mxu0
  %v1453 = vadd.f32 %v1434, %v1452
  %v1454 = vpop.f32.mrf.mxu0
  %v1455 = vadd.f32 %v1436, %v1454
  %1456 = vmatmul.bf16.gmra.mxu0 %v429
  %v1457 = vpop.f32.mrf.mxu0
  %v1458 = vadd.f32 %v1439, %v1457
  %v1459 = vpop.f32.mrf.mxu0
  %v1460 = vadd.f32 %v1441, %v1459
  %1461 = vdwg.mxu0
  %1462 = vmatpush.bf16.msra.mxu0 %v1081
  %1463 = vmatpush.bf16.msra.mxu0 %v1080
  %1464 = vmatpush.bf16.msra.mxu0 %v1079
  %1465 = vmatpush.bf16.msra.mxu0 %v1078
  %1466 = vmatpush.bf16.msra.mxu0 %v1077
  %1467 = vmatpush.bf16.msra.mxu0 %v1076
  %1468 = vmatpush.bf16.msra.mxu0 %v1075
  %1469 = vmatpush.bf16.msra.mxu0 %v1074
  %1470 = vmatmul.bf16.gmra.mxu0 %v414
  %v1471 = vpop.f32.mrf.mxu0
  %v1472 = vadd.f32 %v1453, %v1471
  %v1473 = vpop.f32.mrf.mxu0
  %v1474 = vadd.f32 %v1455, %v1473
  %1475 = vmatmul.bf16.gmra.mxu0 %v430
  %v1476 = vpop.f32.mrf.mxu0
  %v1477 = vadd.f32 %v1458, %v1476
  %v1478 = vpop.f32.mrf.mxu0
  %v1479 = vadd.f32 %v1460, %v1478
  %1480 = vdwg.mxu0
  %1481 = vmatpush.bf16.msra.mxu0 %v1089
  %1482 = vmatpush.bf16.msra.mxu0 %v1088
  %1483 = vmatpush.bf16.msra.mxu0 %v1087
  %1484 = vmatpush.bf16.msra.mxu0 %v1086
  %1485 = vmatpush.bf16.msra.mxu0 %v1085
  %1486 = vmatpush.bf16.msra.mxu0 %v1084
  %1487 = vmatpush.bf16.msra.mxu0 %v1083
  %1488 = vmatpush.bf16.msra.mxu0 %v1082
  %1489 = vmatmul.bf16.gmra.mxu0 %v415
  %v1490 = vpop.f32.mrf.mxu0
  %v1491 = vadd.f32 %v1472, %v1490
  %v1492 = vpop.f32.mrf.mxu0
  %v1493 = vadd.f32 %v1474, %v1492
  %1494 = vmatmul.bf16.gmra.mxu0 %v431
  %v1495 = vpop.f32.mrf.mxu0
  %v1496 = vadd.f32 %v1477, %v1495
  %v1497 = vpop.f32.mrf.mxu0
  %v1498 = vadd.f32 %v1479, %v1497
  %1499 = vdwg.mxu0
  %1500 = vmatpush.bf16.msra.mxu0 %v1097
  %1501 = vmatpush.bf16.msra.mxu0 %v1096
  %1502 = vmatpush.bf16.msra.mxu0 %v1095
  %1503 = vmatpush.bf16.msra.mxu0 %v1094
  %1504 = vmatpush.bf16.msra.mxu0 %v1093
  %1505 = vmatpush.bf16.msra.mxu0 %v1092
  %1506 = vmatpush.bf16.msra.mxu0 %v1091
  %1507 = vmatpush.bf16.msra.mxu0 %v1090
  %1508 = vmatmul.bf16.gmra.mxu0 %v416
  %v1509 = vpop.f32.mrf.mxu0
  %v1510 = vadd.f32 %v1491, %v1509
  %v1511 = vpop.f32.mrf.mxu0
  %v1512 = vadd.f32 %v1493, %v1511
  %1513 = vmatmul.bf16.gmra.mxu0 %v432
  %v1514 = vpop.f32.mrf.mxu0
  %v1515 = vadd.f32 %v1496, %v1514
  %v1516 = vpop.f32.mrf.mxu0
  %v1517 = vadd.f32 %v1498, %v1516
  %1518 = vdwg.mxu0
  %1519 = vmatpush.bf16.msra.mxu0 %v1105
  %1520 = vmatpush.bf16.msra.mxu0 %v1104
  %1521 = vmatpush.bf16.msra.mxu0 %v1103
  %1522 = vmatpush.bf16.msra.mxu0 %v1102
  %1523 = vmatpush.bf16.msra.mxu0 %v1101
  %1524 = vmatpush.bf16.msra.mxu0 %v1100
  %1525 = vmatpush.bf16.msra.mxu0 %v1099
  %1526 = vmatpush.bf16.msra.mxu0 %v1098
  %1527 = vmatmul.bf16.gmra.mxu0 %v417
  %v1528 = vpop.f32.mrf.mxu0
  %v1529 = vadd.f32 %v1510, %v1528
  %v1530 = vpop.f32.mrf.mxu0
  %v1531 = vadd.f32 %v1512, %v1530
  %1532 = vmatmul.bf16.gmra.mxu0 %v433
  %v1533 = vpop.f32.mrf.mxu0
  %v1534 = vadd.f32 %v1515, %v1533
  %v1535 = vpop.f32.mrf.mxu0
  %v1536 = vadd.f32 %v1517, %v1535
  %1537 = vdwg.mxu0
  %v1538 = vxor.u32 %v1529, 2147483648
  %v1539 = vxor.u32 %v1531, 2147483648
  %v1540 = vxor.u32 %v1534, 2147483648
  %v1541 = vxor.u32 %v1536, 2147483648
  %v1542 = vmul.f32 %v1538, 1.442695
  %v1543 = vpow.pop %v1542
  %v1544 = vmul.f32 %v1539, 1.442695
  %v1545 = vpow.pop %v1544
  %v1546 = vmul.f32 %v1540, 1.442695
  %v1547 = vpow.pop %v1546
  %v1548 = vmul.f32 %v1541, 1.442695
  %v1549 = vpow.pop %v1548
  %v1550 = vadd.f32 %v1543, 1.0
  %v1551 = vadd.f32 %v1545, 1.0
  %v1552 = vadd.f32 %v1547, 1.0
  %v1553 = vadd.f32 %v1549, 1.0
  %v1554 = vrcp.pop %v1550
  %v1555 = vmul.f32 %v1550, %v1554
  %v1556 = vsub.f32 1.0, %v1555
  %v1557 = vmul.f32 %v1554, %v1556
  %v1558 = vadd.f32 %v1554, %v1557
  %vm1559 = vweird.f32 %v1550
  %vm1560 = vweird.f32 %v1554
  %vm1561 = vmor %vm1559, %vm1560
  %v1562 = vsel %vm1561, %v1554, %v1558
  %v1563 = vand.u32 2147483647, %v1550
  %vm1564 = vcmp.eq.f32.partialorder %v1563, 8.507059e+37
  %v1565 = vand.u32 %v1550, 2147483648
  %v1566 = vor.u32 1.1754944e-38, %v1565
  %v1567 = vsel %vm1564, %v1566, %v1562
  %v1568 = vmul.f32 1.0, %v1567
  %v1569 = vrcp.pop %v1551
  %v1570 = vmul.f32 %v1551, %v1569
  %v1571 = vsub.f32 1.0, %v1570
  %v1572 = vmul.f32 %v1569, %v1571
  %v1573 = vadd.f32 %v1569, %v1572
  %vm1574 = vweird.f32 %v1551
  %vm1575 = vweird.f32 %v1569
  %vm1576 = vmor %vm1574, %vm1575
  %v1577 = vsel %vm1576, %v1569, %v1573
  %v1578 = vand.u32 2147483647, %v1551
  %vm1579 = vcmp.eq.f32.partialorder %v1578, 8.507059e+37
  %v1580 = vand.u32 %v1551, 2147483648
  %v1581 = vor.u32 1.1754944e-38, %v1580
  %v1582 = vsel %vm1579, %v1581, %v1577
  %v1583 = vmul.f32 1.0, %v1582
  %v1584 = vrcp.pop %v1552
  %v1585 = vmul.f32 %v1552, %v1584
  %v1586 = vsub.f32 1.0, %v1585
  %v1587 = vmul.f32 %v1584, %v1586
  %v1588 = vadd.f32 %v1584, %v1587
  %vm1589 = vweird.f32 %v1552
  %vm1590 = vweird.f32 %v1584
  %vm1591 = vmor %vm1589, %vm1590
  %v1592 = vsel %vm1591, %v1584, %v1588
  %v1593 = vand.u32 2147483647, %v1552
  %vm1594 = vcmp.eq.f32.partialorder %v1593, 8.507059e+37
  %v1595 = vand.u32 %v1552, 2147483648
  %v1596 = vor.u32 1.1754944e-38, %v1595
  %v1597 = vsel %vm1594, %v1596, %v1592
  %v1598 = vmul.f32 1.0, %v1597
  %v1599 = vrcp.pop %v1553
  %v1600 = vmul.f32 %v1553, %v1599
  %v1601 = vsub.f32 1.0, %v1600
  %v1602 = vmul.f32 %v1599, %v1601
  %v1603 = vadd.f32 %v1599, %v1602
  %vm1604 = vweird.f32 %v1553
  %vm1605 = vweird.f32 %v1599
  %vm1606 = vmor %vm1604, %vm1605
  %v1607 = vsel %vm1606, %v1599, %v1603
  %v1608 = vand.u32 2147483647, %v1553
  %vm1609 = vcmp.eq.f32.partialorder %v1608, 8.507059e+37
  %v1610 = vand.u32 %v1553, 2147483648
  %v1611 = vor.u32 1.1754944e-38, %v1610
  %v1612 = vsel %vm1609, %v1611, %v1607
  %v1613 = vmul.f32 1.0, %v1612
  %1614 = vst [vmem:[%s3] sm:$0xff] %v1568
  %1615 = vst [vmem:[%s3 + $0x8] sm:$0xff] %v1583
  %1616 = vst [vmem:[%s3 + $0x10] sm:$0xff] %v1598
  %1617 = vst [vmem:[%s3 + $0x18] sm:$0xff] %v1613
  // Predicated region
  $region14: #{discriminator_forward.9} parent=0 // pred_check
    _
  $region15: #{discriminator_forward.9} parent=0 // pred_check_branch
    %1619 = sbr.rel (0) target = $region17
  $region16: #{discriminator_forward.9} parent=0 // pred_region
    _
  $region17: #{discriminator_forward.9} parent=0 // pred_fallthru
    _
  // Predicated region
  $region18: #{discriminator_forward.9} parent=0 // pred_check
    _
  $region19: #{discriminator_forward.9} parent=0 // pred_check_branch
    %1621 = sbr.rel (0) target = $region21
  $region20: #{discriminator_forward.9} parent=0 // pred_region
    _
  $region21: #{discriminator_forward.9} parent=0 // pred_fallthru
    _

</llo_original>
